<compile_context>
chip_gen: v7x
topology: tpu7x:2x2x1
jax: 0.10.0
libtpu: 0.0.40
codegen_flags: <defaults>
</compile_context>

<pallas_src>
import functools

import jax
import jax.numpy as jnp
from jax.experimental import pallas as pl
from jax.experimental.pallas import tpu as pltpu


# ---------------------------------------------------------------------------
# small helpers
# ---------------------------------------------------------------------------
def _apply_act(y, activation):
    if activation == "relu":
        return jnp.maximum(y, 0.0)
    if activation == "tanh":
        return jnp.tanh(y)
    return y


def _num_tensorcores():
    """Best-effort TensorCore count; safe fallback of 1 (no grid split)."""
    try:
        info = pltpu.get_tpu_info()
        for attr in ("num_tensorcores", "tensorcore_count", "num_cores",
                     "cores_per_chip", "num_cores_per_chip", "core_count"):
            v = getattr(info, attr, None)
            if isinstance(v, int) and v > 0:
                return v
    except Exception:
        pass
    try:
        kind = jax.devices()[0].device_kind.lower()
        if "v4" in kind or "v7" in kind:   # megacore / 2-TC chips
            return 2
    except Exception:
        pass
    return 1


def _depth_to_space(y, n, h, w, cout):
    # (M, 4*Cout) phase-major columns -> (N, 2H, 2W, Cout) NHWC
    y = y.reshape(n, h, w, 2, 2, cout)
    return jnp.transpose(y, (0, 1, 3, 2, 4, 5)).reshape(n, 2 * h, 2 * w, cout)


def _make_slabs(x):
    # x NHWC (already bf16) -> 9 shifted slabs of the zero-padded input,
    # slab s = a*3 + b is xpad shifted by (a, b); each slab is (M, Cin).
    n, h, w, cin = x.shape
    m = n * h * w
    xpad = jnp.pad(x, ((0, 0), (1, 1), (1, 1), (0, 0)))
    return [xpad[:, a:a + h, b:b + w, :].reshape(m, cin)
            for a in range(3) for b in range(3)]


# ---------------------------------------------------------------------------
# Kernel 1: fused Linear + bias + ReLU (single shot, whole K)
# ---------------------------------------------------------------------------
def _linear_kernel(z_ref, w_ref, b_ref, o_ref):
    y = jnp.dot(z_ref[...], w_ref[...], preferred_element_type=jnp.float32)
    o_ref[...] = jnp.maximum(y + b_ref[...], 0.0).astype(o_ref.dtype)


def linear_relu(z, w, b, split):
    # z: (N, K) bf16, w: (K, F) bf16, b: (1, F) f32  ->  (N, F) bf16
    n, k = z.shape
    f = w.shape[1]
    split = split if (f % (128 * split) == 0) else 1
    fb = f // split
    return pl.pallas_call(
        _linear_kernel,
        out_shape=jax.ShapeDtypeStruct((n, f), jnp.bfloat16),
        grid_spec=pltpu.PrefetchScalarGridSpec(
            num_scalar_prefetch=0,
            grid=(split,),
            in_specs=[
                pl.BlockSpec((n, k), lambda j: (0, 0)),
                pl.BlockSpec((k, fb), lambda j: (0, j)),
                pl.BlockSpec((1, fb), lambda j: (0, j)),
            ],
            out_specs=pl.BlockSpec((n, fb), lambda j: (0, j)),
        ),
        compiler_params=pltpu.CompilerParams(dimension_semantics=("parallel",)),
    )(z, w, b)


# ---------------------------------------------------------------------------
# Kernel 2: polyphase ConvTranspose(4,2,1), 16-dot form (Cout=128).
# Each phase result is written to a static, 128-lane-aligned output slice.
# ---------------------------------------------------------------------------
def _convT_phases_kernel(a9_ref, w_ref, b_ref, o_ref):
    # a9_ref: (9, Mb, Cin) bf16 -- 3x3 shifted slabs of the padded input
    # w_ref : (16, Cin, Cout) bf16 -- dense (phase, tap) matrices
    # b_ref : (1, Cout) f32
    # o_ref : (Mb, 4*Cout) bf16 -- columns are phase-major [p*Cout + c]
    cout = b_ref.shape[-1]
    for py in range(2):
        for px in range(2):
            p = 2 * py + px
            acc = None
            for dy in range(2):
                for dx in range(2):
                    s = (py + dy) * 3 + (px + dx)
                    t = 2 * dy + dx
                    d = jnp.dot(a9_ref[s], w_ref[p * 4 + t],
                                preferred_element_type=jnp.float32)
                    acc = d if acc is None else acc + d
            y = jnp.maximum(acc + b_ref[...], 0.0)
            o_ref[:, p * cout:(p + 1) * cout] = y.astype(o_ref.dtype)


def conv_transpose_16dot(x, wp, b, cout, split):
    # x: (N, H, W, Cin) bf16 -> (N, 2H, 2W, Cout) bf16
    n, h, w, cin = x.shape
    m = n * h * w
    a9 = jnp.stack(_make_slabs(x), axis=0)                      # (9, M, Cin)
    split = split if (m % split == 0 and (m // split) % 8 == 0) else 1
    mb = m // split
    y = pl.pallas_call(
        _convT_phases_kernel,
        out_shape=jax.ShapeDtypeStruct((m, 4 * cout), jnp.bfloat16),
        grid_spec=pltpu.PrefetchScalarGridSpec(
            num_scalar_prefetch=0,
            grid=(split,),
            in_specs=[
                pl.BlockSpec((9, mb, cin), lambda j: (0, j, 0)),
                pl.BlockSpec((16, cin, cout), lambda j: (0, 0, 0)),
                pl.BlockSpec((1, cout), lambda j: (0, 0)),
            ],
            out_specs=pl.BlockSpec((mb, 4 * cout), lambda j: (j, 0)),
        ),
        compiler_params=pltpu.CompilerParams(dimension_semantics=("parallel",)),
    )(a9, wp, b)
    return _depth_to_space(y, n, h, w, cout)


# ---------------------------------------------------------------------------
# Kernel 3: slab-major zero-stuffed ConvTranspose(4,2,1) (Cout=64):
# 9 fully-column-utilized dots accumulated, 256-lane dense output.
# ---------------------------------------------------------------------------
def _convT_slab_kernel(a9_ref, w_ref, b_ref, o_ref, *, activation):
    # a9_ref: (9, Mb, Cin) bf16; w_ref: (9, Cin, 4*Cout) bf16 (zero-stuffed)
    # b_ref: (1, 4*Cout) f32; o_ref: (Mb, 4*Cout) bf16, columns phase-major
    acc = jnp.dot(a9_ref[0], w_ref[0], preferred_element_type=jnp.float32)
    for s in range(1, 9):
        acc = acc + jnp.dot(a9_ref[s], w_ref[s],
                            preferred_element_type=jnp.float32)
    y = acc + b_ref[...]
    o_ref[...] = _apply_act(y, activation).astype(o_ref.dtype)


def conv_transpose_slab(x, ws, b, cout, activation, split):
    n, h, w, cin = x.shape
    m = n * h * w
    a9 = jnp.stack(_make_slabs(x), axis=0)                      # (9, M, Cin)
    split = split if (m % split == 0 and (m // split) % 8 == 0) else 1
    mb = m // split
    kern = functools.partial(_convT_slab_kernel, activation=activation)
    y = pl.pallas_call(
        kern,
        out_shape=jax.ShapeDtypeStruct((m, 4 * cout), jnp.bfloat16),
        grid_spec=pltpu.PrefetchScalarGridSpec(
            num_scalar_prefetch=0,
            grid=(split,),
            in_specs=[
                pl.BlockSpec((9, mb, cin), lambda j: (0, j, 0)),
                pl.BlockSpec((9, cin, 4 * cout), lambda j: (0, 0, 0)),
                pl.BlockSpec((1, 4 * cout), lambda j: (0, 0)),
            ],
            out_specs=pl.BlockSpec((mb, 4 * cout), lambda j: (j, 0)),
        ),
        compiler_params=pltpu.CompilerParams(dimension_semantics=("parallel",)),
    )(a9, ws, b)
    return _depth_to_space(y, n, h, w, cout)


# ---------------------------------------------------------------------------
# Kernel 4: slab-major transposed orientation for tiny Cout (=1):
# 9 dots of (4*Cout, Cin)@(Cin, Mb); spatial positions stay lane-dense.
# ---------------------------------------------------------------------------
def _convT_slab_T_kernel(a9t_ref, w_ref, b_ref, o_ref, *, activation):
    # a9t_ref: (9, Cin, Mb) bf16; w_ref: (9, 4*Cout, Cin) bf16 (zero-stuffed)
    # b_ref: (4*Cout, 1) f32; o_ref: (4*Cout, Mb) f32, rows phase-major
    acc = jnp.dot(w_ref[0], a9t_ref[0], preferred_element_type=jnp.float32)
    for s in range(1, 9):
        acc = acc + jnp.dot(w_ref[s], a9t_ref[s],
                            preferred_element_type=jnp.float32)
    y = acc + b_ref[...]
    o_ref[...] = _apply_act(y, activation).astype(o_ref.dtype)


def conv_transpose_small_cout(x, wst, b, cout, split):
    # x: (N, H, W, Cin) bf16 -> (N, 2H, 2W, Cout) f32
    n, h, w, cin = x.shape
    m = n * h * w
    # one channels-first transpose instead of 9 per-slab transposes
    xc = jnp.transpose(x, (3, 0, 1, 2))                         # (Cin, N, H, W)
    xp = jnp.pad(xc, ((0, 0), (0, 0), (1, 1), (1, 1)))
    a9t = jnp.stack([xp[:, :, a:a + h, b:b + w].reshape(cin, m)
                     for a in range(3) for b in range(3)], axis=0)  # (9,Cin,M)
    split = split if (m % split == 0 and (m // split) % 128 == 0) else 1
    mb = m // split
    kern = functools.partial(_convT_slab_T_kernel, activation="tanh")
    y = pl.pallas_call(
        kern,
        out_shape=jax.ShapeDtypeStruct((4 * cout, m), jnp.float32),
        grid_spec=pltpu.PrefetchScalarGridSpec(
            num_scalar_prefetch=0,
            grid=(split,),
            in_specs=[
                pl.BlockSpec((9, cin, mb), lambda j: (0, 0, j)),
                pl.BlockSpec((9, 4 * cout, cin), lambda j: (0, 0, 0)),
                pl.BlockSpec((4 * cout, 1), lambda j: (0, 0)),
            ],
            out_specs=pl.BlockSpec((4 * cout, mb), lambda j: (0, j)),
        ),
        compiler_params=pltpu.CompilerParams(dimension_semantics=("parallel",)),
    )(a9t, wst, b)
    # rows are [p*Cout + c]; depth-to-space back to NHWC
    y = y.reshape(2, 2, cout, n, h, w)
    return jnp.transpose(y, (3, 4, 0, 5, 1, 2)).reshape(n, 2 * h, 2 * w, cout)


# ---------------------------------------------------------------------------
# One-time parameter preprocessing (outside the jitted forward)
# ---------------------------------------------------------------------------
def _prep_convT_weight_16(w):
    # w: (Cin, Cout, 4, 4) PyTorch ConvTranspose2d layout -> (16, Cin, Cout)
    mats = []
    for py in range(2):
        for px in range(2):
            for dy in range(2):
                for dx in range(2):
                    mats.append(w[:, :, 3 - 2 * dy - py, 3 - 2 * dx - px])
    return jnp.stack(mats, axis=0).astype(jnp.bfloat16)


def _prep_convT_weight_slab(w):
    # w: (Cin, Cout, 4, 4) -> (9, Cin, 4*Cout), zero-stuffed slab-major
    cin, cout = w.shape[0], w.shape[1]
    ws = jnp.zeros((9, cin, 4 * cout), jnp.float32)
    for py in range(2):
        for px in range(2):
            p = 2 * py + px
            for dy in range(2):
                for dx in range(2):
                    s = (py + dy) * 3 + (px + dx)
                    ws = ws.at[s, :, p * cout:(p + 1) * cout].set(
                        w[:, :, 3 - 2 * dy - py, 3 - 2 * dx - px])
    return ws.astype(jnp.bfloat16)


def prepare_params(params):
    wl = params["w_lin"].reshape(256, 4, 4, 128)                 # (c, h, w, in)
    wl = jnp.transpose(wl, (1, 2, 0, 3)).reshape(4096, 128)      # rows (h, w, c)
    bl = params["b_lin"].reshape(256, 4, 4)
    bl = jnp.transpose(bl, (1, 2, 0)).reshape(1, 4096)
    w3_slab = _prep_convT_weight_slab(params["w3"])              # (9, 64, 4)
    return {
        "wl": wl.T.astype(jnp.bfloat16),                         # (128, 4096)
        "bl": bl.astype(jnp.float32),
        "w1": _prep_convT_weight_16(params["w1"]),               # (16, 256, 128)
        "b1": params["b1"].reshape(1, -1).astype(jnp.float32),   # (1, 128)
        "w2": _prep_convT_weight_slab(params["w2"]),             # (9, 128, 256)
        "b2": jnp.tile(params["b2"], 4).reshape(1, -1).astype(jnp.float32),
        "w3": jnp.transpose(w3_slab, (0, 2, 1)),                 # (9, 4, 64)
        "b3": jnp.tile(params["b3"], 4).reshape(4, 1).astype(jnp.float32),
    }


# ---------------------------------------------------------------------------
# Generator forward (matches the PyTorch module semantics)
# ---------------------------------------------------------------------------
def generator_forward(p, z, split=1):
    n = z.shape[0]
    h = linear_relu(z.astype(jnp.bfloat16), p["wl"], p["bl"], split)   # (N,4096) bf16
    x = h.reshape(n, 4, 4, 256)                                        # NHWC
    x = conv_transpose_16dot(x, p["w1"], p["b1"], 128, split)          # (N,8,8,128)
    x = conv_transpose_slab(x, p["w2"], p["b2"], 64, "relu", split)    # (N,16,16,64)
    x = conv_transpose_small_cout(x, p["w3"], p["b3"], 1, split)       # (N,32,32,1) f32
    return jnp.transpose(x, (0, 3, 1, 2))                              # NCHW


# ---------------------------------------------------------------------------
# Pure-JAX f32 reference (original parameter layout) for the sanity check
# ---------------------------------------------------------------------------
def _convT_ref(x, w, b):
    rhs = jnp.transpose(w, (1, 0, 2, 3))[:, :, ::-1, ::-1]       # (Cout, Cin, 4, 4)
    y = jax.lax.conv_general_dilated(
        x, rhs, window_strides=(1, 1), padding=[(2, 2), (2, 2)],
        lhs_dilation=(2, 2), dimension_numbers=("NCHW", "OIHW", "NCHW"),
        precision=jax.lax.Precision.HIGHEST)
    return y + b[None, :, None, None]


def generator_ref(params, inp):
    x = jnp.dot(inp, params["w_lin"].T,
                precision=jax.lax.Precision.HIGHEST) + params["b_lin"]
    x = jnp.maximum(x, 0.0).reshape(inp.shape[0], 256, 4, 4)
    x = jnp.maximum(_convT_ref(x, params["w1"], params["b1"]), 0.0)
    x = jnp.maximum(_convT_ref(x, params["w2"], params["b2"]), 0.0)
    return jnp.tanh(_convT_ref(x, params["w3"], params["b3"]))


if __name__ == "__main__":
    key = jax.random.PRNGKey(0)
    ks = jax.random.split(key, 9)
    s = 0.05
    params = {
        "w_lin": jax.random.normal(ks[0], (4096, 128), jnp.float32) * s,  # (out, in)
        "b_lin": jax.random.normal(ks[1], (4096,), jnp.float32) * s,
        "w1": jax.random.normal(ks[2], (256, 128, 4, 4), jnp.float32) * s,
        "b1": jax.random.normal(ks[3], (128,), jnp.float32) * s,
        "w2": jax.random.normal(ks[4], (128, 64, 4, 4), jnp.float32) * s,
        "b2": jax.random.normal(ks[5], (64,), jnp.float32) * s,
        "w3": jax.random.normal(ks[6], (64, 1, 4, 4), jnp.float32) * s,
        "b3": jax.random.normal(ks[7], (1,), jnp.float32) * s,
    }
    x = jax.random.normal(ks[8], (2, 128), jnp.float32)   # batch=2, input_dim=128

    split = 2 if _num_tensorcores() >= 2 else 1           # 2-way grid only on 2-TC chips
    pparams = prepare_params(params)                      # weight transforms outside jit
    fwd = jax.jit(functools.partial(generator_forward, split=split))
    out = jax.block_until_ready(fwd(pparams, x))
    assert out.shape == (2, 1, 32, 32), out.shape

    ref = jax.block_until_ready(jax.jit(generator_ref)(params, x))
    max_err = float(jnp.max(jnp.abs(out - ref)))
    # bf16 matmul operands / intermediates with f32 accumulation -> bf16 tolerance
    if not jnp.allclose(out, ref, atol=2e-2, rtol=2e-2):
        raise RuntimeError(f"mismatch vs reference, max abs err={max_err}")

    print("KERNEL_OK")
</pallas_src>

<mosaic_0001>
module attributes {stable_mosaic.version = 11 : i64} {
  func.func @_linear_kernel(%arg0: i32, %arg1: memref<2x128xbf16, #tpu.memory_space<vmem>>, %arg2: memref<128x4096xbf16, #tpu.memory_space<vmem>>, %arg3: memref<1x4096xf32, #tpu.memory_space<vmem>>, %arg4: memref<2x4096xbf16, #tpu.memory_space<vmem>>) attributes {dimension_semantics = [#tpu.dimension_semantics<parallel>], iteration_bounds = array<i64: 1>, scalar_prefetch = 0 : i64, scratch_operands = 0 : i64, tpu.core_type = #tpu.core_type<tc>, window_params = [{pipeline_mode = #tpu.pipeline_mode<synchronous>, transform_indices = @transform_0, window_bounds = array<i64: 2, 128>}, {transform_indices = @transform_1, window_bounds = array<i64: 128, 4096>}, {transform_indices = @transform_2, window_bounds = array<i64: 1, 4096>}, {transform_indices = @transform_3, window_bounds = array<i64: 2, 4096>}]} {
    %c0 = arith.constant 0 : index
    %c0_0 = arith.constant 0 : index
    %0 = vector.load %arg1[%c0, %c0_0] : memref<2x128xbf16, #tpu.memory_space<vmem>>, vector<2x128xbf16>
    %c0_1 = arith.constant 0 : index
    %c0_2 = arith.constant 0 : index
    %1 = vector.load %arg2[%c0_1, %c0_2] : memref<128x4096xbf16, #tpu.memory_space<vmem>>, vector<128x4096xbf16>
    %cst = arith.constant dense<0.000000e+00> : vector<2x4096xf32>
    %2 = tpu.matmul %0, %1, %cst {dimension_numbers = #tpu.dot_dimension_numbers<[1], [0], [0], [1], [0, 0, 1, 1], [], []>} : vector<2x128xbf16>, vector<128x4096xbf16>, vector<2x4096xf32> -> vector<2x4096xf32>
    %c0_3 = arith.constant 0 : index
    %c0_4 = arith.constant 0 : index
    %3 = vector.load %arg3[%c0_3, %c0_4] : memref<1x4096xf32, #tpu.memory_space<vmem>>, vector<1x4096xf32>
    %4 = vector.broadcast %3 : vector<1x4096xf32> to vector<2x4096xf32>
    %5 = arith.addf %2, %4 : vector<2x4096xf32>
    %cst_5 = arith.constant 0.000000e+00 : f32
    %6 = vector.broadcast %cst_5 : f32 to vector<2x4096xf32>
    %7 = arith.maximumf %5, %6 : vector<2x4096xf32>
    %8 = arith.truncf %7 : vector<2x4096xf32> to vector<2x4096xbf16>
    %c0_6 = arith.constant 0 : index
    %c0_7 = arith.constant 0 : index
    %9 = vector.load %arg4[%c0_6, %c0_7] : memref<2x4096xbf16, #tpu.memory_space<vmem>>, vector<2x4096xbf16>
    tpu.vector_store %arg4[%c0_6, %c0_7], %8 {strides = array<i32>} : memref<2x4096xbf16, #tpu.memory_space<vmem>>, vector<2x4096xbf16>,
    return
  }
  func.func @transform_0(%arg0: i32) -> (i32, i32) {
    %c0_i32 = arith.constant 0 : i32
    %c0_i32_0 = arith.constant 0 : i32
    %c0_i32_1 = arith.constant 0 : i32
    return %c0_i32, %c0_i32_0 : i32, i32
  }
  func.func @transform_1(%arg0: i32) -> (i32, i32) {
    %c0_i32 = arith.constant 0 : i32
    %c0_i32_0 = arith.constant 0 : i32
    return %c0_i32, %arg0 : i32, i32
  }
  func.func @transform_2(%arg0: i32) -> (i32, i32) {
    %c0_i32 = arith.constant 0 : i32
    %c0_i32_0 = arith.constant 0 : i32
    return %c0_i32, %arg0 : i32, i32
  }
  func.func @transform_3(%arg0: i32) -> (i32, i32) {
    %c0_i32 = arith.constant 0 : i32
    %c0_i32_0 = arith.constant 0 : i32
    return %c0_i32, %arg0 : i32, i32
  }
}

module attributes {stable_mosaic.version = 11 : i64} {
  func.func @_convT_phases_kernel(%arg0: i32, %arg1: memref<9x32x256xbf16, #tpu.memory_space<vmem>>, %arg2: memref<16x256x128xbf16, #tpu.memory_space<vmem>>, %arg3: memref<1x128xf32, #tpu.memory_space<vmem>>, %arg4: memref<32x512xbf16, #tpu.memory_space<vmem>>) attributes {dimension_semantics = [#tpu.dimension_semantics<parallel>], iteration_bounds = array<i64: 1>, scalar_prefetch = 0 : i64, scratch_operands = 0 : i64, tpu.core_type = #tpu.core_type<tc>, window_params = [{transform_indices = @transform_0, window_bounds = array<i64: 9, 32, 256>}, {pipeline_mode = #tpu.pipeline_mode<synchronous>, transform_indices = @transform_1, window_bounds = array<i64: 16, 256, 128>}, {pipeline_mode = #tpu.pipeline_mode<synchronous>, transform_indices = @transform_2, window_bounds = array<i64: 1, 128>}, {transform_indices = @transform_3, window_bounds = array<i64: 32, 512>}]} {
    %c0 = arith.constant 0 : index
    %c0_0 = arith.constant 0 : index
    %c0_1 = arith.constant 0 : index
    %0 = vector.load %arg1[%c0, %c0_0, %c0_1] : memref<9x32x256xbf16, #tpu.memory_space<vmem>>, vector<1x32x256xbf16>
    %1 = vector.shape_cast %0 : vector<1x32x256xbf16> to vector<32x256xbf16>
    %c0_2 = arith.constant 0 : index
    %c0_3 = arith.constant 0 : index
    %c0_4 = arith.constant 0 : index
    %2 = vector.load %arg2[%c0_2, %c0_3, %c0_4] : memref<16x256x128xbf16, #tpu.memory_space<vmem>>, vector<1x256x128xbf16>
    %3 = vector.shape_cast %2 : vector<1x256x128xbf16> to vector<256x128xbf16>
    %cst = arith.constant dense<0.000000e+00> : vector<32x128xf32>
    %4 = tpu.matmul %1, %3, %cst {dimension_numbers = #tpu.dot_dimension_numbers<[1], [0], [0], [1], [0, 0, 1, 1], [], []>} : vector<32x256xbf16>, vector<256x128xbf16>, vector<32x128xf32> -> vector<32x128xf32>
    %c1 = arith.constant 1 : index
    %c0_5 = arith.constant 0 : index
    %c0_6 = arith.constant 0 : index
    %5 = vector.load %arg1[%c1, %c0_5, %c0_6] : memref<9x32x256xbf16, #tpu.memory_space<vmem>>, vector<1x32x256xbf16>
    %6 = vector.shape_cast %5 : vector<1x32x256xbf16> to vector<32x256xbf16>
    %c1_7 = arith.constant 1 : index
    %c0_8 = arith.constant 0 : index
    %c0_9 = arith.constant 0 : index
    %7 = vector.load %arg2[%c1_7, %c0_8, %c0_9] : memref<16x256x128xbf16, #tpu.memory_space<vmem>>, vector<1x256x128xbf16>
    %8 = vector.shape_cast %7 : vector<1x256x128xbf16> to vector<256x128xbf16>
    %cst_10 = arith.constant dense<0.000000e+00> : vector<32x128xf32>
    %9 = tpu.matmul %6, %8, %cst_10 {dimension_numbers = #tpu.dot_dimension_numbers<[1], [0], [0], [1], [0, 0, 1, 1], [], []>} : vector<32x256xbf16>, vector<256x128xbf16>, vector<32x128xf32> -> vector<32x128xf32>
    %10 = arith.addf %4, %9 : vector<32x128xf32>
    %c3 = arith.constant 3 : index
    %c0_11 = arith.constant 0 : index
    %c0_12 = arith.constant 0 : index
    %11 = vector.load %arg1[%c3, %c0_11, %c0_12] : memref<9x32x256xbf16, #tpu.memory_space<vmem>>, vector<1x32x256xbf16>
    %12 = vector.shape_cast %11 : vector<1x32x256xbf16> to vector<32x256xbf16>
    %c2 = arith.constant 2 : index
    %c0_13 = arith.constant 0 : index
    %c0_14 = arith.constant 0 : index
    %13 = vector.load %arg2[%c2, %c0_13, %c0_14] : memref<16x256x128xbf16, #tpu.memory_space<vmem>>, vector<1x256x128xbf16>
    %14 = vector.shape_cast %13 : vector<1x256x128xbf16> to vector<256x128xbf16>
    %cst_15 = arith.constant dense<0.000000e+00> : vector<32x128xf32>
    %15 = tpu.matmul %12, %14, %cst_15 {dimension_numbers = #tpu.dot_dimension_numbers<[1], [0], [0], [1], [0, 0, 1, 1], [], []>} : vector<32x256xbf16>, vector<256x128xbf16>, vector<32x128xf32> -> vector<32x128xf32>
    %16 = arith.addf %10, %15 : vector<32x128xf32>
    %c4 = arith.constant 4 : index
    %c0_16 = arith.constant 0 : index
    %c0_17 = arith.constant 0 : index
    %17 = vector.load %arg1[%c4, %c0_16, %c0_17] : memref<9x32x256xbf16, #tpu.memory_space<vmem>>, vector<1x32x256xbf16>
    %18 = vector.shape_cast %17 : vector<1x32x256xbf16> to vector<32x256xbf16>
    %c3_18 = arith.constant 3 : index
    %c0_19 = arith.constant 0 : index
    %c0_20 = arith.constant 0 : index
    %19 = vector.load %arg2[%c3_18, %c0_19, %c0_20] : memref<16x256x128xbf16, #tpu.memory_space<vmem>>, vector<1x256x128xbf16>
    %20 = vector.shape_cast %19 : vector<1x256x128xbf16> to vector<256x128xbf16>
    %cst_21 = arith.constant dense<0.000000e+00> : vector<32x128xf32>
    %21 = tpu.matmul %18, %20, %cst_21 {dimension_numbers = #tpu.dot_dimension_numbers<[1], [0], [0], [1], [0, 0, 1, 1], [], []>} : vector<32x256xbf16>, vector<256x128xbf16>, vector<32x128xf32> -> vector<32x128xf32>
    %22 = arith.addf %16, %21 : vector<32x128xf32>
    %c0_22 = arith.constant 0 : index
    %c0_23 = arith.constant 0 : index
    %23 = vector.load %arg3[%c0_22, %c0_23] : memref<1x128xf32, #tpu.memory_space<vmem>>, vector<1x128xf32>
    %24 = vector.broadcast %23 : vector<1x128xf32> to vector<32x128xf32>
    %25 = arith.addf %22, %24 : vector<32x128xf32>
    %cst_24 = arith.constant 0.000000e+00 : f32
    %26 = vector.broadcast %cst_24 : f32 to vector<32x128xf32>
    %27 = arith.maximumf %25, %26 : vector<32x128xf32>
    %28 = arith.truncf %27 : vector<32x128xf32> to vector<32x128xbf16>
    %c0_25 = arith.constant 0 : index
    %c0_26 = arith.constant 0 : index
    %29 = vector.load %arg4[%c0_25, %c0_26] : memref<32x512xbf16, #tpu.memory_space<vmem>>, vector<32x128xbf16>
    tpu.vector_store %arg4[%c0_25, %c0_26], %28 {strides = array<i32>} : memref<32x512xbf16, #tpu.memory_space<vmem>>, vector<32x128xbf16>,
    %c1_27 = arith.constant 1 : index
    %c0_28 = arith.constant 0 : index
    %c0_29 = arith.constant 0 : index
    %30 = vector.load %arg1[%c1_27, %c0_28, %c0_29] : memref<9x32x256xbf16, #tpu.memory_space<vmem>>, vector<1x32x256xbf16>
    %31 = vector.shape_cast %30 : vector<1x32x256xbf16> to vector<32x256xbf16>
    %c4_30 = arith.constant 4 : index
    %c0_31 = arith.constant 0 : index
    %c0_32 = arith.constant 0 : index
    %32 = vector.load %arg2[%c4_30, %c0_31, %c0_32] : memref<16x256x128xbf16, #tpu.memory_space<vmem>>, vector<1x256x128xbf16>
    %33 = vector.shape_cast %32 : vector<1x256x128xbf16> to vector<256x128xbf16>
    %cst_33 = arith.constant dense<0.000000e+00> : vector<32x128xf32>
    %34 = tpu.matmul %31, %33, %cst_33 {dimension_numbers = #tpu.dot_dimension_numbers<[1], [0], [0], [1], [0, 0, 1, 1], [], []>} : vector<32x256xbf16>, vector<256x128xbf16>, vector<32x128xf32> -> vector<32x128xf32>
    %c2_34 = arith.constant 2 : index
    %c0_35 = arith.constant 0 : index
    %c0_36 = arith.constant 0 : index
    %35 = vector.load %arg1[%c2_34, %c0_35, %c0_36] : memref<9x32x256xbf16, #tpu.memory_space<vmem>>, vector<1x32x256xbf16>
    %36 = vector.shape_cast %35 : vector<1x32x256xbf16> to vector<32x256xbf16>
    %c5 = arith.constant 5 : index
    %c0_37 = arith.constant 0 : index
    %c0_38 = arith.constant 0 : index
    %37 = vector.load %arg2[%c5, %c0_37, %c0_38] : memref<16x256x128xbf16, #tpu.memory_space<vmem>>, vector<1x256x128xbf16>
    %38 = vector.shape_cast %37 : vector<1x256x128xbf16> to vector<256x128xbf16>
    %cst_39 = arith.constant dense<0.000000e+00> : vector<32x128xf32>
    %39 = tpu.matmul %36, %38, %cst_39 {dimension_numbers = #tpu.dot_dimension_numbers<[1], [0], [0], [1], [0, 0, 1, 1], [], []>} : vector<32x256xbf16>, vector<256x128xbf16>, vector<32x128xf32> -> vector<32x128xf32>
    %40 = arith.addf %34, %39 : vector<32x128xf32>
    %c4_40 = arith.constant 4 : index
    %c0_41 = arith.constant 0 : index
    %c0_42 = arith.constant 0 : index
    %41 = vector.load %arg1[%c4_40, %c0_41, %c0_42] : memref<9x32x256xbf16, #tpu.memory_space<vmem>>, vector<1x32x256xbf16>
    %42 = vector.shape_cast %41 : vector<1x32x256xbf16> to vector<32x256xbf16>
    %c6 = arith.constant 6 : index
    %c0_43 = arith.constant 0 : index
    %c0_44 = arith.constant 0 : index
    %43 = vector.load %arg2[%c6, %c0_43, %c0_44] : memref<16x256x128xbf16, #tpu.memory_space<vmem>>, vector<1x256x128xbf16>
    %44 = vector.shape_cast %43 : vector<1x256x128xbf16> to vector<256x128xbf16>
    %cst_45 = arith.constant dense<0.000000e+00> : vector<32x128xf32>
    %45 = tpu.matmul %42, %44, %cst_45 {dimension_numbers = #tpu.dot_dimension_numbers<[1], [0], [0], [1], [0, 0, 1, 1], [], []>} : vector<32x256xbf16>, vector<256x128xbf16>, vector<32x128xf32> -> vector<32x128xf32>
    %46 = arith.addf %40, %45 : vector<32x128xf32>
    %c5_46 = arith.constant 5 : index
    %c0_47 = arith.constant 0 : index
    %c0_48 = arith.constant 0 : index
    %47 = vector.load %arg1[%c5_46, %c0_47, %c0_48] : memref<9x32x256xbf16, #tpu.memory_space<vmem>>, vector<1x32x256xbf16>
    %48 = vector.shape_cast %47 : vector<1x32x256xbf16> to vector<32x256xbf16>
    %c7 = arith.constant 7 : index
    %c0_49 = arith.constant 0 : index
    %c0_50 = arith.constant 0 : index
    %49 = vector.load %arg2[%c7, %c0_49, %c0_50] : memref<16x256x128xbf16, #tpu.memory_space<vmem>>, vector<1x256x128xbf16>
    %50 = vector.shape_cast %49 : vector<1x256x128xbf16> to vector<256x128xbf16>
    %cst_51 = arith.constant dense<0.000000e+00> : vector<32x128xf32>
    %51 = tpu.matmul %48, %50, %cst_51 {dimension_numbers = #tpu.dot_dimension_numbers<[1], [0], [0], [1], [0, 0, 1, 1], [], []>} : vector<32x256xbf16>, vector<256x128xbf16>, vector<32x128xf32> -> vector<32x128xf32>
    %52 = arith.addf %46, %51 : vector<32x128xf32>
    %c0_52 = arith.constant 0 : index
    %c0_53 = arith.constant 0 : index
    %53 = vector.load %arg3[%c0_52, %c0_53] : memref<1x128xf32, #tpu.memory_space<vmem>>, vector<1x128xf32>
    %54 = vector.broadcast %53 : vector<1x128xf32> to vector<32x128xf32>
    %55 = arith.addf %52, %54 : vector<32x128xf32>
    %cst_54 = arith.constant 0.000000e+00 : f32
    %56 = vector.broadcast %cst_54 : f32 to vector<32x128xf32>
    %57 = arith.maximumf %55, %56 : vector<32x128xf32>
    %58 = arith.truncf %57 : vector<32x128xf32> to vector<32x128xbf16>
    %c0_55 = arith.constant 0 : index
    %c128 = arith.constant 128 : index
    %59 = vector.load %arg4[%c0_55, %c128] : memref<32x512xbf16, #tpu.memory_space<vmem>>, vector<32x128xbf16>
    tpu.vector_store %arg4[%c0_55, %c128], %58 {strides = array<i32>} : memref<32x512xbf16, #tpu.memory_space<vmem>>, vector<32x128xbf16>,
    %c3_56 = arith.constant 3 : index
    %c0_57 = arith.constant 0 : index
    %c0_58 = arith.constant 0 : index
    %60 = vector.load %arg1[%c3_56, %c0_57, %c0_58] : memref<9x32x256xbf16, #tpu.memory_space<vmem>>, vector<1x32x256xbf16>
    %61 = vector.shape_cast %60 : vector<1x32x256xbf16> to vector<32x256xbf16>
    %c8 = arith.constant 8 : index
    %c0_59 = arith.constant 0 : index
    %c0_60 = arith.constant 0 : index
    %62 = vector.load %arg2[%c8, %c0_59, %c0_60] : memref<16x256x128xbf16, #tpu.memory_space<vmem>>, vector<1x256x128xbf16>
    %63 = vector.shape_cast %62 : vector<1x256x128xbf16> to vector<256x128xbf16>
    %cst_61 = arith.constant dense<0.000000e+00> : vector<32x128xf32>
    %64 = tpu.matmul %61, %63, %cst_61 {dimension_numbers = #tpu.dot_dimension_numbers<[1], [0], [0], [1], [0, 0, 1, 1], [], []>} : vector<32x256xbf16>, vector<256x128xbf16>, vector<32x128xf32> -> vector<32x128xf32>
    %c4_62 = arith.constant 4 : index
    %c0_63 = arith.constant 0 : index
    %c0_64 = arith.constant 0 : index
    %65 = vector.load %arg1[%c4_62, %c0_63, %c0_64] : memref<9x32x256xbf16, #tpu.memory_space<vmem>>, vector<1x32x256xbf16>
    %66 = vector.shape_cast %65 : vector<1x32x256xbf16> to vector<32x256xbf16>
    %c9 = arith.constant 9 : index
    %c0_65 = arith.constant 0 : index
    %c0_66 = arith.constant 0 : index
    %67 = vector.load %arg2[%c9, %c0_65, %c0_66] : memref<16x256x128xbf16, #tpu.memory_space<vmem>>, vector<1x256x128xbf16>
    %68 = vector.shape_cast %67 : vector<1x256x128xbf16> to vector<256x128xbf16>
    %cst_67 = arith.constant dense<0.000000e+00> : vector<32x128xf32>
    %69 = tpu.matmul %66, %68, %cst_67 {dimension_numbers = #tpu.dot_dimension_numbers<[1], [0], [0], [1], [0, 0, 1, 1], [], []>} : vector<32x256xbf16>, vector<256x128xbf16>, vector<32x128xf32> -> vector<32x128xf32>
    %70 = arith.addf %64, %69 : vector<32x128xf32>
    %c6_68 = arith.constant 6 : index
    %c0_69 = arith.constant 0 : index
    %c0_70 = arith.constant 0 : index
    %71 = vector.load %arg1[%c6_68, %c0_69, %c0_70] : memref<9x32x256xbf16, #tpu.memory_space<vmem>>, vector<1x32x256xbf16>
    %72 = vector.shape_cast %71 : vector<1x32x256xbf16> to vector<32x256xbf16>
    %c10 = arith.constant 10 : index
    %c0_71 = arith.constant 0 : index
    %c0_72 = arith.constant 0 : index
    %73 = vector.load %arg2[%c10, %c0_71, %c0_72] : memref<16x256x128xbf16, #tpu.memory_space<vmem>>, vector<1x256x128xbf16>
    %74 = vector.shape_cast %73 : vector<1x256x128xbf16> to vector<256x128xbf16>
    %cst_73 = arith.constant dense<0.000000e+00> : vector<32x128xf32>
    %75 = tpu.matmul %72, %74, %cst_73 {dimension_numbers = #tpu.dot_dimension_numbers<[1], [0], [0], [1], [0, 0, 1, 1], [], []>} : vector<32x256xbf16>, vector<256x128xbf16>, vector<32x128xf32> -> vector<32x128xf32>
    %76 = arith.addf %70, %75 : vector<32x128xf32>
    %c7_74 = arith.constant 7 : index
    %c0_75 = arith.constant 0 : index
    %c0_76 = arith.constant 0 : index
    %77 = vector.load %arg1[%c7_74, %c0_75, %c0_76] : memref<9x32x256xbf16, #tpu.memory_space<vmem>>, vector<1x32x256xbf16>
    %78 = vector.shape_cast %77 : vector<1x32x256xbf16> to vector<32x256xbf16>
    %c11 = arith.constant 11 : index
    %c0_77 = arith.constant 0 : index
    %c0_78 = arith.constant 0 : index
    %79 = vector.load %arg2[%c11, %c0_77, %c0_78] : memref<16x256x128xbf16, #tpu.memory_space<vmem>>, vector<1x256x128xbf16>
    %80 = vector.shape_cast %79 : vector<1x256x128xbf16> to vector<256x128xbf16>
    %cst_79 = arith.constant dense<0.000000e+00> : vector<32x128xf32>
    %81 = tpu.matmul %78, %80, %cst_79 {dimension_numbers = #tpu.dot_dimension_numbers<[1], [0], [0], [1], [0, 0, 1, 1], [], []>} : vector<32x256xbf16>, vector<256x128xbf16>, vector<32x128xf32> -> vector<32x128xf32>
    %82 = arith.addf %76, %81 : vector<32x128xf32>
    %c0_80 = arith.constant 0 : index
    %c0_81 = arith.constant 0 : index
    %83 = vector.load %arg3[%c0_80, %c0_81] : memref<1x128xf32, #tpu.memory_space<vmem>>, vector<1x128xf32>
    %84 = vector.broadcast %83 : vector<1x128xf32> to vector<32x128xf32>
    %85 = arith.addf %82, %84 : vector<32x128xf32>
    %cst_82 = arith.constant 0.000000e+00 : f32
    %86 = vector.broadcast %cst_82 : f32 to vector<32x128xf32>
    %87 = arith.maximumf %85, %86 : vector<32x128xf32>
    %88 = arith.truncf %87 : vector<32x128xf32> to vector<32x128xbf16>
    %c0_83 = arith.constant 0 : index
    %c256 = arith.constant 256 : index
    %89 = vector.load %arg4[%c0_83, %c256] : memref<32x512xbf16, #tpu.memory_space<vmem>>, vector<32x128xbf16>
    tpu.vector_store %arg4[%c0_83, %c256], %88 {strides = array<i32>} : memref<32x512xbf16, #tpu.memory_space<vmem>>, vector<32x128xbf16>,
    %c4_84 = arith.constant 4 : index
    %c0_85 = arith.constant 0 : index
    %c0_86 = arith.constant 0 : index
    %90 = vector.load %arg1[%c4_84, %c0_85, %c0_86] : memref<9x32x256xbf16, #tpu.memory_space<vmem>>, vector<1x32x256xbf16>
    %91 = vector.shape_cast %90 : vector<1x32x256xbf16> to vector<32x256xbf16>
    %c12 = arith.constant 12 : index
    %c0_87 = arith.constant 0 : index
    %c0_88 = arith.constant 0 : index
    %92 = vector.load %arg2[%c12, %c0_87, %c0_88] : memref<16x256x128xbf16, #tpu.memory_space<vmem>>, vector<1x256x128xbf16>
    %93 = vector.shape_cast %92 : vector<1x256x128xbf16> to vector<256x128xbf16>
    %cst_89 = arith.constant dense<0.000000e+00> : vector<32x128xf32>
    %94 = tpu.matmul %91, %93, %cst_89 {dimension_numbers = #tpu.dot_dimension_numbers<[1], [0], [0], [1], [0, 0, 1, 1], [], []>} : vector<32x256xbf16>, vector<256x128xbf16>, vector<32x128xf32> -> vector<32x128xf32>
    %c5_90 = arith.constant 5 : index
    %c0_91 = arith.constant 0 : index
    %c0_92 = arith.constant 0 : index
    %95 = vector.load %arg1[%c5_90, %c0_91, %c0_92] : memref<9x32x256xbf16, #tpu.memory_space<vmem>>, vector<1x32x256xbf16>
    %96 = vector.shape_cast %95 : vector<1x32x256xbf16> to vector<32x256xbf16>
    %c13 = arith.constant 13 : index
    %c0_93 = arith.constant 0 : index
    %c0_94 = arith.constant 0 : index
    %97 = vector.load %arg2[%c13, %c0_93, %c0_94] : memref<16x256x128xbf16, #tpu.memory_space<vmem>>, vector<1x256x128xbf16>
    %98 = vector.shape_cast %97 : vector<1x256x128xbf16> to vector<256x128xbf16>
    %cst_95 = arith.constant dense<0.000000e+00> : vector<32x128xf32>
    %99 = tpu.matmul %96, %98, %cst_95 {dimension_numbers = #tpu.dot_dimension_numbers<[1], [0], [0], [1], [0, 0, 1, 1], [], []>} : vector<32x256xbf16>, vector<256x128xbf16>, vector<32x128xf32> -> vector<32x128xf32>
    %100 = arith.addf %94, %99 : vector<32x128xf32>
    %c7_96 = arith.constant 7 : index
    %c0_97 = arith.constant 0 : index
    %c0_98 = arith.constant 0 : index
    %101 = vector.load %arg1[%c7_96, %c0_97, %c0_98] : memref<9x32x256xbf16, #tpu.memory_space<vmem>>, vector<1x32x256xbf16>
    %102 = vector.shape_cast %101 : vector<1x32x256xbf16> to vector<32x256xbf16>
    %c14 = arith.constant 14 : index
    %c0_99 = arith.constant 0 : index
    %c0_100 = arith.constant 0 : index
    %103 = vector.load %arg2[%c14, %c0_99, %c0_100] : memref<16x256x128xbf16, #tpu.memory_space<vmem>>, vector<1x256x128xbf16>
    %104 = vector.shape_cast %103 : vector<1x256x128xbf16> to vector<256x128xbf16>
    %cst_101 = arith.constant dense<0.000000e+00> : vector<32x128xf32>
    %105 = tpu.matmul %102, %104, %cst_101 {dimension_numbers = #tpu.dot_dimension_numbers<[1], [0], [0], [1], [0, 0, 1, 1], [], []>} : vector<32x256xbf16>, vector<256x128xbf16>, vector<32x128xf32> -> vector<32x128xf32>
    %106 = arith.addf %100, %105 : vector<32x128xf32>
    %c8_102 = arith.constant 8 : index
    %c0_103 = arith.constant 0 : index
    %c0_104 = arith.constant 0 : index
    %107 = vector.load %arg1[%c8_102, %c0_103, %c0_104] : memref<9x32x256xbf16, #tpu.memory_space<vmem>>, vector<1x32x256xbf16>
    %108 = vector.shape_cast %107 : vector<1x32x256xbf16> to vector<32x256xbf16>
    %c15 = arith.constant 15 : index
    %c0_105 = arith.constant 0 : index
    %c0_106 = arith.constant 0 : index
    %109 = vector.load %arg2[%c15, %c0_105, %c0_106] : memref<16x256x128xbf16, #tpu.memory_space<vmem>>, vector<1x256x128xbf16>
    %110 = vector.shape_cast %109 : vector<1x256x128xbf16> to vector<256x128xbf16>
    %cst_107 = arith.constant dense<0.000000e+00> : vector<32x128xf32>
    %111 = tpu.matmul %108, %110, %cst_107 {dimension_numbers = #tpu.dot_dimension_numbers<[1], [0], [0], [1], [0, 0, 1, 1], [], []>} : vector<32x256xbf16>, vector<256x128xbf16>, vector<32x128xf32> -> vector<32x128xf32>
    %112 = arith.addf %106, %111 : vector<32x128xf32>
    %c0_108 = arith.constant 0 : index
    %c0_109 = arith.constant 0 : index
    %113 = vector.load %arg3[%c0_108, %c0_109] : memref<1x128xf32, #tpu.memory_space<vmem>>, vector<1x128xf32>
    %114 = vector.broadcast %113 : vector<1x128xf32> to vector<32x128xf32>
    %115 = arith.addf %112, %114 : vector<32x128xf32>
    %cst_110 = arith.constant 0.000000e+00 : f32
    %116 = vector.broadcast %cst_110 : f32 to vector<32x128xf32>
    %117 = arith.maximumf %115, %116 : vector<32x128xf32>
    %118 = arith.truncf %117 : vector<32x128xf32> to vector<32x128xbf16>
    %c0_111 = arith.constant 0 : index
    %c384 = arith.constant 384 : index
    %119 = vector.load %arg4[%c0_111, %c384] : memref<32x512xbf16, #tpu.memory_space<vmem>>, vector<32x128xbf16>
    tpu.vector_store %arg4[%c0_111, %c384], %118 {strides = array<i32>} : memref<32x512xbf16, #tpu.memory_space<vmem>>, vector<32x128xbf16>,
    return
  }
  func.func @transform_0(%arg0: i32) -> (i32, i32, i32) {
    %c0_i32 = arith.constant 0 : i32
    %c0_i32_0 = arith.constant 0 : i32
    %c0_i32_1 = arith.constant 0 : i32
    return %c0_i32, %arg0, %c0_i32_0 : i32, i32, i32
  }
  func.func @transform_1(%arg0: i32) -> (i32, i32, i32) {
    %c0_i32 = arith.constant 0 : i32
    %c0_i32_0 = arith.constant 0 : i32
    %c0_i32_1 = arith.constant 0 : i32
    %c0_i32_2 = arith.constant 0 : i32
    return %c0_i32, %c0_i32_0, %c0_i32_1 : i32, i32, i32
  }
  func.func @transform_2(%arg0: i32) -> (i32, i32) {
    %c0_i32 = arith.constant 0 : i32
    %c0_i32_0 = arith.constant 0 : i32
    %c0_i32_1 = arith.constant 0 : i32
    return %c0_i32, %c0_i32_0 : i32, i32
  }
  func.func @transform_3(%arg0: i32) -> (i32, i32) {
    %c0_i32 = arith.constant 0 : i32
    %c0_i32_0 = arith.constant 0 : i32
    return %arg0, %c0_i32 : i32, i32
  }
}

module attributes {stable_mosaic.version = 11 : i64} {
  func.func @_convT_slab_kernel(%arg0: i32, %arg1: memref<9x128x128xbf16, #tpu.memory_space<vmem>>, %arg2: memref<9x128x256xbf16, #tpu.memory_space<vmem>>, %arg3: memref<1x256xf32, #tpu.memory_space<vmem>>, %arg4: memref<128x256xbf16, #tpu.memory_space<vmem>>) attributes {dimension_semantics = [#tpu.dimension_semantics<parallel>], iteration_bounds = array<i64: 1>, scalar_prefetch = 0 : i64, scratch_operands = 0 : i64, tpu.core_type = #tpu.core_type<tc>, window_params = [{transform_indices = @transform_0, window_bounds = array<i64: 9, 128, 128>}, {pipeline_mode = #tpu.pipeline_mode<synchronous>, transform_indices = @transform_1, window_bounds = array<i64: 9, 128, 256>}, {pipeline_mode = #tpu.pipeline_mode<synchronous>, transform_indices = @transform_2, window_bounds = array<i64: 1, 256>}, {transform_indices = @transform_3, window_bounds = array<i64: 128, 256>}]} {
    %c0 = arith.constant 0 : index
    %c0_0 = arith.constant 0 : index
    %c0_1 = arith.constant 0 : index
    %0 = vector.load %arg1[%c0, %c0_0, %c0_1] : memref<9x128x128xbf16, #tpu.memory_space<vmem>>, vector<1x128x128xbf16>
    %1 = vector.shape_cast %0 : vector<1x128x128xbf16> to vector<128x128xbf16>
    %c0_2 = arith.constant 0 : index
    %c0_3 = arith.constant 0 : index
    %c0_4 = arith.constant 0 : index
    %2 = vector.load %arg2[%c0_2, %c0_3, %c0_4] : memref<9x128x256xbf16, #tpu.memory_space<vmem>>, vector<1x128x256xbf16>
    %3 = vector.shape_cast %2 : vector<1x128x256xbf16> to vector<128x256xbf16>
    %cst = arith.constant dense<0.000000e+00> : vector<128x256xf32>
    %4 = tpu.matmul %1, %3, %cst {dimension_numbers = #tpu.dot_dimension_numbers<[1], [0], [0], [1], [0, 0, 1, 1], [], []>} : vector<128x128xbf16>, vector<128x256xbf16>, vector<128x256xf32> -> vector<128x256xf32>
    %c1 = arith.constant 1 : index
    %c0_5 = arith.constant 0 : index
    %c0_6 = arith.constant 0 : index
    %5 = vector.load %arg1[%c1, %c0_5, %c0_6] : memref<9x128x128xbf16, #tpu.memory_space<vmem>>, vector<1x128x128xbf16>
    %6 = vector.shape_cast %5 : vector<1x128x128xbf16> to vector<128x128xbf16>
    %c1_7 = arith.constant 1 : index
    %c0_8 = arith.constant 0 : index
    %c0_9 = arith.constant 0 : index
    %7 = vector.load %arg2[%c1_7, %c0_8, %c0_9] : memref<9x128x256xbf16, #tpu.memory_space<vmem>>, vector<1x128x256xbf16>
    %8 = vector.shape_cast %7 : vector<1x128x256xbf16> to vector<128x256xbf16>
    %cst_10 = arith.constant dense<0.000000e+00> : vector<128x256xf32>
    %9 = tpu.matmul %6, %8, %cst_10 {dimension_numbers = #tpu.dot_dimension_numbers<[1], [0], [0], [1], [0, 0, 1, 1], [], []>} : vector<128x128xbf16>, vector<128x256xbf16>, vector<128x256xf32> -> vector<128x256xf32>
    %10 = arith.addf %4, %9 : vector<128x256xf32>
    %c2 = arith.constant 2 : index
    %c0_11 = arith.constant 0 : index
    %c0_12 = arith.constant 0 : index
    %11 = vector.load %arg1[%c2, %c0_11, %c0_12] : memref<9x128x128xbf16, #tpu.memory_space<vmem>>, vector<1x128x128xbf16>
    %12 = vector.shape_cast %11 : vector<1x128x128xbf16> to vector<128x128xbf16>
    %c2_13 = arith.constant 2 : index
    %c0_14 = arith.constant 0 : index
    %c0_15 = arith.constant 0 : index
    %13 = vector.load %arg2[%c2_13, %c0_14, %c0_15] : memref<9x128x256xbf16, #tpu.memory_space<vmem>>, vector<1x128x256xbf16>
    %14 = vector.shape_cast %13 : vector<1x128x256xbf16> to vector<128x256xbf16>
    %cst_16 = arith.constant dense<0.000000e+00> : vector<128x256xf32>
    %15 = tpu.matmul %12, %14, %cst_16 {dimension_numbers = #tpu.dot_dimension_numbers<[1], [0], [0], [1], [0, 0, 1, 1], [], []>} : vector<128x128xbf16>, vector<128x256xbf16>, vector<128x256xf32> -> vector<128x256xf32>
    %16 = arith.addf %10, %15 : vector<128x256xf32>
    %c3 = arith.constant 3 : index
    %c0_17 = arith.constant 0 : index
    %c0_18 = arith.constant 0 : index
    %17 = vector.load %arg1[%c3, %c0_17, %c0_18] : memref<9x128x128xbf16, #tpu.memory_space<vmem>>, vector<1x128x128xbf16>
    %18 = vector.shape_cast %17 : vector<1x128x128xbf16> to vector<128x128xbf16>
    %c3_19 = arith.constant 3 : index
    %c0_20 = arith.constant 0 : index
    %c0_21 = arith.constant 0 : index
    %19 = vector.load %arg2[%c3_19, %c0_20, %c0_21] : memref<9x128x256xbf16, #tpu.memory_space<vmem>>, vector<1x128x256xbf16>
    %20 = vector.shape_cast %19 : vector<1x128x256xbf16> to vector<128x256xbf16>
    %cst_22 = arith.constant dense<0.000000e+00> : vector<128x256xf32>
    %21 = tpu.matmul %18, %20, %cst_22 {dimension_numbers = #tpu.dot_dimension_numbers<[1], [0], [0], [1], [0, 0, 1, 1], [], []>} : vector<128x128xbf16>, vector<128x256xbf16>, vector<128x256xf32> -> vector<128x256xf32>
    %22 = arith.addf %16, %21 : vector<128x256xf32>
    %c4 = arith.constant 4 : index
    %c0_23 = arith.constant 0 : index
    %c0_24 = arith.constant 0 : index
    %23 = vector.load %arg1[%c4, %c0_23, %c0_24] : memref<9x128x128xbf16, #tpu.memory_space<vmem>>, vector<1x128x128xbf16>
    %24 = vector.shape_cast %23 : vector<1x128x128xbf16> to vector<128x128xbf16>
    %c4_25 = arith.constant 4 : index
    %c0_26 = arith.constant 0 : index
    %c0_27 = arith.constant 0 : index
    %25 = vector.load %arg2[%c4_25, %c0_26, %c0_27] : memref<9x128x256xbf16, #tpu.memory_space<vmem>>, vector<1x128x256xbf16>
    %26 = vector.shape_cast %25 : vector<1x128x256xbf16> to vector<128x256xbf16>
    %cst_28 = arith.constant dense<0.000000e+00> : vector<128x256xf32>
    %27 = tpu.matmul %24, %26, %cst_28 {dimension_numbers = #tpu.dot_dimension_numbers<[1], [0], [0], [1], [0, 0, 1, 1], [], []>} : vector<128x128xbf16>, vector<128x256xbf16>, vector<128x256xf32> -> vector<128x256xf32>
    %28 = arith.addf %22, %27 : vector<128x256xf32>
    %c5 = arith.constant 5 : index
    %c0_29 = arith.constant 0 : index
    %c0_30 = arith.constant 0 : index
    %29 = vector.load %arg1[%c5, %c0_29, %c0_30] : memref<9x128x128xbf16, #tpu.memory_space<vmem>>, vector<1x128x128xbf16>
    %30 = vector.shape_cast %29 : vector<1x128x128xbf16> to vector<128x128xbf16>
    %c5_31 = arith.constant 5 : index
    %c0_32 = arith.constant 0 : index
    %c0_33 = arith.constant 0 : index
    %31 = vector.load %arg2[%c5_31, %c0_32, %c0_33] : memref<9x128x256xbf16, #tpu.memory_space<vmem>>, vector<1x128x256xbf16>
    %32 = vector.shape_cast %31 : vector<1x128x256xbf16> to vector<128x256xbf16>
    %cst_34 = arith.constant dense<0.000000e+00> : vector<128x256xf32>
    %33 = tpu.matmul %30, %32, %cst_34 {dimension_numbers = #tpu.dot_dimension_numbers<[1], [0], [0], [1], [0, 0, 1, 1], [], []>} : vector<128x128xbf16>, vector<128x256xbf16>, vector<128x256xf32> -> vector<128x256xf32>
    %34 = arith.addf %28, %33 : vector<128x256xf32>
    %c6 = arith.constant 6 : index
    %c0_35 = arith.constant 0 : index
    %c0_36 = arith.constant 0 : index
    %35 = vector.load %arg1[%c6, %c0_35, %c0_36] : memref<9x128x128xbf16, #tpu.memory_space<vmem>>, vector<1x128x128xbf16>
    %36 = vector.shape_cast %35 : vector<1x128x128xbf16> to vector<128x128xbf16>
    %c6_37 = arith.constant 6 : index
    %c0_38 = arith.constant 0 : index
    %c0_39 = arith.constant 0 : index
    %37 = vector.load %arg2[%c6_37, %c0_38, %c0_39] : memref<9x128x256xbf16, #tpu.memory_space<vmem>>, vector<1x128x256xbf16>
    %38 = vector.shape_cast %37 : vector<1x128x256xbf16> to vector<128x256xbf16>
    %cst_40 = arith.constant dense<0.000000e+00> : vector<128x256xf32>
    %39 = tpu.matmul %36, %38, %cst_40 {dimension_numbers = #tpu.dot_dimension_numbers<[1], [0], [0], [1], [0, 0, 1, 1], [], []>} : vector<128x128xbf16>, vector<128x256xbf16>, vector<128x256xf32> -> vector<128x256xf32>
    %40 = arith.addf %34, %39 : vector<128x256xf32>
    %c7 = arith.constant 7 : index
    %c0_41 = arith.constant 0 : index
    %c0_42 = arith.constant 0 : index
    %41 = vector.load %arg1[%c7, %c0_41, %c0_42] : memref<9x128x128xbf16, #tpu.memory_space<vmem>>, vector<1x128x128xbf16>
    %42 = vector.shape_cast %41 : vector<1x128x128xbf16> to vector<128x128xbf16>
    %c7_43 = arith.constant 7 : index
    %c0_44 = arith.constant 0 : index
    %c0_45 = arith.constant 0 : index
    %43 = vector.load %arg2[%c7_43, %c0_44, %c0_45] : memref<9x128x256xbf16, #tpu.memory_space<vmem>>, vector<1x128x256xbf16>
    %44 = vector.shape_cast %43 : vector<1x128x256xbf16> to vector<128x256xbf16>
    %cst_46 = arith.constant dense<0.000000e+00> : vector<128x256xf32>
    %45 = tpu.matmul %42, %44, %cst_46 {dimension_numbers = #tpu.dot_dimension_numbers<[1], [0], [0], [1], [0, 0, 1, 1], [], []>} : vector<128x128xbf16>, vector<128x256xbf16>, vector<128x256xf32> -> vector<128x256xf32>
    %46 = arith.addf %40, %45 : vector<128x256xf32>
    %c8 = arith.constant 8 : index
    %c0_47 = arith.constant 0 : index
    %c0_48 = arith.constant 0 : index
    %47 = vector.load %arg1[%c8, %c0_47, %c0_48] : memref<9x128x128xbf16, #tpu.memory_space<vmem>>, vector<1x128x128xbf16>
    %48 = vector.shape_cast %47 : vector<1x128x128xbf16> to vector<128x128xbf16>
    %c8_49 = arith.constant 8 : index
    %c0_50 = arith.constant 0 : index
    %c0_51 = arith.constant 0 : index
    %49 = vector.load %arg2[%c8_49, %c0_50, %c0_51] : memref<9x128x256xbf16, #tpu.memory_space<vmem>>, vector<1x128x256xbf16>
    %50 = vector.shape_cast %49 : vector<1x128x256xbf16> to vector<128x256xbf16>
    %cst_52 = arith.constant dense<0.000000e+00> : vector<128x256xf32>
    %51 = tpu.matmul %48, %50, %cst_52 {dimension_numbers = #tpu.dot_dimension_numbers<[1], [0], [0], [1], [0, 0, 1, 1], [], []>} : vector<128x128xbf16>, vector<128x256xbf16>, vector<128x256xf32> -> vector<128x256xf32>
    %52 = arith.addf %46, %51 : vector<128x256xf32>
    %c0_53 = arith.constant 0 : index
    %c0_54 = arith.constant 0 : index
    %53 = vector.load %arg3[%c0_53, %c0_54] : memref<1x256xf32, #tpu.memory_space<vmem>>, vector<1x256xf32>
    %54 = vector.broadcast %53 : vector<1x256xf32> to vector<128x256xf32>
    %55 = arith.addf %52, %54 : vector<128x256xf32>
    %cst_55 = arith.constant 0.000000e+00 : f32
    %56 = vector.broadcast %cst_55 : f32 to vector<128x256xf32>
    %57 = arith.maximumf %55, %56 : vector<128x256xf32>
    %58 = arith.truncf %57 : vector<128x256xf32> to vector<128x256xbf16>
    %c0_56 = arith.constant 0 : index
    %c0_57 = arith.constant 0 : index
    %59 = vector.load %arg4[%c0_56, %c0_57] : memref<128x256xbf16, #tpu.memory_space<vmem>>, vector<128x256xbf16>
    tpu.vector_store %arg4[%c0_56, %c0_57], %58 {strides = array<i32>} : memref<128x256xbf16, #tpu.memory_space<vmem>>, vector<128x256xbf16>,
    return
  }
  func.func @transform_0(%arg0: i32) -> (i32, i32, i32) {
    %c0_i32 = arith.constant 0 : i32
    %c0_i32_0 = arith.constant 0 : i32
    %c0_i32_1 = arith.constant 0 : i32
    return %c0_i32, %arg0, %c0_i32_0 : i32, i32, i32
  }
  func.func @transform_1(%arg0: i32) -> (i32, i32, i32) {
    %c0_i32 = arith.constant 0 : i32
    %c0_i32_0 = arith.constant 0 : i32
    %c0_i32_1 = arith.constant 0 : i32
    %c0_i32_2 = arith.constant 0 : i32
    return %c0_i32, %c0_i32_0, %c0_i32_1 : i32, i32, i32
  }
  func.func @transform_2(%arg0: i32) -> (i32, i32) {
    %c0_i32 = arith.constant 0 : i32
    %c0_i32_0 = arith.constant 0 : i32
    %c0_i32_1 = arith.constant 0 : i32
    return %c0_i32, %c0_i32_0 : i32, i32
  }
  func.func @transform_3(%arg0: i32) -> (i32, i32) {
    %c0_i32 = arith.constant 0 : i32
    %c0_i32_0 = arith.constant 0 : i32
    return %arg0, %c0_i32 : i32, i32
  }
}

module attributes {stable_mosaic.version = 11 : i64} {
  func.func @_convT_slab_T_kernel(%arg0: i32, %arg1: memref<9x64x512xbf16, #tpu.memory_space<vmem>>, %arg2: memref<9x4x64xbf16, #tpu.memory_space<vmem>>, %arg3: memref<4x1xf32, #tpu.memory_space<vmem>>, %arg4: memref<4x512xf32, #tpu.memory_space<vmem>>) attributes {dimension_semantics = [#tpu.dimension_semantics<parallel>], iteration_bounds = array<i64: 1>, scalar_prefetch = 0 : i64, scratch_operands = 0 : i64, tpu.core_type = #tpu.core_type<tc>, window_params = [{transform_indices = @transform_0, window_bounds = array<i64: 9, 64, 512>}, {pipeline_mode = #tpu.pipeline_mode<synchronous>, transform_indices = @transform_1, window_bounds = array<i64: 9, 4, 64>}, {pipeline_mode = #tpu.pipeline_mode<synchronous>, transform_indices = @transform_2, window_bounds = array<i64: 4, 1>}, {transform_indices = @transform_3, window_bounds = array<i64: 4, 512>}]} {
    %c0 = arith.constant 0 : index
    %c0_0 = arith.constant 0 : index
    %c0_1 = arith.constant 0 : index
    %0 = vector.load %arg2[%c0, %c0_0, %c0_1] : memref<9x4x64xbf16, #tpu.memory_space<vmem>>, vector<1x4x64xbf16>
    %1 = vector.shape_cast %0 : vector<1x4x64xbf16> to vector<4x64xbf16>
    %c0_2 = arith.constant 0 : index
    %c0_3 = arith.constant 0 : index
    %c0_4 = arith.constant 0 : index
    %2 = vector.load %arg1[%c0_2, %c0_3, %c0_4] : memref<9x64x512xbf16, #tpu.memory_space<vmem>>, vector<1x64x512xbf16>
    %3 = vector.shape_cast %2 : vector<1x64x512xbf16> to vector<64x512xbf16>
    %cst = arith.constant dense<0.000000e+00> : vector<4x512xf32>
    %4 = tpu.matmul %1, %3, %cst {dimension_numbers = #tpu.dot_dimension_numbers<[1], [0], [0], [1], [0, 0, 1, 1], [], []>} : vector<4x64xbf16>, vector<64x512xbf16>, vector<4x512xf32> -> vector<4x512xf32>
    %c1 = arith.constant 1 : index
    %c0_5 = arith.constant 0 : index
    %c0_6 = arith.constant 0 : index
    %5 = vector.load %arg2[%c1, %c0_5, %c0_6] : memref<9x4x64xbf16, #tpu.memory_space<vmem>>, vector<1x4x64xbf16>
    %6 = vector.shape_cast %5 : vector<1x4x64xbf16> to vector<4x64xbf16>
    %c1_7 = arith.constant 1 : index
    %c0_8 = arith.constant 0 : index
    %c0_9 = arith.constant 0 : index
    %7 = vector.load %arg1[%c1_7, %c0_8, %c0_9] : memref<9x64x512xbf16, #tpu.memory_space<vmem>>, vector<1x64x512xbf16>
    %8 = vector.shape_cast %7 : vector<1x64x512xbf16> to vector<64x512xbf16>
    %cst_10 = arith.constant dense<0.000000e+00> : vector<4x512xf32>
    %9 = tpu.matmul %6, %8, %cst_10 {dimension_numbers = #tpu.dot_dimension_numbers<[1], [0], [0], [1], [0, 0, 1, 1], [], []>} : vector<4x64xbf16>, vector<64x512xbf16>, vector<4x512xf32> -> vector<4x512xf32>
    %10 = arith.addf %4, %9 : vector<4x512xf32>
    %c2 = arith.constant 2 : index
    %c0_11 = arith.constant 0 : index
    %c0_12 = arith.constant 0 : index
    %11 = vector.load %arg2[%c2, %c0_11, %c0_12] : memref<9x4x64xbf16, #tpu.memory_space<vmem>>, vector<1x4x64xbf16>
    %12 = vector.shape_cast %11 : vector<1x4x64xbf16> to vector<4x64xbf16>
    %c2_13 = arith.constant 2 : index
    %c0_14 = arith.constant 0 : index
    %c0_15 = arith.constant 0 : index
    %13 = vector.load %arg1[%c2_13, %c0_14, %c0_15] : memref<9x64x512xbf16, #tpu.memory_space<vmem>>, vector<1x64x512xbf16>
    %14 = vector.shape_cast %13 : vector<1x64x512xbf16> to vector<64x512xbf16>
    %cst_16 = arith.constant dense<0.000000e+00> : vector<4x512xf32>
    %15 = tpu.matmul %12, %14, %cst_16 {dimension_numbers = #tpu.dot_dimension_numbers<[1], [0], [0], [1], [0, 0, 1, 1], [], []>} : vector<4x64xbf16>, vector<64x512xbf16>, vector<4x512xf32> -> vector<4x512xf32>
    %16 = arith.addf %10, %15 : vector<4x512xf32>
    %c3 = arith.constant 3 : index
    %c0_17 = arith.constant 0 : index
    %c0_18 = arith.constant 0 : index
    %17 = vector.load %arg2[%c3, %c0_17, %c0_18] : memref<9x4x64xbf16, #tpu.memory_space<vmem>>, vector<1x4x64xbf16>
    %18 = vector.shape_cast %17 : vector<1x4x64xbf16> to vector<4x64xbf16>
    %c3_19 = arith.constant 3 : index
    %c0_20 = arith.constant 0 : index
    %c0_21 = arith.constant 0 : index
    %19 = vector.load %arg1[%c3_19, %c0_20, %c0_21] : memref<9x64x512xbf16, #tpu.memory_space<vmem>>, vector<1x64x512xbf16>
    %20 = vector.shape_cast %19 : vector<1x64x512xbf16> to vector<64x512xbf16>
    %cst_22 = arith.constant dense<0.000000e+00> : vector<4x512xf32>
    %21 = tpu.matmul %18, %20, %cst_22 {dimension_numbers = #tpu.dot_dimension_numbers<[1], [0], [0], [1], [0, 0, 1, 1], [], []>} : vector<4x64xbf16>, vector<64x512xbf16>, vector<4x512xf32> -> vector<4x512xf32>
    %22 = arith.addf %16, %21 : vector<4x512xf32>
    %c4 = arith.constant 4 : index
    %c0_23 = arith.constant 0 : index
    %c0_24 = arith.constant 0 : index
    %23 = vector.load %arg2[%c4, %c0_23, %c0_24] : memref<9x4x64xbf16, #tpu.memory_space<vmem>>, vector<1x4x64xbf16>
    %24 = vector.shape_cast %23 : vector<1x4x64xbf16> to vector<4x64xbf16>
    %c4_25 = arith.constant 4 : index
    %c0_26 = arith.constant 0 : index
    %c0_27 = arith.constant 0 : index
    %25 = vector.load %arg1[%c4_25, %c0_26, %c0_27] : memref<9x64x512xbf16, #tpu.memory_space<vmem>>, vector<1x64x512xbf16>
    %26 = vector.shape_cast %25 : vector<1x64x512xbf16> to vector<64x512xbf16>
    %cst_28 = arith.constant dense<0.000000e+00> : vector<4x512xf32>
    %27 = tpu.matmul %24, %26, %cst_28 {dimension_numbers = #tpu.dot_dimension_numbers<[1], [0], [0], [1], [0, 0, 1, 1], [], []>} : vector<4x64xbf16>, vector<64x512xbf16>, vector<4x512xf32> -> vector<4x512xf32>
    %28 = arith.addf %22, %27 : vector<4x512xf32>
    %c5 = arith.constant 5 : index
    %c0_29 = arith.constant 0 : index
    %c0_30 = arith.constant 0 : index
    %29 = vector.load %arg2[%c5, %c0_29, %c0_30] : memref<9x4x64xbf16, #tpu.memory_space<vmem>>, vector<1x4x64xbf16>
    %30 = vector.shape_cast %29 : vector<1x4x64xbf16> to vector<4x64xbf16>
    %c5_31 = arith.constant 5 : index
    %c0_32 = arith.constant 0 : index
    %c0_33 = arith.constant 0 : index
    %31 = vector.load %arg1[%c5_31, %c0_32, %c0_33] : memref<9x64x512xbf16, #tpu.memory_space<vmem>>, vector<1x64x512xbf16>
    %32 = vector.shape_cast %31 : vector<1x64x512xbf16> to vector<64x512xbf16>
    %cst_34 = arith.constant dense<0.000000e+00> : vector<4x512xf32>
    %33 = tpu.matmul %30, %32, %cst_34 {dimension_numbers = #tpu.dot_dimension_numbers<[1], [0], [0], [1], [0, 0, 1, 1], [], []>} : vector<4x64xbf16>, vector<64x512xbf16>, vector<4x512xf32> -> vector<4x512xf32>
    %34 = arith.addf %28, %33 : vector<4x512xf32>
    %c6 = arith.constant 6 : index
    %c0_35 = arith.constant 0 : index
    %c0_36 = arith.constant 0 : index
    %35 = vector.load %arg2[%c6, %c0_35, %c0_36] : memref<9x4x64xbf16, #tpu.memory_space<vmem>>, vector<1x4x64xbf16>
    %36 = vector.shape_cast %35 : vector<1x4x64xbf16> to vector<4x64xbf16>
    %c6_37 = arith.constant 6 : index
    %c0_38 = arith.constant 0 : index
    %c0_39 = arith.constant 0 : index
    %37 = vector.load %arg1[%c6_37, %c0_38, %c0_39] : memref<9x64x512xbf16, #tpu.memory_space<vmem>>, vector<1x64x512xbf16>
    %38 = vector.shape_cast %37 : vector<1x64x512xbf16> to vector<64x512xbf16>
    %cst_40 = arith.constant dense<0.000000e+00> : vector<4x512xf32>
    %39 = tpu.matmul %36, %38, %cst_40 {dimension_numbers = #tpu.dot_dimension_numbers<[1], [0], [0], [1], [0, 0, 1, 1], [], []>} : vector<4x64xbf16>, vector<64x512xbf16>, vector<4x512xf32> -> vector<4x512xf32>
    %40 = arith.addf %34, %39 : vector<4x512xf32>
    %c7 = arith.constant 7 : index
    %c0_41 = arith.constant 0 : index
    %c0_42 = arith.constant 0 : index
    %41 = vector.load %arg2[%c7, %c0_41, %c0_42] : memref<9x4x64xbf16, #tpu.memory_space<vmem>>, vector<1x4x64xbf16>
    %42 = vector.shape_cast %41 : vector<1x4x64xbf16> to vector<4x64xbf16>
    %c7_43 = arith.constant 7 : index
    %c0_44 = arith.constant 0 : index
    %c0_45 = arith.constant 0 : index
    %43 = vector.load %arg1[%c7_43, %c0_44, %c0_45] : memref<9x64x512xbf16, #tpu.memory_space<vmem>>, vector<1x64x512xbf16>
    %44 = vector.shape_cast %43 : vector<1x64x512xbf16> to vector<64x512xbf16>
    %cst_46 = arith.constant dense<0.000000e+00> : vector<4x512xf32>
    %45 = tpu.matmul %42, %44, %cst_46 {dimension_numbers = #tpu.dot_dimension_numbers<[1], [0], [0], [1], [0, 0, 1, 1], [], []>} : vector<4x64xbf16>, vector<64x512xbf16>, vector<4x512xf32> -> vector<4x512xf32>
    %46 = arith.addf %40, %45 : vector<4x512xf32>
    %c8 = arith.constant 8 : index
    %c0_47 = arith.constant 0 : index
    %c0_48 = arith.constant 0 : index
    %47 = vector.load %arg2[%c8, %c0_47, %c0_48] : memref<9x4x64xbf16, #tpu.memory_space<vmem>>, vector<1x4x64xbf16>
    %48 = vector.shape_cast %47 : vector<1x4x64xbf16> to vector<4x64xbf16>
    %c8_49 = arith.constant 8 : index
    %c0_50 = arith.constant 0 : index
    %c0_51 = arith.constant 0 : index
    %49 = vector.load %arg1[%c8_49, %c0_50, %c0_51] : memref<9x64x512xbf16, #tpu.memory_space<vmem>>, vector<1x64x512xbf16>
    %50 = vector.shape_cast %49 : vector<1x64x512xbf16> to vector<64x512xbf16>
    %cst_52 = arith.constant dense<0.000000e+00> : vector<4x512xf32>
    %51 = tpu.matmul %48, %50, %cst_52 {dimension_numbers = #tpu.dot_dimension_numbers<[1], [0], [0], [1], [0, 0, 1, 1], [], []>} : vector<4x64xbf16>, vector<64x512xbf16>, vector<4x512xf32> -> vector<4x512xf32>
    %52 = arith.addf %46, %51 : vector<4x512xf32>
    %c0_53 = arith.constant 0 : index
    %c0_54 = arith.constant 0 : index
    %53 = vector.load %arg3[%c0_53, %c0_54] : memref<4x1xf32, #tpu.memory_space<vmem>>, vector<4x1xf32>
    %54 = vector.broadcast %53 : vector<4x1xf32> to vector<4x512xf32>
    %55 = arith.addf %52, %54 : vector<4x512xf32>
    %56 = math.tanh %55 : vector<4x512xf32>
    %c0_55 = arith.constant 0 : index
    %c0_56 = arith.constant 0 : index
    %57 = vector.load %arg4[%c0_55, %c0_56] : memref<4x512xf32, #tpu.memory_space<vmem>>, vector<4x512xf32>
    tpu.vector_store %arg4[%c0_55, %c0_56], %56 {strides = array<i32>} : memref<4x512xf32, #tpu.memory_space<vmem>>, vector<4x512xf32>,
    return
  }
  func.func @transform_0(%arg0: i32) -> (i32, i32, i32) {
    %c0_i32 = arith.constant 0 : i32
    %c0_i32_0 = arith.constant 0 : i32
    %c0_i32_1 = arith.constant 0 : i32
    return %c0_i32, %c0_i32_0, %arg0 : i32, i32, i32
  }
  func.func @transform_1(%arg0: i32) -> (i32, i32, i32) {
    %c0_i32 = arith.constant 0 : i32
    %c0_i32_0 = arith.constant 0 : i32
    %c0_i32_1 = arith.constant 0 : i32
    %c0_i32_2 = arith.constant 0 : i32
    return %c0_i32, %c0_i32_0, %c0_i32_1 : i32, i32, i32
  }
  func.func @transform_2(%arg0: i32) -> (i32, i32) {
    %c0_i32 = arith.constant 0 : i32
    %c0_i32_0 = arith.constant 0 : i32
    %c0_i32_1 = arith.constant 0 : i32
    return %c0_i32, %c0_i32_0 : i32, i32
  }
  func.func @transform_3(%arg0: i32) -> (i32, i32) {
    %c0_i32 = arith.constant 0 : i32
    %c0_i32_0 = arith.constant 0 : i32
    return %c0_i32, %arg0 : i32, i32
  }
}

</mosaic_0001>

<llo_original>
// kernel: generator_forward.4
$region0: #{generator_forward.4}
  #allocation0 [shape = 'u32[]', space=smem, size = 0x4, offset = 0x4, fixed_abs, tag = 'smem constant byte address 0x4 - core index']
  #allocation1 [shape = 'u32[144,128]{1,0:T(1,128)}', space=vmem, size = 0x12000, scoped, tag = 'internal scratch']
  %s0 = inlined_call_operand.vmem [shape: bf16[2,128], index: 0, kind: input, shape index: {}]
  %s1 = inlined_call_operand.hbm [shape: bf16[128,4096], index: 1, kind: input, shape index: {}]
  %s2 = inlined_call_operand.hbm [shape: f32[1,4096], index: 2, kind: input, shape index: {}]
  %s3 = inlined_call_operand.vmem [shape: bf16[2,4096], index: 3, kind: output, shape index: {}]
  %s4 = sld [smem:[#allocation0]]
  $region30: #{generator_forward.4} parent=0
    _
  %s6 = ssub.s32 1, %s4
  %s7 = scalar_select 0, %s6, %s4
  $region1: #{generator_forward.4} parent=0
    #allocation2 [shape = 'u8[1048576]{0}', space=vmem, size = 0x100000, scoped, tag = 'input window, operand 1, single buffered']
    #allocation3 [shape = 's32[1]{0}', space=sflag, size = 0x4, scoped, tag = 'scoped memory for generator_forward.4']
    #allocation4 [shape = 'u8[16384]{0}', space=vmem, size = 0x4000, scoped, tag = 'input window, operand 2, single buffered']
    #allocation5 [shape = 's32[1]{0}', space=sflag, size = 0x4, scoped, tag = 'scoped memory for generator_forward.4']
    %8 = vsyncpa [#allocation3], 0
    %9 = vsyncpa [#allocation5], 0
    // Predicated region
    $region2: #{generator_forward.4} parent=1 // pred_check
      _
    $region3: #{generator_forward.4} parent=1 // pred_check_branch
      %11 = sbr.rel (0) target = $region5
    $region4: #{generator_forward.4} parent=1 // pred_region
      _
    $region5: #{generator_forward.4} parent=1 // pred_fallthru
      _
    // Predicated region
    $region6: #{generator_forward.4} parent=1 // pred_check
      _
    $region7: #{generator_forward.4} parent=1 // pred_check_branch
      %13 = sbr.rel (0) target = $region9
    $region8: #{generator_forward.4} parent=1 // pred_region
      %s15 = ssub.s32 32768, 32768
      %16 = vsyncadd [#allocation3], %s15
      %s17 = sshll.u32 [#allocation2], 4
      %s18 = int_to_ptr.vmem [resolvable:$true] %s17
      %23 = dma.hbm_to_vmem [thread:$0]  %s1, 32768, %s18, [#allocation3], 2048, 2048, 128
    $region9: #{generator_forward.4} parent=1 // pred_fallthru
      _
    // Predicated region
    $region10: #{generator_forward.4} parent=1 // pred_check
      _
    $region11: #{generator_forward.4} parent=1 // pred_check_branch
      %25 = sbr.rel (0) target = $region13
    $region12: #{generator_forward.4} parent=1 // pred_region
      %s27 = ssub.s32 512, 512
      %28 = vsyncadd [#allocation5], %s27
      %s30 = sshll.u32 [#allocation4], 4
      %s31 = int_to_ptr.vmem [resolvable:$true] %s30
      %33 = dma.hbm_to_vmem [thread:$0]  %s2, 512, %s31, [#allocation5]
    $region13: #{generator_forward.4} parent=1 // pred_fallthru
      _
    // Predicated region
    $region14: #{generator_forward.4} parent=1 // pred_check
      _
    $region15: #{generator_forward.4} parent=1 // pred_check_branch
      %35 = sbr.rel (0) target = $region17
    $region16: #{generator_forward.4} parent=1 // pred_region
      %36 = dma.done [#allocation3], 32768
    $region17: #{generator_forward.4} parent=1 // pred_fallthru
      _
    // Predicated region
    $region18: #{generator_forward.4} parent=1 // pred_check
      _
    $region19: #{generator_forward.4} parent=1 // pred_check_branch
      %38 = sbr.rel (0) target = $region21
    $region20: #{generator_forward.4} parent=1 // pred_region
      %39 = dma.done [#allocation5], 512
    $region21: #{generator_forward.4} parent=1 // pred_fallthru
      _
    %v41 = vld [vmem:[%s0] sm:$0x1]
    %v42 = vld [vmem:[#allocation2] sm:$0xff]
    %v43 = vld [vmem:[#allocation2 + $0x8] sm:$0xff]
    %v44 = vld [vmem:[#allocation2 + $0x10] sm:$0xff]
    %v45 = vld [vmem:[#allocation2 + $0x18] sm:$0xff]
    %v46 = vld [vmem:[#allocation2 + $0x20] sm:$0xff]
    %v47 = vld [vmem:[#allocation2 + $0x28] sm:$0xff]
    %v48 = vld [vmem:[#allocation2 + $0x30] sm:$0xff]
    %v49 = vld [vmem:[#allocation2 + $0x38] sm:$0xff]
    %v50 = vld [vmem:[#allocation2 + $0x40] sm:$0xff]
    %v51 = vld [vmem:[#allocation2 + $0x48] sm:$0xff]
    %v52 = vld [vmem:[#allocation2 + $0x50] sm:$0xff]
    %v53 = vld [vmem:[#allocation2 + $0x58] sm:$0xff]
    %v54 = vld [vmem:[#allocation2 + $0x60] sm:$0xff]
    %v55 = vld [vmem:[#allocation2 + $0x68] sm:$0xff]
    %v56 = vld [vmem:[#allocation2 + $0x70] sm:$0xff]
    %v57 = vld [vmem:[#allocation2 + $0x78] sm:$0xff]
    %v58 = vld [vmem:[#allocation2 + $0x80] sm:$0xff]
    %v59 = vld [vmem:[#allocation2 + $0x88] sm:$0xff]
    %v60 = vld [vmem:[#allocation2 + $0x90] sm:$0xff]
    %v61 = vld [vmem:[#allocation2 + $0x98] sm:$0xff]
    %v62 = vld [vmem:[#allocation2 + $0xa0] sm:$0xff]
    %v63 = vld [vmem:[#allocation2 + $0xa8] sm:$0xff]
    %v64 = vld [vmem:[#allocation2 + $0xb0] sm:$0xff]
    %v65 = vld [vmem:[#allocation2 + $0xb8] sm:$0xff]
    %v66 = vld [vmem:[#allocation2 + $0xc0] sm:$0xff]
    %v67 = vld [vmem:[#allocation2 + $0xc8] sm:$0xff]
    %v68 = vld [vmem:[#allocation2 + $0xd0] sm:$0xff]
    %v69 = vld [vmem:[#allocation2 + $0xd8] sm:$0xff]
    %v70 = vld [vmem:[#allocation2 + $0xe0] sm:$0xff]
    %v71 = vld [vmem:[#allocation2 + $0xe8] sm:$0xff]
    %v72 = vld [vmem:[#allocation2 + $0xf0] sm:$0xff]
    %v73 = vld [vmem:[#allocation2 + $0xf8] sm:$0xff]
    %v74 = vld [vmem:[#allocation2 + $0x100] sm:$0xff]
    %v75 = vld [vmem:[#allocation2 + $0x108] sm:$0xff]
    %v76 = vld [vmem:[#allocation2 + $0x110] sm:$0xff]
    %v77 = vld [vmem:[#allocation2 + $0x118] sm:$0xff]
    %v78 = vld [vmem:[#allocation2 + $0x120] sm:$0xff]
    %v79 = vld [vmem:[#allocation2 + $0x128] sm:$0xff]
    %v80 = vld [vmem:[#allocation2 + $0x130] sm:$0xff]
    %v81 = vld [vmem:[#allocation2 + $0x138] sm:$0xff]
    %v82 = vld [vmem:[#allocation2 + $0x140] sm:$0xff]
    %v83 = vld [vmem:[#allocation2 + $0x148] sm:$0xff]
    %v84 = vld [vmem:[#allocation2 + $0x150] sm:$0xff]
    %v85 = vld [vmem:[#allocation2 + $0x158] sm:$0xff]
    %v86 = vld [vmem:[#allocation2 + $0x160] sm:$0xff]
    %v87 = vld [vmem:[#allocation2 + $0x168] sm:$0xff]
    %v88 = vld [vmem:[#allocation2 + $0x170] sm:$0xff]
    %v89 = vld [vmem:[#allocation2 + $0x178] sm:$0xff]
    %v90 = vld [vmem:[#allocation2 + $0x180] sm:$0xff]
    %v91 = vld [vmem:[#allocation2 + $0x188] sm:$0xff]
    %v92 = vld [vmem:[#allocation2 + $0x190] sm:$0xff]
    %v93 = vld [vmem:[#allocation2 + $0x198] sm:$0xff]
    %v94 = vld [vmem:[#allocation2 + $0x1a0] sm:$0xff]
    %v95 = vld [vmem:[#allocation2 + $0x1a8] sm:$0xff]
    %v96 = vld [vmem:[#allocation2 + $0x1b0] sm:$0xff]
    %v97 = vld [vmem:[#allocation2 + $0x1b8] sm:$0xff]
    %v98 = vld [vmem:[#allocation2 + $0x1c0] sm:$0xff]
    %v99 = vld [vmem:[#allocation2 + $0x1c8] sm:$0xff]
    %v100 = vld [vmem:[#allocation2 + $0x1d0] sm:$0xff]
    %v101 = vld [vmem:[#allocation2 + $0x1d8] sm:$0xff]
    %v102 = vld [vmem:[#allocation2 + $0x1e0] sm:$0xff]
    %v103 = vld [vmem:[#allocation2 + $0x1e8] sm:$0xff]
    %v104 = vld [vmem:[#allocation2 + $0x1f0] sm:$0xff]
    %v105 = vld [vmem:[#allocation2 + $0x1f8] sm:$0xff]
    %v106 = vld [vmem:[#allocation2 + $0x200] sm:$0xff]
    %v107 = vld [vmem:[#allocation2 + $0x208] sm:$0xff]
    %v108 = vld [vmem:[#allocation2 + $0x210] sm:$0xff]
    %v109 = vld [vmem:[#allocation2 + $0x218] sm:$0xff]
    %v110 = vld [vmem:[#allocation2 + $0x220] sm:$0xff]
    %v111 = vld [vmem:[#allocation2 + $0x228] sm:$0xff]
    %v112 = vld [vmem:[#allocation2 + $0x230] sm:$0xff]
    %v113 = vld [vmem:[#allocation2 + $0x238] sm:$0xff]
    %v114 = vld [vmem:[#allocation2 + $0x240] sm:$0xff]
    %v115 = vld [vmem:[#allocation2 + $0x248] sm:$0xff]
    %v116 = vld [vmem:[#allocation2 + $0x250] sm:$0xff]
    %v117 = vld [vmem:[#allocation2 + $0x258] sm:$0xff]
    %v118 = vld [vmem:[#allocation2 + $0x260] sm:$0xff]
    %v119 = vld [vmem:[#allocation2 + $0x268] sm:$0xff]
    %v120 = vld [vmem:[#allocation2 + $0x270] sm:$0xff]
    %v121 = vld [vmem:[#allocation2 + $0x278] sm:$0xff]
    %v122 = vld [vmem:[#allocation2 + $0x280] sm:$0xff]
    %v123 = vld [vmem:[#allocation2 + $0x288] sm:$0xff]
    %v124 = vld [vmem:[#allocation2 + $0x290] sm:$0xff]
    %v125 = vld [vmem:[#allocation2 + $0x298] sm:$0xff]
    %v126 = vld [vmem:[#allocation2 + $0x2a0] sm:$0xff]
    %v127 = vld [vmem:[#allocation2 + $0x2a8] sm:$0xff]
    %v128 = vld [vmem:[#allocation2 + $0x2b0] sm:$0xff]
    %v129 = vld [vmem:[#allocation2 + $0x2b8] sm:$0xff]
    %v130 = vld [vmem:[#allocation2 + $0x2c0] sm:$0xff]
    %v131 = vld [vmem:[#allocation2 + $0x2c8] sm:$0xff]
    %v132 = vld [vmem:[#allocation2 + $0x2d0] sm:$0xff]
    %v133 = vld [vmem:[#allocation2 + $0x2d8] sm:$0xff]
    %v134 = vld [vmem:[#allocation2 + $0x2e0] sm:$0xff]
    %v135 = vld [vmem:[#allocation2 + $0x2e8] sm:$0xff]
    %v136 = vld [vmem:[#allocation2 + $0x2f0] sm:$0xff]
    %v137 = vld [vmem:[#allocation2 + $0x2f8] sm:$0xff]
    %v138 = vld [vmem:[#allocation2 + $0x300] sm:$0xff]
    %v139 = vld [vmem:[#allocation2 + $0x308] sm:$0xff]
    %v140 = vld [vmem:[#allocation2 + $0x310] sm:$0xff]
    %v141 = vld [vmem:[#allocation2 + $0x318] sm:$0xff]
    %v142 = vld [vmem:[#allocation2 + $0x320] sm:$0xff]
    %v143 = vld [vmem:[#allocation2 + $0x328] sm:$0xff]
    %v144 = vld [vmem:[#allocation2 + $0x330] sm:$0xff]
    %v145 = vld [vmem:[#allocation2 + $0x338] sm:$0xff]
    %v146 = vld [vmem:[#allocation2 + $0x340] sm:$0xff]
    %v147 = vld [vmem:[#allocation2 + $0x348] sm:$0xff]
    %v148 = vld [vmem:[#allocation2 + $0x350] sm:$0xff]
    %v149 = vld [vmem:[#allocation2 + $0x358] sm:$0xff]
    %v150 = vld [vmem:[#allocation2 + $0x360] sm:$0xff]
    %v151 = vld [vmem:[#allocation2 + $0x368] sm:$0xff]
    %v152 = vld [vmem:[#allocation2 + $0x370] sm:$0xff]
    %v153 = vld [vmem:[#allocation2 + $0x378] sm:$0xff]
    %v154 = vld [vmem:[#allocation2 + $0x380] sm:$0xff]
    %v155 = vld [vmem:[#allocation2 + $0x388] sm:$0xff]
    %v156 = vld [vmem:[#allocation2 + $0x390] sm:$0xff]
    %v157 = vld [vmem:[#allocation2 + $0x398] sm:$0xff]
    %v158 = vld [vmem:[#allocation2 + $0x3a0] sm:$0xff]
    %v159 = vld [vmem:[#allocation2 + $0x3a8] sm:$0xff]
    %v160 = vld [vmem:[#allocation2 + $0x3b0] sm:$0xff]
    %v161 = vld [vmem:[#allocation2 + $0x3b8] sm:$0xff]
    %v162 = vld [vmem:[#allocation2 + $0x3c0] sm:$0xff]
    %v163 = vld [vmem:[#allocation2 + $0x3c8] sm:$0xff]
    %v164 = vld [vmem:[#allocation2 + $0x3d0] sm:$0xff]
    %v165 = vld [vmem:[#allocation2 + $0x3d8] sm:$0xff]
    %v166 = vld [vmem:[#allocation2 + $0x3e0] sm:$0xff]
    %v167 = vld [vmem:[#allocation2 + $0x3e8] sm:$0xff]
    %v168 = vld [vmem:[#allocation2 + $0x3f0] sm:$0xff]
    %v169 = vld [vmem:[#allocation2 + $0x3f8] sm:$0xff]
    %v170 = vld [vmem:[#allocation2 + $0x400] sm:$0xff]
    %v171 = vld [vmem:[#allocation2 + $0x408] sm:$0xff]
    %v172 = vld [vmem:[#allocation2 + $0x410] sm:$0xff]
    %v173 = vld [vmem:[#allocation2 + $0x418] sm:$0xff]
    %v174 = vld [vmem:[#allocation2 + $0x420] sm:$0xff]
    %v175 = vld [vmem:[#allocation2 + $0x428] sm:$0xff]
    %v176 = vld [vmem:[#allocation2 + $0x430] sm:$0xff]
    %v177 = vld [vmem:[#allocation2 + $0x438] sm:$0xff]
    %v178 = vld [vmem:[#allocation2 + $0x440] sm:$0xff]
    %v179 = vld [vmem:[#allocation2 + $0x448] sm:$0xff]
    %v180 = vld [vmem:[#allocation2 + $0x450] sm:$0xff]
    %v181 = vld [vmem:[#allocation2 + $0x458] sm:$0xff]
    %v182 = vld [vmem:[#allocation2 + $0x460] sm:$0xff]
    %v183 = vld [vmem:[#allocation2 + $0x468] sm:$0xff]
    %v184 = vld [vmem:[#allocation2 + $0x470] sm:$0xff]
    %v185 = vld [vmem:[#allocation2 + $0x478] sm:$0xff]
    %v186 = vld [vmem:[#allocation2 + $0x480] sm:$0xff]
    %v187 = vld [vmem:[#allocation2 + $0x488] sm:$0xff]
    %v188 = vld [vmem:[#allocation2 + $0x490] sm:$0xff]
    %v189 = vld [vmem:[#allocation2 + $0x498] sm:$0xff]
    %v190 = vld [vmem:[#allocation2 + $0x4a0] sm:$0xff]
    %v191 = vld [vmem:[#allocation2 + $0x4a8] sm:$0xff]
    %v192 = vld [vmem:[#allocation2 + $0x4b0] sm:$0xff]
    %v193 = vld [vmem:[#allocation2 + $0x4b8] sm:$0xff]
    %v194 = vld [vmem:[#allocation2 + $0x4c0] sm:$0xff]
    %v195 = vld [vmem:[#allocation2 + $0x4c8] sm:$0xff]
    %v196 = vld [vmem:[#allocation2 + $0x4d0] sm:$0xff]
    %v197 = vld [vmem:[#allocation2 + $0x4d8] sm:$0xff]
    %v198 = vld [vmem:[#allocation2 + $0x4e0] sm:$0xff]
    %v199 = vld [vmem:[#allocation2 + $0x4e8] sm:$0xff]
    %v200 = vld [vmem:[#allocation2 + $0x4f0] sm:$0xff]
    %v201 = vld [vmem:[#allocation2 + $0x4f8] sm:$0xff]
    %v202 = vld [vmem:[#allocation2 + $0x500] sm:$0xff]
    %v203 = vld [vmem:[#allocation2 + $0x508] sm:$0xff]
    %v204 = vld [vmem:[#allocation2 + $0x510] sm:$0xff]
    %v205 = vld [vmem:[#allocation2 + $0x518] sm:$0xff]
    %v206 = vld [vmem:[#allocation2 + $0x520] sm:$0xff]
    %v207 = vld [vmem:[#allocation2 + $0x528] sm:$0xff]
    %v208 = vld [vmem:[#allocation2 + $0x530] sm:$0xff]
    %v209 = vld [vmem:[#allocation2 + $0x538] sm:$0xff]
    %v210 = vld [vmem:[#allocation2 + $0x540] sm:$0xff]
    %v211 = vld [vmem:[#allocation2 + $0x548] sm:$0xff]
    %v212 = vld [vmem:[#allocation2 + $0x550] sm:$0xff]
    %v213 = vld [vmem:[#allocation2 + $0x558] sm:$0xff]
    %v214 = vld [vmem:[#allocation2 + $0x560] sm:$0xff]
    %v215 = vld [vmem:[#allocation2 + $0x568] sm:$0xff]
    %v216 = vld [vmem:[#allocation2 + $0x570] sm:$0xff]
    %v217 = vld [vmem:[#allocation2 + $0x578] sm:$0xff]
    %v218 = vld [vmem:[#allocation2 + $0x580] sm:$0xff]
    %v219 = vld [vmem:[#allocation2 + $0x588] sm:$0xff]
    %v220 = vld [vmem:[#allocation2 + $0x590] sm:$0xff]
    %v221 = vld [vmem:[#allocation2 + $0x598] sm:$0xff]
    %v222 = vld [vmem:[#allocation2 + $0x5a0] sm:$0xff]
    %v223 = vld [vmem:[#allocation2 + $0x5a8] sm:$0xff]
    %v224 = vld [vmem:[#allocation2 + $0x5b0] sm:$0xff]
    %v225 = vld [vmem:[#allocation2 + $0x5b8] sm:$0xff]
    %v226 = vld [vmem:[#allocation2 + $0x5c0] sm:$0xff]
    %v227 = vld [vmem:[#allocation2 + $0x5c8] sm:$0xff]
    %v228 = vld [vmem:[#allocation2 + $0x5d0] sm:$0xff]
    %v229 = vld [vmem:[#allocation2 + $0x5d8] sm:$0xff]
    %v230 = vld [vmem:[#allocation2 + $0x5e0] sm:$0xff]
    %v231 = vld [vmem:[#allocation2 + $0x5e8] sm:$0xff]
    %v232 = vld [vmem:[#allocation2 + $0x5f0] sm:$0xff]
    %v233 = vld [vmem:[#allocation2 + $0x5f8] sm:$0xff]
    %v234 = vld [vmem:[#allocation2 + $0x600] sm:$0xff]
    %v235 = vld [vmem:[#allocation2 + $0x608] sm:$0xff]
    %v236 = vld [vmem:[#allocation2 + $0x610] sm:$0xff]
    %v237 = vld [vmem:[#allocation2 + $0x618] sm:$0xff]
    %v238 = vld [vmem:[#allocation2 + $0x620] sm:$0xff]
    %v239 = vld [vmem:[#allocation2 + $0x628] sm:$0xff]
    %v240 = vld [vmem:[#allocation2 + $0x630] sm:$0xff]
    %v241 = vld [vmem:[#allocation2 + $0x638] sm:$0xff]
    %v242 = vld [vmem:[#allocation2 + $0x640] sm:$0xff]
    %v243 = vld [vmem:[#allocation2 + $0x648] sm:$0xff]
    %v244 = vld [vmem:[#allocation2 + $0x650] sm:$0xff]
    %v245 = vld [vmem:[#allocation2 + $0x658] sm:$0xff]
    %v246 = vld [vmem:[#allocation2 + $0x660] sm:$0xff]
    %v247 = vld [vmem:[#allocation2 + $0x668] sm:$0xff]
    %v248 = vld [vmem:[#allocation2 + $0x670] sm:$0xff]
    %v249 = vld [vmem:[#allocation2 + $0x678] sm:$0xff]
    %v250 = vld [vmem:[#allocation2 + $0x680] sm:$0xff]
    %v251 = vld [vmem:[#allocation2 + $0x688] sm:$0xff]
    %v252 = vld [vmem:[#allocation2 + $0x690] sm:$0xff]
    %v253 = vld [vmem:[#allocation2 + $0x698] sm:$0xff]
    %v254 = vld [vmem:[#allocation2 + $0x6a0] sm:$0xff]
    %v255 = vld [vmem:[#allocation2 + $0x6a8] sm:$0xff]
    %v256 = vld [vmem:[#allocation2 + $0x6b0] sm:$0xff]
    %v257 = vld [vmem:[#allocation2 + $0x6b8] sm:$0xff]
    %v258 = vld [vmem:[#allocation2 + $0x6c0] sm:$0xff]
    %v259 = vld [vmem:[#allocation2 + $0x6c8] sm:$0xff]
    %v260 = vld [vmem:[#allocation2 + $0x6d0] sm:$0xff]
    %v261 = vld [vmem:[#allocation2 + $0x6d8] sm:$0xff]
    %v262 = vld [vmem:[#allocation2 + $0x6e0] sm:$0xff]
    %v263 = vld [vmem:[#allocation2 + $0x6e8] sm:$0xff]
    %v264 = vld [vmem:[#allocation2 + $0x6f0] sm:$0xff]
    %v265 = vld [vmem:[#allocation2 + $0x6f8] sm:$0xff]
    %v266 = vld [vmem:[#allocation2 + $0x700] sm:$0xff]
    %v267 = vld [vmem:[#allocation2 + $0x708] sm:$0xff]
    %v268 = vld [vmem:[#allocation2 + $0x710] sm:$0xff]
    %v269 = vld [vmem:[#allocation2 + $0x718] sm:$0xff]
    %v270 = vld [vmem:[#allocation2 + $0x720] sm:$0xff]
    %v271 = vld [vmem:[#allocation2 + $0x728] sm:$0xff]
    %v272 = vld [vmem:[#allocation2 + $0x730] sm:$0xff]
    %v273 = vld [vmem:[#allocation2 + $0x738] sm:$0xff]
    %v274 = vld [vmem:[#allocation2 + $0x740] sm:$0xff]
    %v275 = vld [vmem:[#allocation2 + $0x748] sm:$0xff]
    %v276 = vld [vmem:[#allocation2 + $0x750] sm:$0xff]
    %v277 = vld [vmem:[#allocation2 + $0x758] sm:$0xff]
    %v278 = vld [vmem:[#allocation2 + $0x760] sm:$0xff]
    %v279 = vld [vmem:[#allocation2 + $0x768] sm:$0xff]
    %v280 = vld [vmem:[#allocation2 + $0x770] sm:$0xff]
    %v281 = vld [vmem:[#allocation2 + $0x778] sm:$0xff]
    %v282 = vld [vmem:[#allocation2 + $0x780] sm:$0xff]
    %v283 = vld [vmem:[#allocation2 + $0x788] sm:$0xff]
    %v284 = vld [vmem:[#allocation2 + $0x790] sm:$0xff]
    %v285 = vld [vmem:[#allocation2 + $0x798] sm:$0xff]
    %v286 = vld [vmem:[#allocation2 + $0x7a0] sm:$0xff]
    %v287 = vld [vmem:[#allocation2 + $0x7a8] sm:$0xff]
    %v288 = vld [vmem:[#allocation2 + $0x7b0] sm:$0xff]
    %v289 = vld [vmem:[#allocation2 + $0x7b8] sm:$0xff]
    %v290 = vld [vmem:[#allocation2 + $0x7c0] sm:$0xff]
    %v291 = vld [vmem:[#allocation2 + $0x7c8] sm:$0xff]
    %v292 = vld [vmem:[#allocation2 + $0x7d0] sm:$0xff]
    %v293 = vld [vmem:[#allocation2 + $0x7d8] sm:$0xff]
    %v294 = vld [vmem:[#allocation2 + $0x7e0] sm:$0xff]
    %v295 = vld [vmem:[#allocation2 + $0x7e8] sm:$0xff]
    %v296 = vld [vmem:[#allocation2 + $0x7f0] sm:$0xff]
    %v297 = vld [vmem:[#allocation2 + $0x7f8] sm:$0xff]
    %v298 = vld [vmem:[#allocation4] sm:$0xff]
    %v299 = vld [vmem:[#allocation4 + $0x8] sm:$0xff]
    %v300 = vld [vmem:[#allocation4 + $0x10] sm:$0xff]
    %v301 = vld [vmem:[#allocation4 + $0x18] sm:$0xff]
    %v306 = vlaneseq
    %v307 = vshrl.u32 %v306, 7
    %v308 = vsub.s32 0, %v307
    %v309 = vrot.slane %v298, %v308
    %v310 = vlaneseq
    %v311 = vshrl.u32 %v310, 7
    %v312 = vsub.s32 1, %v311
    %v313 = vrot.slane %v298, %v312
    %v314 = vlaneseq
    %v315 = vshrl.u32 %v314, 7
    %v316 = vsub.s32 2, %v315
    %v317 = vrot.slane %v298, %v316
    %v318 = vlaneseq
    %v319 = vshrl.u32 %v318, 7
    %v320 = vsub.s32 3, %v319
    %v321 = vrot.slane %v298, %v320
    %v322 = vlaneseq
    %v323 = vshrl.u32 %v322, 7
    %v324 = vsub.s32 4, %v323
    %v325 = vrot.slane %v298, %v324
    %v326 = vlaneseq
    %v327 = vshrl.u32 %v326, 7
    %v328 = vsub.s32 5, %v327
    %v329 = vrot.slane %v298, %v328
    %v330 = vlaneseq
    %v331 = vshrl.u32 %v330, 7
    %v332 = vsub.s32 6, %v331
    %v333 = vrot.slane %v298, %v332
    %v334 = vlaneseq
    %v335 = vshrl.u32 %v334, 7
    %v336 = vsub.s32 7, %v335
    %v337 = vrot.slane %v298, %v336
    %v338 = vlaneseq
    %v339 = vshrl.u32 %v338, 7
    %v340 = vsub.s32 0, %v339
    %v341 = vrot.slane %v299, %v340
    %v342 = vlaneseq
    %v343 = vshrl.u32 %v342, 7
    %v344 = vsub.s32 1, %v343
    %v345 = vrot.slane %v299, %v344
    %v346 = vlaneseq
    %v347 = vshrl.u32 %v346, 7
    %v348 = vsub.s32 2, %v347
    %v349 = vrot.slane %v299, %v348
    %v350 = vlaneseq
    %v351 = vshrl.u32 %v350, 7
    %v352 = vsub.s32 3, %v351
    %v353 = vrot.slane %v299, %v352
    %v354 = vlaneseq
    %v355 = vshrl.u32 %v354, 7
    %v356 = vsub.s32 4, %v355
    %v357 = vrot.slane %v299, %v356
    %v358 = vlaneseq
    %v359 = vshrl.u32 %v358, 7
    %v360 = vsub.s32 5, %v359
    %v361 = vrot.slane %v299, %v360
    %v362 = vlaneseq
    %v363 = vshrl.u32 %v362, 7
    %v364 = vsub.s32 6, %v363
    %v365 = vrot.slane %v299, %v364
    %v366 = vlaneseq
    %v367 = vshrl.u32 %v366, 7
    %v368 = vsub.s32 7, %v367
    %v369 = vrot.slane %v299, %v368
    %v370 = vlaneseq
    %v371 = vshrl.u32 %v370, 7
    %v372 = vsub.s32 0, %v371
    %v373 = vrot.slane %v300, %v372
    %v374 = vlaneseq
    %v375 = vshrl.u32 %v374, 7
    %v376 = vsub.s32 1, %v375
    %v377 = vrot.slane %v300, %v376
    %v378 = vlaneseq
    %v379 = vshrl.u32 %v378, 7
    %v380 = vsub.s32 2, %v379
    %v381 = vrot.slane %v300, %v380
    %v382 = vlaneseq
    %v383 = vshrl.u32 %v382, 7
    %v384 = vsub.s32 3, %v383
    %v385 = vrot.slane %v300, %v384
    %v386 = vlaneseq
    %v387 = vshrl.u32 %v386, 7
    %v388 = vsub.s32 4, %v387
    %v389 = vrot.slane %v300, %v388
    %v390 = vlaneseq
    %v391 = vshrl.u32 %v390, 7
    %v392 = vsub.s32 5, %v391
    %v393 = vrot.slane %v300, %v392
    %v394 = vlaneseq
    %v395 = vshrl.u32 %v394, 7
    %v396 = vsub.s32 6, %v395
    %v397 = vrot.slane %v300, %v396
    %v398 = vlaneseq
    %v399 = vshrl.u32 %v398, 7
    %v400 = vsub.s32 7, %v399
    %v401 = vrot.slane %v300, %v400
    %v402 = vlaneseq
    %v403 = vshrl.u32 %v402, 7
    %v404 = vsub.s32 0, %v403
    %v405 = vrot.slane %v301, %v404
    %v406 = vlaneseq
    %v407 = vshrl.u32 %v406, 7
    %v408 = vsub.s32 1, %v407
    %v409 = vrot.slane %v301, %v408
    %v410 = vlaneseq
    %v411 = vshrl.u32 %v410, 7
    %v412 = vsub.s32 2, %v411
    %v413 = vrot.slane %v301, %v412
    %v414 = vlaneseq
    %v415 = vshrl.u32 %v414, 7
    %v416 = vsub.s32 3, %v415
    %v417 = vrot.slane %v301, %v416
    %v418 = vlaneseq
    %v419 = vshrl.u32 %v418, 7
    %v420 = vsub.s32 4, %v419
    %v421 = vrot.slane %v301, %v420
    %v422 = vlaneseq
    %v423 = vshrl.u32 %v422, 7
    %v424 = vsub.s32 5, %v423
    %v425 = vrot.slane %v301, %v424
    %v426 = vlaneseq
    %v427 = vshrl.u32 %v426, 7
    %v428 = vsub.s32 6, %v427
    %v429 = vrot.slane %v301, %v428
    %v430 = vlaneseq
    %v431 = vshrl.u32 %v430, 7
    %v432 = vsub.s32 7, %v431
    %v433 = vrot.slane %v301, %v432
    %v722 = vunpack.c.l.b16 %v42
    %v723 = vunpack.c.h.b16 %v42
    %v724 = vunpack.c.l.b16 %v43
    %v725 = vunpack.c.h.b16 %v43
    %v726 = vunpack.c.l.b16 %v44
    %v727 = vunpack.c.h.b16 %v44
    %v728 = vunpack.c.l.b16 %v45
    %v729 = vunpack.c.h.b16 %v45
    %v730 = vunpack.c.l.b16 %v46
    %v731 = vunpack.c.h.b16 %v46
    %v732 = vunpack.c.l.b16 %v47
    %v733 = vunpack.c.h.b16 %v47
    %v734 = vunpack.c.l.b16 %v48
    %v735 = vunpack.c.h.b16 %v48
    %v736 = vunpack.c.l.b16 %v49
    %v737 = vunpack.c.h.b16 %v49
    %v738 = vunpack.c.l.b16 %v50
    %v739 = vunpack.c.h.b16 %v50
    %v740 = vunpack.c.l.b16 %v51
    %v741 = vunpack.c.h.b16 %v51
    %v742 = vunpack.c.l.b16 %v52
    %v743 = vunpack.c.h.b16 %v52
    %v744 = vunpack.c.l.b16 %v53
    %v745 = vunpack.c.h.b16 %v53
    %v746 = vunpack.c.l.b16 %v54
    %v747 = vunpack.c.h.b16 %v54
    %v748 = vunpack.c.l.b16 %v55
    %v749 = vunpack.c.h.b16 %v55
    %v750 = vunpack.c.l.b16 %v56
    %v751 = vunpack.c.h.b16 %v56
    %v752 = vunpack.c.l.b16 %v57
    %v753 = vunpack.c.h.b16 %v57
    %v754 = vunpack.c.l.b16 %v58
    %v755 = vunpack.c.h.b16 %v58
    %v756 = vunpack.c.l.b16 %v59
    %v757 = vunpack.c.h.b16 %v59
    %v758 = vunpack.c.l.b16 %v60
    %v759 = vunpack.c.h.b16 %v60
    %v760 = vunpack.c.l.b16 %v61
    %v761 = vunpack.c.h.b16 %v61
    %v762 = vunpack.c.l.b16 %v62
    %v763 = vunpack.c.h.b16 %v62
    %v764 = vunpack.c.l.b16 %v63
    %v765 = vunpack.c.h.b16 %v63
    %v766 = vunpack.c.l.b16 %v64
    %v767 = vunpack.c.h.b16 %v64
    %v768 = vunpack.c.l.b16 %v65
    %v769 = vunpack.c.h.b16 %v65
    %v770 = vunpack.c.l.b16 %v66
    %v771 = vunpack.c.h.b16 %v66
    %v772 = vunpack.c.l.b16 %v67
    %v773 = vunpack.c.h.b16 %v67
    %v774 = vunpack.c.l.b16 %v68
    %v775 = vunpack.c.h.b16 %v68
    %v776 = vunpack.c.l.b16 %v69
    %v777 = vunpack.c.h.b16 %v69
    %v778 = vunpack.c.l.b16 %v70
    %v779 = vunpack.c.h.b16 %v70
    %v780 = vunpack.c.l.b16 %v71
    %v781 = vunpack.c.h.b16 %v71
    %v782 = vunpack.c.l.b16 %v72
    %v783 = vunpack.c.h.b16 %v72
    %v784 = vunpack.c.l.b16 %v73
    %v785 = vunpack.c.h.b16 %v73
    %v786 = vunpack.c.l.b16 %v74
    %v787 = vunpack.c.h.b16 %v74
    %v788 = vunpack.c.l.b16 %v75
    %v789 = vunpack.c.h.b16 %v75
    %v790 = vunpack.c.l.b16 %v76
    %v791 = vunpack.c.h.b16 %v76
    %v792 = vunpack.c.l.b16 %v77
    %v793 = vunpack.c.h.b16 %v77
    %v794 = vunpack.c.l.b16 %v78
    %v795 = vunpack.c.h.b16 %v78
    %v796 = vunpack.c.l.b16 %v79
    %v797 = vunpack.c.h.b16 %v79
    %v798 = vunpack.c.l.b16 %v80
    %v799 = vunpack.c.h.b16 %v80
    %v800 = vunpack.c.l.b16 %v81
    %v801 = vunpack.c.h.b16 %v81
    %v802 = vunpack.c.l.b16 %v82
    %v803 = vunpack.c.h.b16 %v82
    %v804 = vunpack.c.l.b16 %v83
    %v805 = vunpack.c.h.b16 %v83
    %v806 = vunpack.c.l.b16 %v84
    %v807 = vunpack.c.h.b16 %v84
    %v808 = vunpack.c.l.b16 %v85
    %v809 = vunpack.c.h.b16 %v85
    %v810 = vunpack.c.l.b16 %v86
    %v811 = vunpack.c.h.b16 %v86
    %v812 = vunpack.c.l.b16 %v87
    %v813 = vunpack.c.h.b16 %v87
    %v814 = vunpack.c.l.b16 %v88
    %v815 = vunpack.c.h.b16 %v88
    %v816 = vunpack.c.l.b16 %v89
    %v817 = vunpack.c.h.b16 %v89
    %v818 = vunpack.c.l.b16 %v90
    %v819 = vunpack.c.h.b16 %v90
    %v820 = vunpack.c.l.b16 %v91
    %v821 = vunpack.c.h.b16 %v91
    %v822 = vunpack.c.l.b16 %v92
    %v823 = vunpack.c.h.b16 %v92
    %v824 = vunpack.c.l.b16 %v93
    %v825 = vunpack.c.h.b16 %v93
    %v826 = vunpack.c.l.b16 %v94
    %v827 = vunpack.c.h.b16 %v94
    %v828 = vunpack.c.l.b16 %v95
    %v829 = vunpack.c.h.b16 %v95
    %v830 = vunpack.c.l.b16 %v96
    %v831 = vunpack.c.h.b16 %v96
    %v832 = vunpack.c.l.b16 %v97
    %v833 = vunpack.c.h.b16 %v97
    %v834 = vunpack.c.l.b16 %v98
    %v835 = vunpack.c.h.b16 %v98
    %v836 = vunpack.c.l.b16 %v99
    %v837 = vunpack.c.h.b16 %v99
    %v838 = vunpack.c.l.b16 %v100
    %v839 = vunpack.c.h.b16 %v100
    %v840 = vunpack.c.l.b16 %v101
    %v841 = vunpack.c.h.b16 %v101
    %v842 = vunpack.c.l.b16 %v102
    %v843 = vunpack.c.h.b16 %v102
    %v844 = vunpack.c.l.b16 %v103
    %v845 = vunpack.c.h.b16 %v103
    %v846 = vunpack.c.l.b16 %v104
    %v847 = vunpack.c.h.b16 %v104
    %v848 = vunpack.c.l.b16 %v105
    %v849 = vunpack.c.h.b16 %v105
    %v850 = vunpack.c.l.b16 %v106
    %v851 = vunpack.c.h.b16 %v106
    %v852 = vunpack.c.l.b16 %v107
    %v853 = vunpack.c.h.b16 %v107
    %v854 = vunpack.c.l.b16 %v108
    %v855 = vunpack.c.h.b16 %v108
    %v856 = vunpack.c.l.b16 %v109
    %v857 = vunpack.c.h.b16 %v109
    %v858 = vunpack.c.l.b16 %v110
    %v859 = vunpack.c.h.b16 %v110
    %v860 = vunpack.c.l.b16 %v111
    %v861 = vunpack.c.h.b16 %v111
    %v862 = vunpack.c.l.b16 %v112
    %v863 = vunpack.c.h.b16 %v112
    %v864 = vunpack.c.l.b16 %v113
    %v865 = vunpack.c.h.b16 %v113
    %v866 = vunpack.c.l.b16 %v114
    %v867 = vunpack.c.h.b16 %v114
    %v868 = vunpack.c.l.b16 %v115
    %v869 = vunpack.c.h.b16 %v115
    %v870 = vunpack.c.l.b16 %v116
    %v871 = vunpack.c.h.b16 %v116
    %v872 = vunpack.c.l.b16 %v117
    %v873 = vunpack.c.h.b16 %v117
    %v874 = vunpack.c.l.b16 %v118
    %v875 = vunpack.c.h.b16 %v118
    %v876 = vunpack.c.l.b16 %v119
    %v877 = vunpack.c.h.b16 %v119
    %v878 = vunpack.c.l.b16 %v120
    %v879 = vunpack.c.h.b16 %v120
    %v880 = vunpack.c.l.b16 %v121
    %v881 = vunpack.c.h.b16 %v121
    %v882 = vunpack.c.l.b16 %v122
    %v883 = vunpack.c.h.b16 %v122
    %v884 = vunpack.c.l.b16 %v123
    %v885 = vunpack.c.h.b16 %v123
    %v886 = vunpack.c.l.b16 %v124
    %v887 = vunpack.c.h.b16 %v124
    %v888 = vunpack.c.l.b16 %v125
    %v889 = vunpack.c.h.b16 %v125
    %v890 = vunpack.c.l.b16 %v126
    %v891 = vunpack.c.h.b16 %v126
    %v892 = vunpack.c.l.b16 %v127
    %v893 = vunpack.c.h.b16 %v127
    %v894 = vunpack.c.l.b16 %v128
    %v895 = vunpack.c.h.b16 %v128
    %v896 = vunpack.c.l.b16 %v129
    %v897 = vunpack.c.h.b16 %v129
    %v898 = vunpack.c.l.b16 %v130
    %v899 = vunpack.c.h.b16 %v130
    %v900 = vunpack.c.l.b16 %v131
    %v901 = vunpack.c.h.b16 %v131
    %v902 = vunpack.c.l.b16 %v132
    %v903 = vunpack.c.h.b16 %v132
    %v904 = vunpack.c.l.b16 %v133
    %v905 = vunpack.c.h.b16 %v133
    %v906 = vunpack.c.l.b16 %v134
    %v907 = vunpack.c.h.b16 %v134
    %v908 = vunpack.c.l.b16 %v135
    %v909 = vunpack.c.h.b16 %v135
    %v910 = vunpack.c.l.b16 %v136
    %v911 = vunpack.c.h.b16 %v136
    %v912 = vunpack.c.l.b16 %v137
    %v913 = vunpack.c.h.b16 %v137
    %v914 = vunpack.c.l.b16 %v138
    %v915 = vunpack.c.h.b16 %v138
    %v916 = vunpack.c.l.b16 %v139
    %v917 = vunpack.c.h.b16 %v139
    %v918 = vunpack.c.l.b16 %v140
    %v919 = vunpack.c.h.b16 %v140
    %v920 = vunpack.c.l.b16 %v141
    %v921 = vunpack.c.h.b16 %v141
    %v922 = vunpack.c.l.b16 %v142
    %v923 = vunpack.c.h.b16 %v142
    %v924 = vunpack.c.l.b16 %v143
    %v925 = vunpack.c.h.b16 %v143
    %v926 = vunpack.c.l.b16 %v144
    %v927 = vunpack.c.h.b16 %v144
    %v928 = vunpack.c.l.b16 %v145
    %v929 = vunpack.c.h.b16 %v145
    %v930 = vunpack.c.l.b16 %v146
    %v931 = vunpack.c.h.b16 %v146
    %v932 = vunpack.c.l.b16 %v147
    %v933 = vunpack.c.h.b16 %v147
    %v934 = vunpack.c.l.b16 %v148
    %v935 = vunpack.c.h.b16 %v148
    %v936 = vunpack.c.l.b16 %v149
    %v937 = vunpack.c.h.b16 %v149
    %v938 = vunpack.c.l.b16 %v150
    %v939 = vunpack.c.h.b16 %v150
    %v940 = vunpack.c.l.b16 %v151
    %v941 = vunpack.c.h.b16 %v151
    %v942 = vunpack.c.l.b16 %v152
    %v943 = vunpack.c.h.b16 %v152
    %v944 = vunpack.c.l.b16 %v153
    %v945 = vunpack.c.h.b16 %v153
    %v946 = vunpack.c.l.b16 %v154
    %v947 = vunpack.c.h.b16 %v154
    %v948 = vunpack.c.l.b16 %v155
    %v949 = vunpack.c.h.b16 %v155
    %v950 = vunpack.c.l.b16 %v156
    %v951 = vunpack.c.h.b16 %v156
    %v952 = vunpack.c.l.b16 %v157
    %v953 = vunpack.c.h.b16 %v157
    %v954 = vunpack.c.l.b16 %v158
    %v955 = vunpack.c.h.b16 %v158
    %v956 = vunpack.c.l.b16 %v159
    %v957 = vunpack.c.h.b16 %v159
    %v958 = vunpack.c.l.b16 %v160
    %v959 = vunpack.c.h.b16 %v160
    %v960 = vunpack.c.l.b16 %v161
    %v961 = vunpack.c.h.b16 %v161
    %v962 = vunpack.c.l.b16 %v162
    %v963 = vunpack.c.h.b16 %v162
    %v964 = vunpack.c.l.b16 %v163
    %v965 = vunpack.c.h.b16 %v163
    %v966 = vunpack.c.l.b16 %v164
    %v967 = vunpack.c.h.b16 %v164
    %v968 = vunpack.c.l.b16 %v165
    %v969 = vunpack.c.h.b16 %v165
    %v970 = vunpack.c.l.b16 %v166
    %v971 = vunpack.c.h.b16 %v166
    %v972 = vunpack.c.l.b16 %v167
    %v973 = vunpack.c.h.b16 %v167
    %v974 = vunpack.c.l.b16 %v168
    %v975 = vunpack.c.h.b16 %v168
    %v976 = vunpack.c.l.b16 %v169
    %v977 = vunpack.c.h.b16 %v169
    %v978 = vunpack.c.l.b16 %v170
    %v979 = vunpack.c.h.b16 %v170
    %v980 = vunpack.c.l.b16 %v171
    %v981 = vunpack.c.h.b16 %v171
    %v982 = vunpack.c.l.b16 %v172
    %v983 = vunpack.c.h.b16 %v172
    %v984 = vunpack.c.l.b16 %v173
    %v985 = vunpack.c.h.b16 %v173
    %v986 = vunpack.c.l.b16 %v174
    %v987 = vunpack.c.h.b16 %v174
    %v988 = vunpack.c.l.b16 %v175
    %v989 = vunpack.c.h.b16 %v175
    %v990 = vunpack.c.l.b16 %v176
    %v991 = vunpack.c.h.b16 %v176
    %v992 = vunpack.c.l.b16 %v177
    %v993 = vunpack.c.h.b16 %v177
    %v994 = vunpack.c.l.b16 %v178
    %v995 = vunpack.c.h.b16 %v178
    %v996 = vunpack.c.l.b16 %v179
    %v997 = vunpack.c.h.b16 %v179
    %v998 = vunpack.c.l.b16 %v180
    %v999 = vunpack.c.h.b16 %v180
    %v1000 = vunpack.c.l.b16 %v181
    %v1001 = vunpack.c.h.b16 %v181
    %v1002 = vunpack.c.l.b16 %v182
    %v1003 = vunpack.c.h.b16 %v182
    %v1004 = vunpack.c.l.b16 %v183
    %v1005 = vunpack.c.h.b16 %v183
    %v1006 = vunpack.c.l.b16 %v184
    %v1007 = vunpack.c.h.b16 %v184
    %v1008 = vunpack.c.l.b16 %v185
    %v1009 = vunpack.c.h.b16 %v185
    %v1010 = vunpack.c.l.b16 %v186
    %v1011 = vunpack.c.h.b16 %v186
    %v1012 = vunpack.c.l.b16 %v187
    %v1013 = vunpack.c.h.b16 %v187
    %v1014 = vunpack.c.l.b16 %v188
    %v1015 = vunpack.c.h.b16 %v188
    %v1016 = vunpack.c.l.b16 %v189
    %v1017 = vunpack.c.h.b16 %v189
    %v1018 = vunpack.c.l.b16 %v190
    %v1019 = vunpack.c.h.b16 %v190
    %v1020 = vunpack.c.l.b16 %v191
    %v1021 = vunpack.c.h.b16 %v191
    %v1022 = vunpack.c.l.b16 %v192
    %v1023 = vunpack.c.h.b16 %v192
    %v1024 = vunpack.c.l.b16 %v193
    %v1025 = vunpack.c.h.b16 %v193
    %v1026 = vunpack.c.l.b16 %v194
    %v1027 = vunpack.c.h.b16 %v194
    %v1028 = vunpack.c.l.b16 %v195
    %v1029 = vunpack.c.h.b16 %v195
    %v1030 = vunpack.c.l.b16 %v196
    %v1031 = vunpack.c.h.b16 %v196
    %v1032 = vunpack.c.l.b16 %v197
    %v1033 = vunpack.c.h.b16 %v197
    %v1034 = vunpack.c.l.b16 %v198
    %v1035 = vunpack.c.h.b16 %v198
    %v1036 = vunpack.c.l.b16 %v199
    %v1037 = vunpack.c.h.b16 %v199
    %v1038 = vunpack.c.l.b16 %v200
    %v1039 = vunpack.c.h.b16 %v200
    %v1040 = vunpack.c.l.b16 %v201
    %v1041 = vunpack.c.h.b16 %v201
    %v1042 = vunpack.c.l.b16 %v202
    %v1043 = vunpack.c.h.b16 %v202
    %v1044 = vunpack.c.l.b16 %v203
    %v1045 = vunpack.c.h.b16 %v203
    %v1046 = vunpack.c.l.b16 %v204
    %v1047 = vunpack.c.h.b16 %v204
    %v1048 = vunpack.c.l.b16 %v205
    %v1049 = vunpack.c.h.b16 %v205
    %v1050 = vunpack.c.l.b16 %v206
    %v1051 = vunpack.c.h.b16 %v206
    %v1052 = vunpack.c.l.b16 %v207
    %v1053 = vunpack.c.h.b16 %v207
    %v1054 = vunpack.c.l.b16 %v208
    %v1055 = vunpack.c.h.b16 %v208
    %v1056 = vunpack.c.l.b16 %v209
    %v1057 = vunpack.c.h.b16 %v209
    %v1058 = vunpack.c.l.b16 %v210
    %v1059 = vunpack.c.h.b16 %v210
    %v1060 = vunpack.c.l.b16 %v211
    %v1061 = vunpack.c.h.b16 %v211
    %v1062 = vunpack.c.l.b16 %v212
    %v1063 = vunpack.c.h.b16 %v212
    %v1064 = vunpack.c.l.b16 %v213
    %v1065 = vunpack.c.h.b16 %v213
    %v1066 = vunpack.c.l.b16 %v214
    %v1067 = vunpack.c.h.b16 %v214
    %v1068 = vunpack.c.l.b16 %v215
    %v1069 = vunpack.c.h.b16 %v215
    %v1070 = vunpack.c.l.b16 %v216
    %v1071 = vunpack.c.h.b16 %v216
    %v1072 = vunpack.c.l.b16 %v217
    %v1073 = vunpack.c.h.b16 %v217
    %v1074 = vunpack.c.l.b16 %v218
    %v1075 = vunpack.c.h.b16 %v218
    %v1076 = vunpack.c.l.b16 %v219
    %v1077 = vunpack.c.h.b16 %v219
    %v1078 = vunpack.c.l.b16 %v220
    %v1079 = vunpack.c.h.b16 %v220
    %v1080 = vunpack.c.l.b16 %v221
    %v1081 = vunpack.c.h.b16 %v221
    %v1082 = vunpack.c.l.b16 %v222
    %v1083 = vunpack.c.h.b16 %v222
    %v1084 = vunpack.c.l.b16 %v223
    %v1085 = vunpack.c.h.b16 %v223
    %v1086 = vunpack.c.l.b16 %v224
    %v1087 = vunpack.c.h.b16 %v224
    %v1088 = vunpack.c.l.b16 %v225
    %v1089 = vunpack.c.h.b16 %v225
    %v1090 = vunpack.c.l.b16 %v226
    %v1091 = vunpack.c.h.b16 %v226
    %v1092 = vunpack.c.l.b16 %v227
    %v1093 = vunpack.c.h.b16 %v227
    %v1094 = vunpack.c.l.b16 %v228
    %v1095 = vunpack.c.h.b16 %v228
    %v1096 = vunpack.c.l.b16 %v229
    %v1097 = vunpack.c.h.b16 %v229
    %v1098 = vunpack.c.l.b16 %v230
    %v1099 = vunpack.c.h.b16 %v230
    %v1100 = vunpack.c.l.b16 %v231
    %v1101 = vunpack.c.h.b16 %v231
    %v1102 = vunpack.c.l.b16 %v232
    %v1103 = vunpack.c.h.b16 %v232
    %v1104 = vunpack.c.l.b16 %v233
    %v1105 = vunpack.c.h.b16 %v233
    %v1106 = vunpack.c.l.b16 %v234
    %v1107 = vunpack.c.h.b16 %v234
    %v1108 = vunpack.c.l.b16 %v235
    %v1109 = vunpack.c.h.b16 %v235
    %v1110 = vunpack.c.l.b16 %v236
    %v1111 = vunpack.c.h.b16 %v236
    %v1112 = vunpack.c.l.b16 %v237
    %v1113 = vunpack.c.h.b16 %v237
    %v1114 = vunpack.c.l.b16 %v238
    %v1115 = vunpack.c.h.b16 %v238
    %v1116 = vunpack.c.l.b16 %v239
    %v1117 = vunpack.c.h.b16 %v239
    %v1118 = vunpack.c.l.b16 %v240
    %v1119 = vunpack.c.h.b16 %v240
    %v1120 = vunpack.c.l.b16 %v241
    %v1121 = vunpack.c.h.b16 %v241
    %v1122 = vunpack.c.l.b16 %v242
    %v1123 = vunpack.c.h.b16 %v242
    %v1124 = vunpack.c.l.b16 %v243
    %v1125 = vunpack.c.h.b16 %v243
    %v1126 = vunpack.c.l.b16 %v244
    %v1127 = vunpack.c.h.b16 %v244
    %v1128 = vunpack.c.l.b16 %v245
    %v1129 = vunpack.c.h.b16 %v245
    %v1130 = vunpack.c.l.b16 %v246
    %v1131 = vunpack.c.h.b16 %v246
    %v1132 = vunpack.c.l.b16 %v247
    %v1133 = vunpack.c.h.b16 %v247
    %v1134 = vunpack.c.l.b16 %v248
    %v1135 = vunpack.c.h.b16 %v248
    %v1136 = vunpack.c.l.b16 %v249
    %v1137 = vunpack.c.h.b16 %v249
    %v1138 = vunpack.c.l.b16 %v250
    %v1139 = vunpack.c.h.b16 %v250
    %v1140 = vunpack.c.l.b16 %v251
    %v1141 = vunpack.c.h.b16 %v251
    %v1142 = vunpack.c.l.b16 %v252
    %v1143 = vunpack.c.h.b16 %v252
    %v1144 = vunpack.c.l.b16 %v253
    %v1145 = vunpack.c.h.b16 %v253
    %v1146 = vunpack.c.l.b16 %v254
    %v1147 = vunpack.c.h.b16 %v254
    %v1148 = vunpack.c.l.b16 %v255
    %v1149 = vunpack.c.h.b16 %v255
    %v1150 = vunpack.c.l.b16 %v256
    %v1151 = vunpack.c.h.b16 %v256
    %v1152 = vunpack.c.l.b16 %v257
    %v1153 = vunpack.c.h.b16 %v257
    %v1154 = vunpack.c.l.b16 %v258
    %v1155 = vunpack.c.h.b16 %v258
    %v1156 = vunpack.c.l.b16 %v259
    %v1157 = vunpack.c.h.b16 %v259
    %v1158 = vunpack.c.l.b16 %v260
    %v1159 = vunpack.c.h.b16 %v260
    %v1160 = vunpack.c.l.b16 %v261
    %v1161 = vunpack.c.h.b16 %v261
    %v1162 = vunpack.c.l.b16 %v262
    %v1163 = vunpack.c.h.b16 %v262
    %v1164 = vunpack.c.l.b16 %v263
    %v1165 = vunpack.c.h.b16 %v263
    %v1166 = vunpack.c.l.b16 %v264
    %v1167 = vunpack.c.h.b16 %v264
    %v1168 = vunpack.c.l.b16 %v265
    %v1169 = vunpack.c.h.b16 %v265
    %v1170 = vunpack.c.l.b16 %v266
    %v1171 = vunpack.c.h.b16 %v266
    %v1172 = vunpack.c.l.b16 %v267
    %v1173 = vunpack.c.h.b16 %v267
    %v1174 = vunpack.c.l.b16 %v268
    %v1175 = vunpack.c.h.b16 %v268
    %v1176 = vunpack.c.l.b16 %v269
    %v1177 = vunpack.c.h.b16 %v269
    %v1178 = vunpack.c.l.b16 %v270
    %v1179 = vunpack.c.h.b16 %v270
    %v1180 = vunpack.c.l.b16 %v271
    %v1181 = vunpack.c.h.b16 %v271
    %v1182 = vunpack.c.l.b16 %v272
    %v1183 = vunpack.c.h.b16 %v272
    %v1184 = vunpack.c.l.b16 %v273
    %v1185 = vunpack.c.h.b16 %v273
    %v1186 = vunpack.c.l.b16 %v274
    %v1187 = vunpack.c.h.b16 %v274
    %v1188 = vunpack.c.l.b16 %v275
    %v1189 = vunpack.c.h.b16 %v275
    %v1190 = vunpack.c.l.b16 %v276
    %v1191 = vunpack.c.h.b16 %v276
    %v1192 = vunpack.c.l.b16 %v277
    %v1193 = vunpack.c.h.b16 %v277
    %v1194 = vunpack.c.l.b16 %v278
    %v1195 = vunpack.c.h.b16 %v278
    %v1196 = vunpack.c.l.b16 %v279
    %v1197 = vunpack.c.h.b16 %v279
    %v1198 = vunpack.c.l.b16 %v280
    %v1199 = vunpack.c.h.b16 %v280
    %v1200 = vunpack.c.l.b16 %v281
    %v1201 = vunpack.c.h.b16 %v281
    %v1202 = vunpack.c.l.b16 %v282
    %v1203 = vunpack.c.h.b16 %v282
    %v1204 = vunpack.c.l.b16 %v283
    %v1205 = vunpack.c.h.b16 %v283
    %v1206 = vunpack.c.l.b16 %v284
    %v1207 = vunpack.c.h.b16 %v284
    %v1208 = vunpack.c.l.b16 %v285
    %v1209 = vunpack.c.h.b16 %v285
    %v1210 = vunpack.c.l.b16 %v286
    %v1211 = vunpack.c.h.b16 %v286
    %v1212 = vunpack.c.l.b16 %v287
    %v1213 = vunpack.c.h.b16 %v287
    %v1214 = vunpack.c.l.b16 %v288
    %v1215 = vunpack.c.h.b16 %v288
    %v1216 = vunpack.c.l.b16 %v289
    %v1217 = vunpack.c.h.b16 %v289
    %v1218 = vunpack.c.l.b16 %v290
    %v1219 = vunpack.c.h.b16 %v290
    %v1220 = vunpack.c.l.b16 %v291
    %v1221 = vunpack.c.h.b16 %v291
    %v1222 = vunpack.c.l.b16 %v292
    %v1223 = vunpack.c.h.b16 %v292
    %v1224 = vunpack.c.l.b16 %v293
    %v1225 = vunpack.c.h.b16 %v293
    %v1226 = vunpack.c.l.b16 %v294
    %v1227 = vunpack.c.h.b16 %v294
    %v1228 = vunpack.c.l.b16 %v295
    %v1229 = vunpack.c.h.b16 %v295
    %v1230 = vunpack.c.l.b16 %v296
    %v1231 = vunpack.c.h.b16 %v296
    %v1232 = vunpack.c.l.b16 %v297
    %v1233 = vunpack.c.h.b16 %v297
    %v1234 = vpack.c.b16 %v754, %v722
    %v1235 = vpack.c.b16 %v755, %v723
    %v1236 = vpack.c.b16 %v756, %v724
    %v1237 = vpack.c.b16 %v757, %v725
    %v1238 = vpack.c.b16 %v758, %v726
    %v1239 = vpack.c.b16 %v759, %v727
    %v1240 = vpack.c.b16 %v760, %v728
    %v1241 = vpack.c.b16 %v761, %v729
    %v1242 = vpack.c.b16 %v762, %v730
    %v1243 = vpack.c.b16 %v763, %v731
    %v1244 = vpack.c.b16 %v764, %v732
    %v1245 = vpack.c.b16 %v765, %v733
    %v1246 = vpack.c.b16 %v766, %v734
    %v1247 = vpack.c.b16 %v767, %v735
    %v1248 = vpack.c.b16 %v768, %v736
    %v1249 = vpack.c.b16 %v769, %v737
    %v1250 = vpack.c.b16 %v770, %v738
    %v1251 = vpack.c.b16 %v771, %v739
    %v1252 = vpack.c.b16 %v772, %v740
    %v1253 = vpack.c.b16 %v773, %v741
    %v1254 = vpack.c.b16 %v774, %v742
    %v1255 = vpack.c.b16 %v775, %v743
    %v1256 = vpack.c.b16 %v776, %v744
    %v1257 = vpack.c.b16 %v777, %v745
    %v1258 = vpack.c.b16 %v778, %v746
    %v1259 = vpack.c.b16 %v779, %v747
    %v1260 = vpack.c.b16 %v780, %v748
    %v1261 = vpack.c.b16 %v781, %v749
    %v1262 = vpack.c.b16 %v782, %v750
    %v1263 = vpack.c.b16 %v783, %v751
    %v1264 = vpack.c.b16 %v784, %v752
    %v1265 = vpack.c.b16 %v785, %v753
    %v1266 = vpack.c.b16 %v818, %v786
    %v1267 = vpack.c.b16 %v819, %v787
    %v1268 = vpack.c.b16 %v820, %v788
    %v1269 = vpack.c.b16 %v821, %v789
    %v1270 = vpack.c.b16 %v822, %v790
    %v1271 = vpack.c.b16 %v823, %v791
    %v1272 = vpack.c.b16 %v824, %v792
    %v1273 = vpack.c.b16 %v825, %v793
    %v1274 = vpack.c.b16 %v826, %v794
    %v1275 = vpack.c.b16 %v827, %v795
    %v1276 = vpack.c.b16 %v828, %v796
    %v1277 = vpack.c.b16 %v829, %v797
    %v1278 = vpack.c.b16 %v830, %v798
    %v1279 = vpack.c.b16 %v831, %v799
    %v1280 = vpack.c.b16 %v832, %v800
    %v1281 = vpack.c.b16 %v833, %v801
    %v1282 = vpack.c.b16 %v834, %v802
    %v1283 = vpack.c.b16 %v835, %v803
    %v1284 = vpack.c.b16 %v836, %v804
    %v1285 = vpack.c.b16 %v837, %v805
    %v1286 = vpack.c.b16 %v838, %v806
    %v1287 = vpack.c.b16 %v839, %v807
    %v1288 = vpack.c.b16 %v840, %v808
    %v1289 = vpack.c.b16 %v841, %v809
    %v1290 = vpack.c.b16 %v842, %v810
    %v1291 = vpack.c.b16 %v843, %v811
    %v1292 = vpack.c.b16 %v844, %v812
    %v1293 = vpack.c.b16 %v845, %v813
    %v1294 = vpack.c.b16 %v846, %v814
    %v1295 = vpack.c.b16 %v847, %v815
    %v1296 = vpack.c.b16 %v848, %v816
    %v1297 = vpack.c.b16 %v849, %v817
    %v1298 = vpack.c.b16 %v882, %v850
    %v1299 = vpack.c.b16 %v883, %v851
    %v1300 = vpack.c.b16 %v884, %v852
    %v1301 = vpack.c.b16 %v885, %v853
    %v1302 = vpack.c.b16 %v886, %v854
    %v1303 = vpack.c.b16 %v887, %v855
    %v1304 = vpack.c.b16 %v888, %v856
    %v1305 = vpack.c.b16 %v889, %v857
    %v1306 = vpack.c.b16 %v890, %v858
    %v1307 = vpack.c.b16 %v891, %v859
    %v1308 = vpack.c.b16 %v892, %v860
    %v1309 = vpack.c.b16 %v893, %v861
    %v1310 = vpack.c.b16 %v894, %v862
    %v1311 = vpack.c.b16 %v895, %v863
    %v1312 = vpack.c.b16 %v896, %v864
    %v1313 = vpack.c.b16 %v897, %v865
    %v1314 = vpack.c.b16 %v898, %v866
    %v1315 = vpack.c.b16 %v899, %v867
    %v1316 = vpack.c.b16 %v900, %v868
    %v1317 = vpack.c.b16 %v901, %v869
    %v1318 = vpack.c.b16 %v902, %v870
    %v1319 = vpack.c.b16 %v903, %v871
    %v1320 = vpack.c.b16 %v904, %v872
    %v1321 = vpack.c.b16 %v905, %v873
    %v1322 = vpack.c.b16 %v906, %v874
    %v1323 = vpack.c.b16 %v907, %v875
    %v1324 = vpack.c.b16 %v908, %v876
    %v1325 = vpack.c.b16 %v909, %v877
    %v1326 = vpack.c.b16 %v910, %v878
    %v1327 = vpack.c.b16 %v911, %v879
    %v1328 = vpack.c.b16 %v912, %v880
    %v1329 = vpack.c.b16 %v913, %v881
    %v1330 = vpack.c.b16 %v946, %v914
    %v1331 = vpack.c.b16 %v947, %v915
    %v1332 = vpack.c.b16 %v948, %v916
    %v1333 = vpack.c.b16 %v949, %v917
    %v1334 = vpack.c.b16 %v950, %v918
    %v1335 = vpack.c.b16 %v951, %v919
    %v1336 = vpack.c.b16 %v952, %v920
    %v1337 = vpack.c.b16 %v953, %v921
    %v1338 = vpack.c.b16 %v954, %v922
    %v1339 = vpack.c.b16 %v955, %v923
    %v1340 = vpack.c.b16 %v956, %v924
    %v1341 = vpack.c.b16 %v957, %v925
    %v1342 = vpack.c.b16 %v958, %v926
    %v1343 = vpack.c.b16 %v959, %v927
    %v1344 = vpack.c.b16 %v960, %v928
    %v1345 = vpack.c.b16 %v961, %v929
    %v1346 = vpack.c.b16 %v962, %v930
    %v1347 = vpack.c.b16 %v963, %v931
    %v1348 = vpack.c.b16 %v964, %v932
    %v1349 = vpack.c.b16 %v965, %v933
    %v1350 = vpack.c.b16 %v966, %v934
    %v1351 = vpack.c.b16 %v967, %v935
    %v1352 = vpack.c.b16 %v968, %v936
    %v1353 = vpack.c.b16 %v969, %v937
    %v1354 = vpack.c.b16 %v970, %v938
    %v1355 = vpack.c.b16 %v971, %v939
    %v1356 = vpack.c.b16 %v972, %v940
    %v1357 = vpack.c.b16 %v973, %v941
    %v1358 = vpack.c.b16 %v974, %v942
    %v1359 = vpack.c.b16 %v975, %v943
    %v1360 = vpack.c.b16 %v976, %v944
    %v1361 = vpack.c.b16 %v977, %v945
    %v1362 = vpack.c.b16 %v1010, %v978
    %v1363 = vpack.c.b16 %v1011, %v979
    %v1364 = vpack.c.b16 %v1012, %v980
    %v1365 = vpack.c.b16 %v1013, %v981
    %v1366 = vpack.c.b16 %v1014, %v982
    %v1367 = vpack.c.b16 %v1015, %v983
    %v1368 = vpack.c.b16 %v1016, %v984
    %v1369 = vpack.c.b16 %v1017, %v985
    %v1370 = vpack.c.b16 %v1018, %v986
    %v1371 = vpack.c.b16 %v1019, %v987
    %v1372 = vpack.c.b16 %v1020, %v988
    %v1373 = vpack.c.b16 %v1021, %v989
    %v1374 = vpack.c.b16 %v1022, %v990
    %v1375 = vpack.c.b16 %v1023, %v991
    %v1376 = vpack.c.b16 %v1024, %v992
    %v1377 = vpack.c.b16 %v1025, %v993
    %v1378 = vpack.c.b16 %v1026, %v994
    %v1379 = vpack.c.b16 %v1027, %v995
    %v1380 = vpack.c.b16 %v1028, %v996
    %v1381 = vpack.c.b16 %v1029, %v997
    %v1382 = vpack.c.b16 %v1030, %v998
    %v1383 = vpack.c.b16 %v1031, %v999
    %v1384 = vpack.c.b16 %v1032, %v1000
    %v1385 = vpack.c.b16 %v1033, %v1001
    %v1386 = vpack.c.b16 %v1034, %v1002
    %v1387 = vpack.c.b16 %v1035, %v1003
    %v1388 = vpack.c.b16 %v1036, %v1004
    %v1389 = vpack.c.b16 %v1037, %v1005
    %v1390 = vpack.c.b16 %v1038, %v1006
    %v1391 = vpack.c.b16 %v1039, %v1007
    %v1392 = vpack.c.b16 %v1040, %v1008
    %v1393 = vpack.c.b16 %v1041, %v1009
    %v1394 = vpack.c.b16 %v1074, %v1042
    %v1395 = vpack.c.b16 %v1075, %v1043
    %v1396 = vpack.c.b16 %v1076, %v1044
    %v1397 = vpack.c.b16 %v1077, %v1045
    %v1398 = vpack.c.b16 %v1078, %v1046
    %v1399 = vpack.c.b16 %v1079, %v1047
    %v1400 = vpack.c.b16 %v1080, %v1048
    %v1401 = vpack.c.b16 %v1081, %v1049
    %v1402 = vpack.c.b16 %v1082, %v1050
    %v1403 = vpack.c.b16 %v1083, %v1051
    %v1404 = vpack.c.b16 %v1084, %v1052
    %v1405 = vpack.c.b16 %v1085, %v1053
    %v1406 = vpack.c.b16 %v1086, %v1054
    %v1407 = vpack.c.b16 %v1087, %v1055
    %v1408 = vpack.c.b16 %v1088, %v1056
    %v1409 = vpack.c.b16 %v1089, %v1057
    %v1410 = vpack.c.b16 %v1090, %v1058
    %v1411 = vpack.c.b16 %v1091, %v1059
    %v1412 = vpack.c.b16 %v1092, %v1060
    %v1413 = vpack.c.b16 %v1093, %v1061
    %v1414 = vpack.c.b16 %v1094, %v1062
    %v1415 = vpack.c.b16 %v1095, %v1063
    %v1416 = vpack.c.b16 %v1096, %v1064
    %v1417 = vpack.c.b16 %v1097, %v1065
    %v1418 = vpack.c.b16 %v1098, %v1066
    %v1419 = vpack.c.b16 %v1099, %v1067
    %v1420 = vpack.c.b16 %v1100, %v1068
    %v1421 = vpack.c.b16 %v1101, %v1069
    %v1422 = vpack.c.b16 %v1102, %v1070
    %v1423 = vpack.c.b16 %v1103, %v1071
    %v1424 = vpack.c.b16 %v1104, %v1072
    %v1425 = vpack.c.b16 %v1105, %v1073
    %v1426 = vpack.c.b16 %v1138, %v1106
    %v1427 = vpack.c.b16 %v1139, %v1107
    %v1428 = vpack.c.b16 %v1140, %v1108
    %v1429 = vpack.c.b16 %v1141, %v1109
    %v1430 = vpack.c.b16 %v1142, %v1110
    %v1431 = vpack.c.b16 %v1143, %v1111
    %v1432 = vpack.c.b16 %v1144, %v1112
    %v1433 = vpack.c.b16 %v1145, %v1113
    %v1434 = vpack.c.b16 %v1146, %v1114
    %v1435 = vpack.c.b16 %v1147, %v1115
    %v1436 = vpack.c.b16 %v1148, %v1116
    %v1437 = vpack.c.b16 %v1149, %v1117
    %v1438 = vpack.c.b16 %v1150, %v1118
    %v1439 = vpack.c.b16 %v1151, %v1119
    %v1440 = vpack.c.b16 %v1152, %v1120
    %v1441 = vpack.c.b16 %v1153, %v1121
    %v1442 = vpack.c.b16 %v1154, %v1122
    %v1443 = vpack.c.b16 %v1155, %v1123
    %v1444 = vpack.c.b16 %v1156, %v1124
    %v1445 = vpack.c.b16 %v1157, %v1125
    %v1446 = vpack.c.b16 %v1158, %v1126
    %v1447 = vpack.c.b16 %v1159, %v1127
    %v1448 = vpack.c.b16 %v1160, %v1128
    %v1449 = vpack.c.b16 %v1161, %v1129
    %v1450 = vpack.c.b16 %v1162, %v1130
    %v1451 = vpack.c.b16 %v1163, %v1131
    %v1452 = vpack.c.b16 %v1164, %v1132
    %v1453 = vpack.c.b16 %v1165, %v1133
    %v1454 = vpack.c.b16 %v1166, %v1134
    %v1455 = vpack.c.b16 %v1167, %v1135
    %v1456 = vpack.c.b16 %v1168, %v1136
    %v1457 = vpack.c.b16 %v1169, %v1137
    %v1458 = vpack.c.b16 %v1202, %v1170
    %v1459 = vpack.c.b16 %v1203, %v1171
    %v1460 = vpack.c.b16 %v1204, %v1172
    %v1461 = vpack.c.b16 %v1205, %v1173
    %v1462 = vpack.c.b16 %v1206, %v1174
    %v1463 = vpack.c.b16 %v1207, %v1175
    %v1464 = vpack.c.b16 %v1208, %v1176
    %v1465 = vpack.c.b16 %v1209, %v1177
    %v1466 = vpack.c.b16 %v1210, %v1178
    %v1467 = vpack.c.b16 %v1211, %v1179
    %v1468 = vpack.c.b16 %v1212, %v1180
    %v1469 = vpack.c.b16 %v1213, %v1181
    %v1470 = vpack.c.b16 %v1214, %v1182
    %v1471 = vpack.c.b16 %v1215, %v1183
    %v1472 = vpack.c.b16 %v1216, %v1184
    %v1473 = vpack.c.b16 %v1217, %v1185
    %v1474 = vpack.c.b16 %v1218, %v1186
    %v1475 = vpack.c.b16 %v1219, %v1187
    %v1476 = vpack.c.b16 %v1220, %v1188
    %v1477 = vpack.c.b16 %v1221, %v1189
    %v1478 = vpack.c.b16 %v1222, %v1190
    %v1479 = vpack.c.b16 %v1223, %v1191
    %v1480 = vpack.c.b16 %v1224, %v1192
    %v1481 = vpack.c.b16 %v1225, %v1193
    %v1482 = vpack.c.b16 %v1226, %v1194
    %v1483 = vpack.c.b16 %v1227, %v1195
    %v1484 = vpack.c.b16 %v1228, %v1196
    %v1485 = vpack.c.b16 %v1229, %v1197
    %v1486 = vpack.c.b16 %v1230, %v1198
    %v1487 = vpack.c.b16 %v1231, %v1199
    %v1488 = vpack.c.b16 %v1232, %v1200
    %v1489 = vpack.c.b16 %v1233, %v1201
    %1746 = vmatprep.subr.bf16.mxu0 %v1235
    %1747 = vmatpush1.bf16.msra.mxu0 %v1234
    %1748 = vmatprep.subr.bf16.mxu0 %v1267
    %1749 = vmatpush1.bf16.msra.mxu0 %v1266
    %1750 = vmatprep.subr.bf16.mxu0 %v1299
    %1751 = vmatpush1.bf16.msra.mxu0 %v1298
    %1752 = vmatprep.subr.bf16.mxu0 %v1331
    %1753 = vmatpush1.bf16.msra.mxu0 %v1330
    %1754 = vmatprep.subr.bf16.mxu0 %v1363
    %1755 = vmatpush1.bf16.msra.mxu0 %v1362
    %1756 = vmatprep.subr.bf16.mxu0 %v1395
    %1757 = vmatpush1.bf16.msra.mxu0 %v1394
    %1758 = vmatprep.subr.bf16.mxu0 %v1427
    %1759 = vmatpush1.bf16.msra.mxu0 %v1426
    %1760 = vmatprep.subr.bf16.mxu0 %v1459
    %1761 = vmatpush1.bf16.msra.mxu0 %v1458
    %1762 = vmatprep.subr.bf16.mxu0 0
    %1763 = vmatpush1.bf16.msra.mxu0 0
    %1764 = vmatprep.subr.bf16.mxu0 0
    %1765 = vmatpush1.bf16.msra.mxu0 0
    %1766 = vmatprep.subr.bf16.mxu0 0
    %1767 = vmatpush1.bf16.msra.mxu0 0
    %1768 = vmatprep.subr.bf16.mxu0 0
    %1769 = vmatpush1.bf16.msra.mxu0 0
    %1770 = vmatprep.subr.bf16.mxu0 0
    %1771 = vmatpush1.bf16.msra.mxu0 0
    %1772 = vmatprep.subr.bf16.mxu0 0
    %1773 = vmatpush1.bf16.msra.mxu0 0
    %1774 = vmatprep.subr.bf16.mxu0 0
    %1775 = vmatpush1.bf16.msra.mxu0 0
    %1776 = vmatprep.subr.bf16.mxu0 0
    %1777 = vmatpush1.bf16.msra.mxu0 0
    %1778 = vmatprep.mubr.bf16.mxu0 0
    %1779 = vmatmul.mubr.bf16.gmra.mrb[0].mxu0 %v41
    %v1780 = vpop.f32.mrb[0].mxu0
    %v1781 = vadd.f32 %v309, %v1780
    %v1782 = vpop.f32.mrb[0].mxu0
    %v1783 = vadd.f32 %v313, %v1782
    %v1784 = vpop.f32.mrb[0].mxu0
    %v1785 = vpop.f32.mrb[0].mxu0
    %1786 = vdwg.mxu0
    %1787 = vmatprep.subr.bf16.mxu0 %v1237
    %1788 = vmatpush1.bf16.msra.mxu0 %v1236
    %1789 = vmatprep.subr.bf16.mxu0 %v1269
    %1790 = vmatpush1.bf16.msra.mxu0 %v1268
    %1791 = vmatprep.subr.bf16.mxu0 %v1301
    %1792 = vmatpush1.bf16.msra.mxu0 %v1300
    %1793 = vmatprep.subr.bf16.mxu0 %v1333
    %1794 = vmatpush1.bf16.msra.mxu0 %v1332
    %1795 = vmatprep.subr.bf16.mxu0 %v1365
    %1796 = vmatpush1.bf16.msra.mxu0 %v1364
    %1797 = vmatprep.subr.bf16.mxu0 %v1397
    %1798 = vmatpush1.bf16.msra.mxu0 %v1396
    %1799 = vmatprep.subr.bf16.mxu0 %v1429
    %1800 = vmatpush1.bf16.msra.mxu0 %v1428
    %1801 = vmatprep.subr.bf16.mxu0 %v1461
    %1802 = vmatpush1.bf16.msra.mxu0 %v1460
    %1803 = vmatprep.subr.bf16.mxu0 0
    %1804 = vmatpush1.bf16.msra.mxu0 0
    %1805 = vmatprep.subr.bf16.mxu0 0
    %1806 = vmatpush1.bf16.msra.mxu0 0
    %1807 = vmatprep.subr.bf16.mxu0 0
    %1808 = vmatpush1.bf16.msra.mxu0 0
    %1809 = vmatprep.subr.bf16.mxu0 0
    %1810 = vmatpush1.bf16.msra.mxu0 0
    %1811 = vmatprep.subr.bf16.mxu0 0
    %1812 = vmatpush1.bf16.msra.mxu0 0
    %1813 = vmatprep.subr.bf16.mxu0 0
    %1814 = vmatpush1.bf16.msra.mxu0 0
    %1815 = vmatprep.subr.bf16.mxu0 0
    %1816 = vmatpush1.bf16.msra.mxu0 0
    %1817 = vmatprep.subr.bf16.mxu0 0
    %1818 = vmatpush1.bf16.msra.mxu0 0
    %1819 = vmatprep.mubr.bf16.mxu0 0
    %1820 = vmatmul.mubr.bf16.gmra.mrb[0].mxu0 %v41
    %v1821 = vpop.f32.mrb[0].mxu0
    %v1822 = vadd.f32 %v317, %v1821
    %v1823 = vpop.f32.mrb[0].mxu0
    %v1824 = vadd.f32 %v321, %v1823
    %v1825 = vpop.f32.mrb[0].mxu0
    %v1826 = vpop.f32.mrb[0].mxu0
    %1827 = vdwg.mxu0
    %1828 = vmatprep.subr.bf16.mxu0 %v1239
    %1829 = vmatpush1.bf16.msra.mxu0 %v1238
    %1830 = vmatprep.subr.bf16.mxu0 %v1271
    %1831 = vmatpush1.bf16.msra.mxu0 %v1270
    %1832 = vmatprep.subr.bf16.mxu0 %v1303
    %1833 = vmatpush1.bf16.msra.mxu0 %v1302
    %1834 = vmatprep.subr.bf16.mxu0 %v1335
    %1835 = vmatpush1.bf16.msra.mxu0 %v1334
    %1836 = vmatprep.subr.bf16.mxu0 %v1367
    %1837 = vmatpush1.bf16.msra.mxu0 %v1366
    %1838 = vmatprep.subr.bf16.mxu0 %v1399
    %1839 = vmatpush1.bf16.msra.mxu0 %v1398
    %1840 = vmatprep.subr.bf16.mxu0 %v1431
    %1841 = vmatpush1.bf16.msra.mxu0 %v1430
    %1842 = vmatprep.subr.bf16.mxu0 %v1463
    %1843 = vmatpush1.bf16.msra.mxu0 %v1462
    %1844 = vmatprep.subr.bf16.mxu0 0
    %1845 = vmatpush1.bf16.msra.mxu0 0
    %1846 = vmatprep.subr.bf16.mxu0 0
    %1847 = vmatpush1.bf16.msra.mxu0 0
    %1848 = vmatprep.subr.bf16.mxu0 0
    %1849 = vmatpush1.bf16.msra.mxu0 0
    %1850 = vmatprep.subr.bf16.mxu0 0
    %1851 = vmatpush1.bf16.msra.mxu0 0
    %1852 = vmatprep.subr.bf16.mxu0 0
    %1853 = vmatpush1.bf16.msra.mxu0 0
    %1854 = vmatprep.subr.bf16.mxu0 0
    %1855 = vmatpush1.bf16.msra.mxu0 0
    %1856 = vmatprep.subr.bf16.mxu0 0
    %1857 = vmatpush1.bf16.msra.mxu0 0
    %1858 = vmatprep.subr.bf16.mxu0 0
    %1859 = vmatpush1.bf16.msra.mxu0 0
    %1860 = vmatprep.mubr.bf16.mxu0 0
    %1861 = vmatmul.mubr.bf16.gmra.mrb[0].mxu0 %v41
    %v1862 = vpop.f32.mrb[0].mxu0
    %v1863 = vadd.f32 %v325, %v1862
    %v1864 = vpop.f32.mrb[0].mxu0
    %v1865 = vadd.f32 %v329, %v1864
    %v1866 = vpop.f32.mrb[0].mxu0
    %v1867 = vpop.f32.mrb[0].mxu0
    %1868 = vdwg.mxu0
    %1869 = vmatprep.subr.bf16.mxu0 %v1241
    %1870 = vmatpush1.bf16.msra.mxu0 %v1240
    %1871 = vmatprep.subr.bf16.mxu0 %v1273
    %1872 = vmatpush1.bf16.msra.mxu0 %v1272
    %1873 = vmatprep.subr.bf16.mxu0 %v1305
    %1874 = vmatpush1.bf16.msra.mxu0 %v1304
    %1875 = vmatprep.subr.bf16.mxu0 %v1337
    %1876 = vmatpush1.bf16.msra.mxu0 %v1336
    %1877 = vmatprep.subr.bf16.mxu0 %v1369
    %1878 = vmatpush1.bf16.msra.mxu0 %v1368
    %1879 = vmatprep.subr.bf16.mxu0 %v1401
    %1880 = vmatpush1.bf16.msra.mxu0 %v1400
    %1881 = vmatprep.subr.bf16.mxu0 %v1433
    %1882 = vmatpush1.bf16.msra.mxu0 %v1432
    %1883 = vmatprep.subr.bf16.mxu0 %v1465
    %1884 = vmatpush1.bf16.msra.mxu0 %v1464
    %1885 = vmatprep.subr.bf16.mxu0 0
    %1886 = vmatpush1.bf16.msra.mxu0 0
    %1887 = vmatprep.subr.bf16.mxu0 0
    %1888 = vmatpush1.bf16.msra.mxu0 0
    %1889 = vmatprep.subr.bf16.mxu0 0
    %1890 = vmatpush1.bf16.msra.mxu0 0
    %1891 = vmatprep.subr.bf16.mxu0 0
    %1892 = vmatpush1.bf16.msra.mxu0 0
    %1893 = vmatprep.subr.bf16.mxu0 0
    %1894 = vmatpush1.bf16.msra.mxu0 0
    %1895 = vmatprep.subr.bf16.mxu0 0
    %1896 = vmatpush1.bf16.msra.mxu0 0
    %1897 = vmatprep.subr.bf16.mxu0 0
    %1898 = vmatpush1.bf16.msra.mxu0 0
    %1899 = vmatprep.subr.bf16.mxu0 0
    %1900 = vmatpush1.bf16.msra.mxu0 0
    %1901 = vmatprep.mubr.bf16.mxu0 0
    %1902 = vmatmul.mubr.bf16.gmra.mrb[0].mxu0 %v41
    %v1903 = vpop.f32.mrb[0].mxu0
    %v1904 = vadd.f32 %v333, %v1903
    %v1905 = vpop.f32.mrb[0].mxu0
    %v1906 = vadd.f32 %v337, %v1905
    %v1907 = vpop.f32.mrb[0].mxu0
    %v1908 = vpop.f32.mrb[0].mxu0
    %1909 = vdwg.mxu0
    %1910 = vmatprep.subr.bf16.mxu0 %v1243
    %1911 = vmatpush1.bf16.msra.mxu0 %v1242
    %1912 = vmatprep.subr.bf16.mxu0 %v1275
    %1913 = vmatpush1.bf16.msra.mxu0 %v1274
    %1914 = vmatprep.subr.bf16.mxu0 %v1307
    %1915 = vmatpush1.bf16.msra.mxu0 %v1306
    %1916 = vmatprep.subr.bf16.mxu0 %v1339
    %1917 = vmatpush1.bf16.msra.mxu0 %v1338
    %1918 = vmatprep.subr.bf16.mxu0 %v1371
    %1919 = vmatpush1.bf16.msra.mxu0 %v1370
    %1920 = vmatprep.subr.bf16.mxu0 %v1403
    %1921 = vmatpush1.bf16.msra.mxu0 %v1402
    %1922 = vmatprep.subr.bf16.mxu0 %v1435
    %1923 = vmatpush1.bf16.msra.mxu0 %v1434
    %1924 = vmatprep.subr.bf16.mxu0 %v1467
    %1925 = vmatpush1.bf16.msra.mxu0 %v1466
    %1926 = vmatprep.subr.bf16.mxu0 0
    %1927 = vmatpush1.bf16.msra.mxu0 0
    %1928 = vmatprep.subr.bf16.mxu0 0
    %1929 = vmatpush1.bf16.msra.mxu0 0
    %1930 = vmatprep.subr.bf16.mxu0 0
    %1931 = vmatpush1.bf16.msra.mxu0 0
    %1932 = vmatprep.subr.bf16.mxu0 0
    %1933 = vmatpush1.bf16.msra.mxu0 0
    %1934 = vmatprep.subr.bf16.mxu0 0
    %1935 = vmatpush1.bf16.msra.mxu0 0
    %1936 = vmatprep.subr.bf16.mxu0 0
    %1937 = vmatpush1.bf16.msra.mxu0 0
    %1938 = vmatprep.subr.bf16.mxu0 0
    %1939 = vmatpush1.bf16.msra.mxu0 0
    %1940 = vmatprep.subr.bf16.mxu0 0
    %1941 = vmatpush1.bf16.msra.mxu0 0
    %1942 = vmatprep.mubr.bf16.mxu0 0
    %1943 = vmatmul.mubr.bf16.gmra.mrb[0].mxu0 %v41
    %v1944 = vpop.f32.mrb[0].mxu0
    %v1945 = vadd.f32 %v341, %v1944
    %v1946 = vpop.f32.mrb[0].mxu0
    %v1947 = vadd.f32 %v345, %v1946
    %v1948 = vpop.f32.mrb[0].mxu0
    %v1949 = vpop.f32.mrb[0].mxu0
    %1950 = vdwg.mxu0
    %1951 = vmatprep.subr.bf16.mxu0 %v1245
    %1952 = vmatpush1.bf16.msra.mxu0 %v1244
    %1953 = vmatprep.subr.bf16.mxu0 %v1277
    %1954 = vmatpush1.bf16.msra.mxu0 %v1276
    %1955 = vmatprep.subr.bf16.mxu0 %v1309
    %1956 = vmatpush1.bf16.msra.mxu0 %v1308
    %1957 = vmatprep.subr.bf16.mxu0 %v1341
    %1958 = vmatpush1.bf16.msra.mxu0 %v1340
    %1959 = vmatprep.subr.bf16.mxu0 %v1373
    %1960 = vmatpush1.bf16.msra.mxu0 %v1372
    %1961 = vmatprep.subr.bf16.mxu0 %v1405
    %1962 = vmatpush1.bf16.msra.mxu0 %v1404
    %1963 = vmatprep.subr.bf16.mxu0 %v1437
    %1964 = vmatpush1.bf16.msra.mxu0 %v1436
    %1965 = vmatprep.subr.bf16.mxu0 %v1469
    %1966 = vmatpush1.bf16.msra.mxu0 %v1468
    %1967 = vmatprep.subr.bf16.mxu0 0
    %1968 = vmatpush1.bf16.msra.mxu0 0
    %1969 = vmatprep.subr.bf16.mxu0 0
    %1970 = vmatpush1.bf16.msra.mxu0 0
    %1971 = vmatprep.subr.bf16.mxu0 0
    %1972 = vmatpush1.bf16.msra.mxu0 0
    %1973 = vmatprep.subr.bf16.mxu0 0
    %1974 = vmatpush1.bf16.msra.mxu0 0
    %1975 = vmatprep.subr.bf16.mxu0 0
    %1976 = vmatpush1.bf16.msra.mxu0 0
    %1977 = vmatprep.subr.bf16.mxu0 0
    %1978 = vmatpush1.bf16.msra.mxu0 0
    %1979 = vmatprep.subr.bf16.mxu0 0
    %1980 = vmatpush1.bf16.msra.mxu0 0
    %1981 = vmatprep.subr.bf16.mxu0 0
    %1982 = vmatpush1.bf16.msra.mxu0 0
    %1983 = vmatprep.mubr.bf16.mxu0 0
    %1984 = vmatmul.mubr.bf16.gmra.mrb[0].mxu0 %v41
    %v1985 = vpop.f32.mrb[0].mxu0
    %v1986 = vadd.f32 %v349, %v1985
    %v1987 = vpop.f32.mrb[0].mxu0
    %v1988 = vadd.f32 %v353, %v1987
    %v1989 = vpop.f32.mrb[0].mxu0
    %v1990 = vpop.f32.mrb[0].mxu0
    %1991 = vdwg.mxu0
    %1992 = vmatprep.subr.bf16.mxu0 %v1247
    %1993 = vmatpush1.bf16.msra.mxu0 %v1246
    %1994 = vmatprep.subr.bf16.mxu0 %v1279
    %1995 = vmatpush1.bf16.msra.mxu0 %v1278
    %1996 = vmatprep.subr.bf16.mxu0 %v1311
    %1997 = vmatpush1.bf16.msra.mxu0 %v1310
    %1998 = vmatprep.subr.bf16.mxu0 %v1343
    %1999 = vmatpush1.bf16.msra.mxu0 %v1342
    %2000 = vmatprep.subr.bf16.mxu0 %v1375
    %2001 = vmatpush1.bf16.msra.mxu0 %v1374
    %2002 = vmatprep.subr.bf16.mxu0 %v1407
    %2003 = vmatpush1.bf16.msra.mxu0 %v1406
    %2004 = vmatprep.subr.bf16.mxu0 %v1439
    %2005 = vmatpush1.bf16.msra.mxu0 %v1438
    %2006 = vmatprep.subr.bf16.mxu0 %v1471
    %2007 = vmatpush1.bf16.msra.mxu0 %v1470
    %2008 = vmatprep.subr.bf16.mxu0 0
    %2009 = vmatpush1.bf16.msra.mxu0 0
    %2010 = vmatprep.subr.bf16.mxu0 0
    %2011 = vmatpush1.bf16.msra.mxu0 0
    %2012 = vmatprep.subr.bf16.mxu0 0
    %2013 = vmatpush1.bf16.msra.mxu0 0
    %2014 = vmatprep.subr.bf16.mxu0 0
    %2015 = vmatpush1.bf16.msra.mxu0 0
    %2016 = vmatprep.subr.bf16.mxu0 0
    %2017 = vmatpush1.bf16.msra.mxu0 0
    %2018 = vmatprep.subr.bf16.mxu0 0
    %2019 = vmatpush1.bf16.msra.mxu0 0
    %2020 = vmatprep.subr.bf16.mxu0 0
    %2021 = vmatpush1.bf16.msra.mxu0 0
    %2022 = vmatprep.subr.bf16.mxu0 0
    %2023 = vmatpush1.bf16.msra.mxu0 0
    %2024 = vmatprep.mubr.bf16.mxu0 0
    %2025 = vmatmul.mubr.bf16.gmra.mrb[0].mxu0 %v41
    %v2026 = vpop.f32.mrb[0].mxu0
    %v2027 = vadd.f32 %v357, %v2026
    %v2028 = vpop.f32.mrb[0].mxu0
    %v2029 = vadd.f32 %v361, %v2028
    %v2030 = vpop.f32.mrb[0].mxu0
    %v2031 = vpop.f32.mrb[0].mxu0
    %2032 = vdwg.mxu0
    %2033 = vmatprep.subr.bf16.mxu0 %v1249
    %2034 = vmatpush1.bf16.msra.mxu0 %v1248
    %2035 = vmatprep.subr.bf16.mxu0 %v1281
    %2036 = vmatpush1.bf16.msra.mxu0 %v1280
    %2037 = vmatprep.subr.bf16.mxu0 %v1313
    %2038 = vmatpush1.bf16.msra.mxu0 %v1312
    %2039 = vmatprep.subr.bf16.mxu0 %v1345
    %2040 = vmatpush1.bf16.msra.mxu0 %v1344
    %2041 = vmatprep.subr.bf16.mxu0 %v1377
    %2042 = vmatpush1.bf16.msra.mxu0 %v1376
    %2043 = vmatprep.subr.bf16.mxu0 %v1409
    %2044 = vmatpush1.bf16.msra.mxu0 %v1408
    %2045 = vmatprep.subr.bf16.mxu0 %v1441
    %2046 = vmatpush1.bf16.msra.mxu0 %v1440
    %2047 = vmatprep.subr.bf16.mxu0 %v1473
    %2048 = vmatpush1.bf16.msra.mxu0 %v1472
    %2049 = vmatprep.subr.bf16.mxu0 0
    %2050 = vmatpush1.bf16.msra.mxu0 0
    %2051 = vmatprep.subr.bf16.mxu0 0
    %2052 = vmatpush1.bf16.msra.mxu0 0
    %2053 = vmatprep.subr.bf16.mxu0 0
    %2054 = vmatpush1.bf16.msra.mxu0 0
    %2055 = vmatprep.subr.bf16.mxu0 0
    %2056 = vmatpush1.bf16.msra.mxu0 0
    %2057 = vmatprep.subr.bf16.mxu0 0
    %2058 = vmatpush1.bf16.msra.mxu0 0
    %2059 = vmatprep.subr.bf16.mxu0 0
    %2060 = vmatpush1.bf16.msra.mxu0 0
    %2061 = vmatprep.subr.bf16.mxu0 0
    %2062 = vmatpush1.bf16.msra.mxu0 0
    %2063 = vmatprep.subr.bf16.mxu0 0
    %2064 = vmatpush1.bf16.msra.mxu0 0
    %2065 = vmatprep.mubr.bf16.mxu0 0
    %2066 = vmatmul.mubr.bf16.gmra.mrb[0].mxu0 %v41
    %v2067 = vpop.f32.mrb[0].mxu0
    %v2068 = vadd.f32 %v365, %v2067
    %v2069 = vpop.f32.mrb[0].mxu0
    %v2070 = vadd.f32 %v369, %v2069
    %v2071 = vpop.f32.mrb[0].mxu0
    %v2072 = vpop.f32.mrb[0].mxu0
    %2073 = vdwg.mxu0
    %2074 = vmatprep.subr.bf16.mxu0 %v1251
    %2075 = vmatpush1.bf16.msra.mxu0 %v1250
    %2076 = vmatprep.subr.bf16.mxu0 %v1283
    %2077 = vmatpush1.bf16.msra.mxu0 %v1282
    %2078 = vmatprep.subr.bf16.mxu0 %v1315
    %2079 = vmatpush1.bf16.msra.mxu0 %v1314
    %2080 = vmatprep.subr.bf16.mxu0 %v1347
    %2081 = vmatpush1.bf16.msra.mxu0 %v1346
    %2082 = vmatprep.subr.bf16.mxu0 %v1379
    %2083 = vmatpush1.bf16.msra.mxu0 %v1378
    %2084 = vmatprep.subr.bf16.mxu0 %v1411
    %2085 = vmatpush1.bf16.msra.mxu0 %v1410
    %2086 = vmatprep.subr.bf16.mxu0 %v1443
    %2087 = vmatpush1.bf16.msra.mxu0 %v1442
    %2088 = vmatprep.subr.bf16.mxu0 %v1475
    %2089 = vmatpush1.bf16.msra.mxu0 %v1474
    %2090 = vmatprep.subr.bf16.mxu0 0
    %2091 = vmatpush1.bf16.msra.mxu0 0
    %2092 = vmatprep.subr.bf16.mxu0 0
    %2093 = vmatpush1.bf16.msra.mxu0 0
    %2094 = vmatprep.subr.bf16.mxu0 0
    %2095 = vmatpush1.bf16.msra.mxu0 0
    %2096 = vmatprep.subr.bf16.mxu0 0
    %2097 = vmatpush1.bf16.msra.mxu0 0
    %2098 = vmatprep.subr.bf16.mxu0 0
    %2099 = vmatpush1.bf16.msra.mxu0 0
    %2100 = vmatprep.subr.bf16.mxu0 0
    %2101 = vmatpush1.bf16.msra.mxu0 0
    %2102 = vmatprep.subr.bf16.mxu0 0
    %2103 = vmatpush1.bf16.msra.mxu0 0
    %2104 = vmatprep.subr.bf16.mxu0 0
    %2105 = vmatpush1.bf16.msra.mxu0 0
    %2106 = vmatprep.mubr.bf16.mxu0 0
    %2107 = vmatmul.mubr.bf16.gmra.mrb[0].mxu0 %v41
    %v2108 = vpop.f32.mrb[0].mxu0
    %v2109 = vadd.f32 %v373, %v2108
    %v2110 = vpop.f32.mrb[0].mxu0
    %v2111 = vadd.f32 %v377, %v2110
    %v2112 = vpop.f32.mrb[0].mxu0
    %v2113 = vpop.f32.mrb[0].mxu0
    %2114 = vdwg.mxu0
    %2115 = vmatprep.subr.bf16.mxu0 %v1253
    %2116 = vmatpush1.bf16.msra.mxu0 %v1252
    %2117 = vmatprep.subr.bf16.mxu0 %v1285
    %2118 = vmatpush1.bf16.msra.mxu0 %v1284
    %2119 = vmatprep.subr.bf16.mxu0 %v1317
    %2120 = vmatpush1.bf16.msra.mxu0 %v1316
    %2121 = vmatprep.subr.bf16.mxu0 %v1349
    %2122 = vmatpush1.bf16.msra.mxu0 %v1348
    %2123 = vmatprep.subr.bf16.mxu0 %v1381
    %2124 = vmatpush1.bf16.msra.mxu0 %v1380
    %2125 = vmatprep.subr.bf16.mxu0 %v1413
    %2126 = vmatpush1.bf16.msra.mxu0 %v1412
    %2127 = vmatprep.subr.bf16.mxu0 %v1445
    %2128 = vmatpush1.bf16.msra.mxu0 %v1444
    %2129 = vmatprep.subr.bf16.mxu0 %v1477
    %2130 = vmatpush1.bf16.msra.mxu0 %v1476
    %2131 = vmatprep.subr.bf16.mxu0 0
    %2132 = vmatpush1.bf16.msra.mxu0 0
    %2133 = vmatprep.subr.bf16.mxu0 0
    %2134 = vmatpush1.bf16.msra.mxu0 0
    %2135 = vmatprep.subr.bf16.mxu0 0
    %2136 = vmatpush1.bf16.msra.mxu0 0
    %2137 = vmatprep.subr.bf16.mxu0 0
    %2138 = vmatpush1.bf16.msra.mxu0 0
    %2139 = vmatprep.subr.bf16.mxu0 0
    %2140 = vmatpush1.bf16.msra.mxu0 0
    %2141 = vmatprep.subr.bf16.mxu0 0
    %2142 = vmatpush1.bf16.msra.mxu0 0
    %2143 = vmatprep.subr.bf16.mxu0 0
    %2144 = vmatpush1.bf16.msra.mxu0 0
    %2145 = vmatprep.subr.bf16.mxu0 0
    %2146 = vmatpush1.bf16.msra.mxu0 0
    %2147 = vmatprep.mubr.bf16.mxu0 0
    %2148 = vmatmul.mubr.bf16.gmra.mrb[0].mxu0 %v41
    %v2149 = vpop.f32.mrb[0].mxu0
    %v2150 = vadd.f32 %v381, %v2149
    %v2151 = vpop.f32.mrb[0].mxu0
    %v2152 = vadd.f32 %v385, %v2151
    %v2153 = vpop.f32.mrb[0].mxu0
    %v2154 = vpop.f32.mrb[0].mxu0
    %2155 = vdwg.mxu0
    %2156 = vmatprep.subr.bf16.mxu0 %v1255
    %2157 = vmatpush1.bf16.msra.mxu0 %v1254
    %2158 = vmatprep.subr.bf16.mxu0 %v1287
    %2159 = vmatpush1.bf16.msra.mxu0 %v1286
    %2160 = vmatprep.subr.bf16.mxu0 %v1319
    %2161 = vmatpush1.bf16.msra.mxu0 %v1318
    %2162 = vmatprep.subr.bf16.mxu0 %v1351
    %2163 = vmatpush1.bf16.msra.mxu0 %v1350
    %2164 = vmatprep.subr.bf16.mxu0 %v1383
    %2165 = vmatpush1.bf16.msra.mxu0 %v1382
    %2166 = vmatprep.subr.bf16.mxu0 %v1415
    %2167 = vmatpush1.bf16.msra.mxu0 %v1414
    %2168 = vmatprep.subr.bf16.mxu0 %v1447
    %2169 = vmatpush1.bf16.msra.mxu0 %v1446
    %2170 = vmatprep.subr.bf16.mxu0 %v1479
    %2171 = vmatpush1.bf16.msra.mxu0 %v1478
    %2172 = vmatprep.subr.bf16.mxu0 0
    %2173 = vmatpush1.bf16.msra.mxu0 0
    %2174 = vmatprep.subr.bf16.mxu0 0
    %2175 = vmatpush1.bf16.msra.mxu0 0
    %2176 = vmatprep.subr.bf16.mxu0 0
    %2177 = vmatpush1.bf16.msra.mxu0 0
    %2178 = vmatprep.subr.bf16.mxu0 0
    %2179 = vmatpush1.bf16.msra.mxu0 0
    %2180 = vmatprep.subr.bf16.mxu0 0
    %2181 = vmatpush1.bf16.msra.mxu0 0
    %2182 = vmatprep.subr.bf16.mxu0 0
    %2183 = vmatpush1.bf16.msra.mxu0 0
    %2184 = vmatprep.subr.bf16.mxu0 0
    %2185 = vmatpush1.bf16.msra.mxu0 0
    %2186 = vmatprep.subr.bf16.mxu0 0
    %2187 = vmatpush1.bf16.msra.mxu0 0
    %2188 = vmatprep.mubr.bf16.mxu0 0
    %2189 = vmatmul.mubr.bf16.gmra.mrb[0].mxu0 %v41
    %v2190 = vpop.f32.mrb[0].mxu0
    %v2191 = vadd.f32 %v389, %v2190
    %v2192 = vpop.f32.mrb[0].mxu0
    %v2193 = vadd.f32 %v393, %v2192
    %v2194 = vpop.f32.mrb[0].mxu0
    %v2195 = vpop.f32.mrb[0].mxu0
    %2196 = vdwg.mxu0
    %2197 = vmatprep.subr.bf16.mxu0 %v1257
    %2198 = vmatpush1.bf16.msra.mxu0 %v1256
    %2199 = vmatprep.subr.bf16.mxu0 %v1289
    %2200 = vmatpush1.bf16.msra.mxu0 %v1288
    %2201 = vmatprep.subr.bf16.mxu0 %v1321
    %2202 = vmatpush1.bf16.msra.mxu0 %v1320
    %2203 = vmatprep.subr.bf16.mxu0 %v1353
    %2204 = vmatpush1.bf16.msra.mxu0 %v1352
    %2205 = vmatprep.subr.bf16.mxu0 %v1385
    %2206 = vmatpush1.bf16.msra.mxu0 %v1384
    %2207 = vmatprep.subr.bf16.mxu0 %v1417
    %2208 = vmatpush1.bf16.msra.mxu0 %v1416
    %2209 = vmatprep.subr.bf16.mxu0 %v1449
    %2210 = vmatpush1.bf16.msra.mxu0 %v1448
    %2211 = vmatprep.subr.bf16.mxu0 %v1481
    %2212 = vmatpush1.bf16.msra.mxu0 %v1480
    %2213 = vmatprep.subr.bf16.mxu0 0
    %2214 = vmatpush1.bf16.msra.mxu0 0
    %2215 = vmatprep.subr.bf16.mxu0 0
    %2216 = vmatpush1.bf16.msra.mxu0 0
    %2217 = vmatprep.subr.bf16.mxu0 0
    %2218 = vmatpush1.bf16.msra.mxu0 0
    %2219 = vmatprep.subr.bf16.mxu0 0
    %2220 = vmatpush1.bf16.msra.mxu0 0
    %2221 = vmatprep.subr.bf16.mxu0 0
    %2222 = vmatpush1.bf16.msra.mxu0 0
    %2223 = vmatprep.subr.bf16.mxu0 0
    %2224 = vmatpush1.bf16.msra.mxu0 0
    %2225 = vmatprep.subr.bf16.mxu0 0
    %2226 = vmatpush1.bf16.msra.mxu0 0
    %2227 = vmatprep.subr.bf16.mxu0 0
    %2228 = vmatpush1.bf16.msra.mxu0 0
    %2229 = vmatprep.mubr.bf16.mxu0 0
    %2230 = vmatmul.mubr.bf16.gmra.mrb[0].mxu0 %v41
    %v2231 = vpop.f32.mrb[0].mxu0
    %v2232 = vadd.f32 %v397, %v2231
    %v2233 = vpop.f32.mrb[0].mxu0
    %v2234 = vadd.f32 %v401, %v2233
    %v2235 = vpop.f32.mrb[0].mxu0
    %v2236 = vpop.f32.mrb[0].mxu0
    %2237 = vdwg.mxu0
    %2238 = vmatprep.subr.bf16.mxu0 %v1259
    %2239 = vmatpush1.bf16.msra.mxu0 %v1258
    %2240 = vmatprep.subr.bf16.mxu0 %v1291
    %2241 = vmatpush1.bf16.msra.mxu0 %v1290
    %2242 = vmatprep.subr.bf16.mxu0 %v1323
    %2243 = vmatpush1.bf16.msra.mxu0 %v1322
    %2244 = vmatprep.subr.bf16.mxu0 %v1355
    %2245 = vmatpush1.bf16.msra.mxu0 %v1354
    %2246 = vmatprep.subr.bf16.mxu0 %v1387
    %2247 = vmatpush1.bf16.msra.mxu0 %v1386
    %2248 = vmatprep.subr.bf16.mxu0 %v1419
    %2249 = vmatpush1.bf16.msra.mxu0 %v1418
    %2250 = vmatprep.subr.bf16.mxu0 %v1451
    %2251 = vmatpush1.bf16.msra.mxu0 %v1450
    %2252 = vmatprep.subr.bf16.mxu0 %v1483
    %2253 = vmatpush1.bf16.msra.mxu0 %v1482
    %2254 = vmatprep.subr.bf16.mxu0 0
    %2255 = vmatpush1.bf16.msra.mxu0 0
    %2256 = vmatprep.subr.bf16.mxu0 0
    %2257 = vmatpush1.bf16.msra.mxu0 0
    %2258 = vmatprep.subr.bf16.mxu0 0
    %2259 = vmatpush1.bf16.msra.mxu0 0
    %2260 = vmatprep.subr.bf16.mxu0 0
    %2261 = vmatpush1.bf16.msra.mxu0 0
    %2262 = vmatprep.subr.bf16.mxu0 0
    %2263 = vmatpush1.bf16.msra.mxu0 0
    %2264 = vmatprep.subr.bf16.mxu0 0
    %2265 = vmatpush1.bf16.msra.mxu0 0
    %2266 = vmatprep.subr.bf16.mxu0 0
    %2267 = vmatpush1.bf16.msra.mxu0 0
    %2268 = vmatprep.subr.bf16.mxu0 0
    %2269 = vmatpush1.bf16.msra.mxu0 0
    %2270 = vmatprep.mubr.bf16.mxu0 0
    %2271 = vmatmul.mubr.bf16.gmra.mrb[0].mxu0 %v41
    %v2272 = vpop.f32.mrb[0].mxu0
    %v2273 = vadd.f32 %v405, %v2272
    %v2274 = vpop.f32.mrb[0].mxu0
    %v2275 = vadd.f32 %v409, %v2274
    %v2276 = vpop.f32.mrb[0].mxu0
    %v2277 = vpop.f32.mrb[0].mxu0
    %2278 = vdwg.mxu0
    %2279 = vmatprep.subr.bf16.mxu0 %v1261
    %2280 = vmatpush1.bf16.msra.mxu0 %v1260
    %2281 = vmatprep.subr.bf16.mxu0 %v1293
    %2282 = vmatpush1.bf16.msra.mxu0 %v1292
    %2283 = vmatprep.subr.bf16.mxu0 %v1325
    %2284 = vmatpush1.bf16.msra.mxu0 %v1324
    %2285 = vmatprep.subr.bf16.mxu0 %v1357
    %2286 = vmatpush1.bf16.msra.mxu0 %v1356
    %2287 = vmatprep.subr.bf16.mxu0 %v1389
    %2288 = vmatpush1.bf16.msra.mxu0 %v1388
    %2289 = vmatprep.subr.bf16.mxu0 %v1421
    %2290 = vmatpush1.bf16.msra.mxu0 %v1420
    %2291 = vmatprep.subr.bf16.mxu0 %v1453
    %2292 = vmatpush1.bf16.msra.mxu0 %v1452
    %2293 = vmatprep.subr.bf16.mxu0 %v1485
    %2294 = vmatpush1.bf16.msra.mxu0 %v1484
    %2295 = vmatprep.subr.bf16.mxu0 0
    %2296 = vmatpush1.bf16.msra.mxu0 0
    %2297 = vmatprep.subr.bf16.mxu0 0
    %2298 = vmatpush1.bf16.msra.mxu0 0
    %2299 = vmatprep.subr.bf16.mxu0 0
    %2300 = vmatpush1.bf16.msra.mxu0 0
    %2301 = vmatprep.subr.bf16.mxu0 0
    %2302 = vmatpush1.bf16.msra.mxu0 0
    %2303 = vmatprep.subr.bf16.mxu0 0
    %2304 = vmatpush1.bf16.msra.mxu0 0
    %2305 = vmatprep.subr.bf16.mxu0 0
    %2306 = vmatpush1.bf16.msra.mxu0 0
    %2307 = vmatprep.subr.bf16.mxu0 0
    %2308 = vmatpush1.bf16.msra.mxu0 0
    %2309 = vmatprep.subr.bf16.mxu0 0
    %2310 = vmatpush1.bf16.msra.mxu0 0
    %2311 = vmatprep.mubr.bf16.mxu0 0
    %2312 = vmatmul.mubr.bf16.gmra.mrb[0].mxu0 %v41
    %v2313 = vpop.f32.mrb[0].mxu0
    %v2314 = vadd.f32 %v413, %v2313
    %v2315 = vpop.f32.mrb[0].mxu0
    %v2316 = vadd.f32 %v417, %v2315
    %v2317 = vpop.f32.mrb[0].mxu0
    %v2318 = vpop.f32.mrb[0].mxu0
    %2319 = vdwg.mxu0
    %2320 = vmatprep.subr.bf16.mxu0 %v1263
    %2321 = vmatpush1.bf16.msra.mxu0 %v1262
    %2322 = vmatprep.subr.bf16.mxu0 %v1295
    %2323 = vmatpush1.bf16.msra.mxu0 %v1294
    %2324 = vmatprep.subr.bf16.mxu0 %v1327
    %2325 = vmatpush1.bf16.msra.mxu0 %v1326
    %2326 = vmatprep.subr.bf16.mxu0 %v1359
    %2327 = vmatpush1.bf16.msra.mxu0 %v1358
    %2328 = vmatprep.subr.bf16.mxu0 %v1391
    %2329 = vmatpush1.bf16.msra.mxu0 %v1390
    %2330 = vmatprep.subr.bf16.mxu0 %v1423
    %2331 = vmatpush1.bf16.msra.mxu0 %v1422
    %2332 = vmatprep.subr.bf16.mxu0 %v1455
    %2333 = vmatpush1.bf16.msra.mxu0 %v1454
    %2334 = vmatprep.subr.bf16.mxu0 %v1487
    %2335 = vmatpush1.bf16.msra.mxu0 %v1486
    %2336 = vmatprep.subr.bf16.mxu0 0
    %2337 = vmatpush1.bf16.msra.mxu0 0
    %2338 = vmatprep.subr.bf16.mxu0 0
    %2339 = vmatpush1.bf16.msra.mxu0 0
    %2340 = vmatprep.subr.bf16.mxu0 0
    %2341 = vmatpush1.bf16.msra.mxu0 0
    %2342 = vmatprep.subr.bf16.mxu0 0
    %2343 = vmatpush1.bf16.msra.mxu0 0
    %2344 = vmatprep.subr.bf16.mxu0 0
    %2345 = vmatpush1.bf16.msra.mxu0 0
    %2346 = vmatprep.subr.bf16.mxu0 0
    %2347 = vmatpush1.bf16.msra.mxu0 0
    %2348 = vmatprep.subr.bf16.mxu0 0
    %2349 = vmatpush1.bf16.msra.mxu0 0
    %2350 = vmatprep.subr.bf16.mxu0 0
    %2351 = vmatpush1.bf16.msra.mxu0 0
    %2352 = vmatprep.mubr.bf16.mxu0 0
    %2353 = vmatmul.mubr.bf16.gmra.mrb[0].mxu0 %v41
    %v2354 = vpop.f32.mrb[0].mxu0
    %v2355 = vadd.f32 %v421, %v2354
    %v2356 = vpop.f32.mrb[0].mxu0
    %v2357 = vadd.f32 %v425, %v2356
    %v2358 = vpop.f32.mrb[0].mxu0
    %v2359 = vpop.f32.mrb[0].mxu0
    %2360 = vdwg.mxu0
    %2361 = vmatprep.subr.bf16.mxu0 %v1265
    %2362 = vmatpush1.bf16.msra.mxu0 %v1264
    %2363 = vmatprep.subr.bf16.mxu0 %v1297
    %2364 = vmatpush1.bf16.msra.mxu0 %v1296
    %2365 = vmatprep.subr.bf16.mxu0 %v1329
    %2366 = vmatpush1.bf16.msra.mxu0 %v1328
    %2367 = vmatprep.subr.bf16.mxu0 %v1361
    %2368 = vmatpush1.bf16.msra.mxu0 %v1360
    %2369 = vmatprep.subr.bf16.mxu0 %v1393
    %2370 = vmatpush1.bf16.msra.mxu0 %v1392
    %2371 = vmatprep.subr.bf16.mxu0 %v1425
    %2372 = vmatpush1.bf16.msra.mxu0 %v1424
    %2373 = vmatprep.subr.bf16.mxu0 %v1457
    %2374 = vmatpush1.bf16.msra.mxu0 %v1456
    %2375 = vmatprep.subr.bf16.mxu0 %v1489
    %2376 = vmatpush1.bf16.msra.mxu0 %v1488
    %2377 = vmatprep.subr.bf16.mxu0 0
    %2378 = vmatpush1.bf16.msra.mxu0 0
    %2379 = vmatprep.subr.bf16.mxu0 0
    %2380 = vmatpush1.bf16.msra.mxu0 0
    %2381 = vmatprep.subr.bf16.mxu0 0
    %2382 = vmatpush1.bf16.msra.mxu0 0
    %2383 = vmatprep.subr.bf16.mxu0 0
    %2384 = vmatpush1.bf16.msra.mxu0 0
    %2385 = vmatprep.subr.bf16.mxu0 0
    %2386 = vmatpush1.bf16.msra.mxu0 0
    %2387 = vmatprep.subr.bf16.mxu0 0
    %2388 = vmatpush1.bf16.msra.mxu0 0
    %2389 = vmatprep.subr.bf16.mxu0 0
    %2390 = vmatpush1.bf16.msra.mxu0 0
    %2391 = vmatprep.subr.bf16.mxu0 0
    %2392 = vmatpush1.bf16.msra.mxu0 0
    %2393 = vmatprep.mubr.bf16.mxu0 0
    %2394 = vmatmul.mubr.bf16.gmra.mrb[0].mxu0 %v41
    %v2395 = vpop.f32.mrb[0].mxu0
    %v2396 = vadd.f32 %v429, %v2395
    %v2397 = vpop.f32.mrb[0].mxu0
    %v2398 = vadd.f32 %v433, %v2397
    %v2399 = vpop.f32.mrb[0].mxu0
    %v2400 = vpop.f32.mrb[0].mxu0
    %2401 = vdwg.mxu0
    %v2402 = vmax.f32 %v1781, 0.0
    %v2403 = vmax.f32 %v1783, 0.0
    %v2404 = vmax.f32 %v1822, 0.0
    %v2405 = vmax.f32 %v1824, 0.0
    %v2406 = vmax.f32 %v1863, 0.0
    %v2407 = vmax.f32 %v1865, 0.0
    %v2408 = vmax.f32 %v1904, 0.0
    %v2409 = vmax.f32 %v1906, 0.0
    %v2410 = vmax.f32 %v1945, 0.0
    %v2411 = vmax.f32 %v1947, 0.0
    %v2412 = vmax.f32 %v1986, 0.0
    %v2413 = vmax.f32 %v1988, 0.0
    %v2414 = vmax.f32 %v2027, 0.0
    %v2415 = vmax.f32 %v2029, 0.0
    %v2416 = vmax.f32 %v2068, 0.0
    %v2417 = vmax.f32 %v2070, 0.0
    %v2418 = vmax.f32 %v2109, 0.0
    %v2419 = vmax.f32 %v2111, 0.0
    %v2420 = vmax.f32 %v2150, 0.0
    %v2421 = vmax.f32 %v2152, 0.0
    %v2422 = vmax.f32 %v2191, 0.0
    %v2423 = vmax.f32 %v2193, 0.0
    %v2424 = vmax.f32 %v2232, 0.0
    %v2425 = vmax.f32 %v2234, 0.0
    %v2426 = vmax.f32 %v2273, 0.0
    %v2427 = vmax.f32 %v2275, 0.0
    %v2428 = vmax.f32 %v2314, 0.0
    %v2429 = vmax.f32 %v2316, 0.0
    %v2430 = vmax.f32 %v2355, 0.0
    %v2431 = vmax.f32 %v2357, 0.0
    %v2432 = vmax.f32 %v2396, 0.0
    %v2433 = vmax.f32 %v2398, 0.0
    %v2434 = vpack.c.bf16 %v2402, %v2402
    %v2435 = vpack.c.bf16 %v2403, %v2403
    %v2436 = vpack.c.bf16 %v2404, %v2404
    %v2437 = vpack.c.bf16 %v2405, %v2405
    %v2438 = vpack.c.bf16 %v2406, %v2406
    %v2439 = vpack.c.bf16 %v2407, %v2407
    %v2440 = vpack.c.bf16 %v2408, %v2408
    %v2441 = vpack.c.bf16 %v2409, %v2409
    %v2442 = vpack.c.bf16 %v2410, %v2410
    %v2443 = vpack.c.bf16 %v2411, %v2411
    %v2444 = vpack.c.bf16 %v2412, %v2412
    %v2445 = vpack.c.bf16 %v2413, %v2413
    %v2446 = vpack.c.bf16 %v2414, %v2414
    %v2447 = vpack.c.bf16 %v2415, %v2415
    %v2448 = vpack.c.bf16 %v2416, %v2416
    %v2449 = vpack.c.bf16 %v2417, %v2417
    %v2450 = vpack.c.bf16 %v2418, %v2418
    %v2451 = vpack.c.bf16 %v2419, %v2419
    %v2452 = vpack.c.bf16 %v2420, %v2420
    %v2453 = vpack.c.bf16 %v2421, %v2421
    %v2454 = vpack.c.bf16 %v2422, %v2422
    %v2455 = vpack.c.bf16 %v2423, %v2423
    %v2456 = vpack.c.bf16 %v2424, %v2424
    %v2457 = vpack.c.bf16 %v2425, %v2425
    %v2458 = vpack.c.bf16 %v2426, %v2426
    %v2459 = vpack.c.bf16 %v2427, %v2427
    %v2460 = vpack.c.bf16 %v2428, %v2428
    %v2461 = vpack.c.bf16 %v2429, %v2429
    %v2462 = vpack.c.bf16 %v2430, %v2430
    %v2463 = vpack.c.bf16 %v2431, %v2431
    %v2464 = vpack.c.bf16 %v2432, %v2432
    %v2465 = vpack.c.bf16 %v2433, %v2433
    %v2498 = vcombine.low %v2434, %v2435
    %v2499 = vcombine.low %v2436, %v2437
    %v2500 = vcombine.low %v2438, %v2439
    %v2501 = vcombine.low %v2440, %v2441
    %v2503 = vunpack.c.l.s4 1966171168
    %v2504 = vunpack.c.0.s8 %v2503
    %v2505 = vlaneseq
    %v2506 = vshrl.u32 %v2505, 7
    %v2507 = vsub.s32 %v2504, %v2506
    %v2508 = vrot.slane %v2498, %v2507
    %v2510 = vunpack.c.l.s4 1966171168
    %v2511 = vunpack.c.0.s8 %v2510
    %v2512 = vlaneseq
    %v2513 = vshrl.u32 %v2512, 7
    %v2514 = vsub.s32 %v2511, %v2513
    %v2515 = vrot.slane %v2499, %v2514
    %v2517 = vunpack.c.l.s4 1966171168
    %v2518 = vunpack.c.0.s8 %v2517
    %v2519 = vlaneseq
    %v2520 = vshrl.u32 %v2519, 7
    %v2521 = vsub.s32 %v2518, %v2520
    %v2522 = vrot.slane %v2500, %v2521
    %v2524 = vunpack.c.l.s4 1966171168
    %v2525 = vunpack.c.0.s8 %v2524
    %v2526 = vlaneseq
    %v2527 = vshrl.u32 %v2526, 7
    %v2528 = vsub.s32 %v2525, %v2527
    %v2529 = vrot.slane %v2501, %v2528
    %v2530 = vcombine.low %v2508, %v2515
    %v2531 = vcombine.low %v2522, %v2529
    %v2533 = vunpack.c.l.s4 1966171168
    %v2534 = vunpack.c.0.s8 %v2533
    %v2535 = vlaneseq
    %v2536 = vshrl.u32 %v2535, 7
    %v2537 = vsub.s32 %v2534, %v2536
    %v2538 = vrot.slane %v2530, %v2537
    %v2540 = vunpack.c.l.s4 1966171168
    %v2541 = vunpack.c.0.s8 %v2540
    %v2542 = vlaneseq
    %v2543 = vshrl.u32 %v2542, 7
    %v2544 = vsub.s32 %v2541, %v2543
    %v2545 = vrot.slane %v2531, %v2544
    %v2546 = vcombine.low %v2538, %v2545
    %v2547 = vcombine.low %v2442, %v2443
    %v2548 = vcombine.low %v2444, %v2445
    %v2549 = vcombine.low %v2446, %v2447
    %v2550 = vcombine.low %v2448, %v2449
    %v2552 = vunpack.c.l.s4 1966171168
    %v2553 = vunpack.c.0.s8 %v2552
    %v2554 = vlaneseq
    %v2555 = vshrl.u32 %v2554, 7
    %v2556 = vsub.s32 %v2553, %v2555
    %v2557 = vrot.slane %v2547, %v2556
    %v2559 = vunpack.c.l.s4 1966171168
    %v2560 = vunpack.c.0.s8 %v2559
    %v2561 = vlaneseq
    %v2562 = vshrl.u32 %v2561, 7
    %v2563 = vsub.s32 %v2560, %v2562
    %v2564 = vrot.slane %v2548, %v2563
    %v2566 = vunpack.c.l.s4 1966171168
    %v2567 = vunpack.c.0.s8 %v2566
    %v2568 = vlaneseq
    %v2569 = vshrl.u32 %v2568, 7
    %v2570 = vsub.s32 %v2567, %v2569
    %v2571 = vrot.slane %v2549, %v2570
    %v2573 = vunpack.c.l.s4 1966171168
    %v2574 = vunpack.c.0.s8 %v2573
    %v2575 = vlaneseq
    %v2576 = vshrl.u32 %v2575, 7
    %v2577 = vsub.s32 %v2574, %v2576
    %v2578 = vrot.slane %v2550, %v2577
    %v2579 = vcombine.low %v2557, %v2564
    %v2580 = vcombine.low %v2571, %v2578
    %v2582 = vunpack.c.l.s4 1966171168
    %v2583 = vunpack.c.0.s8 %v2582
    %v2584 = vlaneseq
    %v2585 = vshrl.u32 %v2584, 7
    %v2586 = vsub.s32 %v2583, %v2585
    %v2587 = vrot.slane %v2579, %v2586
    %v2589 = vunpack.c.l.s4 1966171168
    %v2590 = vunpack.c.0.s8 %v2589
    %v2591 = vlaneseq
    %v2592 = vshrl.u32 %v2591, 7
    %v2593 = vsub.s32 %v2590, %v2592
    %v2594 = vrot.slane %v2580, %v2593
    %v2595 = vcombine.low %v2587, %v2594
    %v2596 = vcombine.low %v2450, %v2451
    %v2597 = vcombine.low %v2452, %v2453
    %v2598 = vcombine.low %v2454, %v2455
    %v2599 = vcombine.low %v2456, %v2457
    %v2601 = vunpack.c.l.s4 1966171168
    %v2602 = vunpack.c.0.s8 %v2601
    %v2603 = vlaneseq
    %v2604 = vshrl.u32 %v2603, 7
    %v2605 = vsub.s32 %v2602, %v2604
    %v2606 = vrot.slane %v2596, %v2605
    %v2608 = vunpack.c.l.s4 1966171168
    %v2609 = vunpack.c.0.s8 %v2608
    %v2610 = vlaneseq
    %v2611 = vshrl.u32 %v2610, 7
    %v2612 = vsub.s32 %v2609, %v2611
    %v2613 = vrot.slane %v2597, %v2612
    %v2615 = vunpack.c.l.s4 1966171168
    %v2616 = vunpack.c.0.s8 %v2615
    %v2617 = vlaneseq
    %v2618 = vshrl.u32 %v2617, 7
    %v2619 = vsub.s32 %v2616, %v2618
    %v2620 = vrot.slane %v2598, %v2619
    %v2622 = vunpack.c.l.s4 1966171168
    %v2623 = vunpack.c.0.s8 %v2622
    %v2624 = vlaneseq
    %v2625 = vshrl.u32 %v2624, 7
    %v2626 = vsub.s32 %v2623, %v2625
    %v2627 = vrot.slane %v2599, %v2626
    %v2628 = vcombine.low %v2606, %v2613
    %v2629 = vcombine.low %v2620, %v2627
    %v2631 = vunpack.c.l.s4 1966171168
    %v2632 = vunpack.c.0.s8 %v2631
    %v2633 = vlaneseq
    %v2634 = vshrl.u32 %v2633, 7
    %v2635 = vsub.s32 %v2632, %v2634
    %v2636 = vrot.slane %v2628, %v2635
    %v2638 = vunpack.c.l.s4 1966171168
    %v2639 = vunpack.c.0.s8 %v2638
    %v2640 = vlaneseq
    %v2641 = vshrl.u32 %v2640, 7
    %v2642 = vsub.s32 %v2639, %v2641
    %v2643 = vrot.slane %v2629, %v2642
    %v2644 = vcombine.low %v2636, %v2643
    %v2645 = vcombine.low %v2458, %v2459
    %v2646 = vcombine.low %v2460, %v2461
    %v2647 = vcombine.low %v2462, %v2463
    %v2648 = vcombine.low %v2464, %v2465
    %v2650 = vunpack.c.l.s4 1966171168
    %v2651 = vunpack.c.0.s8 %v2650
    %v2652 = vlaneseq
    %v2653 = vshrl.u32 %v2652, 7
    %v2654 = vsub.s32 %v2651, %v2653
    %v2655 = vrot.slane %v2645, %v2654
    %v2657 = vunpack.c.l.s4 1966171168
    %v2658 = vunpack.c.0.s8 %v2657
    %v2659 = vlaneseq
    %v2660 = vshrl.u32 %v2659, 7
    %v2661 = vsub.s32 %v2658, %v2660
    %v2662 = vrot.slane %v2646, %v2661
    %v2664 = vunpack.c.l.s4 1966171168
    %v2665 = vunpack.c.0.s8 %v2664
    %v2666 = vlaneseq
    %v2667 = vshrl.u32 %v2666, 7
    %v2668 = vsub.s32 %v2665, %v2667
    %v2669 = vrot.slane %v2647, %v2668
    %v2671 = vunpack.c.l.s4 1966171168
    %v2672 = vunpack.c.0.s8 %v2671
    %v2673 = vlaneseq
    %v2674 = vshrl.u32 %v2673, 7
    %v2675 = vsub.s32 %v2672, %v2674
    %v2676 = vrot.slane %v2648, %v2675
    %v2677 = vcombine.low %v2655, %v2662
    %v2678 = vcombine.low %v2669, %v2676
    %v2680 = vunpack.c.l.s4 1966171168
    %v2681 = vunpack.c.0.s8 %v2680
    %v2682 = vlaneseq
    %v2683 = vshrl.u32 %v2682, 7
    %v2684 = vsub.s32 %v2681, %v2683
    %v2685 = vrot.slane %v2677, %v2684
    %v2687 = vunpack.c.l.s4 1966171168
    %v2688 = vunpack.c.0.s8 %v2687
    %v2689 = vlaneseq
    %v2690 = vshrl.u32 %v2689, 7
    %v2691 = vsub.s32 %v2688, %v2690
    %v2692 = vrot.slane %v2678, %v2691
    %v2693 = vcombine.low %v2685, %v2692
    %2698 = vst [vmem:[%s3] sm:$0xff] %v2546
    %2699 = vst [vmem:[%s3 + $0x8] sm:$0xff] %v2595
    %2700 = vst [vmem:[%s3 + $0x10] sm:$0xff] %v2644
    %2701 = vst [vmem:[%s3 + $0x18] sm:$0xff] %v2693
    // Predicated region
    $region22: #{generator_forward.4} parent=1 // pred_check
      _
    $region23: #{generator_forward.4} parent=1 // pred_check_branch
      %2703 = sbr.rel (0) target = $region25
    $region24: #{generator_forward.4} parent=1 // pred_region
      _
    $region25: #{generator_forward.4} parent=1 // pred_fallthru
      _
    // Predicated region
    $region26: #{generator_forward.4} parent=1 // pred_check
      _
    $region27: #{generator_forward.4} parent=1 // pred_check_branch
      %2705 = sbr.rel (0) target = $region29
    $region28: #{generator_forward.4} parent=1 // pred_region
      _
    $region29: #{generator_forward.4} parent=1 // pred_fallthru
      _
    %2706 = vsyncpa [#allocation3], 1
    %2707 = vsyncpa [#allocation5], 1

// kernel: generator_forward.5
$region0: #{generator_forward.5}
  #allocation0 [shape = 'u32[]', space=smem, size = 0x4, offset = 0x4, fixed_abs, tag = 'smem constant byte address 0x4 - core index']
  #allocation1 [shape = 'u32[144,128]{1,0:T(1,128)}', space=vmem, size = 0x12000, scoped, tag = 'internal scratch']
  %s0 = inlined_call_operand.vmem [shape: bf16[9,32,256], index: 0, kind: input, shape index: {}]
  %s1 = inlined_call_operand.vmem [shape: bf16[16,256,128], index: 1, kind: input, shape index: {}]
  %s2 = inlined_call_operand.vmem [shape: f32[1,128], index: 2, kind: input, shape index: {}]
  %s3 = inlined_call_operand.vmem [shape: bf16[32,512], index: 3, kind: output, shape index: {}]
  %s4 = sld [smem:[#allocation0]]
  $region22: #{generator_forward.5} parent=0
    _
  %s6 = ssub.s32 1, %s4
  %s7 = scalar_select 0, %s6, %s4
  // Predicated region
  $region2: #{generator_forward.5} parent=0 // pred_check
    _
  $region3: #{generator_forward.5} parent=0 // pred_check_branch
    %9 = sbr.rel (0) target = $region5
  $region4: #{generator_forward.5} parent=0 // pred_region
    _
  $region5: #{generator_forward.5} parent=0 // pred_fallthru
    _
  // Predicated region
  $region6: #{generator_forward.5} parent=0 // pred_check
    _
  $region7: #{generator_forward.5} parent=0 // pred_check_branch
    %11 = sbr.rel (0) target = $region9
  $region8: #{generator_forward.5} parent=0 // pred_region
    _
  $region9: #{generator_forward.5} parent=0 // pred_fallthru
    _
  // Predicated region
  $region10: #{generator_forward.5} parent=0 // pred_check
    _
  $region11: #{generator_forward.5} parent=0 // pred_check_branch
    %13 = sbr.rel (0) target = $region13
  $region12: #{generator_forward.5} parent=0 // pred_region
    _
  $region13: #{generator_forward.5} parent=0 // pred_fallthru
    _
  %v15 = vld [vmem:[%s0] sm:$0xff]
  %v16 = vld [vmem:[%s0 + $0x8] sm:$0xff]
  %v17 = vld [vmem:[%s0 + $0x10] sm:$0xff]
  %v18 = vld [vmem:[%s0 + $0x18] sm:$0xff]
  %v19 = vld [vmem:[%s1] sm:$0xf]
  %v20 = vld [vmem:[%s1 + $0x4] sm:$0xf]
  %v21 = vld [vmem:[%s1 + $0x8] sm:$0xf]
  %v22 = vld [vmem:[%s1 + $0xc] sm:$0xf]
  %v23 = vld [vmem:[%s1 + $0x10] sm:$0xf]
  %v24 = vld [vmem:[%s1 + $0x14] sm:$0xf]
  %v25 = vld [vmem:[%s1 + $0x18] sm:$0xf]
  %v26 = vld [vmem:[%s1 + $0x1c] sm:$0xf]
  %v27 = vld [vmem:[%s1 + $0x20] sm:$0xf]
  %v28 = vld [vmem:[%s1 + $0x24] sm:$0xf]
  %v29 = vld [vmem:[%s1 + $0x28] sm:$0xf]
  %v30 = vld [vmem:[%s1 + $0x2c] sm:$0xf]
  %v31 = vld [vmem:[%s1 + $0x30] sm:$0xf]
  %v32 = vld [vmem:[%s1 + $0x34] sm:$0xf]
  %v33 = vld [vmem:[%s1 + $0x38] sm:$0xf]
  %v34 = vld [vmem:[%s1 + $0x3c] sm:$0xf]
  %v35 = vld [vmem:[%s1 + $0x40] sm:$0xf]
  %v36 = vld [vmem:[%s1 + $0x44] sm:$0xf]
  %v37 = vld [vmem:[%s1 + $0x48] sm:$0xf]
  %v38 = vld [vmem:[%s1 + $0x4c] sm:$0xf]
  %v39 = vld [vmem:[%s1 + $0x50] sm:$0xf]
  %v40 = vld [vmem:[%s1 + $0x54] sm:$0xf]
  %v41 = vld [vmem:[%s1 + $0x58] sm:$0xf]
  %v42 = vld [vmem:[%s1 + $0x5c] sm:$0xf]
  %v43 = vld [vmem:[%s1 + $0x60] sm:$0xf]
  %v44 = vld [vmem:[%s1 + $0x64] sm:$0xf]
  %v45 = vld [vmem:[%s1 + $0x68] sm:$0xf]
  %v46 = vld [vmem:[%s1 + $0x6c] sm:$0xf]
  %v47 = vld [vmem:[%s1 + $0x70] sm:$0xf]
  %v48 = vld [vmem:[%s1 + $0x74] sm:$0xf]
  %v49 = vld [vmem:[%s1 + $0x78] sm:$0xf]
  %v50 = vld [vmem:[%s1 + $0x7c] sm:$0xf]
  %s51 = scalar_lea.vmem %s0, 32
  %v52 = vld [vmem:[%s51] sm:$0xff]
  %v53 = vld [vmem:[%s51 + $0x8] sm:$0xff]
  %v54 = vld [vmem:[%s51 + $0x10] sm:$0xff]
  %v55 = vld [vmem:[%s51 + $0x18] sm:$0xff]
  %s56 = scalar_lea.vmem %s1, 128
  %v57 = vld [vmem:[%s56] sm:$0xf]
  %v58 = vld [vmem:[%s56 + $0x4] sm:$0xf]
  %v59 = vld [vmem:[%s56 + $0x8] sm:$0xf]
  %v60 = vld [vmem:[%s56 + $0xc] sm:$0xf]
  %v61 = vld [vmem:[%s56 + $0x10] sm:$0xf]
  %v62 = vld [vmem:[%s56 + $0x14] sm:$0xf]
  %v63 = vld [vmem:[%s56 + $0x18] sm:$0xf]
  %v64 = vld [vmem:[%s56 + $0x1c] sm:$0xf]
  %v65 = vld [vmem:[%s56 + $0x20] sm:$0xf]
  %v66 = vld [vmem:[%s56 + $0x24] sm:$0xf]
  %v67 = vld [vmem:[%s56 + $0x28] sm:$0xf]
  %v68 = vld [vmem:[%s56 + $0x2c] sm:$0xf]
  %v69 = vld [vmem:[%s56 + $0x30] sm:$0xf]
  %v70 = vld [vmem:[%s56 + $0x34] sm:$0xf]
  %v71 = vld [vmem:[%s56 + $0x38] sm:$0xf]
  %v72 = vld [vmem:[%s56 + $0x3c] sm:$0xf]
  %v73 = vld [vmem:[%s56 + $0x40] sm:$0xf]
  %v74 = vld [vmem:[%s56 + $0x44] sm:$0xf]
  %v75 = vld [vmem:[%s56 + $0x48] sm:$0xf]
  %v76 = vld [vmem:[%s56 + $0x4c] sm:$0xf]
  %v77 = vld [vmem:[%s56 + $0x50] sm:$0xf]
  %v78 = vld [vmem:[%s56 + $0x54] sm:$0xf]
  %v79 = vld [vmem:[%s56 + $0x58] sm:$0xf]
  %v80 = vld [vmem:[%s56 + $0x5c] sm:$0xf]
  %v81 = vld [vmem:[%s56 + $0x60] sm:$0xf]
  %v82 = vld [vmem:[%s56 + $0x64] sm:$0xf]
  %v83 = vld [vmem:[%s56 + $0x68] sm:$0xf]
  %v84 = vld [vmem:[%s56 + $0x6c] sm:$0xf]
  %v85 = vld [vmem:[%s56 + $0x70] sm:$0xf]
  %v86 = vld [vmem:[%s56 + $0x74] sm:$0xf]
  %v87 = vld [vmem:[%s56 + $0x78] sm:$0xf]
  %v88 = vld [vmem:[%s56 + $0x7c] sm:$0xf]
  %v93 = vunpack.c.l.b16 %v52
  %v94 = vunpack.c.h.b16 %v52
  %v95 = vunpack.c.l.b16 %v53
  %v96 = vunpack.c.h.b16 %v53
  %v97 = vunpack.c.l.b16 %v54
  %v98 = vunpack.c.h.b16 %v54
  %v99 = vunpack.c.l.b16 %v55
  %v100 = vunpack.c.h.b16 %v55
  %v101 = vpack.c.b16 %v95, %v93
  %v102 = vpack.c.b16 %v96, %v94
  %v103 = vpack.c.b16 %v99, %v97
  %v104 = vpack.c.b16 %v100, %v98
  %v141 = vunpack.c.l.b16 %v57
  %v142 = vunpack.c.l.b16 %v58
  %v143 = vunpack.c.l.b16 %v59
  %v144 = vunpack.c.l.b16 %v60
  %v145 = vunpack.c.l.b16 %v61
  %v146 = vunpack.c.l.b16 %v62
  %v147 = vunpack.c.l.b16 %v63
  %v148 = vunpack.c.l.b16 %v64
  %v149 = vunpack.c.l.b16 %v65
  %v150 = vunpack.c.l.b16 %v66
  %v151 = vunpack.c.l.b16 %v67
  %v152 = vunpack.c.l.b16 %v68
  %v153 = vunpack.c.l.b16 %v69
  %v154 = vunpack.c.l.b16 %v70
  %v155 = vunpack.c.l.b16 %v71
  %v156 = vunpack.c.l.b16 %v72
  %v157 = vunpack.c.l.b16 %v73
  %v158 = vunpack.c.l.b16 %v74
  %v159 = vunpack.c.l.b16 %v75
  %v160 = vunpack.c.l.b16 %v76
  %v161 = vunpack.c.l.b16 %v77
  %v162 = vunpack.c.l.b16 %v78
  %v163 = vunpack.c.l.b16 %v79
  %v164 = vunpack.c.l.b16 %v80
  %v165 = vunpack.c.l.b16 %v81
  %v166 = vunpack.c.l.b16 %v82
  %v167 = vunpack.c.l.b16 %v83
  %v168 = vunpack.c.l.b16 %v84
  %v169 = vunpack.c.l.b16 %v85
  %v170 = vunpack.c.l.b16 %v86
  %v171 = vunpack.c.l.b16 %v87
  %v172 = vunpack.c.l.b16 %v88
  %v173 = vpack.c.b16 %v142, %v141
  %v174 = vpack.c.b16 %v144, %v143
  %v175 = vpack.c.b16 %v146, %v145
  %v176 = vpack.c.b16 %v148, %v147
  %v177 = vpack.c.b16 %v150, %v149
  %v178 = vpack.c.b16 %v152, %v151
  %v179 = vpack.c.b16 %v154, %v153
  %v180 = vpack.c.b16 %v156, %v155
  %v181 = vpack.c.b16 %v158, %v157
  %v182 = vpack.c.b16 %v160, %v159
  %v183 = vpack.c.b16 %v162, %v161
  %v184 = vpack.c.b16 %v164, %v163
  %v185 = vpack.c.b16 %v166, %v165
  %v186 = vpack.c.b16 %v168, %v167
  %v187 = vpack.c.b16 %v170, %v169
  %v188 = vpack.c.b16 %v172, %v171
  %205 = vmatprep.subr.bf16.mxu0 0
  %206 = vmatpush1.bf16.msra.mxu0 %v173
  %207 = vmatprep.subr.bf16.mxu0 0
  %208 = vmatpush1.bf16.msra.mxu0 %v174
  %209 = vmatprep.subr.bf16.mxu0 0
  %210 = vmatpush1.bf16.msra.mxu0 %v175
  %211 = vmatprep.subr.bf16.mxu0 0
  %212 = vmatpush1.bf16.msra.mxu0 %v176
  %213 = vmatprep.subr.bf16.mxu0 0
  %214 = vmatpush1.bf16.msra.mxu0 %v177
  %215 = vmatprep.subr.bf16.mxu0 0
  %216 = vmatpush1.bf16.msra.mxu0 %v178
  %217 = vmatprep.subr.bf16.mxu0 0
  %218 = vmatpush1.bf16.msra.mxu0 %v179
  %219 = vmatprep.subr.bf16.mxu0 0
  %220 = vmatpush1.bf16.msra.mxu0 %v180
  %221 = vmatprep.subr.bf16.mxu0 0
  %222 = vmatpush1.bf16.msra.mxu0 %v181
  %223 = vmatprep.subr.bf16.mxu0 0
  %224 = vmatpush1.bf16.msra.mxu0 %v182
  %225 = vmatprep.subr.bf16.mxu0 0
  %226 = vmatpush1.bf16.msra.mxu0 %v183
  %227 = vmatprep.subr.bf16.mxu0 0
  %228 = vmatpush1.bf16.msra.mxu0 %v184
  %229 = vmatprep.subr.bf16.mxu0 0
  %230 = vmatpush1.bf16.msra.mxu0 %v185
  %231 = vmatprep.subr.bf16.mxu0 0
  %232 = vmatpush1.bf16.msra.mxu0 %v186
  %233 = vmatprep.subr.bf16.mxu0 0
  %234 = vmatpush1.bf16.msra.mxu0 %v187
  %235 = vmatprep.subr.bf16.mxu0 0
  %236 = vmatpush1.bf16.msra.mxu0 %v188
  %237 = vmatprep.mubr.bf16.mxu0 %v102
  %238 = vmatmul.mubr.bf16.gmra.mrb[0].mxu0 %v101
  %v239 = vpop.f32.mrb[0].mxu0
  %v240 = vadd.f32 0.0, %v239
  %v241 = vpop.f32.mrb[0].mxu0
  %v242 = vpop.f32.mrb[0].mxu0
  %v243 = vadd.f32 0.0, %v242
  %v244 = vpop.f32.mrb[0].mxu0
  %245 = vmatprep.mubr.bf16.mxu0 %v104
  %246 = vmatmul.mubr.bf16.gmra.mrb[0].mxu0 %v103
  %v247 = vpop.f32.mrb[0].mxu0
  %v248 = vadd.f32 0.0, %v247
  %v249 = vpop.f32.mrb[0].mxu0
  %v250 = vpop.f32.mrb[0].mxu0
  %v251 = vadd.f32 0.0, %v250
  %v252 = vpop.f32.mrb[0].mxu0
  %253 = vdwg.mxu0
  %v258 = vunpack.c.l.b16 %v15
  %v259 = vunpack.c.h.b16 %v15
  %v260 = vunpack.c.l.b16 %v16
  %v261 = vunpack.c.h.b16 %v16
  %v262 = vunpack.c.l.b16 %v17
  %v263 = vunpack.c.h.b16 %v17
  %v264 = vunpack.c.l.b16 %v18
  %v265 = vunpack.c.h.b16 %v18
  %v266 = vpack.c.b16 %v260, %v258
  %v267 = vpack.c.b16 %v261, %v259
  %v268 = vpack.c.b16 %v264, %v262
  %v269 = vpack.c.b16 %v265, %v263
  %v306 = vunpack.c.l.b16 %v19
  %v307 = vunpack.c.l.b16 %v20
  %v308 = vunpack.c.l.b16 %v21
  %v309 = vunpack.c.l.b16 %v22
  %v310 = vunpack.c.l.b16 %v23
  %v311 = vunpack.c.l.b16 %v24
  %v312 = vunpack.c.l.b16 %v25
  %v313 = vunpack.c.l.b16 %v26
  %v314 = vunpack.c.l.b16 %v27
  %v315 = vunpack.c.l.b16 %v28
  %v316 = vunpack.c.l.b16 %v29
  %v317 = vunpack.c.l.b16 %v30
  %v318 = vunpack.c.l.b16 %v31
  %v319 = vunpack.c.l.b16 %v32
  %v320 = vunpack.c.l.b16 %v33
  %v321 = vunpack.c.l.b16 %v34
  %v322 = vunpack.c.l.b16 %v35
  %v323 = vunpack.c.l.b16 %v36
  %v324 = vunpack.c.l.b16 %v37
  %v325 = vunpack.c.l.b16 %v38
  %v326 = vunpack.c.l.b16 %v39
  %v327 = vunpack.c.l.b16 %v40
  %v328 = vunpack.c.l.b16 %v41
  %v329 = vunpack.c.l.b16 %v42
  %v330 = vunpack.c.l.b16 %v43
  %v331 = vunpack.c.l.b16 %v44
  %v332 = vunpack.c.l.b16 %v45
  %v333 = vunpack.c.l.b16 %v46
  %v334 = vunpack.c.l.b16 %v47
  %v335 = vunpack.c.l.b16 %v48
  %v336 = vunpack.c.l.b16 %v49
  %v337 = vunpack.c.l.b16 %v50
  %v338 = vpack.c.b16 %v307, %v306
  %v339 = vpack.c.b16 %v309, %v308
  %v340 = vpack.c.b16 %v311, %v310
  %v341 = vpack.c.b16 %v313, %v312
  %v342 = vpack.c.b16 %v315, %v314
  %v343 = vpack.c.b16 %v317, %v316
  %v344 = vpack.c.b16 %v319, %v318
  %v345 = vpack.c.b16 %v321, %v320
  %v346 = vpack.c.b16 %v323, %v322
  %v347 = vpack.c.b16 %v325, %v324
  %v348 = vpack.c.b16 %v327, %v326
  %v349 = vpack.c.b16 %v329, %v328
  %v350 = vpack.c.b16 %v331, %v330
  %v351 = vpack.c.b16 %v333, %v332
  %v352 = vpack.c.b16 %v335, %v334
  %v353 = vpack.c.b16 %v337, %v336
  %370 = vmatprep.subr.bf16.mxu0 0
  %371 = vmatpush1.bf16.msra.mxu0 %v338
  %372 = vmatprep.subr.bf16.mxu0 0
  %373 = vmatpush1.bf16.msra.mxu0 %v339
  %374 = vmatprep.subr.bf16.mxu0 0
  %375 = vmatpush1.bf16.msra.mxu0 %v340
  %376 = vmatprep.subr.bf16.mxu0 0
  %377 = vmatpush1.bf16.msra.mxu0 %v341
  %378 = vmatprep.subr.bf16.mxu0 0
  %379 = vmatpush1.bf16.msra.mxu0 %v342
  %380 = vmatprep.subr.bf16.mxu0 0
  %381 = vmatpush1.bf16.msra.mxu0 %v343
  %382 = vmatprep.subr.bf16.mxu0 0
  %383 = vmatpush1.bf16.msra.mxu0 %v344
  %384 = vmatprep.subr.bf16.mxu0 0
  %385 = vmatpush1.bf16.msra.mxu0 %v345
  %386 = vmatprep.subr.bf16.mxu0 0
  %387 = vmatpush1.bf16.msra.mxu0 %v346
  %388 = vmatprep.subr.bf16.mxu0 0
  %389 = vmatpush1.bf16.msra.mxu0 %v347
  %390 = vmatprep.subr.bf16.mxu0 0
  %391 = vmatpush1.bf16.msra.mxu0 %v348
  %392 = vmatprep.subr.bf16.mxu0 0
  %393 = vmatpush1.bf16.msra.mxu0 %v349
  %394 = vmatprep.subr.bf16.mxu0 0
  %395 = vmatpush1.bf16.msra.mxu0 %v350
  %396 = vmatprep.subr.bf16.mxu0 0
  %397 = vmatpush1.bf16.msra.mxu0 %v351
  %398 = vmatprep.subr.bf16.mxu0 0
  %399 = vmatpush1.bf16.msra.mxu0 %v352
  %400 = vmatprep.subr.bf16.mxu0 0
  %401 = vmatpush1.bf16.msra.mxu0 %v353
  %402 = vmatprep.mubr.bf16.mxu0 %v267
  %403 = vmatmul.mubr.bf16.gmra.mrb[0].mxu0 %v266
  %v404 = vpop.f32.mrb[0].mxu0
  %v405 = vadd.f32 %v240, %v404
  %v406 = vpop.f32.mrb[0].mxu0
  %v407 = vpop.f32.mrb[0].mxu0
  %v408 = vadd.f32 %v243, %v407
  %v409 = vpop.f32.mrb[0].mxu0
  %410 = vmatprep.mubr.bf16.mxu0 %v269
  %411 = vmatmul.mubr.bf16.gmra.mrb[0].mxu0 %v268
  %v412 = vpop.f32.mrb[0].mxu0
  %v413 = vadd.f32 %v248, %v412
  %v414 = vpop.f32.mrb[0].mxu0
  %v415 = vpop.f32.mrb[0].mxu0
  %v416 = vadd.f32 %v251, %v415
  %v417 = vpop.f32.mrb[0].mxu0
  %418 = vdwg.mxu0
  %s419 = scalar_lea.vmem %s0, 96
  %v420 = vld [vmem:[%s419] sm:$0xff]
  %v421 = vld [vmem:[%s419 + $0x8] sm:$0xff]
  %v422 = vld [vmem:[%s419 + $0x10] sm:$0xff]
  %v423 = vld [vmem:[%s419 + $0x18] sm:$0xff]
  %s424 = scalar_lea.vmem %s1, 256
  %v425 = vld [vmem:[%s424] sm:$0xf]
  %v426 = vld [vmem:[%s424 + $0x4] sm:$0xf]
  %v427 = vld [vmem:[%s424 + $0x8] sm:$0xf]
  %v428 = vld [vmem:[%s424 + $0xc] sm:$0xf]
  %v429 = vld [vmem:[%s424 + $0x10] sm:$0xf]
  %v430 = vld [vmem:[%s424 + $0x14] sm:$0xf]
  %v431 = vld [vmem:[%s424 + $0x18] sm:$0xf]
  %v432 = vld [vmem:[%s424 + $0x1c] sm:$0xf]
  %v433 = vld [vmem:[%s424 + $0x20] sm:$0xf]
  %v434 = vld [vmem:[%s424 + $0x24] sm:$0xf]
  %v435 = vld [vmem:[%s424 + $0x28] sm:$0xf]
  %v436 = vld [vmem:[%s424 + $0x2c] sm:$0xf]
  %v437 = vld [vmem:[%s424 + $0x30] sm:$0xf]
  %v438 = vld [vmem:[%s424 + $0x34] sm:$0xf]
  %v439 = vld [vmem:[%s424 + $0x38] sm:$0xf]
  %v440 = vld [vmem:[%s424 + $0x3c] sm:$0xf]
  %v441 = vld [vmem:[%s424 + $0x40] sm:$0xf]
  %v442 = vld [vmem:[%s424 + $0x44] sm:$0xf]
  %v443 = vld [vmem:[%s424 + $0x48] sm:$0xf]
  %v444 = vld [vmem:[%s424 + $0x4c] sm:$0xf]
  %v445 = vld [vmem:[%s424 + $0x50] sm:$0xf]
  %v446 = vld [vmem:[%s424 + $0x54] sm:$0xf]
  %v447 = vld [vmem:[%s424 + $0x58] sm:$0xf]
  %v448 = vld [vmem:[%s424 + $0x5c] sm:$0xf]
  %v449 = vld [vmem:[%s424 + $0x60] sm:$0xf]
  %v450 = vld [vmem:[%s424 + $0x64] sm:$0xf]
  %v451 = vld [vmem:[%s424 + $0x68] sm:$0xf]
  %v452 = vld [vmem:[%s424 + $0x6c] sm:$0xf]
  %v453 = vld [vmem:[%s424 + $0x70] sm:$0xf]
  %v454 = vld [vmem:[%s424 + $0x74] sm:$0xf]
  %v455 = vld [vmem:[%s424 + $0x78] sm:$0xf]
  %v456 = vld [vmem:[%s424 + $0x7c] sm:$0xf]
  %v461 = vunpack.c.l.b16 %v420
  %v462 = vunpack.c.h.b16 %v420
  %v463 = vunpack.c.l.b16 %v421
  %v464 = vunpack.c.h.b16 %v421
  %v465 = vunpack.c.l.b16 %v422
  %v466 = vunpack.c.h.b16 %v422
  %v467 = vunpack.c.l.b16 %v423
  %v468 = vunpack.c.h.b16 %v423
  %v469 = vpack.c.b16 %v463, %v461
  %v470 = vpack.c.b16 %v464, %v462
  %v471 = vpack.c.b16 %v467, %v465
  %v472 = vpack.c.b16 %v468, %v466
  %v509 = vunpack.c.l.b16 %v425
  %v510 = vunpack.c.l.b16 %v426
  %v511 = vunpack.c.l.b16 %v427
  %v512 = vunpack.c.l.b16 %v428
  %v513 = vunpack.c.l.b16 %v429
  %v514 = vunpack.c.l.b16 %v430
  %v515 = vunpack.c.l.b16 %v431
  %v516 = vunpack.c.l.b16 %v432
  %v517 = vunpack.c.l.b16 %v433
  %v518 = vunpack.c.l.b16 %v434
  %v519 = vunpack.c.l.b16 %v435
  %v520 = vunpack.c.l.b16 %v436
  %v521 = vunpack.c.l.b16 %v437
  %v522 = vunpack.c.l.b16 %v438
  %v523 = vunpack.c.l.b16 %v439
  %v524 = vunpack.c.l.b16 %v440
  %v525 = vunpack.c.l.b16 %v441
  %v526 = vunpack.c.l.b16 %v442
  %v527 = vunpack.c.l.b16 %v443
  %v528 = vunpack.c.l.b16 %v444
  %v529 = vunpack.c.l.b16 %v445
  %v530 = vunpack.c.l.b16 %v446
  %v531 = vunpack.c.l.b16 %v447
  %v532 = vunpack.c.l.b16 %v448
  %v533 = vunpack.c.l.b16 %v449
  %v534 = vunpack.c.l.b16 %v450
  %v535 = vunpack.c.l.b16 %v451
  %v536 = vunpack.c.l.b16 %v452
  %v537 = vunpack.c.l.b16 %v453
  %v538 = vunpack.c.l.b16 %v454
  %v539 = vunpack.c.l.b16 %v455
  %v540 = vunpack.c.l.b16 %v456
  %v541 = vpack.c.b16 %v510, %v509
  %v542 = vpack.c.b16 %v512, %v511
  %v543 = vpack.c.b16 %v514, %v513
  %v544 = vpack.c.b16 %v516, %v515
  %v545 = vpack.c.b16 %v518, %v517
  %v546 = vpack.c.b16 %v520, %v519
  %v547 = vpack.c.b16 %v522, %v521
  %v548 = vpack.c.b16 %v524, %v523
  %v549 = vpack.c.b16 %v526, %v525
  %v550 = vpack.c.b16 %v528, %v527
  %v551 = vpack.c.b16 %v530, %v529
  %v552 = vpack.c.b16 %v532, %v531
  %v553 = vpack.c.b16 %v534, %v533
  %v554 = vpack.c.b16 %v536, %v535
  %v555 = vpack.c.b16 %v538, %v537
  %v556 = vpack.c.b16 %v540, %v539
  %573 = vmatprep.subr.bf16.mxu0 0
  %574 = vmatpush1.bf16.msra.mxu0 %v541
  %575 = vmatprep.subr.bf16.mxu0 0
  %576 = vmatpush1.bf16.msra.mxu0 %v542
  %577 = vmatprep.subr.bf16.mxu0 0
  %578 = vmatpush1.bf16.msra.mxu0 %v543
  %579 = vmatprep.subr.bf16.mxu0 0
  %580 = vmatpush1.bf16.msra.mxu0 %v544
  %581 = vmatprep.subr.bf16.mxu0 0
  %582 = vmatpush1.bf16.msra.mxu0 %v545
  %583 = vmatprep.subr.bf16.mxu0 0
  %584 = vmatpush1.bf16.msra.mxu0 %v546
  %585 = vmatprep.subr.bf16.mxu0 0
  %586 = vmatpush1.bf16.msra.mxu0 %v547
  %587 = vmatprep.subr.bf16.mxu0 0
  %588 = vmatpush1.bf16.msra.mxu0 %v548
  %589 = vmatprep.subr.bf16.mxu0 0
  %590 = vmatpush1.bf16.msra.mxu0 %v549
  %591 = vmatprep.subr.bf16.mxu0 0
  %592 = vmatpush1.bf16.msra.mxu0 %v550
  %593 = vmatprep.subr.bf16.mxu0 0
  %594 = vmatpush1.bf16.msra.mxu0 %v551
  %595 = vmatprep.subr.bf16.mxu0 0
  %596 = vmatpush1.bf16.msra.mxu0 %v552
  %597 = vmatprep.subr.bf16.mxu0 0
  %598 = vmatpush1.bf16.msra.mxu0 %v553
  %599 = vmatprep.subr.bf16.mxu0 0
  %600 = vmatpush1.bf16.msra.mxu0 %v554
  %601 = vmatprep.subr.bf16.mxu0 0
  %602 = vmatpush1.bf16.msra.mxu0 %v555
  %603 = vmatprep.subr.bf16.mxu0 0
  %604 = vmatpush1.bf16.msra.mxu0 %v556
  %605 = vmatprep.mubr.bf16.mxu0 %v470
  %606 = vmatmul.mubr.bf16.gmra.mrb[0].mxu0 %v469
  %v607 = vpop.f32.mrb[0].mxu0
  %v608 = vadd.f32 0.0, %v607
  %v609 = vpop.f32.mrb[0].mxu0
  %v610 = vpop.f32.mrb[0].mxu0
  %v611 = vadd.f32 0.0, %v610
  %v612 = vpop.f32.mrb[0].mxu0
  %613 = vmatprep.mubr.bf16.mxu0 %v472
  %614 = vmatmul.mubr.bf16.gmra.mrb[0].mxu0 %v471
  %v615 = vpop.f32.mrb[0].mxu0
  %v616 = vadd.f32 0.0, %v615
  %v617 = vpop.f32.mrb[0].mxu0
  %v618 = vpop.f32.mrb[0].mxu0
  %v619 = vadd.f32 0.0, %v618
  %v620 = vpop.f32.mrb[0].mxu0
  %621 = vdwg.mxu0
  %v622 = vadd.f32 %v405, %v608
  %v623 = vadd.f32 %v408, %v611
  %v624 = vadd.f32 %v413, %v616
  %v625 = vadd.f32 %v416, %v619
  %s626 = scalar_lea.vmem %s0, 128
  %v627 = vld [vmem:[%s626] sm:$0xff]
  %v628 = vld [vmem:[%s626 + $0x8] sm:$0xff]
  %v629 = vld [vmem:[%s626 + $0x10] sm:$0xff]
  %v630 = vld [vmem:[%s626 + $0x18] sm:$0xff]
  %s631 = scalar_lea.vmem %s1, 384
  %v632 = vld [vmem:[%s631] sm:$0xf]
  %v633 = vld [vmem:[%s631 + $0x4] sm:$0xf]
  %v634 = vld [vmem:[%s631 + $0x8] sm:$0xf]
  %v635 = vld [vmem:[%s631 + $0xc] sm:$0xf]
  %v636 = vld [vmem:[%s631 + $0x10] sm:$0xf]
  %v637 = vld [vmem:[%s631 + $0x14] sm:$0xf]
  %v638 = vld [vmem:[%s631 + $0x18] sm:$0xf]
  %v639 = vld [vmem:[%s631 + $0x1c] sm:$0xf]
  %v640 = vld [vmem:[%s631 + $0x20] sm:$0xf]
  %v641 = vld [vmem:[%s631 + $0x24] sm:$0xf]
  %v642 = vld [vmem:[%s631 + $0x28] sm:$0xf]
  %v643 = vld [vmem:[%s631 + $0x2c] sm:$0xf]
  %v644 = vld [vmem:[%s631 + $0x30] sm:$0xf]
  %v645 = vld [vmem:[%s631 + $0x34] sm:$0xf]
  %v646 = vld [vmem:[%s631 + $0x38] sm:$0xf]
  %v647 = vld [vmem:[%s631 + $0x3c] sm:$0xf]
  %v648 = vld [vmem:[%s631 + $0x40] sm:$0xf]
  %v649 = vld [vmem:[%s631 + $0x44] sm:$0xf]
  %v650 = vld [vmem:[%s631 + $0x48] sm:$0xf]
  %v651 = vld [vmem:[%s631 + $0x4c] sm:$0xf]
  %v652 = vld [vmem:[%s631 + $0x50] sm:$0xf]
  %v653 = vld [vmem:[%s631 + $0x54] sm:$0xf]
  %v654 = vld [vmem:[%s631 + $0x58] sm:$0xf]
  %v655 = vld [vmem:[%s631 + $0x5c] sm:$0xf]
  %v656 = vld [vmem:[%s631 + $0x60] sm:$0xf]
  %v657 = vld [vmem:[%s631 + $0x64] sm:$0xf]
  %v658 = vld [vmem:[%s631 + $0x68] sm:$0xf]
  %v659 = vld [vmem:[%s631 + $0x6c] sm:$0xf]
  %v660 = vld [vmem:[%s631 + $0x70] sm:$0xf]
  %v661 = vld [vmem:[%s631 + $0x74] sm:$0xf]
  %v662 = vld [vmem:[%s631 + $0x78] sm:$0xf]
  %v663 = vld [vmem:[%s631 + $0x7c] sm:$0xf]
  %v668 = vunpack.c.l.b16 %v627
  %v669 = vunpack.c.h.b16 %v627
  %v670 = vunpack.c.l.b16 %v628
  %v671 = vunpack.c.h.b16 %v628
  %v672 = vunpack.c.l.b16 %v629
  %v673 = vunpack.c.h.b16 %v629
  %v674 = vunpack.c.l.b16 %v630
  %v675 = vunpack.c.h.b16 %v630
  %v676 = vpack.c.b16 %v670, %v668
  %v677 = vpack.c.b16 %v671, %v669
  %v678 = vpack.c.b16 %v674, %v672
  %v679 = vpack.c.b16 %v675, %v673
  %v716 = vunpack.c.l.b16 %v632
  %v717 = vunpack.c.l.b16 %v633
  %v718 = vunpack.c.l.b16 %v634
  %v719 = vunpack.c.l.b16 %v635
  %v720 = vunpack.c.l.b16 %v636
  %v721 = vunpack.c.l.b16 %v637
  %v722 = vunpack.c.l.b16 %v638
  %v723 = vunpack.c.l.b16 %v639
  %v724 = vunpack.c.l.b16 %v640
  %v725 = vunpack.c.l.b16 %v641
  %v726 = vunpack.c.l.b16 %v642
  %v727 = vunpack.c.l.b16 %v643
  %v728 = vunpack.c.l.b16 %v644
  %v729 = vunpack.c.l.b16 %v645
  %v730 = vunpack.c.l.b16 %v646
  %v731 = vunpack.c.l.b16 %v647
  %v732 = vunpack.c.l.b16 %v648
  %v733 = vunpack.c.l.b16 %v649
  %v734 = vunpack.c.l.b16 %v650
  %v735 = vunpack.c.l.b16 %v651
  %v736 = vunpack.c.l.b16 %v652
  %v737 = vunpack.c.l.b16 %v653
  %v738 = vunpack.c.l.b16 %v654
  %v739 = vunpack.c.l.b16 %v655
  %v740 = vunpack.c.l.b16 %v656
  %v741 = vunpack.c.l.b16 %v657
  %v742 = vunpack.c.l.b16 %v658
  %v743 = vunpack.c.l.b16 %v659
  %v744 = vunpack.c.l.b16 %v660
  %v745 = vunpack.c.l.b16 %v661
  %v746 = vunpack.c.l.b16 %v662
  %v747 = vunpack.c.l.b16 %v663
  %v748 = vpack.c.b16 %v717, %v716
  %v749 = vpack.c.b16 %v719, %v718
  %v750 = vpack.c.b16 %v721, %v720
  %v751 = vpack.c.b16 %v723, %v722
  %v752 = vpack.c.b16 %v725, %v724
  %v753 = vpack.c.b16 %v727, %v726
  %v754 = vpack.c.b16 %v729, %v728
  %v755 = vpack.c.b16 %v731, %v730
  %v756 = vpack.c.b16 %v733, %v732
  %v757 = vpack.c.b16 %v735, %v734
  %v758 = vpack.c.b16 %v737, %v736
  %v759 = vpack.c.b16 %v739, %v738
  %v760 = vpack.c.b16 %v741, %v740
  %v761 = vpack.c.b16 %v743, %v742
  %v762 = vpack.c.b16 %v745, %v744
  %v763 = vpack.c.b16 %v747, %v746
  %780 = vmatprep.subr.bf16.mxu0 0
  %781 = vmatpush1.bf16.msra.mxu0 %v748
  %782 = vmatprep.subr.bf16.mxu0 0
  %783 = vmatpush1.bf16.msra.mxu0 %v749
  %784 = vmatprep.subr.bf16.mxu0 0
  %785 = vmatpush1.bf16.msra.mxu0 %v750
  %786 = vmatprep.subr.bf16.mxu0 0
  %787 = vmatpush1.bf16.msra.mxu0 %v751
  %788 = vmatprep.subr.bf16.mxu0 0
  %789 = vmatpush1.bf16.msra.mxu0 %v752
  %790 = vmatprep.subr.bf16.mxu0 0
  %791 = vmatpush1.bf16.msra.mxu0 %v753
  %792 = vmatprep.subr.bf16.mxu0 0
  %793 = vmatpush1.bf16.msra.mxu0 %v754
  %794 = vmatprep.subr.bf16.mxu0 0
  %795 = vmatpush1.bf16.msra.mxu0 %v755
  %796 = vmatprep.subr.bf16.mxu0 0
  %797 = vmatpush1.bf16.msra.mxu0 %v756
  %798 = vmatprep.subr.bf16.mxu0 0
  %799 = vmatpush1.bf16.msra.mxu0 %v757
  %800 = vmatprep.subr.bf16.mxu0 0
  %801 = vmatpush1.bf16.msra.mxu0 %v758
  %802 = vmatprep.subr.bf16.mxu0 0
  %803 = vmatpush1.bf16.msra.mxu0 %v759
  %804 = vmatprep.subr.bf16.mxu0 0
  %805 = vmatpush1.bf16.msra.mxu0 %v760
  %806 = vmatprep.subr.bf16.mxu0 0
  %807 = vmatpush1.bf16.msra.mxu0 %v761
  %808 = vmatprep.subr.bf16.mxu0 0
  %809 = vmatpush1.bf16.msra.mxu0 %v762
  %810 = vmatprep.subr.bf16.mxu0 0
  %811 = vmatpush1.bf16.msra.mxu0 %v763
  %812 = vmatprep.mubr.bf16.mxu0 %v677
  %813 = vmatmul.mubr.bf16.gmra.mrb[0].mxu0 %v676
  %v814 = vpop.f32.mrb[0].mxu0
  %v815 = vadd.f32 0.0, %v814
  %v816 = vpop.f32.mrb[0].mxu0
  %v817 = vpop.f32.mrb[0].mxu0
  %v818 = vadd.f32 0.0, %v817
  %v819 = vpop.f32.mrb[0].mxu0
  %820 = vmatprep.mubr.bf16.mxu0 %v679
  %821 = vmatmul.mubr.bf16.gmra.mrb[0].mxu0 %v678
  %v822 = vpop.f32.mrb[0].mxu0
  %v823 = vadd.f32 0.0, %v822
  %v824 = vpop.f32.mrb[0].mxu0
  %v825 = vpop.f32.mrb[0].mxu0
  %v826 = vadd.f32 0.0, %v825
  %v827 = vpop.f32.mrb[0].mxu0
  %828 = vdwg.mxu0
  %v829 = vadd.f32 %v622, %v815
  %v830 = vadd.f32 %v623, %v818
  %v831 = vadd.f32 %v624, %v823
  %v832 = vadd.f32 %v625, %v826
  %v833 = vld [vmem:[%s2] sm:$0x1]
  %v835 = vlaneseq
  %v836 = vshrl.u32 %v835, 7
  %v837 = vsub.s32 0, %v836
  %v838 = vrot.slane %v833, %v837
  %v840 = vadd.f32 %v829, %v838
  %v841 = vadd.f32 %v830, %v838
  %v842 = vadd.f32 %v831, %v838
  %v843 = vadd.f32 %v832, %v838
  %v844 = vmax.f32 %v840, 0.0
  %v845 = vmax.f32 %v841, 0.0
  %v846 = vmax.f32 %v842, 0.0
  %v847 = vmax.f32 %v843, 0.0
  %v848 = vpack.c.bf16 %v845, %v844
  %v849 = vpack.c.bf16 %v847, %v846
  %v852 = vunpack.c.l.b16 %v848
  %v853 = vunpack.c.h.b16 %v848
  %v854 = vunpack.c.l.b16 %v849
  %v855 = vunpack.c.h.b16 %v849
  %v856 = vpack.c.b16 %v852, %v852
  %v857 = vpack.c.b16 %v853, %v853
  %v858 = vpack.c.b16 %v854, %v854
  %v859 = vpack.c.b16 %v855, %v855
  %864 = vst [vmem:[%s3] sm:$0xf] %v856
  %865 = vst [vmem:[%s3 + $0x10] sm:$0xf] %v857
  %866 = vst [vmem:[%s3 + $0x20] sm:$0xf] %v858
  %867 = vst [vmem:[%s3 + $0x30] sm:$0xf] %v859
  %v868 = vld [vmem:[%s51] sm:$0xff]
  %v869 = vld [vmem:[%s51 + $0x8] sm:$0xff]
  %v870 = vld [vmem:[%s51 + $0x10] sm:$0xff]
  %v871 = vld [vmem:[%s51 + $0x18] sm:$0xff]
  %s872 = scalar_lea.vmem %s1, 512
  %v873 = vld [vmem:[%s872] sm:$0xf]
  %v874 = vld [vmem:[%s872 + $0x4] sm:$0xf]
  %v875 = vld [vmem:[%s872 + $0x8] sm:$0xf]
  %v876 = vld [vmem:[%s872 + $0xc] sm:$0xf]
  %v877 = vld [vmem:[%s872 + $0x10] sm:$0xf]
  %v878 = vld [vmem:[%s872 + $0x14] sm:$0xf]
  %v879 = vld [vmem:[%s872 + $0x18] sm:$0xf]
  %v880 = vld [vmem:[%s872 + $0x1c] sm:$0xf]
  %v881 = vld [vmem:[%s872 + $0x20] sm:$0xf]
  %v882 = vld [vmem:[%s872 + $0x24] sm:$0xf]
  %v883 = vld [vmem:[%s872 + $0x28] sm:$0xf]
  %v884 = vld [vmem:[%s872 + $0x2c] sm:$0xf]
  %v885 = vld [vmem:[%s872 + $0x30] sm:$0xf]
  %v886 = vld [vmem:[%s872 + $0x34] sm:$0xf]
  %v887 = vld [vmem:[%s872 + $0x38] sm:$0xf]
  %v888 = vld [vmem:[%s872 + $0x3c] sm:$0xf]
  %v889 = vld [vmem:[%s872 + $0x40] sm:$0xf]
  %v890 = vld [vmem:[%s872 + $0x44] sm:$0xf]
  %v891 = vld [vmem:[%s872 + $0x48] sm:$0xf]
  %v892 = vld [vmem:[%s872 + $0x4c] sm:$0xf]
  %v893 = vld [vmem:[%s872 + $0x50] sm:$0xf]
  %v894 = vld [vmem:[%s872 + $0x54] sm:$0xf]
  %v895 = vld [vmem:[%s872 + $0x58] sm:$0xf]
  %v896 = vld [vmem:[%s872 + $0x5c] sm:$0xf]
  %v897 = vld [vmem:[%s872 + $0x60] sm:$0xf]
  %v898 = vld [vmem:[%s872 + $0x64] sm:$0xf]
  %v899 = vld [vmem:[%s872 + $0x68] sm:$0xf]
  %v900 = vld [vmem:[%s872 + $0x6c] sm:$0xf]
  %v901 = vld [vmem:[%s872 + $0x70] sm:$0xf]
  %v902 = vld [vmem:[%s872 + $0x74] sm:$0xf]
  %v903 = vld [vmem:[%s872 + $0x78] sm:$0xf]
  %v904 = vld [vmem:[%s872 + $0x7c] sm:$0xf]
  %s905 = scalar_lea.vmem %s0, 64
  %v906 = vld [vmem:[%s905] sm:$0xff]
  %v907 = vld [vmem:[%s905 + $0x8] sm:$0xff]
  %v908 = vld [vmem:[%s905 + $0x10] sm:$0xff]
  %v909 = vld [vmem:[%s905 + $0x18] sm:$0xff]
  %s910 = scalar_lea.vmem %s1, 640
  %v911 = vld [vmem:[%s910] sm:$0xf]
  %v912 = vld [vmem:[%s910 + $0x4] sm:$0xf]
  %v913 = vld [vmem:[%s910 + $0x8] sm:$0xf]
  %v914 = vld [vmem:[%s910 + $0xc] sm:$0xf]
  %v915 = vld [vmem:[%s910 + $0x10] sm:$0xf]
  %v916 = vld [vmem:[%s910 + $0x14] sm:$0xf]
  %v917 = vld [vmem:[%s910 + $0x18] sm:$0xf]
  %v918 = vld [vmem:[%s910 + $0x1c] sm:$0xf]
  %v919 = vld [vmem:[%s910 + $0x20] sm:$0xf]
  %v920 = vld [vmem:[%s910 + $0x24] sm:$0xf]
  %v921 = vld [vmem:[%s910 + $0x28] sm:$0xf]
  %v922 = vld [vmem:[%s910 + $0x2c] sm:$0xf]
  %v923 = vld [vmem:[%s910 + $0x30] sm:$0xf]
  %v924 = vld [vmem:[%s910 + $0x34] sm:$0xf]
  %v925 = vld [vmem:[%s910 + $0x38] sm:$0xf]
  %v926 = vld [vmem:[%s910 + $0x3c] sm:$0xf]
  %v927 = vld [vmem:[%s910 + $0x40] sm:$0xf]
  %v928 = vld [vmem:[%s910 + $0x44] sm:$0xf]
  %v929 = vld [vmem:[%s910 + $0x48] sm:$0xf]
  %v930 = vld [vmem:[%s910 + $0x4c] sm:$0xf]
  %v931 = vld [vmem:[%s910 + $0x50] sm:$0xf]
  %v932 = vld [vmem:[%s910 + $0x54] sm:$0xf]
  %v933 = vld [vmem:[%s910 + $0x58] sm:$0xf]
  %v934 = vld [vmem:[%s910 + $0x5c] sm:$0xf]
  %v935 = vld [vmem:[%s910 + $0x60] sm:$0xf]
  %v936 = vld [vmem:[%s910 + $0x64] sm:$0xf]
  %v937 = vld [vmem:[%s910 + $0x68] sm:$0xf]
  %v938 = vld [vmem:[%s910 + $0x6c] sm:$0xf]
  %v939 = vld [vmem:[%s910 + $0x70] sm:$0xf]
  %v940 = vld [vmem:[%s910 + $0x74] sm:$0xf]
  %v941 = vld [vmem:[%s910 + $0x78] sm:$0xf]
  %v942 = vld [vmem:[%s910 + $0x7c] sm:$0xf]
  %v947 = vunpack.c.l.b16 %v906
  %v948 = vunpack.c.h.b16 %v906
  %v949 = vunpack.c.l.b16 %v907
  %v950 = vunpack.c.h.b16 %v907
  %v951 = vunpack.c.l.b16 %v908
  %v952 = vunpack.c.h.b16 %v908
  %v953 = vunpack.c.l.b16 %v909
  %v954 = vunpack.c.h.b16 %v909
  %v955 = vpack.c.b16 %v949, %v947
  %v956 = vpack.c.b16 %v950, %v948
  %v957 = vpack.c.b16 %v953, %v951
  %v958 = vpack.c.b16 %v954, %v952
  %v995 = vunpack.c.l.b16 %v911
  %v996 = vunpack.c.l.b16 %v912
  %v997 = vunpack.c.l.b16 %v913
  %v998 = vunpack.c.l.b16 %v914
  %v999 = vunpack.c.l.b16 %v915
  %v1000 = vunpack.c.l.b16 %v916
  %v1001 = vunpack.c.l.b16 %v917
  %v1002 = vunpack.c.l.b16 %v918
  %v1003 = vunpack.c.l.b16 %v919
  %v1004 = vunpack.c.l.b16 %v920
  %v1005 = vunpack.c.l.b16 %v921
  %v1006 = vunpack.c.l.b16 %v922
  %v1007 = vunpack.c.l.b16 %v923
  %v1008 = vunpack.c.l.b16 %v924
  %v1009 = vunpack.c.l.b16 %v925
  %v1010 = vunpack.c.l.b16 %v926
  %v1011 = vunpack.c.l.b16 %v927
  %v1012 = vunpack.c.l.b16 %v928
  %v1013 = vunpack.c.l.b16 %v929
  %v1014 = vunpack.c.l.b16 %v930
  %v1015 = vunpack.c.l.b16 %v931
  %v1016 = vunpack.c.l.b16 %v932
  %v1017 = vunpack.c.l.b16 %v933
  %v1018 = vunpack.c.l.b16 %v934
  %v1019 = vunpack.c.l.b16 %v935
  %v1020 = vunpack.c.l.b16 %v936
  %v1021 = vunpack.c.l.b16 %v937
  %v1022 = vunpack.c.l.b16 %v938
  %v1023 = vunpack.c.l.b16 %v939
  %v1024 = vunpack.c.l.b16 %v940
  %v1025 = vunpack.c.l.b16 %v941
  %v1026 = vunpack.c.l.b16 %v942
  %v1027 = vpack.c.b16 %v996, %v995
  %v1028 = vpack.c.b16 %v998, %v997
  %v1029 = vpack.c.b16 %v1000, %v999
  %v1030 = vpack.c.b16 %v1002, %v1001
  %v1031 = vpack.c.b16 %v1004, %v1003
  %v1032 = vpack.c.b16 %v1006, %v1005
  %v1033 = vpack.c.b16 %v1008, %v1007
  %v1034 = vpack.c.b16 %v1010, %v1009
  %v1035 = vpack.c.b16 %v1012, %v1011
  %v1036 = vpack.c.b16 %v1014, %v1013
  %v1037 = vpack.c.b16 %v1016, %v1015
  %v1038 = vpack.c.b16 %v1018, %v1017
  %v1039 = vpack.c.b16 %v1020, %v1019
  %v1040 = vpack.c.b16 %v1022, %v1021
  %v1041 = vpack.c.b16 %v1024, %v1023
  %v1042 = vpack.c.b16 %v1026, %v1025
  %1059 = vmatprep.subr.bf16.mxu0 0
  %1060 = vmatpush1.bf16.msra.mxu0 %v1027
  %1061 = vmatprep.subr.bf16.mxu0 0
  %1062 = vmatpush1.bf16.msra.mxu0 %v1028
  %1063 = vmatprep.subr.bf16.mxu0 0
  %1064 = vmatpush1.bf16.msra.mxu0 %v1029
  %1065 = vmatprep.subr.bf16.mxu0 0
  %1066 = vmatpush1.bf16.msra.mxu0 %v1030
  %1067 = vmatprep.subr.bf16.mxu0 0
  %1068 = vmatpush1.bf16.msra.mxu0 %v1031
  %1069 = vmatprep.subr.bf16.mxu0 0
  %1070 = vmatpush1.bf16.msra.mxu0 %v1032
  %1071 = vmatprep.subr.bf16.mxu0 0
  %1072 = vmatpush1.bf16.msra.mxu0 %v1033
  %1073 = vmatprep.subr.bf16.mxu0 0
  %1074 = vmatpush1.bf16.msra.mxu0 %v1034
  %1075 = vmatprep.subr.bf16.mxu0 0
  %1076 = vmatpush1.bf16.msra.mxu0 %v1035
  %1077 = vmatprep.subr.bf16.mxu0 0
  %1078 = vmatpush1.bf16.msra.mxu0 %v1036
  %1079 = vmatprep.subr.bf16.mxu0 0
  %1080 = vmatpush1.bf16.msra.mxu0 %v1037
  %1081 = vmatprep.subr.bf16.mxu0 0
  %1082 = vmatpush1.bf16.msra.mxu0 %v1038
  %1083 = vmatprep.subr.bf16.mxu0 0
  %1084 = vmatpush1.bf16.msra.mxu0 %v1039
  %1085 = vmatprep.subr.bf16.mxu0 0
  %1086 = vmatpush1.bf16.msra.mxu0 %v1040
  %1087 = vmatprep.subr.bf16.mxu0 0
  %1088 = vmatpush1.bf16.msra.mxu0 %v1041
  %1089 = vmatprep.subr.bf16.mxu0 0
  %1090 = vmatpush1.bf16.msra.mxu0 %v1042
  %1091 = vmatprep.mubr.bf16.mxu0 %v956
  %1092 = vmatmul.mubr.bf16.gmra.mrb[0].mxu0 %v955
  %v1093 = vpop.f32.mrb[0].mxu0
  %v1094 = vadd.f32 0.0, %v1093
  %v1095 = vpop.f32.mrb[0].mxu0
  %v1096 = vpop.f32.mrb[0].mxu0
  %v1097 = vadd.f32 0.0, %v1096
  %v1098 = vpop.f32.mrb[0].mxu0
  %1099 = vmatprep.mubr.bf16.mxu0 %v958
  %1100 = vmatmul.mubr.bf16.gmra.mrb[0].mxu0 %v957
  %v1101 = vpop.f32.mrb[0].mxu0
  %v1102 = vadd.f32 0.0, %v1101
  %v1103 = vpop.f32.mrb[0].mxu0
  %v1104 = vpop.f32.mrb[0].mxu0
  %v1105 = vadd.f32 0.0, %v1104
  %v1106 = vpop.f32.mrb[0].mxu0
  %1107 = vdwg.mxu0
  %v1112 = vunpack.c.l.b16 %v868
  %v1113 = vunpack.c.h.b16 %v868
  %v1114 = vunpack.c.l.b16 %v869
  %v1115 = vunpack.c.h.b16 %v869
  %v1116 = vunpack.c.l.b16 %v870
  %v1117 = vunpack.c.h.b16 %v870
  %v1118 = vunpack.c.l.b16 %v871
  %v1119 = vunpack.c.h.b16 %v871
  %v1120 = vpack.c.b16 %v1114, %v1112
  %v1121 = vpack.c.b16 %v1115, %v1113
  %v1122 = vpack.c.b16 %v1118, %v1116
  %v1123 = vpack.c.b16 %v1119, %v1117
  %v1160 = vunpack.c.l.b16 %v873
  %v1161 = vunpack.c.l.b16 %v874
  %v1162 = vunpack.c.l.b16 %v875
  %v1163 = vunpack.c.l.b16 %v876
  %v1164 = vunpack.c.l.b16 %v877
  %v1165 = vunpack.c.l.b16 %v878
  %v1166 = vunpack.c.l.b16 %v879
  %v1167 = vunpack.c.l.b16 %v880
  %v1168 = vunpack.c.l.b16 %v881
  %v1169 = vunpack.c.l.b16 %v882
  %v1170 = vunpack.c.l.b16 %v883
  %v1171 = vunpack.c.l.b16 %v884
  %v1172 = vunpack.c.l.b16 %v885
  %v1173 = vunpack.c.l.b16 %v886
  %v1174 = vunpack.c.l.b16 %v887
  %v1175 = vunpack.c.l.b16 %v888
  %v1176 = vunpack.c.l.b16 %v889
  %v1177 = vunpack.c.l.b16 %v890
  %v1178 = vunpack.c.l.b16 %v891
  %v1179 = vunpack.c.l.b16 %v892
  %v1180 = vunpack.c.l.b16 %v893
  %v1181 = vunpack.c.l.b16 %v894
  %v1182 = vunpack.c.l.b16 %v895
  %v1183 = vunpack.c.l.b16 %v896
  %v1184 = vunpack.c.l.b16 %v897
  %v1185 = vunpack.c.l.b16 %v898
  %v1186 = vunpack.c.l.b16 %v899
  %v1187 = vunpack.c.l.b16 %v900
  %v1188 = vunpack.c.l.b16 %v901
  %v1189 = vunpack.c.l.b16 %v902
  %v1190 = vunpack.c.l.b16 %v903
  %v1191 = vunpack.c.l.b16 %v904
  %v1192 = vpack.c.b16 %v1161, %v1160
  %v1193 = vpack.c.b16 %v1163, %v1162
  %v1194 = vpack.c.b16 %v1165, %v1164
  %v1195 = vpack.c.b16 %v1167, %v1166
  %v1196 = vpack.c.b16 %v1169, %v1168
  %v1197 = vpack.c.b16 %v1171, %v1170
  %v1198 = vpack.c.b16 %v1173, %v1172
  %v1199 = vpack.c.b16 %v1175, %v1174
  %v1200 = vpack.c.b16 %v1177, %v1176
  %v1201 = vpack.c.b16 %v1179, %v1178
  %v1202 = vpack.c.b16 %v1181, %v1180
  %v1203 = vpack.c.b16 %v1183, %v1182
  %v1204 = vpack.c.b16 %v1185, %v1184
  %v1205 = vpack.c.b16 %v1187, %v1186
  %v1206 = vpack.c.b16 %v1189, %v1188
  %v1207 = vpack.c.b16 %v1191, %v1190
  %1224 = vmatprep.subr.bf16.mxu0 0
  %1225 = vmatpush1.bf16.msra.mxu0 %v1192
  %1226 = vmatprep.subr.bf16.mxu0 0
  %1227 = vmatpush1.bf16.msra.mxu0 %v1193
  %1228 = vmatprep.subr.bf16.mxu0 0
  %1229 = vmatpush1.bf16.msra.mxu0 %v1194
  %1230 = vmatprep.subr.bf16.mxu0 0
  %1231 = vmatpush1.bf16.msra.mxu0 %v1195
  %1232 = vmatprep.subr.bf16.mxu0 0
  %1233 = vmatpush1.bf16.msra.mxu0 %v1196
  %1234 = vmatprep.subr.bf16.mxu0 0
  %1235 = vmatpush1.bf16.msra.mxu0 %v1197
  %1236 = vmatprep.subr.bf16.mxu0 0
  %1237 = vmatpush1.bf16.msra.mxu0 %v1198
  %1238 = vmatprep.subr.bf16.mxu0 0
  %1239 = vmatpush1.bf16.msra.mxu0 %v1199
  %1240 = vmatprep.subr.bf16.mxu0 0
  %1241 = vmatpush1.bf16.msra.mxu0 %v1200
  %1242 = vmatprep.subr.bf16.mxu0 0
  %1243 = vmatpush1.bf16.msra.mxu0 %v1201
  %1244 = vmatprep.subr.bf16.mxu0 0
  %1245 = vmatpush1.bf16.msra.mxu0 %v1202
  %1246 = vmatprep.subr.bf16.mxu0 0
  %1247 = vmatpush1.bf16.msra.mxu0 %v1203
  %1248 = vmatprep.subr.bf16.mxu0 0
  %1249 = vmatpush1.bf16.msra.mxu0 %v1204
  %1250 = vmatprep.subr.bf16.mxu0 0
  %1251 = vmatpush1.bf16.msra.mxu0 %v1205
  %1252 = vmatprep.subr.bf16.mxu0 0
  %1253 = vmatpush1.bf16.msra.mxu0 %v1206
  %1254 = vmatprep.subr.bf16.mxu0 0
  %1255 = vmatpush1.bf16.msra.mxu0 %v1207
  %1256 = vmatprep.mubr.bf16.mxu0 %v1121
  %1257 = vmatmul.mubr.bf16.gmra.mrb[0].mxu0 %v1120
  %v1258 = vpop.f32.mrb[0].mxu0
  %v1259 = vadd.f32 %v1094, %v1258
  %v1260 = vpop.f32.mrb[0].mxu0
  %v1261 = vpop.f32.mrb[0].mxu0
  %v1262 = vadd.f32 %v1097, %v1261
  %v1263 = vpop.f32.mrb[0].mxu0
  %1264 = vmatprep.mubr.bf16.mxu0 %v1123
  %1265 = vmatmul.mubr.bf16.gmra.mrb[0].mxu0 %v1122
  %v1266 = vpop.f32.mrb[0].mxu0
  %v1267 = vadd.f32 %v1102, %v1266
  %v1268 = vpop.f32.mrb[0].mxu0
  %v1269 = vpop.f32.mrb[0].mxu0
  %v1270 = vadd.f32 %v1105, %v1269
  %v1271 = vpop.f32.mrb[0].mxu0
  %1272 = vdwg.mxu0
  %v1273 = vld [vmem:[%s626] sm:$0xff]
  %v1274 = vld [vmem:[%s626 + $0x8] sm:$0xff]
  %v1275 = vld [vmem:[%s626 + $0x10] sm:$0xff]
  %v1276 = vld [vmem:[%s626 + $0x18] sm:$0xff]
  %s1277 = scalar_lea.vmem %s1, 768
  %v1278 = vld [vmem:[%s1277] sm:$0xf]
  %v1279 = vld [vmem:[%s1277 + $0x4] sm:$0xf]
  %v1280 = vld [vmem:[%s1277 + $0x8] sm:$0xf]
  %v1281 = vld [vmem:[%s1277 + $0xc] sm:$0xf]
  %v1282 = vld [vmem:[%s1277 + $0x10] sm:$0xf]
  %v1283 = vld [vmem:[%s1277 + $0x14] sm:$0xf]
  %v1284 = vld [vmem:[%s1277 + $0x18] sm:$0xf]
  %v1285 = vld [vmem:[%s1277 + $0x1c] sm:$0xf]
  %v1286 = vld [vmem:[%s1277 + $0x20] sm:$0xf]
  %v1287 = vld [vmem:[%s1277 + $0x24] sm:$0xf]
  %v1288 = vld [vmem:[%s1277 + $0x28] sm:$0xf]
  %v1289 = vld [vmem:[%s1277 + $0x2c] sm:$0xf]
  %v1290 = vld [vmem:[%s1277 + $0x30] sm:$0xf]
  %v1291 = vld [vmem:[%s1277 + $0x34] sm:$0xf]
  %v1292 = vld [vmem:[%s1277 + $0x38] sm:$0xf]
  %v1293 = vld [vmem:[%s1277 + $0x3c] sm:$0xf]
  %v1294 = vld [vmem:[%s1277 + $0x40] sm:$0xf]
  %v1295 = vld [vmem:[%s1277 + $0x44] sm:$0xf]
  %v1296 = vld [vmem:[%s1277 + $0x48] sm:$0xf]
  %v1297 = vld [vmem:[%s1277 + $0x4c] sm:$0xf]
  %v1298 = vld [vmem:[%s1277 + $0x50] sm:$0xf]
  %v1299 = vld [vmem:[%s1277 + $0x54] sm:$0xf]
  %v1300 = vld [vmem:[%s1277 + $0x58] sm:$0xf]
  %v1301 = vld [vmem:[%s1277 + $0x5c] sm:$0xf]
  %v1302 = vld [vmem:[%s1277 + $0x60] sm:$0xf]
  %v1303 = vld [vmem:[%s1277 + $0x64] sm:$0xf]
  %v1304 = vld [vmem:[%s1277 + $0x68] sm:$0xf]
  %v1305 = vld [vmem:[%s1277 + $0x6c] sm:$0xf]
  %v1306 = vld [vmem:[%s1277 + $0x70] sm:$0xf]
  %v1307 = vld [vmem:[%s1277 + $0x74] sm:$0xf]
  %v1308 = vld [vmem:[%s1277 + $0x78] sm:$0xf]
  %v1309 = vld [vmem:[%s1277 + $0x7c] sm:$0xf]
  %v1314 = vunpack.c.l.b16 %v1273
  %v1315 = vunpack.c.h.b16 %v1273
  %v1316 = vunpack.c.l.b16 %v1274
  %v1317 = vunpack.c.h.b16 %v1274
  %v1318 = vunpack.c.l.b16 %v1275
  %v1319 = vunpack.c.h.b16 %v1275
  %v1320 = vunpack.c.l.b16 %v1276
  %v1321 = vunpack.c.h.b16 %v1276
  %v1322 = vpack.c.b16 %v1316, %v1314
  %v1323 = vpack.c.b16 %v1317, %v1315
  %v1324 = vpack.c.b16 %v1320, %v1318
  %v1325 = vpack.c.b16 %v1321, %v1319
  %v1362 = vunpack.c.l.b16 %v1278
  %v1363 = vunpack.c.l.b16 %v1279
  %v1364 = vunpack.c.l.b16 %v1280
  %v1365 = vunpack.c.l.b16 %v1281
  %v1366 = vunpack.c.l.b16 %v1282
  %v1367 = vunpack.c.l.b16 %v1283
  %v1368 = vunpack.c.l.b16 %v1284
  %v1369 = vunpack.c.l.b16 %v1285
  %v1370 = vunpack.c.l.b16 %v1286
  %v1371 = vunpack.c.l.b16 %v1287
  %v1372 = vunpack.c.l.b16 %v1288
  %v1373 = vunpack.c.l.b16 %v1289
  %v1374 = vunpack.c.l.b16 %v1290
  %v1375 = vunpack.c.l.b16 %v1291
  %v1376 = vunpack.c.l.b16 %v1292
  %v1377 = vunpack.c.l.b16 %v1293
  %v1378 = vunpack.c.l.b16 %v1294
  %v1379 = vunpack.c.l.b16 %v1295
  %v1380 = vunpack.c.l.b16 %v1296
  %v1381 = vunpack.c.l.b16 %v1297
  %v1382 = vunpack.c.l.b16 %v1298
  %v1383 = vunpack.c.l.b16 %v1299
  %v1384 = vunpack.c.l.b16 %v1300
  %v1385 = vunpack.c.l.b16 %v1301
  %v1386 = vunpack.c.l.b16 %v1302
  %v1387 = vunpack.c.l.b16 %v1303
  %v1388 = vunpack.c.l.b16 %v1304
  %v1389 = vunpack.c.l.b16 %v1305
  %v1390 = vunpack.c.l.b16 %v1306
  %v1391 = vunpack.c.l.b16 %v1307
  %v1392 = vunpack.c.l.b16 %v1308
  %v1393 = vunpack.c.l.b16 %v1309
  %v1394 = vpack.c.b16 %v1363, %v1362
  %v1395 = vpack.c.b16 %v1365, %v1364
  %v1396 = vpack.c.b16 %v1367, %v1366
  %v1397 = vpack.c.b16 %v1369, %v1368
  %v1398 = vpack.c.b16 %v1371, %v1370
  %v1399 = vpack.c.b16 %v1373, %v1372
  %v1400 = vpack.c.b16 %v1375, %v1374
  %v1401 = vpack.c.b16 %v1377, %v1376
  %v1402 = vpack.c.b16 %v1379, %v1378
  %v1403 = vpack.c.b16 %v1381, %v1380
  %v1404 = vpack.c.b16 %v1383, %v1382
  %v1405 = vpack.c.b16 %v1385, %v1384
  %v1406 = vpack.c.b16 %v1387, %v1386
  %v1407 = vpack.c.b16 %v1389, %v1388
  %v1408 = vpack.c.b16 %v1391, %v1390
  %v1409 = vpack.c.b16 %v1393, %v1392
  %1426 = vmatprep.subr.bf16.mxu0 0
  %1427 = vmatpush1.bf16.msra.mxu0 %v1394
  %1428 = vmatprep.subr.bf16.mxu0 0
  %1429 = vmatpush1.bf16.msra.mxu0 %v1395
  %1430 = vmatprep.subr.bf16.mxu0 0
  %1431 = vmatpush1.bf16.msra.mxu0 %v1396
  %1432 = vmatprep.subr.bf16.mxu0 0
  %1433 = vmatpush1.bf16.msra.mxu0 %v1397
  %1434 = vmatprep.subr.bf16.mxu0 0
  %1435 = vmatpush1.bf16.msra.mxu0 %v1398
  %1436 = vmatprep.subr.bf16.mxu0 0
  %1437 = vmatpush1.bf16.msra.mxu0 %v1399
  %1438 = vmatprep.subr.bf16.mxu0 0
  %1439 = vmatpush1.bf16.msra.mxu0 %v1400
  %1440 = vmatprep.subr.bf16.mxu0 0
  %1441 = vmatpush1.bf16.msra.mxu0 %v1401
  %1442 = vmatprep.subr.bf16.mxu0 0
  %1443 = vmatpush1.bf16.msra.mxu0 %v1402
  %1444 = vmatprep.subr.bf16.mxu0 0
  %1445 = vmatpush1.bf16.msra.mxu0 %v1403
  %1446 = vmatprep.subr.bf16.mxu0 0
  %1447 = vmatpush1.bf16.msra.mxu0 %v1404
  %1448 = vmatprep.subr.bf16.mxu0 0
  %1449 = vmatpush1.bf16.msra.mxu0 %v1405
  %1450 = vmatprep.subr.bf16.mxu0 0
  %1451 = vmatpush1.bf16.msra.mxu0 %v1406
  %1452 = vmatprep.subr.bf16.mxu0 0
  %1453 = vmatpush1.bf16.msra.mxu0 %v1407
  %1454 = vmatprep.subr.bf16.mxu0 0
  %1455 = vmatpush1.bf16.msra.mxu0 %v1408
  %1456 = vmatprep.subr.bf16.mxu0 0
  %1457 = vmatpush1.bf16.msra.mxu0 %v1409
  %1458 = vmatprep.mubr.bf16.mxu0 %v1323
  %1459 = vmatmul.mubr.bf16.gmra.mrb[0].mxu0 %v1322
  %v1460 = vpop.f32.mrb[0].mxu0
  %v1461 = vadd.f32 0.0, %v1460
  %v1462 = vpop.f32.mrb[0].mxu0
  %v1463 = vpop.f32.mrb[0].mxu0
  %v1464 = vadd.f32 0.0, %v1463
  %v1465 = vpop.f32.mrb[0].mxu0
  %1466 = vmatprep.mubr.bf16.mxu0 %v1325
  %1467 = vmatmul.mubr.bf16.gmra.mrb[0].mxu0 %v1324
  %v1468 = vpop.f32.mrb[0].mxu0
  %v1469 = vadd.f32 0.0, %v1468
  %v1470 = vpop.f32.mrb[0].mxu0
  %v1471 = vpop.f32.mrb[0].mxu0
  %v1472 = vadd.f32 0.0, %v1471
  %v1473 = vpop.f32.mrb[0].mxu0
  %1474 = vdwg.mxu0
  %v1475 = vadd.f32 %v1259, %v1461
  %v1476 = vadd.f32 %v1262, %v1464
  %v1477 = vadd.f32 %v1267, %v1469
  %v1478 = vadd.f32 %v1270, %v1472
  %s1479 = scalar_lea.vmem %s0, 160
  %v1480 = vld [vmem:[%s1479] sm:$0xff]
  %v1481 = vld [vmem:[%s1479 + $0x8] sm:$0xff]
  %v1482 = vld [vmem:[%s1479 + $0x10] sm:$0xff]
  %v1483 = vld [vmem:[%s1479 + $0x18] sm:$0xff]
  %s1484 = scalar_lea.vmem %s1, 896
  %v1485 = vld [vmem:[%s1484] sm:$0xf]
  %v1486 = vld [vmem:[%s1484 + $0x4] sm:$0xf]
  %v1487 = vld [vmem:[%s1484 + $0x8] sm:$0xf]
  %v1488 = vld [vmem:[%s1484 + $0xc] sm:$0xf]
  %v1489 = vld [vmem:[%s1484 + $0x10] sm:$0xf]
  %v1490 = vld [vmem:[%s1484 + $0x14] sm:$0xf]
  %v1491 = vld [vmem:[%s1484 + $0x18] sm:$0xf]
  %v1492 = vld [vmem:[%s1484 + $0x1c] sm:$0xf]
  %v1493 = vld [vmem:[%s1484 + $0x20] sm:$0xf]
  %v1494 = vld [vmem:[%s1484 + $0x24] sm:$0xf]
  %v1495 = vld [vmem:[%s1484 + $0x28] sm:$0xf]
  %v1496 = vld [vmem:[%s1484 + $0x2c] sm:$0xf]
  %v1497 = vld [vmem:[%s1484 + $0x30] sm:$0xf]
  %v1498 = vld [vmem:[%s1484 + $0x34] sm:$0xf]
  %v1499 = vld [vmem:[%s1484 + $0x38] sm:$0xf]
  %v1500 = vld [vmem:[%s1484 + $0x3c] sm:$0xf]
  %v1501 = vld [vmem:[%s1484 + $0x40] sm:$0xf]
  %v1502 = vld [vmem:[%s1484 + $0x44] sm:$0xf]
  %v1503 = vld [vmem:[%s1484 + $0x48] sm:$0xf]
  %v1504 = vld [vmem:[%s1484 + $0x4c] sm:$0xf]
  %v1505 = vld [vmem:[%s1484 + $0x50] sm:$0xf]
  %v1506 = vld [vmem:[%s1484 + $0x54] sm:$0xf]
  %v1507 = vld [vmem:[%s1484 + $0x58] sm:$0xf]
  %v1508 = vld [vmem:[%s1484 + $0x5c] sm:$0xf]
  %v1509 = vld [vmem:[%s1484 + $0x60] sm:$0xf]
  %v1510 = vld [vmem:[%s1484 + $0x64] sm:$0xf]
  %v1511 = vld [vmem:[%s1484 + $0x68] sm:$0xf]
  %v1512 = vld [vmem:[%s1484 + $0x6c] sm:$0xf]
  %v1513 = vld [vmem:[%s1484 + $0x70] sm:$0xf]
  %v1514 = vld [vmem:[%s1484 + $0x74] sm:$0xf]
  %v1515 = vld [vmem:[%s1484 + $0x78] sm:$0xf]
  %v1516 = vld [vmem:[%s1484 + $0x7c] sm:$0xf]
  %v1521 = vunpack.c.l.b16 %v1480
  %v1522 = vunpack.c.h.b16 %v1480
  %v1523 = vunpack.c.l.b16 %v1481
  %v1524 = vunpack.c.h.b16 %v1481
  %v1525 = vunpack.c.l.b16 %v1482
  %v1526 = vunpack.c.h.b16 %v1482
  %v1527 = vunpack.c.l.b16 %v1483
  %v1528 = vunpack.c.h.b16 %v1483
  %v1529 = vpack.c.b16 %v1523, %v1521
  %v1530 = vpack.c.b16 %v1524, %v1522
  %v1531 = vpack.c.b16 %v1527, %v1525
  %v1532 = vpack.c.b16 %v1528, %v1526
  %v1569 = vunpack.c.l.b16 %v1485
  %v1570 = vunpack.c.l.b16 %v1486
  %v1571 = vunpack.c.l.b16 %v1487
  %v1572 = vunpack.c.l.b16 %v1488
  %v1573 = vunpack.c.l.b16 %v1489
  %v1574 = vunpack.c.l.b16 %v1490
  %v1575 = vunpack.c.l.b16 %v1491
  %v1576 = vunpack.c.l.b16 %v1492
  %v1577 = vunpack.c.l.b16 %v1493
  %v1578 = vunpack.c.l.b16 %v1494
  %v1579 = vunpack.c.l.b16 %v1495
  %v1580 = vunpack.c.l.b16 %v1496
  %v1581 = vunpack.c.l.b16 %v1497
  %v1582 = vunpack.c.l.b16 %v1498
  %v1583 = vunpack.c.l.b16 %v1499
  %v1584 = vunpack.c.l.b16 %v1500
  %v1585 = vunpack.c.l.b16 %v1501
  %v1586 = vunpack.c.l.b16 %v1502
  %v1587 = vunpack.c.l.b16 %v1503
  %v1588 = vunpack.c.l.b16 %v1504
  %v1589 = vunpack.c.l.b16 %v1505
  %v1590 = vunpack.c.l.b16 %v1506
  %v1591 = vunpack.c.l.b16 %v1507
  %v1592 = vunpack.c.l.b16 %v1508
  %v1593 = vunpack.c.l.b16 %v1509
  %v1594 = vunpack.c.l.b16 %v1510
  %v1595 = vunpack.c.l.b16 %v1511
  %v1596 = vunpack.c.l.b16 %v1512
  %v1597 = vunpack.c.l.b16 %v1513
  %v1598 = vunpack.c.l.b16 %v1514
  %v1599 = vunpack.c.l.b16 %v1515
  %v1600 = vunpack.c.l.b16 %v1516
  %v1601 = vpack.c.b16 %v1570, %v1569
  %v1602 = vpack.c.b16 %v1572, %v1571
  %v1603 = vpack.c.b16 %v1574, %v1573
  %v1604 = vpack.c.b16 %v1576, %v1575
  %v1605 = vpack.c.b16 %v1578, %v1577
  %v1606 = vpack.c.b16 %v1580, %v1579
  %v1607 = vpack.c.b16 %v1582, %v1581
  %v1608 = vpack.c.b16 %v1584, %v1583
  %v1609 = vpack.c.b16 %v1586, %v1585
  %v1610 = vpack.c.b16 %v1588, %v1587
  %v1611 = vpack.c.b16 %v1590, %v1589
  %v1612 = vpack.c.b16 %v1592, %v1591
  %v1613 = vpack.c.b16 %v1594, %v1593
  %v1614 = vpack.c.b16 %v1596, %v1595
  %v1615 = vpack.c.b16 %v1598, %v1597
  %v1616 = vpack.c.b16 %v1600, %v1599
  %1633 = vmatprep.subr.bf16.mxu0 0
  %1634 = vmatpush1.bf16.msra.mxu0 %v1601
  %1635 = vmatprep.subr.bf16.mxu0 0
  %1636 = vmatpush1.bf16.msra.mxu0 %v1602
  %1637 = vmatprep.subr.bf16.mxu0 0
  %1638 = vmatpush1.bf16.msra.mxu0 %v1603
  %1639 = vmatprep.subr.bf16.mxu0 0
  %1640 = vmatpush1.bf16.msra.mxu0 %v1604
  %1641 = vmatprep.subr.bf16.mxu0 0
  %1642 = vmatpush1.bf16.msra.mxu0 %v1605
  %1643 = vmatprep.subr.bf16.mxu0 0
  %1644 = vmatpush1.bf16.msra.mxu0 %v1606
  %1645 = vmatprep.subr.bf16.mxu0 0
  %1646 = vmatpush1.bf16.msra.mxu0 %v1607
  %1647 = vmatprep.subr.bf16.mxu0 0
  %1648 = vmatpush1.bf16.msra.mxu0 %v1608
  %1649 = vmatprep.subr.bf16.mxu0 0
  %1650 = vmatpush1.bf16.msra.mxu0 %v1609
  %1651 = vmatprep.subr.bf16.mxu0 0
  %1652 = vmatpush1.bf16.msra.mxu0 %v1610
  %1653 = vmatprep.subr.bf16.mxu0 0
  %1654 = vmatpush1.bf16.msra.mxu0 %v1611
  %1655 = vmatprep.subr.bf16.mxu0 0
  %1656 = vmatpush1.bf16.msra.mxu0 %v1612
  %1657 = vmatprep.subr.bf16.mxu0 0
  %1658 = vmatpush1.bf16.msra.mxu0 %v1613
  %1659 = vmatprep.subr.bf16.mxu0 0
  %1660 = vmatpush1.bf16.msra.mxu0 %v1614
  %1661 = vmatprep.subr.bf16.mxu0 0
  %1662 = vmatpush1.bf16.msra.mxu0 %v1615
  %1663 = vmatprep.subr.bf16.mxu0 0
  %1664 = vmatpush1.bf16.msra.mxu0 %v1616
  %1665 = vmatprep.mubr.bf16.mxu0 %v1530
  %1666 = vmatmul.mubr.bf16.gmra.mrb[0].mxu0 %v1529
  %v1667 = vpop.f32.mrb[0].mxu0
  %v1668 = vadd.f32 0.0, %v1667
  %v1669 = vpop.f32.mrb[0].mxu0
  %v1670 = vpop.f32.mrb[0].mxu0
  %v1671 = vadd.f32 0.0, %v1670
  %v1672 = vpop.f32.mrb[0].mxu0
  %1673 = vmatprep.mubr.bf16.mxu0 %v1532
  %1674 = vmatmul.mubr.bf16.gmra.mrb[0].mxu0 %v1531
  %v1675 = vpop.f32.mrb[0].mxu0
  %v1676 = vadd.f32 0.0, %v1675
  %v1677 = vpop.f32.mrb[0].mxu0
  %v1678 = vpop.f32.mrb[0].mxu0
  %v1679 = vadd.f32 0.0, %v1678
  %v1680 = vpop.f32.mrb[0].mxu0
  %1681 = vdwg.mxu0
  %v1682 = vadd.f32 %v1475, %v1668
  %v1683 = vadd.f32 %v1476, %v1671
  %v1684 = vadd.f32 %v1477, %v1676
  %v1685 = vadd.f32 %v1478, %v1679
  %v1686 = vld [vmem:[%s2] sm:$0x1]
  %v1688 = vlaneseq
  %v1689 = vshrl.u32 %v1688, 7
  %v1690 = vsub.s32 0, %v1689
  %v1691 = vrot.slane %v1686, %v1690
  %v1693 = vadd.f32 %v1682, %v1691
  %v1694 = vadd.f32 %v1683, %v1691
  %v1695 = vadd.f32 %v1684, %v1691
  %v1696 = vadd.f32 %v1685, %v1691
  %v1697 = vmax.f32 %v1693, 0.0
  %v1698 = vmax.f32 %v1694, 0.0
  %v1699 = vmax.f32 %v1695, 0.0
  %v1700 = vmax.f32 %v1696, 0.0
  %v1701 = vpack.c.bf16 %v1698, %v1697
  %v1702 = vpack.c.bf16 %v1700, %v1699
  %v1705 = vunpack.c.l.b16 %v1701
  %v1706 = vunpack.c.h.b16 %v1701
  %v1707 = vunpack.c.l.b16 %v1702
  %v1708 = vunpack.c.h.b16 %v1702
  %v1709 = vpack.c.b16 %v1705, %v1705
  %v1710 = vpack.c.b16 %v1706, %v1706
  %v1711 = vpack.c.b16 %v1707, %v1707
  %v1712 = vpack.c.b16 %v1708, %v1708
  %1717 = vst [vmem:[%s3 + $0x4] sm:$0xf] %v1709
  %1718 = vst [vmem:[%s3 + $0x14] sm:$0xf] %v1710
  %1719 = vst [vmem:[%s3 + $0x24] sm:$0xf] %v1711
  %1720 = vst [vmem:[%s3 + $0x34] sm:$0xf] %v1712
  %v1721 = vld [vmem:[%s419] sm:$0xff]
  %v1722 = vld [vmem:[%s419 + $0x8] sm:$0xff]
  %v1723 = vld [vmem:[%s419 + $0x10] sm:$0xff]
  %v1724 = vld [vmem:[%s419 + $0x18] sm:$0xff]
  %s1725 = scalar_lea.vmem %s1, 1024
  %v1726 = vld [vmem:[%s1725] sm:$0xf]
  %v1727 = vld [vmem:[%s1725 + $0x4] sm:$0xf]
  %v1728 = vld [vmem:[%s1725 + $0x8] sm:$0xf]
  %v1729 = vld [vmem:[%s1725 + $0xc] sm:$0xf]
  %v1730 = vld [vmem:[%s1725 + $0x10] sm:$0xf]
  %v1731 = vld [vmem:[%s1725 + $0x14] sm:$0xf]
  %v1732 = vld [vmem:[%s1725 + $0x18] sm:$0xf]
  %v1733 = vld [vmem:[%s1725 + $0x1c] sm:$0xf]
  %v1734 = vld [vmem:[%s1725 + $0x20] sm:$0xf]
  %v1735 = vld [vmem:[%s1725 + $0x24] sm:$0xf]
  %v1736 = vld [vmem:[%s1725 + $0x28] sm:$0xf]
  %v1737 = vld [vmem:[%s1725 + $0x2c] sm:$0xf]
  %v1738 = vld [vmem:[%s1725 + $0x30] sm:$0xf]
  %v1739 = vld [vmem:[%s1725 + $0x34] sm:$0xf]
  %v1740 = vld [vmem:[%s1725 + $0x38] sm:$0xf]
  %v1741 = vld [vmem:[%s1725 + $0x3c] sm:$0xf]
  %v1742 = vld [vmem:[%s1725 + $0x40] sm:$0xf]
  %v1743 = vld [vmem:[%s1725 + $0x44] sm:$0xf]
  %v1744 = vld [vmem:[%s1725 + $0x48] sm:$0xf]
  %v1745 = vld [vmem:[%s1725 + $0x4c] sm:$0xf]
  %v1746 = vld [vmem:[%s1725 + $0x50] sm:$0xf]
  %v1747 = vld [vmem:[%s1725 + $0x54] sm:$0xf]
  %v1748 = vld [vmem:[%s1725 + $0x58] sm:$0xf]
  %v1749 = vld [vmem:[%s1725 + $0x5c] sm:$0xf]
  %v1750 = vld [vmem:[%s1725 + $0x60] sm:$0xf]
  %v1751 = vld [vmem:[%s1725 + $0x64] sm:$0xf]
  %v1752 = vld [vmem:[%s1725 + $0x68] sm:$0xf]
  %v1753 = vld [vmem:[%s1725 + $0x6c] sm:$0xf]
  %v1754 = vld [vmem:[%s1725 + $0x70] sm:$0xf]
  %v1755 = vld [vmem:[%s1725 + $0x74] sm:$0xf]
  %v1756 = vld [vmem:[%s1725 + $0x78] sm:$0xf]
  %v1757 = vld [vmem:[%s1725 + $0x7c] sm:$0xf]
  %v1758 = vld [vmem:[%s626] sm:$0xff]
  %v1759 = vld [vmem:[%s626 + $0x8] sm:$0xff]
  %v1760 = vld [vmem:[%s626 + $0x10] sm:$0xff]
  %v1761 = vld [vmem:[%s626 + $0x18] sm:$0xff]
  %s1762 = scalar_lea.vmem %s1, 1152
  %v1763 = vld [vmem:[%s1762] sm:$0xf]
  %v1764 = vld [vmem:[%s1762 + $0x4] sm:$0xf]
  %v1765 = vld [vmem:[%s1762 + $0x8] sm:$0xf]
  %v1766 = vld [vmem:[%s1762 + $0xc] sm:$0xf]
  %v1767 = vld [vmem:[%s1762 + $0x10] sm:$0xf]
  %v1768 = vld [vmem:[%s1762 + $0x14] sm:$0xf]
  %v1769 = vld [vmem:[%s1762 + $0x18] sm:$0xf]
  %v1770 = vld [vmem:[%s1762 + $0x1c] sm:$0xf]
  %v1771 = vld [vmem:[%s1762 + $0x20] sm:$0xf]
  %v1772 = vld [vmem:[%s1762 + $0x24] sm:$0xf]
  %v1773 = vld [vmem:[%s1762 + $0x28] sm:$0xf]
  %v1774 = vld [vmem:[%s1762 + $0x2c] sm:$0xf]
  %v1775 = vld [vmem:[%s1762 + $0x30] sm:$0xf]
  %v1776 = vld [vmem:[%s1762 + $0x34] sm:$0xf]
  %v1777 = vld [vmem:[%s1762 + $0x38] sm:$0xf]
  %v1778 = vld [vmem:[%s1762 + $0x3c] sm:$0xf]
  %v1779 = vld [vmem:[%s1762 + $0x40] sm:$0xf]
  %v1780 = vld [vmem:[%s1762 + $0x44] sm:$0xf]
  %v1781 = vld [vmem:[%s1762 + $0x48] sm:$0xf]
  %v1782 = vld [vmem:[%s1762 + $0x4c] sm:$0xf]
  %v1783 = vld [vmem:[%s1762 + $0x50] sm:$0xf]
  %v1784 = vld [vmem:[%s1762 + $0x54] sm:$0xf]
  %v1785 = vld [vmem:[%s1762 + $0x58] sm:$0xf]
  %v1786 = vld [vmem:[%s1762 + $0x5c] sm:$0xf]
  %v1787 = vld [vmem:[%s1762 + $0x60] sm:$0xf]
  %v1788 = vld [vmem:[%s1762 + $0x64] sm:$0xf]
  %v1789 = vld [vmem:[%s1762 + $0x68] sm:$0xf]
  %v1790 = vld [vmem:[%s1762 + $0x6c] sm:$0xf]
  %v1791 = vld [vmem:[%s1762 + $0x70] sm:$0xf]
  %v1792 = vld [vmem:[%s1762 + $0x74] sm:$0xf]
  %v1793 = vld [vmem:[%s1762 + $0x78] sm:$0xf]
  %v1794 = vld [vmem:[%s1762 + $0x7c] sm:$0xf]
  %v1799 = vunpack.c.l.b16 %v1758
  %v1800 = vunpack.c.h.b16 %v1758
  %v1801 = vunpack.c.l.b16 %v1759
  %v1802 = vunpack.c.h.b16 %v1759
  %v1803 = vunpack.c.l.b16 %v1760
  %v1804 = vunpack.c.h.b16 %v1760
  %v1805 = vunpack.c.l.b16 %v1761
  %v1806 = vunpack.c.h.b16 %v1761
  %v1807 = vpack.c.b16 %v1801, %v1799
  %v1808 = vpack.c.b16 %v1802, %v1800
  %v1809 = vpack.c.b16 %v1805, %v1803
  %v1810 = vpack.c.b16 %v1806, %v1804
  %v1847 = vunpack.c.l.b16 %v1763
  %v1848 = vunpack.c.l.b16 %v1764
  %v1849 = vunpack.c.l.b16 %v1765
  %v1850 = vunpack.c.l.b16 %v1766
  %v1851 = vunpack.c.l.b16 %v1767
  %v1852 = vunpack.c.l.b16 %v1768
  %v1853 = vunpack.c.l.b16 %v1769
  %v1854 = vunpack.c.l.b16 %v1770
  %v1855 = vunpack.c.l.b16 %v1771
  %v1856 = vunpack.c.l.b16 %v1772
  %v1857 = vunpack.c.l.b16 %v1773
  %v1858 = vunpack.c.l.b16 %v1774
  %v1859 = vunpack.c.l.b16 %v1775
  %v1860 = vunpack.c.l.b16 %v1776
  %v1861 = vunpack.c.l.b16 %v1777
  %v1862 = vunpack.c.l.b16 %v1778
  %v1863 = vunpack.c.l.b16 %v1779
  %v1864 = vunpack.c.l.b16 %v1780
  %v1865 = vunpack.c.l.b16 %v1781
  %v1866 = vunpack.c.l.b16 %v1782
  %v1867 = vunpack.c.l.b16 %v1783
  %v1868 = vunpack.c.l.b16 %v1784
  %v1869 = vunpack.c.l.b16 %v1785
  %v1870 = vunpack.c.l.b16 %v1786
  %v1871 = vunpack.c.l.b16 %v1787
  %v1872 = vunpack.c.l.b16 %v1788
  %v1873 = vunpack.c.l.b16 %v1789
  %v1874 = vunpack.c.l.b16 %v1790
  %v1875 = vunpack.c.l.b16 %v1791
  %v1876 = vunpack.c.l.b16 %v1792
  %v1877 = vunpack.c.l.b16 %v1793
  %v1878 = vunpack.c.l.b16 %v1794
  %v1879 = vpack.c.b16 %v1848, %v1847
  %v1880 = vpack.c.b16 %v1850, %v1849
  %v1881 = vpack.c.b16 %v1852, %v1851
  %v1882 = vpack.c.b16 %v1854, %v1853
  %v1883 = vpack.c.b16 %v1856, %v1855
  %v1884 = vpack.c.b16 %v1858, %v1857
  %v1885 = vpack.c.b16 %v1860, %v1859
  %v1886 = vpack.c.b16 %v1862, %v1861
  %v1887 = vpack.c.b16 %v1864, %v1863
  %v1888 = vpack.c.b16 %v1866, %v1865
  %v1889 = vpack.c.b16 %v1868, %v1867
  %v1890 = vpack.c.b16 %v1870, %v1869
  %v1891 = vpack.c.b16 %v1872, %v1871
  %v1892 = vpack.c.b16 %v1874, %v1873
  %v1893 = vpack.c.b16 %v1876, %v1875
  %v1894 = vpack.c.b16 %v1878, %v1877
  %1911 = vmatprep.subr.bf16.mxu0 0
  %1912 = vmatpush1.bf16.msra.mxu0 %v1879
  %1913 = vmatprep.subr.bf16.mxu0 0
  %1914 = vmatpush1.bf16.msra.mxu0 %v1880
  %1915 = vmatprep.subr.bf16.mxu0 0
  %1916 = vmatpush1.bf16.msra.mxu0 %v1881
  %1917 = vmatprep.subr.bf16.mxu0 0
  %1918 = vmatpush1.bf16.msra.mxu0 %v1882
  %1919 = vmatprep.subr.bf16.mxu0 0
  %1920 = vmatpush1.bf16.msra.mxu0 %v1883
  %1921 = vmatprep.subr.bf16.mxu0 0
  %1922 = vmatpush1.bf16.msra.mxu0 %v1884
  %1923 = vmatprep.subr.bf16.mxu0 0
  %1924 = vmatpush1.bf16.msra.mxu0 %v1885
  %1925 = vmatprep.subr.bf16.mxu0 0
  %1926 = vmatpush1.bf16.msra.mxu0 %v1886
  %1927 = vmatprep.subr.bf16.mxu0 0
  %1928 = vmatpush1.bf16.msra.mxu0 %v1887
  %1929 = vmatprep.subr.bf16.mxu0 0
  %1930 = vmatpush1.bf16.msra.mxu0 %v1888
  %1931 = vmatprep.subr.bf16.mxu0 0
  %1932 = vmatpush1.bf16.msra.mxu0 %v1889
  %1933 = vmatprep.subr.bf16.mxu0 0
  %1934 = vmatpush1.bf16.msra.mxu0 %v1890
  %1935 = vmatprep.subr.bf16.mxu0 0
  %1936 = vmatpush1.bf16.msra.mxu0 %v1891
  %1937 = vmatprep.subr.bf16.mxu0 0
  %1938 = vmatpush1.bf16.msra.mxu0 %v1892
  %1939 = vmatprep.subr.bf16.mxu0 0
  %1940 = vmatpush1.bf16.msra.mxu0 %v1893
  %1941 = vmatprep.subr.bf16.mxu0 0
  %1942 = vmatpush1.bf16.msra.mxu0 %v1894
  %1943 = vmatprep.mubr.bf16.mxu0 %v1808
  %1944 = vmatmul.mubr.bf16.gmra.mrb[0].mxu0 %v1807
  %v1945 = vpop.f32.mrb[0].mxu0
  %v1946 = vadd.f32 0.0, %v1945
  %v1947 = vpop.f32.mrb[0].mxu0
  %v1948 = vpop.f32.mrb[0].mxu0
  %v1949 = vadd.f32 0.0, %v1948
  %v1950 = vpop.f32.mrb[0].mxu0
  %1951 = vmatprep.mubr.bf16.mxu0 %v1810
  %1952 = vmatmul.mubr.bf16.gmra.mrb[0].mxu0 %v1809
  %v1953 = vpop.f32.mrb[0].mxu0
  %v1954 = vadd.f32 0.0, %v1953
  %v1955 = vpop.f32.mrb[0].mxu0
  %v1956 = vpop.f32.mrb[0].mxu0
  %v1957 = vadd.f32 0.0, %v1956
  %v1958 = vpop.f32.mrb[0].mxu0
  %1959 = vdwg.mxu0
  %v1964 = vunpack.c.l.b16 %v1721
  %v1965 = vunpack.c.h.b16 %v1721
  %v1966 = vunpack.c.l.b16 %v1722
  %v1967 = vunpack.c.h.b16 %v1722
  %v1968 = vunpack.c.l.b16 %v1723
  %v1969 = vunpack.c.h.b16 %v1723
  %v1970 = vunpack.c.l.b16 %v1724
  %v1971 = vunpack.c.h.b16 %v1724
  %v1972 = vpack.c.b16 %v1966, %v1964
  %v1973 = vpack.c.b16 %v1967, %v1965
  %v1974 = vpack.c.b16 %v1970, %v1968
  %v1975 = vpack.c.b16 %v1971, %v1969
  %v2012 = vunpack.c.l.b16 %v1726
  %v2013 = vunpack.c.l.b16 %v1727
  %v2014 = vunpack.c.l.b16 %v1728
  %v2015 = vunpack.c.l.b16 %v1729
  %v2016 = vunpack.c.l.b16 %v1730
  %v2017 = vunpack.c.l.b16 %v1731
  %v2018 = vunpack.c.l.b16 %v1732
  %v2019 = vunpack.c.l.b16 %v1733
  %v2020 = vunpack.c.l.b16 %v1734
  %v2021 = vunpack.c.l.b16 %v1735
  %v2022 = vunpack.c.l.b16 %v1736
  %v2023 = vunpack.c.l.b16 %v1737
  %v2024 = vunpack.c.l.b16 %v1738
  %v2025 = vunpack.c.l.b16 %v1739
  %v2026 = vunpack.c.l.b16 %v1740
  %v2027 = vunpack.c.l.b16 %v1741
  %v2028 = vunpack.c.l.b16 %v1742
  %v2029 = vunpack.c.l.b16 %v1743
  %v2030 = vunpack.c.l.b16 %v1744
  %v2031 = vunpack.c.l.b16 %v1745
  %v2032 = vunpack.c.l.b16 %v1746
  %v2033 = vunpack.c.l.b16 %v1747
  %v2034 = vunpack.c.l.b16 %v1748
  %v2035 = vunpack.c.l.b16 %v1749
  %v2036 = vunpack.c.l.b16 %v1750
  %v2037 = vunpack.c.l.b16 %v1751
  %v2038 = vunpack.c.l.b16 %v1752
  %v2039 = vunpack.c.l.b16 %v1753
  %v2040 = vunpack.c.l.b16 %v1754
  %v2041 = vunpack.c.l.b16 %v1755
  %v2042 = vunpack.c.l.b16 %v1756
  %v2043 = vunpack.c.l.b16 %v1757
  %v2044 = vpack.c.b16 %v2013, %v2012
  %v2045 = vpack.c.b16 %v2015, %v2014
  %v2046 = vpack.c.b16 %v2017, %v2016
  %v2047 = vpack.c.b16 %v2019, %v2018
  %v2048 = vpack.c.b16 %v2021, %v2020
  %v2049 = vpack.c.b16 %v2023, %v2022
  %v2050 = vpack.c.b16 %v2025, %v2024
  %v2051 = vpack.c.b16 %v2027, %v2026
  %v2052 = vpack.c.b16 %v2029, %v2028
  %v2053 = vpack.c.b16 %v2031, %v2030
  %v2054 = vpack.c.b16 %v2033, %v2032
  %v2055 = vpack.c.b16 %v2035, %v2034
  %v2056 = vpack.c.b16 %v2037, %v2036
  %v2057 = vpack.c.b16 %v2039, %v2038
  %v2058 = vpack.c.b16 %v2041, %v2040
  %v2059 = vpack.c.b16 %v2043, %v2042
  %2076 = vmatprep.subr.bf16.mxu0 0
  %2077 = vmatpush1.bf16.msra.mxu0 %v2044
  %2078 = vmatprep.subr.bf16.mxu0 0
  %2079 = vmatpush1.bf16.msra.mxu0 %v2045
  %2080 = vmatprep.subr.bf16.mxu0 0
  %2081 = vmatpush1.bf16.msra.mxu0 %v2046
  %2082 = vmatprep.subr.bf16.mxu0 0
  %2083 = vmatpush1.bf16.msra.mxu0 %v2047
  %2084 = vmatprep.subr.bf16.mxu0 0
  %2085 = vmatpush1.bf16.msra.mxu0 %v2048
  %2086 = vmatprep.subr.bf16.mxu0 0
  %2087 = vmatpush1.bf16.msra.mxu0 %v2049
  %2088 = vmatprep.subr.bf16.mxu0 0
  %2089 = vmatpush1.bf16.msra.mxu0 %v2050
  %2090 = vmatprep.subr.bf16.mxu0 0
  %2091 = vmatpush1.bf16.msra.mxu0 %v2051
  %2092 = vmatprep.subr.bf16.mxu0 0
  %2093 = vmatpush1.bf16.msra.mxu0 %v2052
  %2094 = vmatprep.subr.bf16.mxu0 0
  %2095 = vmatpush1.bf16.msra.mxu0 %v2053
  %2096 = vmatprep.subr.bf16.mxu0 0
  %2097 = vmatpush1.bf16.msra.mxu0 %v2054
  %2098 = vmatprep.subr.bf16.mxu0 0
  %2099 = vmatpush1.bf16.msra.mxu0 %v2055
  %2100 = vmatprep.subr.bf16.mxu0 0
  %2101 = vmatpush1.bf16.msra.mxu0 %v2056
  %2102 = vmatprep.subr.bf16.mxu0 0
  %2103 = vmatpush1.bf16.msra.mxu0 %v2057
  %2104 = vmatprep.subr.bf16.mxu0 0
  %2105 = vmatpush1.bf16.msra.mxu0 %v2058
  %2106 = vmatprep.subr.bf16.mxu0 0
  %2107 = vmatpush1.bf16.msra.mxu0 %v2059
  %2108 = vmatprep.mubr.bf16.mxu0 %v1973
  %2109 = vmatmul.mubr.bf16.gmra.mrb[0].mxu0 %v1972
  %v2110 = vpop.f32.mrb[0].mxu0
  %v2111 = vadd.f32 %v1946, %v2110
  %v2112 = vpop.f32.mrb[0].mxu0
  %v2113 = vpop.f32.mrb[0].mxu0
  %v2114 = vadd.f32 %v1949, %v2113
  %v2115 = vpop.f32.mrb[0].mxu0
  %2116 = vmatprep.mubr.bf16.mxu0 %v1975
  %2117 = vmatmul.mubr.bf16.gmra.mrb[0].mxu0 %v1974
  %v2118 = vpop.f32.mrb[0].mxu0
  %v2119 = vadd.f32 %v1954, %v2118
  %v2120 = vpop.f32.mrb[0].mxu0
  %v2121 = vpop.f32.mrb[0].mxu0
  %v2122 = vadd.f32 %v1957, %v2121
  %v2123 = vpop.f32.mrb[0].mxu0
  %2124 = vdwg.mxu0
  %s2125 = scalar_lea.vmem %s0, 192
  %v2126 = vld [vmem:[%s2125] sm:$0xff]
  %v2127 = vld [vmem:[%s2125 + $0x8] sm:$0xff]
  %v2128 = vld [vmem:[%s2125 + $0x10] sm:$0xff]
  %v2129 = vld [vmem:[%s2125 + $0x18] sm:$0xff]
  %s2130 = scalar_lea.vmem %s1, 1280
  %v2131 = vld [vmem:[%s2130] sm:$0xf]
  %v2132 = vld [vmem:[%s2130 + $0x4] sm:$0xf]
  %v2133 = vld [vmem:[%s2130 + $0x8] sm:$0xf]
  %v2134 = vld [vmem:[%s2130 + $0xc] sm:$0xf]
  %v2135 = vld [vmem:[%s2130 + $0x10] sm:$0xf]
  %v2136 = vld [vmem:[%s2130 + $0x14] sm:$0xf]
  %v2137 = vld [vmem:[%s2130 + $0x18] sm:$0xf]
  %v2138 = vld [vmem:[%s2130 + $0x1c] sm:$0xf]
  %v2139 = vld [vmem:[%s2130 + $0x20] sm:$0xf]
  %v2140 = vld [vmem:[%s2130 + $0x24] sm:$0xf]
  %v2141 = vld [vmem:[%s2130 + $0x28] sm:$0xf]
  %v2142 = vld [vmem:[%s2130 + $0x2c] sm:$0xf]
  %v2143 = vld [vmem:[%s2130 + $0x30] sm:$0xf]
  %v2144 = vld [vmem:[%s2130 + $0x34] sm:$0xf]
  %v2145 = vld [vmem:[%s2130 + $0x38] sm:$0xf]
  %v2146 = vld [vmem:[%s2130 + $0x3c] sm:$0xf]
  %v2147 = vld [vmem:[%s2130 + $0x40] sm:$0xf]
  %v2148 = vld [vmem:[%s2130 + $0x44] sm:$0xf]
  %v2149 = vld [vmem:[%s2130 + $0x48] sm:$0xf]
  %v2150 = vld [vmem:[%s2130 + $0x4c] sm:$0xf]
  %v2151 = vld [vmem:[%s2130 + $0x50] sm:$0xf]
  %v2152 = vld [vmem:[%s2130 + $0x54] sm:$0xf]
  %v2153 = vld [vmem:[%s2130 + $0x58] sm:$0xf]
  %v2154 = vld [vmem:[%s2130 + $0x5c] sm:$0xf]
  %v2155 = vld [vmem:[%s2130 + $0x60] sm:$0xf]
  %v2156 = vld [vmem:[%s2130 + $0x64] sm:$0xf]
  %v2157 = vld [vmem:[%s2130 + $0x68] sm:$0xf]
  %v2158 = vld [vmem:[%s2130 + $0x6c] sm:$0xf]
  %v2159 = vld [vmem:[%s2130 + $0x70] sm:$0xf]
  %v2160 = vld [vmem:[%s2130 + $0x74] sm:$0xf]
  %v2161 = vld [vmem:[%s2130 + $0x78] sm:$0xf]
  %v2162 = vld [vmem:[%s2130 + $0x7c] sm:$0xf]
  %v2167 = vunpack.c.l.b16 %v2126
  %v2168 = vunpack.c.h.b16 %v2126
  %v2169 = vunpack.c.l.b16 %v2127
  %v2170 = vunpack.c.h.b16 %v2127
  %v2171 = vunpack.c.l.b16 %v2128
  %v2172 = vunpack.c.h.b16 %v2128
  %v2173 = vunpack.c.l.b16 %v2129
  %v2174 = vunpack.c.h.b16 %v2129
  %v2175 = vpack.c.b16 %v2169, %v2167
  %v2176 = vpack.c.b16 %v2170, %v2168
  %v2177 = vpack.c.b16 %v2173, %v2171
  %v2178 = vpack.c.b16 %v2174, %v2172
  %v2215 = vunpack.c.l.b16 %v2131
  %v2216 = vunpack.c.l.b16 %v2132
  %v2217 = vunpack.c.l.b16 %v2133
  %v2218 = vunpack.c.l.b16 %v2134
  %v2219 = vunpack.c.l.b16 %v2135
  %v2220 = vunpack.c.l.b16 %v2136
  %v2221 = vunpack.c.l.b16 %v2137
  %v2222 = vunpack.c.l.b16 %v2138
  %v2223 = vunpack.c.l.b16 %v2139
  %v2224 = vunpack.c.l.b16 %v2140
  %v2225 = vunpack.c.l.b16 %v2141
  %v2226 = vunpack.c.l.b16 %v2142
  %v2227 = vunpack.c.l.b16 %v2143
  %v2228 = vunpack.c.l.b16 %v2144
  %v2229 = vunpack.c.l.b16 %v2145
  %v2230 = vunpack.c.l.b16 %v2146
  %v2231 = vunpack.c.l.b16 %v2147
  %v2232 = vunpack.c.l.b16 %v2148
  %v2233 = vunpack.c.l.b16 %v2149
  %v2234 = vunpack.c.l.b16 %v2150
  %v2235 = vunpack.c.l.b16 %v2151
  %v2236 = vunpack.c.l.b16 %v2152
  %v2237 = vunpack.c.l.b16 %v2153
  %v2238 = vunpack.c.l.b16 %v2154
  %v2239 = vunpack.c.l.b16 %v2155
  %v2240 = vunpack.c.l.b16 %v2156
  %v2241 = vunpack.c.l.b16 %v2157
  %v2242 = vunpack.c.l.b16 %v2158
  %v2243 = vunpack.c.l.b16 %v2159
  %v2244 = vunpack.c.l.b16 %v2160
  %v2245 = vunpack.c.l.b16 %v2161
  %v2246 = vunpack.c.l.b16 %v2162
  %v2247 = vpack.c.b16 %v2216, %v2215
  %v2248 = vpack.c.b16 %v2218, %v2217
  %v2249 = vpack.c.b16 %v2220, %v2219
  %v2250 = vpack.c.b16 %v2222, %v2221
  %v2251 = vpack.c.b16 %v2224, %v2223
  %v2252 = vpack.c.b16 %v2226, %v2225
  %v2253 = vpack.c.b16 %v2228, %v2227
  %v2254 = vpack.c.b16 %v2230, %v2229
  %v2255 = vpack.c.b16 %v2232, %v2231
  %v2256 = vpack.c.b16 %v2234, %v2233
  %v2257 = vpack.c.b16 %v2236, %v2235
  %v2258 = vpack.c.b16 %v2238, %v2237
  %v2259 = vpack.c.b16 %v2240, %v2239
  %v2260 = vpack.c.b16 %v2242, %v2241
  %v2261 = vpack.c.b16 %v2244, %v2243
  %v2262 = vpack.c.b16 %v2246, %v2245
  %2279 = vmatprep.subr.bf16.mxu0 0
  %2280 = vmatpush1.bf16.msra.mxu0 %v2247
  %2281 = vmatprep.subr.bf16.mxu0 0
  %2282 = vmatpush1.bf16.msra.mxu0 %v2248
  %2283 = vmatprep.subr.bf16.mxu0 0
  %2284 = vmatpush1.bf16.msra.mxu0 %v2249
  %2285 = vmatprep.subr.bf16.mxu0 0
  %2286 = vmatpush1.bf16.msra.mxu0 %v2250
  %2287 = vmatprep.subr.bf16.mxu0 0
  %2288 = vmatpush1.bf16.msra.mxu0 %v2251
  %2289 = vmatprep.subr.bf16.mxu0 0
  %2290 = vmatpush1.bf16.msra.mxu0 %v2252
  %2291 = vmatprep.subr.bf16.mxu0 0
  %2292 = vmatpush1.bf16.msra.mxu0 %v2253
  %2293 = vmatprep.subr.bf16.mxu0 0
  %2294 = vmatpush1.bf16.msra.mxu0 %v2254
  %2295 = vmatprep.subr.bf16.mxu0 0
  %2296 = vmatpush1.bf16.msra.mxu0 %v2255
  %2297 = vmatprep.subr.bf16.mxu0 0
  %2298 = vmatpush1.bf16.msra.mxu0 %v2256
  %2299 = vmatprep.subr.bf16.mxu0 0
  %2300 = vmatpush1.bf16.msra.mxu0 %v2257
  %2301 = vmatprep.subr.bf16.mxu0 0
  %2302 = vmatpush1.bf16.msra.mxu0 %v2258
  %2303 = vmatprep.subr.bf16.mxu0 0
  %2304 = vmatpush1.bf16.msra.mxu0 %v2259
  %2305 = vmatprep.subr.bf16.mxu0 0
  %2306 = vmatpush1.bf16.msra.mxu0 %v2260
  %2307 = vmatprep.subr.bf16.mxu0 0
  %2308 = vmatpush1.bf16.msra.mxu0 %v2261
  %2309 = vmatprep.subr.bf16.mxu0 0
  %2310 = vmatpush1.bf16.msra.mxu0 %v2262
  %2311 = vmatprep.mubr.bf16.mxu0 %v2176
  %2312 = vmatmul.mubr.bf16.gmra.mrb[0].mxu0 %v2175
  %v2313 = vpop.f32.mrb[0].mxu0
  %v2314 = vadd.f32 0.0, %v2313
  %v2315 = vpop.f32.mrb[0].mxu0
  %v2316 = vpop.f32.mrb[0].mxu0
  %v2317 = vadd.f32 0.0, %v2316
  %v2318 = vpop.f32.mrb[0].mxu0
  %2319 = vmatprep.mubr.bf16.mxu0 %v2178
  %2320 = vmatmul.mubr.bf16.gmra.mrb[0].mxu0 %v2177
  %v2321 = vpop.f32.mrb[0].mxu0
  %v2322 = vadd.f32 0.0, %v2321
  %v2323 = vpop.f32.mrb[0].mxu0
  %v2324 = vpop.f32.mrb[0].mxu0
  %v2325 = vadd.f32 0.0, %v2324
  %v2326 = vpop.f32.mrb[0].mxu0
  %2327 = vdwg.mxu0
  %v2328 = vadd.f32 %v2111, %v2314
  %v2329 = vadd.f32 %v2114, %v2317
  %v2330 = vadd.f32 %v2119, %v2322
  %v2331 = vadd.f32 %v2122, %v2325
  %s2332 = scalar_lea.vmem %s0, 224
  %v2333 = vld [vmem:[%s2332] sm:$0xff]
  %v2334 = vld [vmem:[%s2332 + $0x8] sm:$0xff]
  %v2335 = vld [vmem:[%s2332 + $0x10] sm:$0xff]
  %v2336 = vld [vmem:[%s2332 + $0x18] sm:$0xff]
  %s2337 = scalar_lea.vmem %s1, 1408
  %v2338 = vld [vmem:[%s2337] sm:$0xf]
  %v2339 = vld [vmem:[%s2337 + $0x4] sm:$0xf]
  %v2340 = vld [vmem:[%s2337 + $0x8] sm:$0xf]
  %v2341 = vld [vmem:[%s2337 + $0xc] sm:$0xf]
  %v2342 = vld [vmem:[%s2337 + $0x10] sm:$0xf]
  %v2343 = vld [vmem:[%s2337 + $0x14] sm:$0xf]
  %v2344 = vld [vmem:[%s2337 + $0x18] sm:$0xf]
  %v2345 = vld [vmem:[%s2337 + $0x1c] sm:$0xf]
  %v2346 = vld [vmem:[%s2337 + $0x20] sm:$0xf]
  %v2347 = vld [vmem:[%s2337 + $0x24] sm:$0xf]
  %v2348 = vld [vmem:[%s2337 + $0x28] sm:$0xf]
  %v2349 = vld [vmem:[%s2337 + $0x2c] sm:$0xf]
  %v2350 = vld [vmem:[%s2337 + $0x30] sm:$0xf]
  %v2351 = vld [vmem:[%s2337 + $0x34] sm:$0xf]
  %v2352 = vld [vmem:[%s2337 + $0x38] sm:$0xf]
  %v2353 = vld [vmem:[%s2337 + $0x3c] sm:$0xf]
  %v2354 = vld [vmem:[%s2337 + $0x40] sm:$0xf]
  %v2355 = vld [vmem:[%s2337 + $0x44] sm:$0xf]
  %v2356 = vld [vmem:[%s2337 + $0x48] sm:$0xf]
  %v2357 = vld [vmem:[%s2337 + $0x4c] sm:$0xf]
  %v2358 = vld [vmem:[%s2337 + $0x50] sm:$0xf]
  %v2359 = vld [vmem:[%s2337 + $0x54] sm:$0xf]
  %v2360 = vld [vmem:[%s2337 + $0x58] sm:$0xf]
  %v2361 = vld [vmem:[%s2337 + $0x5c] sm:$0xf]
  %v2362 = vld [vmem:[%s2337 + $0x60] sm:$0xf]
  %v2363 = vld [vmem:[%s2337 + $0x64] sm:$0xf]
  %v2364 = vld [vmem:[%s2337 + $0x68] sm:$0xf]
  %v2365 = vld [vmem:[%s2337 + $0x6c] sm:$0xf]
  %v2366 = vld [vmem:[%s2337 + $0x70] sm:$0xf]
  %v2367 = vld [vmem:[%s2337 + $0x74] sm:$0xf]
  %v2368 = vld [vmem:[%s2337 + $0x78] sm:$0xf]
  %v2369 = vld [vmem:[%s2337 + $0x7c] sm:$0xf]
  %v2374 = vunpack.c.l.b16 %v2333
  %v2375 = vunpack.c.h.b16 %v2333
  %v2376 = vunpack.c.l.b16 %v2334
  %v2377 = vunpack.c.h.b16 %v2334
  %v2378 = vunpack.c.l.b16 %v2335
  %v2379 = vunpack.c.h.b16 %v2335
  %v2380 = vunpack.c.l.b16 %v2336
  %v2381 = vunpack.c.h.b16 %v2336
  %v2382 = vpack.c.b16 %v2376, %v2374
  %v2383 = vpack.c.b16 %v2377, %v2375
  %v2384 = vpack.c.b16 %v2380, %v2378
  %v2385 = vpack.c.b16 %v2381, %v2379
  %v2422 = vunpack.c.l.b16 %v2338
  %v2423 = vunpack.c.l.b16 %v2339
  %v2424 = vunpack.c.l.b16 %v2340
  %v2425 = vunpack.c.l.b16 %v2341
  %v2426 = vunpack.c.l.b16 %v2342
  %v2427 = vunpack.c.l.b16 %v2343
  %v2428 = vunpack.c.l.b16 %v2344
  %v2429 = vunpack.c.l.b16 %v2345
  %v2430 = vunpack.c.l.b16 %v2346
  %v2431 = vunpack.c.l.b16 %v2347
  %v2432 = vunpack.c.l.b16 %v2348
  %v2433 = vunpack.c.l.b16 %v2349
  %v2434 = vunpack.c.l.b16 %v2350
  %v2435 = vunpack.c.l.b16 %v2351
  %v2436 = vunpack.c.l.b16 %v2352
  %v2437 = vunpack.c.l.b16 %v2353
  %v2438 = vunpack.c.l.b16 %v2354
  %v2439 = vunpack.c.l.b16 %v2355
  %v2440 = vunpack.c.l.b16 %v2356
  %v2441 = vunpack.c.l.b16 %v2357
  %v2442 = vunpack.c.l.b16 %v2358
  %v2443 = vunpack.c.l.b16 %v2359
  %v2444 = vunpack.c.l.b16 %v2360
  %v2445 = vunpack.c.l.b16 %v2361
  %v2446 = vunpack.c.l.b16 %v2362
  %v2447 = vunpack.c.l.b16 %v2363
  %v2448 = vunpack.c.l.b16 %v2364
  %v2449 = vunpack.c.l.b16 %v2365
  %v2450 = vunpack.c.l.b16 %v2366
  %v2451 = vunpack.c.l.b16 %v2367
  %v2452 = vunpack.c.l.b16 %v2368
  %v2453 = vunpack.c.l.b16 %v2369
  %v2454 = vpack.c.b16 %v2423, %v2422
  %v2455 = vpack.c.b16 %v2425, %v2424
  %v2456 = vpack.c.b16 %v2427, %v2426
  %v2457 = vpack.c.b16 %v2429, %v2428
  %v2458 = vpack.c.b16 %v2431, %v2430
  %v2459 = vpack.c.b16 %v2433, %v2432
  %v2460 = vpack.c.b16 %v2435, %v2434
  %v2461 = vpack.c.b16 %v2437, %v2436
  %v2462 = vpack.c.b16 %v2439, %v2438
  %v2463 = vpack.c.b16 %v2441, %v2440
  %v2464 = vpack.c.b16 %v2443, %v2442
  %v2465 = vpack.c.b16 %v2445, %v2444
  %v2466 = vpack.c.b16 %v2447, %v2446
  %v2467 = vpack.c.b16 %v2449, %v2448
  %v2468 = vpack.c.b16 %v2451, %v2450
  %v2469 = vpack.c.b16 %v2453, %v2452
  %2486 = vmatprep.subr.bf16.mxu0 0
  %2487 = vmatpush1.bf16.msra.mxu0 %v2454
  %2488 = vmatprep.subr.bf16.mxu0 0
  %2489 = vmatpush1.bf16.msra.mxu0 %v2455
  %2490 = vmatprep.subr.bf16.mxu0 0
  %2491 = vmatpush1.bf16.msra.mxu0 %v2456
  %2492 = vmatprep.subr.bf16.mxu0 0
  %2493 = vmatpush1.bf16.msra.mxu0 %v2457
  %2494 = vmatprep.subr.bf16.mxu0 0
  %2495 = vmatpush1.bf16.msra.mxu0 %v2458
  %2496 = vmatprep.subr.bf16.mxu0 0
  %2497 = vmatpush1.bf16.msra.mxu0 %v2459
  %2498 = vmatprep.subr.bf16.mxu0 0
  %2499 = vmatpush1.bf16.msra.mxu0 %v2460
  %2500 = vmatprep.subr.bf16.mxu0 0
  %2501 = vmatpush1.bf16.msra.mxu0 %v2461
  %2502 = vmatprep.subr.bf16.mxu0 0
  %2503 = vmatpush1.bf16.msra.mxu0 %v2462
  %2504 = vmatprep.subr.bf16.mxu0 0
  %2505 = vmatpush1.bf16.msra.mxu0 %v2463
  %2506 = vmatprep.subr.bf16.mxu0 0
  %2507 = vmatpush1.bf16.msra.mxu0 %v2464
  %2508 = vmatprep.subr.bf16.mxu0 0
  %2509 = vmatpush1.bf16.msra.mxu0 %v2465
  %2510 = vmatprep.subr.bf16.mxu0 0
  %2511 = vmatpush1.bf16.msra.mxu0 %v2466
  %2512 = vmatprep.subr.bf16.mxu0 0
  %2513 = vmatpush1.bf16.msra.mxu0 %v2467
  %2514 = vmatprep.subr.bf16.mxu0 0
  %2515 = vmatpush1.bf16.msra.mxu0 %v2468
  %2516 = vmatprep.subr.bf16.mxu0 0
  %2517 = vmatpush1.bf16.msra.mxu0 %v2469
  %2518 = vmatprep.mubr.bf16.mxu0 %v2383
  %2519 = vmatmul.mubr.bf16.gmra.mrb[0].mxu0 %v2382
  %v2520 = vpop.f32.mrb[0].mxu0
  %v2521 = vadd.f32 0.0, %v2520
  %v2522 = vpop.f32.mrb[0].mxu0
  %v2523 = vpop.f32.mrb[0].mxu0
  %v2524 = vadd.f32 0.0, %v2523
  %v2525 = vpop.f32.mrb[0].mxu0
  %2526 = vmatprep.mubr.bf16.mxu0 %v2385
  %2527 = vmatmul.mubr.bf16.gmra.mrb[0].mxu0 %v2384
  %v2528 = vpop.f32.mrb[0].mxu0
  %v2529 = vadd.f32 0.0, %v2528
  %v2530 = vpop.f32.mrb[0].mxu0
  %v2531 = vpop.f32.mrb[0].mxu0
  %v2532 = vadd.f32 0.0, %v2531
  %v2533 = vpop.f32.mrb[0].mxu0
  %2534 = vdwg.mxu0
  %v2535 = vadd.f32 %v2328, %v2521
  %v2536 = vadd.f32 %v2329, %v2524
  %v2537 = vadd.f32 %v2330, %v2529
  %v2538 = vadd.f32 %v2331, %v2532
  %v2539 = vld [vmem:[%s2] sm:$0x1]
  %v2541 = vlaneseq
  %v2542 = vshrl.u32 %v2541, 7
  %v2543 = vsub.s32 0, %v2542
  %v2544 = vrot.slane %v2539, %v2543
  %v2546 = vadd.f32 %v2535, %v2544
  %v2547 = vadd.f32 %v2536, %v2544
  %v2548 = vadd.f32 %v2537, %v2544
  %v2549 = vadd.f32 %v2538, %v2544
  %v2550 = vmax.f32 %v2546, 0.0
  %v2551 = vmax.f32 %v2547, 0.0
  %v2552 = vmax.f32 %v2548, 0.0
  %v2553 = vmax.f32 %v2549, 0.0
  %v2554 = vpack.c.bf16 %v2551, %v2550
  %v2555 = vpack.c.bf16 %v2553, %v2552
  %v2558 = vunpack.c.l.b16 %v2554
  %v2559 = vunpack.c.h.b16 %v2554
  %v2560 = vunpack.c.l.b16 %v2555
  %v2561 = vunpack.c.h.b16 %v2555
  %v2562 = vpack.c.b16 %v2558, %v2558
  %v2563 = vpack.c.b16 %v2559, %v2559
  %v2564 = vpack.c.b16 %v2560, %v2560
  %v2565 = vpack.c.b16 %v2561, %v2561
  %2570 = vst [vmem:[%s3 + $0x8] sm:$0xf] %v2562
  %2571 = vst [vmem:[%s3 + $0x18] sm:$0xf] %v2563
  %2572 = vst [vmem:[%s3 + $0x28] sm:$0xf] %v2564
  %2573 = vst [vmem:[%s3 + $0x38] sm:$0xf] %v2565
  %v2574 = vld [vmem:[%s626] sm:$0xff]
  %v2575 = vld [vmem:[%s626 + $0x8] sm:$0xff]
  %v2576 = vld [vmem:[%s626 + $0x10] sm:$0xff]
  %v2577 = vld [vmem:[%s626 + $0x18] sm:$0xff]
  %s2578 = scalar_lea.vmem %s1, 1536
  %v2579 = vld [vmem:[%s2578] sm:$0xf]
  %v2580 = vld [vmem:[%s2578 + $0x4] sm:$0xf]
  %v2581 = vld [vmem:[%s2578 + $0x8] sm:$0xf]
  %v2582 = vld [vmem:[%s2578 + $0xc] sm:$0xf]
  %v2583 = vld [vmem:[%s2578 + $0x10] sm:$0xf]
  %v2584 = vld [vmem:[%s2578 + $0x14] sm:$0xf]
  %v2585 = vld [vmem:[%s2578 + $0x18] sm:$0xf]
  %v2586 = vld [vmem:[%s2578 + $0x1c] sm:$0xf]
  %v2587 = vld [vmem:[%s2578 + $0x20] sm:$0xf]
  %v2588 = vld [vmem:[%s2578 + $0x24] sm:$0xf]
  %v2589 = vld [vmem:[%s2578 + $0x28] sm:$0xf]
  %v2590 = vld [vmem:[%s2578 + $0x2c] sm:$0xf]
  %v2591 = vld [vmem:[%s2578 + $0x30] sm:$0xf]
  %v2592 = vld [vmem:[%s2578 + $0x34] sm:$0xf]
  %v2593 = vld [vmem:[%s2578 + $0x38] sm:$0xf]
  %v2594 = vld [vmem:[%s2578 + $0x3c] sm:$0xf]
  %v2595 = vld [vmem:[%s2578 + $0x40] sm:$0xf]
  %v2596 = vld [vmem:[%s2578 + $0x44] sm:$0xf]
  %v2597 = vld [vmem:[%s2578 + $0x48] sm:$0xf]
  %v2598 = vld [vmem:[%s2578 + $0x4c] sm:$0xf]
  %v2599 = vld [vmem:[%s2578 + $0x50] sm:$0xf]
  %v2600 = vld [vmem:[%s2578 + $0x54] sm:$0xf]
  %v2601 = vld [vmem:[%s2578 + $0x58] sm:$0xf]
  %v2602 = vld [vmem:[%s2578 + $0x5c] sm:$0xf]
  %v2603 = vld [vmem:[%s2578 + $0x60] sm:$0xf]
  %v2604 = vld [vmem:[%s2578 + $0x64] sm:$0xf]
  %v2605 = vld [vmem:[%s2578 + $0x68] sm:$0xf]
  %v2606 = vld [vmem:[%s2578 + $0x6c] sm:$0xf]
  %v2607 = vld [vmem:[%s2578 + $0x70] sm:$0xf]
  %v2608 = vld [vmem:[%s2578 + $0x74] sm:$0xf]
  %v2609 = vld [vmem:[%s2578 + $0x78] sm:$0xf]
  %v2610 = vld [vmem:[%s2578 + $0x7c] sm:$0xf]
  %v2611 = vld [vmem:[%s1479] sm:$0xff]
  %v2612 = vld [vmem:[%s1479 + $0x8] sm:$0xff]
  %v2613 = vld [vmem:[%s1479 + $0x10] sm:$0xff]
  %v2614 = vld [vmem:[%s1479 + $0x18] sm:$0xff]
  %s2615 = scalar_lea.vmem %s1, 1664
  %v2616 = vld [vmem:[%s2615] sm:$0xf]
  %v2617 = vld [vmem:[%s2615 + $0x4] sm:$0xf]
  %v2618 = vld [vmem:[%s2615 + $0x8] sm:$0xf]
  %v2619 = vld [vmem:[%s2615 + $0xc] sm:$0xf]
  %v2620 = vld [vmem:[%s2615 + $0x10] sm:$0xf]
  %v2621 = vld [vmem:[%s2615 + $0x14] sm:$0xf]
  %v2622 = vld [vmem:[%s2615 + $0x18] sm:$0xf]
  %v2623 = vld [vmem:[%s2615 + $0x1c] sm:$0xf]
  %v2624 = vld [vmem:[%s2615 + $0x20] sm:$0xf]
  %v2625 = vld [vmem:[%s2615 + $0x24] sm:$0xf]
  %v2626 = vld [vmem:[%s2615 + $0x28] sm:$0xf]
  %v2627 = vld [vmem:[%s2615 + $0x2c] sm:$0xf]
  %v2628 = vld [vmem:[%s2615 + $0x30] sm:$0xf]
  %v2629 = vld [vmem:[%s2615 + $0x34] sm:$0xf]
  %v2630 = vld [vmem:[%s2615 + $0x38] sm:$0xf]
  %v2631 = vld [vmem:[%s2615 + $0x3c] sm:$0xf]
  %v2632 = vld [vmem:[%s2615 + $0x40] sm:$0xf]
  %v2633 = vld [vmem:[%s2615 + $0x44] sm:$0xf]
  %v2634 = vld [vmem:[%s2615 + $0x48] sm:$0xf]
  %v2635 = vld [vmem:[%s2615 + $0x4c] sm:$0xf]
  %v2636 = vld [vmem:[%s2615 + $0x50] sm:$0xf]
  %v2637 = vld [vmem:[%s2615 + $0x54] sm:$0xf]
  %v2638 = vld [vmem:[%s2615 + $0x58] sm:$0xf]
  %v2639 = vld [vmem:[%s2615 + $0x5c] sm:$0xf]
  %v2640 = vld [vmem:[%s2615 + $0x60] sm:$0xf]
  %v2641 = vld [vmem:[%s2615 + $0x64] sm:$0xf]
  %v2642 = vld [vmem:[%s2615 + $0x68] sm:$0xf]
  %v2643 = vld [vmem:[%s2615 + $0x6c] sm:$0xf]
  %v2644 = vld [vmem:[%s2615 + $0x70] sm:$0xf]
  %v2645 = vld [vmem:[%s2615 + $0x74] sm:$0xf]
  %v2646 = vld [vmem:[%s2615 + $0x78] sm:$0xf]
  %v2647 = vld [vmem:[%s2615 + $0x7c] sm:$0xf]
  %v2652 = vunpack.c.l.b16 %v2611
  %v2653 = vunpack.c.h.b16 %v2611
  %v2654 = vunpack.c.l.b16 %v2612
  %v2655 = vunpack.c.h.b16 %v2612
  %v2656 = vunpack.c.l.b16 %v2613
  %v2657 = vunpack.c.h.b16 %v2613
  %v2658 = vunpack.c.l.b16 %v2614
  %v2659 = vunpack.c.h.b16 %v2614
  %v2660 = vpack.c.b16 %v2654, %v2652
  %v2661 = vpack.c.b16 %v2655, %v2653
  %v2662 = vpack.c.b16 %v2658, %v2656
  %v2663 = vpack.c.b16 %v2659, %v2657
  %v2700 = vunpack.c.l.b16 %v2616
  %v2701 = vunpack.c.l.b16 %v2617
  %v2702 = vunpack.c.l.b16 %v2618
  %v2703 = vunpack.c.l.b16 %v2619
  %v2704 = vunpack.c.l.b16 %v2620
  %v2705 = vunpack.c.l.b16 %v2621
  %v2706 = vunpack.c.l.b16 %v2622
  %v2707 = vunpack.c.l.b16 %v2623
  %v2708 = vunpack.c.l.b16 %v2624
  %v2709 = vunpack.c.l.b16 %v2625
  %v2710 = vunpack.c.l.b16 %v2626
  %v2711 = vunpack.c.l.b16 %v2627
  %v2712 = vunpack.c.l.b16 %v2628
  %v2713 = vunpack.c.l.b16 %v2629
  %v2714 = vunpack.c.l.b16 %v2630
  %v2715 = vunpack.c.l.b16 %v2631
  %v2716 = vunpack.c.l.b16 %v2632
  %v2717 = vunpack.c.l.b16 %v2633
  %v2718 = vunpack.c.l.b16 %v2634
  %v2719 = vunpack.c.l.b16 %v2635
  %v2720 = vunpack.c.l.b16 %v2636
  %v2721 = vunpack.c.l.b16 %v2637
  %v2722 = vunpack.c.l.b16 %v2638
  %v2723 = vunpack.c.l.b16 %v2639
  %v2724 = vunpack.c.l.b16 %v2640
  %v2725 = vunpack.c.l.b16 %v2641
  %v2726 = vunpack.c.l.b16 %v2642
  %v2727 = vunpack.c.l.b16 %v2643
  %v2728 = vunpack.c.l.b16 %v2644
  %v2729 = vunpack.c.l.b16 %v2645
  %v2730 = vunpack.c.l.b16 %v2646
  %v2731 = vunpack.c.l.b16 %v2647
  %v2732 = vpack.c.b16 %v2701, %v2700
  %v2733 = vpack.c.b16 %v2703, %v2702
  %v2734 = vpack.c.b16 %v2705, %v2704
  %v2735 = vpack.c.b16 %v2707, %v2706
  %v2736 = vpack.c.b16 %v2709, %v2708
  %v2737 = vpack.c.b16 %v2711, %v2710
  %v2738 = vpack.c.b16 %v2713, %v2712
  %v2739 = vpack.c.b16 %v2715, %v2714
  %v2740 = vpack.c.b16 %v2717, %v2716
  %v2741 = vpack.c.b16 %v2719, %v2718
  %v2742 = vpack.c.b16 %v2721, %v2720
  %v2743 = vpack.c.b16 %v2723, %v2722
  %v2744 = vpack.c.b16 %v2725, %v2724
  %v2745 = vpack.c.b16 %v2727, %v2726
  %v2746 = vpack.c.b16 %v2729, %v2728
  %v2747 = vpack.c.b16 %v2731, %v2730
  %2764 = vmatprep.subr.bf16.mxu0 0
  %2765 = vmatpush1.bf16.msra.mxu0 %v2732
  %2766 = vmatprep.subr.bf16.mxu0 0
  %2767 = vmatpush1.bf16.msra.mxu0 %v2733
  %2768 = vmatprep.subr.bf16.mxu0 0
  %2769 = vmatpush1.bf16.msra.mxu0 %v2734
  %2770 = vmatprep.subr.bf16.mxu0 0
  %2771 = vmatpush1.bf16.msra.mxu0 %v2735
  %2772 = vmatprep.subr.bf16.mxu0 0
  %2773 = vmatpush1.bf16.msra.mxu0 %v2736
  %2774 = vmatprep.subr.bf16.mxu0 0
  %2775 = vmatpush1.bf16.msra.mxu0 %v2737
  %2776 = vmatprep.subr.bf16.mxu0 0
  %2777 = vmatpush1.bf16.msra.mxu0 %v2738
  %2778 = vmatprep.subr.bf16.mxu0 0
  %2779 = vmatpush1.bf16.msra.mxu0 %v2739
  %2780 = vmatprep.subr.bf16.mxu0 0
  %2781 = vmatpush1.bf16.msra.mxu0 %v2740
  %2782 = vmatprep.subr.bf16.mxu0 0
  %2783 = vmatpush1.bf16.msra.mxu0 %v2741
  %2784 = vmatprep.subr.bf16.mxu0 0
  %2785 = vmatpush1.bf16.msra.mxu0 %v2742
  %2786 = vmatprep.subr.bf16.mxu0 0
  %2787 = vmatpush1.bf16.msra.mxu0 %v2743
  %2788 = vmatprep.subr.bf16.mxu0 0
  %2789 = vmatpush1.bf16.msra.mxu0 %v2744
  %2790 = vmatprep.subr.bf16.mxu0 0
  %2791 = vmatpush1.bf16.msra.mxu0 %v2745
  %2792 = vmatprep.subr.bf16.mxu0 0
  %2793 = vmatpush1.bf16.msra.mxu0 %v2746
  %2794 = vmatprep.subr.bf16.mxu0 0
  %2795 = vmatpush1.bf16.msra.mxu0 %v2747
  %2796 = vmatprep.mubr.bf16.mxu0 %v2661
  %2797 = vmatmul.mubr.bf16.gmra.mrb[0].mxu0 %v2660
  %v2798 = vpop.f32.mrb[0].mxu0
  %v2799 = vadd.f32 0.0, %v2798
  %v2800 = vpop.f32.mrb[0].mxu0
  %v2801 = vpop.f32.mrb[0].mxu0
  %v2802 = vadd.f32 0.0, %v2801
  %v2803 = vpop.f32.mrb[0].mxu0
  %2804 = vmatprep.mubr.bf16.mxu0 %v2663
  %2805 = vmatmul.mubr.bf16.gmra.mrb[0].mxu0 %v2662
  %v2806 = vpop.f32.mrb[0].mxu0
  %v2807 = vadd.f32 0.0, %v2806
  %v2808 = vpop.f32.mrb[0].mxu0
  %v2809 = vpop.f32.mrb[0].mxu0
  %v2810 = vadd.f32 0.0, %v2809
  %v2811 = vpop.f32.mrb[0].mxu0
  %2812 = vdwg.mxu0
  %v2817 = vunpack.c.l.b16 %v2574
  %v2818 = vunpack.c.h.b16 %v2574
  %v2819 = vunpack.c.l.b16 %v2575
  %v2820 = vunpack.c.h.b16 %v2575
  %v2821 = vunpack.c.l.b16 %v2576
  %v2822 = vunpack.c.h.b16 %v2576
  %v2823 = vunpack.c.l.b16 %v2577
  %v2824 = vunpack.c.h.b16 %v2577
  %v2825 = vpack.c.b16 %v2819, %v2817
  %v2826 = vpack.c.b16 %v2820, %v2818
  %v2827 = vpack.c.b16 %v2823, %v2821
  %v2828 = vpack.c.b16 %v2824, %v2822
  %v2865 = vunpack.c.l.b16 %v2579
  %v2866 = vunpack.c.l.b16 %v2580
  %v2867 = vunpack.c.l.b16 %v2581
  %v2868 = vunpack.c.l.b16 %v2582
  %v2869 = vunpack.c.l.b16 %v2583
  %v2870 = vunpack.c.l.b16 %v2584
  %v2871 = vunpack.c.l.b16 %v2585
  %v2872 = vunpack.c.l.b16 %v2586
  %v2873 = vunpack.c.l.b16 %v2587
  %v2874 = vunpack.c.l.b16 %v2588
  %v2875 = vunpack.c.l.b16 %v2589
  %v2876 = vunpack.c.l.b16 %v2590
  %v2877 = vunpack.c.l.b16 %v2591
  %v2878 = vunpack.c.l.b16 %v2592
  %v2879 = vunpack.c.l.b16 %v2593
  %v2880 = vunpack.c.l.b16 %v2594
  %v2881 = vunpack.c.l.b16 %v2595
  %v2882 = vunpack.c.l.b16 %v2596
  %v2883 = vunpack.c.l.b16 %v2597
  %v2884 = vunpack.c.l.b16 %v2598
  %v2885 = vunpack.c.l.b16 %v2599
  %v2886 = vunpack.c.l.b16 %v2600
  %v2887 = vunpack.c.l.b16 %v2601
  %v2888 = vunpack.c.l.b16 %v2602
  %v2889 = vunpack.c.l.b16 %v2603
  %v2890 = vunpack.c.l.b16 %v2604
  %v2891 = vunpack.c.l.b16 %v2605
  %v2892 = vunpack.c.l.b16 %v2606
  %v2893 = vunpack.c.l.b16 %v2607
  %v2894 = vunpack.c.l.b16 %v2608
  %v2895 = vunpack.c.l.b16 %v2609
  %v2896 = vunpack.c.l.b16 %v2610
  %v2897 = vpack.c.b16 %v2866, %v2865
  %v2898 = vpack.c.b16 %v2868, %v2867
  %v2899 = vpack.c.b16 %v2870, %v2869
  %v2900 = vpack.c.b16 %v2872, %v2871
  %v2901 = vpack.c.b16 %v2874, %v2873
  %v2902 = vpack.c.b16 %v2876, %v2875
  %v2903 = vpack.c.b16 %v2878, %v2877
  %v2904 = vpack.c.b16 %v2880, %v2879
  %v2905 = vpack.c.b16 %v2882, %v2881
  %v2906 = vpack.c.b16 %v2884, %v2883
  %v2907 = vpack.c.b16 %v2886, %v2885
  %v2908 = vpack.c.b16 %v2888, %v2887
  %v2909 = vpack.c.b16 %v2890, %v2889
  %v2910 = vpack.c.b16 %v2892, %v2891
  %v2911 = vpack.c.b16 %v2894, %v2893
  %v2912 = vpack.c.b16 %v2896, %v2895
  %2929 = vmatprep.subr.bf16.mxu0 0
  %2930 = vmatpush1.bf16.msra.mxu0 %v2897
  %2931 = vmatprep.subr.bf16.mxu0 0
  %2932 = vmatpush1.bf16.msra.mxu0 %v2898
  %2933 = vmatprep.subr.bf16.mxu0 0
  %2934 = vmatpush1.bf16.msra.mxu0 %v2899
  %2935 = vmatprep.subr.bf16.mxu0 0
  %2936 = vmatpush1.bf16.msra.mxu0 %v2900
  %2937 = vmatprep.subr.bf16.mxu0 0
  %2938 = vmatpush1.bf16.msra.mxu0 %v2901
  %2939 = vmatprep.subr.bf16.mxu0 0
  %2940 = vmatpush1.bf16.msra.mxu0 %v2902
  %2941 = vmatprep.subr.bf16.mxu0 0
  %2942 = vmatpush1.bf16.msra.mxu0 %v2903
  %2943 = vmatprep.subr.bf16.mxu0 0
  %2944 = vmatpush1.bf16.msra.mxu0 %v2904
  %2945 = vmatprep.subr.bf16.mxu0 0
  %2946 = vmatpush1.bf16.msra.mxu0 %v2905
  %2947 = vmatprep.subr.bf16.mxu0 0
  %2948 = vmatpush1.bf16.msra.mxu0 %v2906
  %2949 = vmatprep.subr.bf16.mxu0 0
  %2950 = vmatpush1.bf16.msra.mxu0 %v2907
  %2951 = vmatprep.subr.bf16.mxu0 0
  %2952 = vmatpush1.bf16.msra.mxu0 %v2908
  %2953 = vmatprep.subr.bf16.mxu0 0
  %2954 = vmatpush1.bf16.msra.mxu0 %v2909
  %2955 = vmatprep.subr.bf16.mxu0 0
  %2956 = vmatpush1.bf16.msra.mxu0 %v2910
  %2957 = vmatprep.subr.bf16.mxu0 0
  %2958 = vmatpush1.bf16.msra.mxu0 %v2911
  %2959 = vmatprep.subr.bf16.mxu0 0
  %2960 = vmatpush1.bf16.msra.mxu0 %v2912
  %2961 = vmatprep.mubr.bf16.mxu0 %v2826
  %2962 = vmatmul.mubr.bf16.gmra.mrb[0].mxu0 %v2825
  %v2963 = vpop.f32.mrb[0].mxu0
  %v2964 = vadd.f32 %v2799, %v2963
  %v2965 = vpop.f32.mrb[0].mxu0
  %v2966 = vpop.f32.mrb[0].mxu0
  %v2967 = vadd.f32 %v2802, %v2966
  %v2968 = vpop.f32.mrb[0].mxu0
  %2969 = vmatprep.mubr.bf16.mxu0 %v2828
  %2970 = vmatmul.mubr.bf16.gmra.mrb[0].mxu0 %v2827
  %v2971 = vpop.f32.mrb[0].mxu0
  %v2972 = vadd.f32 %v2807, %v2971
  %v2973 = vpop.f32.mrb[0].mxu0
  %v2974 = vpop.f32.mrb[0].mxu0
  %v2975 = vadd.f32 %v2810, %v2974
  %v2976 = vpop.f32.mrb[0].mxu0
  %2977 = vdwg.mxu0
  %v2978 = vld [vmem:[%s2332] sm:$0xff]
  %v2979 = vld [vmem:[%s2332 + $0x8] sm:$0xff]
  %v2980 = vld [vmem:[%s2332 + $0x10] sm:$0xff]
  %v2981 = vld [vmem:[%s2332 + $0x18] sm:$0xff]
  %s2982 = scalar_lea.vmem %s1, 1792
  %v2983 = vld [vmem:[%s2982] sm:$0xf]
  %v2984 = vld [vmem:[%s2982 + $0x4] sm:$0xf]
  %v2985 = vld [vmem:[%s2982 + $0x8] sm:$0xf]
  %v2986 = vld [vmem:[%s2982 + $0xc] sm:$0xf]
  %v2987 = vld [vmem:[%s2982 + $0x10] sm:$0xf]
  %v2988 = vld [vmem:[%s2982 + $0x14] sm:$0xf]
  %v2989 = vld [vmem:[%s2982 + $0x18] sm:$0xf]
  %v2990 = vld [vmem:[%s2982 + $0x1c] sm:$0xf]
  %v2991 = vld [vmem:[%s2982 + $0x20] sm:$0xf]
  %v2992 = vld [vmem:[%s2982 + $0x24] sm:$0xf]
  %v2993 = vld [vmem:[%s2982 + $0x28] sm:$0xf]
  %v2994 = vld [vmem:[%s2982 + $0x2c] sm:$0xf]
  %v2995 = vld [vmem:[%s2982 + $0x30] sm:$0xf]
  %v2996 = vld [vmem:[%s2982 + $0x34] sm:$0xf]
  %v2997 = vld [vmem:[%s2982 + $0x38] sm:$0xf]
  %v2998 = vld [vmem:[%s2982 + $0x3c] sm:$0xf]
  %v2999 = vld [vmem:[%s2982 + $0x40] sm:$0xf]
  %v3000 = vld [vmem:[%s2982 + $0x44] sm:$0xf]
  %v3001 = vld [vmem:[%s2982 + $0x48] sm:$0xf]
  %v3002 = vld [vmem:[%s2982 + $0x4c] sm:$0xf]
  %v3003 = vld [vmem:[%s2982 + $0x50] sm:$0xf]
  %v3004 = vld [vmem:[%s2982 + $0x54] sm:$0xf]
  %v3005 = vld [vmem:[%s2982 + $0x58] sm:$0xf]
  %v3006 = vld [vmem:[%s2982 + $0x5c] sm:$0xf]
  %v3007 = vld [vmem:[%s2982 + $0x60] sm:$0xf]
  %v3008 = vld [vmem:[%s2982 + $0x64] sm:$0xf]
  %v3009 = vld [vmem:[%s2982 + $0x68] sm:$0xf]
  %v3010 = vld [vmem:[%s2982 + $0x6c] sm:$0xf]
  %v3011 = vld [vmem:[%s2982 + $0x70] sm:$0xf]
  %v3012 = vld [vmem:[%s2982 + $0x74] sm:$0xf]
  %v3013 = vld [vmem:[%s2982 + $0x78] sm:$0xf]
  %v3014 = vld [vmem:[%s2982 + $0x7c] sm:$0xf]
  %v3019 = vunpack.c.l.b16 %v2978
  %v3020 = vunpack.c.h.b16 %v2978
  %v3021 = vunpack.c.l.b16 %v2979
  %v3022 = vunpack.c.h.b16 %v2979
  %v3023 = vunpack.c.l.b16 %v2980
  %v3024 = vunpack.c.h.b16 %v2980
  %v3025 = vunpack.c.l.b16 %v2981
  %v3026 = vunpack.c.h.b16 %v2981
  %v3027 = vpack.c.b16 %v3021, %v3019
  %v3028 = vpack.c.b16 %v3022, %v3020
  %v3029 = vpack.c.b16 %v3025, %v3023
  %v3030 = vpack.c.b16 %v3026, %v3024
  %v3067 = vunpack.c.l.b16 %v2983
  %v3068 = vunpack.c.l.b16 %v2984
  %v3069 = vunpack.c.l.b16 %v2985
  %v3070 = vunpack.c.l.b16 %v2986
  %v3071 = vunpack.c.l.b16 %v2987
  %v3072 = vunpack.c.l.b16 %v2988
  %v3073 = vunpack.c.l.b16 %v2989
  %v3074 = vunpack.c.l.b16 %v2990
  %v3075 = vunpack.c.l.b16 %v2991
  %v3076 = vunpack.c.l.b16 %v2992
  %v3077 = vunpack.c.l.b16 %v2993
  %v3078 = vunpack.c.l.b16 %v2994
  %v3079 = vunpack.c.l.b16 %v2995
  %v3080 = vunpack.c.l.b16 %v2996
  %v3081 = vunpack.c.l.b16 %v2997
  %v3082 = vunpack.c.l.b16 %v2998
  %v3083 = vunpack.c.l.b16 %v2999
  %v3084 = vunpack.c.l.b16 %v3000
  %v3085 = vunpack.c.l.b16 %v3001
  %v3086 = vunpack.c.l.b16 %v3002
  %v3087 = vunpack.c.l.b16 %v3003
  %v3088 = vunpack.c.l.b16 %v3004
  %v3089 = vunpack.c.l.b16 %v3005
  %v3090 = vunpack.c.l.b16 %v3006
  %v3091 = vunpack.c.l.b16 %v3007
  %v3092 = vunpack.c.l.b16 %v3008
  %v3093 = vunpack.c.l.b16 %v3009
  %v3094 = vunpack.c.l.b16 %v3010
  %v3095 = vunpack.c.l.b16 %v3011
  %v3096 = vunpack.c.l.b16 %v3012
  %v3097 = vunpack.c.l.b16 %v3013
  %v3098 = vunpack.c.l.b16 %v3014
  %v3099 = vpack.c.b16 %v3068, %v3067
  %v3100 = vpack.c.b16 %v3070, %v3069
  %v3101 = vpack.c.b16 %v3072, %v3071
  %v3102 = vpack.c.b16 %v3074, %v3073
  %v3103 = vpack.c.b16 %v3076, %v3075
  %v3104 = vpack.c.b16 %v3078, %v3077
  %v3105 = vpack.c.b16 %v3080, %v3079
  %v3106 = vpack.c.b16 %v3082, %v3081
  %v3107 = vpack.c.b16 %v3084, %v3083
  %v3108 = vpack.c.b16 %v3086, %v3085
  %v3109 = vpack.c.b16 %v3088, %v3087
  %v3110 = vpack.c.b16 %v3090, %v3089
  %v3111 = vpack.c.b16 %v3092, %v3091
  %v3112 = vpack.c.b16 %v3094, %v3093
  %v3113 = vpack.c.b16 %v3096, %v3095
  %v3114 = vpack.c.b16 %v3098, %v3097
  %3131 = vmatprep.subr.bf16.mxu0 0
  %3132 = vmatpush1.bf16.msra.mxu0 %v3099
  %3133 = vmatprep.subr.bf16.mxu0 0
  %3134 = vmatpush1.bf16.msra.mxu0 %v3100
  %3135 = vmatprep.subr.bf16.mxu0 0
  %3136 = vmatpush1.bf16.msra.mxu0 %v3101
  %3137 = vmatprep.subr.bf16.mxu0 0
  %3138 = vmatpush1.bf16.msra.mxu0 %v3102
  %3139 = vmatprep.subr.bf16.mxu0 0
  %3140 = vmatpush1.bf16.msra.mxu0 %v3103
  %3141 = vmatprep.subr.bf16.mxu0 0
  %3142 = vmatpush1.bf16.msra.mxu0 %v3104
  %3143 = vmatprep.subr.bf16.mxu0 0
  %3144 = vmatpush1.bf16.msra.mxu0 %v3105
  %3145 = vmatprep.subr.bf16.mxu0 0
  %3146 = vmatpush1.bf16.msra.mxu0 %v3106
  %3147 = vmatprep.subr.bf16.mxu0 0
  %3148 = vmatpush1.bf16.msra.mxu0 %v3107
  %3149 = vmatprep.subr.bf16.mxu0 0
  %3150 = vmatpush1.bf16.msra.mxu0 %v3108
  %3151 = vmatprep.subr.bf16.mxu0 0
  %3152 = vmatpush1.bf16.msra.mxu0 %v3109
  %3153 = vmatprep.subr.bf16.mxu0 0
  %3154 = vmatpush1.bf16.msra.mxu0 %v3110
  %3155 = vmatprep.subr.bf16.mxu0 0
  %3156 = vmatpush1.bf16.msra.mxu0 %v3111
  %3157 = vmatprep.subr.bf16.mxu0 0
  %3158 = vmatpush1.bf16.msra.mxu0 %v3112
  %3159 = vmatprep.subr.bf16.mxu0 0
  %3160 = vmatpush1.bf16.msra.mxu0 %v3113
  %3161 = vmatprep.subr.bf16.mxu0 0
  %3162 = vmatpush1.bf16.msra.mxu0 %v3114
  %3163 = vmatprep.mubr.bf16.mxu0 %v3028
  %3164 = vmatmul.mubr.bf16.gmra.mrb[0].mxu0 %v3027
  %v3165 = vpop.f32.mrb[0].mxu0
  %v3166 = vadd.f32 0.0, %v3165
  %v3167 = vpop.f32.mrb[0].mxu0
  %v3168 = vpop.f32.mrb[0].mxu0
  %v3169 = vadd.f32 0.0, %v3168
  %v3170 = vpop.f32.mrb[0].mxu0
  %3171 = vmatprep.mubr.bf16.mxu0 %v3030
  %3172 = vmatmul.mubr.bf16.gmra.mrb[0].mxu0 %v3029
  %v3173 = vpop.f32.mrb[0].mxu0
  %v3174 = vadd.f32 0.0, %v3173
  %v3175 = vpop.f32.mrb[0].mxu0
  %v3176 = vpop.f32.mrb[0].mxu0
  %v3177 = vadd.f32 0.0, %v3176
  %v3178 = vpop.f32.mrb[0].mxu0
  %3179 = vdwg.mxu0
  %v3180 = vadd.f32 %v2964, %v3166
  %v3181 = vadd.f32 %v2967, %v3169
  %v3182 = vadd.f32 %v2972, %v3174
  %v3183 = vadd.f32 %v2975, %v3177
  %s3184 = scalar_lea.vmem %s0, 256
  %v3185 = vld [vmem:[%s3184] sm:$0xff]
  %v3186 = vld [vmem:[%s3184 + $0x8] sm:$0xff]
  %v3187 = vld [vmem:[%s3184 + $0x10] sm:$0xff]
  %v3188 = vld [vmem:[%s3184 + $0x18] sm:$0xff]
  %s3189 = scalar_lea.vmem %s1, 1920
  %v3190 = vld [vmem:[%s3189] sm:$0xf]
  %v3191 = vld [vmem:[%s3189 + $0x4] sm:$0xf]
  %v3192 = vld [vmem:[%s3189 + $0x8] sm:$0xf]
  %v3193 = vld [vmem:[%s3189 + $0xc] sm:$0xf]
  %v3194 = vld [vmem:[%s3189 + $0x10] sm:$0xf]
  %v3195 = vld [vmem:[%s3189 + $0x14] sm:$0xf]
  %v3196 = vld [vmem:[%s3189 + $0x18] sm:$0xf]
  %v3197 = vld [vmem:[%s3189 + $0x1c] sm:$0xf]
  %v3198 = vld [vmem:[%s3189 + $0x20] sm:$0xf]
  %v3199 = vld [vmem:[%s3189 + $0x24] sm:$0xf]
  %v3200 = vld [vmem:[%s3189 + $0x28] sm:$0xf]
  %v3201 = vld [vmem:[%s3189 + $0x2c] sm:$0xf]
  %v3202 = vld [vmem:[%s3189 + $0x30] sm:$0xf]
  %v3203 = vld [vmem:[%s3189 + $0x34] sm:$0xf]
  %v3204 = vld [vmem:[%s3189 + $0x38] sm:$0xf]
  %v3205 = vld [vmem:[%s3189 + $0x3c] sm:$0xf]
  %v3206 = vld [vmem:[%s3189 + $0x40] sm:$0xf]
  %v3207 = vld [vmem:[%s3189 + $0x44] sm:$0xf]
  %v3208 = vld [vmem:[%s3189 + $0x48] sm:$0xf]
  %v3209 = vld [vmem:[%s3189 + $0x4c] sm:$0xf]
  %v3210 = vld [vmem:[%s3189 + $0x50] sm:$0xf]
  %v3211 = vld [vmem:[%s3189 + $0x54] sm:$0xf]
  %v3212 = vld [vmem:[%s3189 + $0x58] sm:$0xf]
  %v3213 = vld [vmem:[%s3189 + $0x5c] sm:$0xf]
  %v3214 = vld [vmem:[%s3189 + $0x60] sm:$0xf]
  %v3215 = vld [vmem:[%s3189 + $0x64] sm:$0xf]
  %v3216 = vld [vmem:[%s3189 + $0x68] sm:$0xf]
  %v3217 = vld [vmem:[%s3189 + $0x6c] sm:$0xf]
  %v3218 = vld [vmem:[%s3189 + $0x70] sm:$0xf]
  %v3219 = vld [vmem:[%s3189 + $0x74] sm:$0xf]
  %v3220 = vld [vmem:[%s3189 + $0x78] sm:$0xf]
  %v3221 = vld [vmem:[%s3189 + $0x7c] sm:$0xf]
  %v3226 = vunpack.c.l.b16 %v3185
  %v3227 = vunpack.c.h.b16 %v3185
  %v3228 = vunpack.c.l.b16 %v3186
  %v3229 = vunpack.c.h.b16 %v3186
  %v3230 = vunpack.c.l.b16 %v3187
  %v3231 = vunpack.c.h.b16 %v3187
  %v3232 = vunpack.c.l.b16 %v3188
  %v3233 = vunpack.c.h.b16 %v3188
  %v3234 = vpack.c.b16 %v3228, %v3226
  %v3235 = vpack.c.b16 %v3229, %v3227
  %v3236 = vpack.c.b16 %v3232, %v3230
  %v3237 = vpack.c.b16 %v3233, %v3231
  %v3274 = vunpack.c.l.b16 %v3190
  %v3275 = vunpack.c.l.b16 %v3191
  %v3276 = vunpack.c.l.b16 %v3192
  %v3277 = vunpack.c.l.b16 %v3193
  %v3278 = vunpack.c.l.b16 %v3194
  %v3279 = vunpack.c.l.b16 %v3195
  %v3280 = vunpack.c.l.b16 %v3196
  %v3281 = vunpack.c.l.b16 %v3197
  %v3282 = vunpack.c.l.b16 %v3198
  %v3283 = vunpack.c.l.b16 %v3199
  %v3284 = vunpack.c.l.b16 %v3200
  %v3285 = vunpack.c.l.b16 %v3201
  %v3286 = vunpack.c.l.b16 %v3202
  %v3287 = vunpack.c.l.b16 %v3203
  %v3288 = vunpack.c.l.b16 %v3204
  %v3289 = vunpack.c.l.b16 %v3205
  %v3290 = vunpack.c.l.b16 %v3206
  %v3291 = vunpack.c.l.b16 %v3207
  %v3292 = vunpack.c.l.b16 %v3208
  %v3293 = vunpack.c.l.b16 %v3209
  %v3294 = vunpack.c.l.b16 %v3210
  %v3295 = vunpack.c.l.b16 %v3211
  %v3296 = vunpack.c.l.b16 %v3212
  %v3297 = vunpack.c.l.b16 %v3213
  %v3298 = vunpack.c.l.b16 %v3214
  %v3299 = vunpack.c.l.b16 %v3215
  %v3300 = vunpack.c.l.b16 %v3216
  %v3301 = vunpack.c.l.b16 %v3217
  %v3302 = vunpack.c.l.b16 %v3218
  %v3303 = vunpack.c.l.b16 %v3219
  %v3304 = vunpack.c.l.b16 %v3220
  %v3305 = vunpack.c.l.b16 %v3221
  %v3306 = vpack.c.b16 %v3275, %v3274
  %v3307 = vpack.c.b16 %v3277, %v3276
  %v3308 = vpack.c.b16 %v3279, %v3278
  %v3309 = vpack.c.b16 %v3281, %v3280
  %v3310 = vpack.c.b16 %v3283, %v3282
  %v3311 = vpack.c.b16 %v3285, %v3284
  %v3312 = vpack.c.b16 %v3287, %v3286
  %v3313 = vpack.c.b16 %v3289, %v3288
  %v3314 = vpack.c.b16 %v3291, %v3290
  %v3315 = vpack.c.b16 %v3293, %v3292
  %v3316 = vpack.c.b16 %v3295, %v3294
  %v3317 = vpack.c.b16 %v3297, %v3296
  %v3318 = vpack.c.b16 %v3299, %v3298
  %v3319 = vpack.c.b16 %v3301, %v3300
  %v3320 = vpack.c.b16 %v3303, %v3302
  %v3321 = vpack.c.b16 %v3305, %v3304
  %3338 = vmatprep.subr.bf16.mxu0 0
  %3339 = vmatpush1.bf16.msra.mxu0 %v3306
  %3340 = vmatprep.subr.bf16.mxu0 0
  %3341 = vmatpush1.bf16.msra.mxu0 %v3307
  %3342 = vmatprep.subr.bf16.mxu0 0
  %3343 = vmatpush1.bf16.msra.mxu0 %v3308
  %3344 = vmatprep.subr.bf16.mxu0 0
  %3345 = vmatpush1.bf16.msra.mxu0 %v3309
  %3346 = vmatprep.subr.bf16.mxu0 0
  %3347 = vmatpush1.bf16.msra.mxu0 %v3310
  %3348 = vmatprep.subr.bf16.mxu0 0
  %3349 = vmatpush1.bf16.msra.mxu0 %v3311
  %3350 = vmatprep.subr.bf16.mxu0 0
  %3351 = vmatpush1.bf16.msra.mxu0 %v3312
  %3352 = vmatprep.subr.bf16.mxu0 0
  %3353 = vmatpush1.bf16.msra.mxu0 %v3313
  %3354 = vmatprep.subr.bf16.mxu0 0
  %3355 = vmatpush1.bf16.msra.mxu0 %v3314
  %3356 = vmatprep.subr.bf16.mxu0 0
  %3357 = vmatpush1.bf16.msra.mxu0 %v3315
  %3358 = vmatprep.subr.bf16.mxu0 0
  %3359 = vmatpush1.bf16.msra.mxu0 %v3316
  %3360 = vmatprep.subr.bf16.mxu0 0
  %3361 = vmatpush1.bf16.msra.mxu0 %v3317
  %3362 = vmatprep.subr.bf16.mxu0 0
  %3363 = vmatpush1.bf16.msra.mxu0 %v3318
  %3364 = vmatprep.subr.bf16.mxu0 0
  %3365 = vmatpush1.bf16.msra.mxu0 %v3319
  %3366 = vmatprep.subr.bf16.mxu0 0
  %3367 = vmatpush1.bf16.msra.mxu0 %v3320
  %3368 = vmatprep.subr.bf16.mxu0 0
  %3369 = vmatpush1.bf16.msra.mxu0 %v3321
  %3370 = vmatprep.mubr.bf16.mxu0 %v3235
  %3371 = vmatmul.mubr.bf16.gmra.mrb[0].mxu0 %v3234
  %v3372 = vpop.f32.mrb[0].mxu0
  %v3373 = vadd.f32 0.0, %v3372
  %v3374 = vpop.f32.mrb[0].mxu0
  %v3375 = vpop.f32.mrb[0].mxu0
  %v3376 = vadd.f32 0.0, %v3375
  %v3377 = vpop.f32.mrb[0].mxu0
  %3378 = vmatprep.mubr.bf16.mxu0 %v3237
  %3379 = vmatmul.mubr.bf16.gmra.mrb[0].mxu0 %v3236
  %v3380 = vpop.f32.mrb[0].mxu0
  %v3381 = vadd.f32 0.0, %v3380
  %v3382 = vpop.f32.mrb[0].mxu0
  %v3383 = vpop.f32.mrb[0].mxu0
  %v3384 = vadd.f32 0.0, %v3383
  %v3385 = vpop.f32.mrb[0].mxu0
  %3386 = vdwg.mxu0
  %v3387 = vadd.f32 %v3180, %v3373
  %v3388 = vadd.f32 %v3181, %v3376
  %v3389 = vadd.f32 %v3182, %v3381
  %v3390 = vadd.f32 %v3183, %v3384
  %v3391 = vld [vmem:[%s2] sm:$0x1]
  %v3393 = vlaneseq
  %v3394 = vshrl.u32 %v3393, 7
  %v3395 = vsub.s32 0, %v3394
  %v3396 = vrot.slane %v3391, %v3395
  %v3398 = vadd.f32 %v3387, %v3396
  %v3399 = vadd.f32 %v3388, %v3396
  %v3400 = vadd.f32 %v3389, %v3396
  %v3401 = vadd.f32 %v3390, %v3396
  %v3402 = vmax.f32 %v3398, 0.0
  %v3403 = vmax.f32 %v3399, 0.0
  %v3404 = vmax.f32 %v3400, 0.0
  %v3405 = vmax.f32 %v3401, 0.0
  %v3406 = vpack.c.bf16 %v3403, %v3402
  %v3407 = vpack.c.bf16 %v3405, %v3404
  %v3410 = vunpack.c.l.b16 %v3406
  %v3411 = vunpack.c.h.b16 %v3406
  %v3412 = vunpack.c.l.b16 %v3407
  %v3413 = vunpack.c.h.b16 %v3407
  %v3414 = vpack.c.b16 %v3410, %v3410
  %v3415 = vpack.c.b16 %v3411, %v3411
  %v3416 = vpack.c.b16 %v3412, %v3412
  %v3417 = vpack.c.b16 %v3413, %v3413
  %3422 = vst [vmem:[%s3 + $0xc] sm:$0xf] %v3414
  %3423 = vst [vmem:[%s3 + $0x1c] sm:$0xf] %v3415
  %3424 = vst [vmem:[%s3 + $0x2c] sm:$0xf] %v3416
  %3425 = vst [vmem:[%s3 + $0x3c] sm:$0xf] %v3417
  // Predicated region
  $region14: #{generator_forward.5} parent=0 // pred_check
    _
  $region15: #{generator_forward.5} parent=0 // pred_check_branch
    %3427 = sbr.rel (0) target = $region17
  $region16: #{generator_forward.5} parent=0 // pred_region
    _
  $region17: #{generator_forward.5} parent=0 // pred_fallthru
    _
  // Predicated region
  $region18: #{generator_forward.5} parent=0 // pred_check
    _
  $region19: #{generator_forward.5} parent=0 // pred_check_branch
    %3429 = sbr.rel (0) target = $region21
  $region20: #{generator_forward.5} parent=0 // pred_region
    _
  $region21: #{generator_forward.5} parent=0 // pred_fallthru
    _

// kernel: generator_forward.6
$region0: #{generator_forward.6}
  #allocation0 [shape = 'u32[]', space=smem, size = 0x4, offset = 0x4, fixed_abs, tag = 'smem constant byte address 0x4 - core index']
  #allocation1 [shape = 'u32[144,128]{1,0:T(1,128)}', space=vmem, size = 0x12000, scoped, tag = 'internal scratch']
  %s0 = inlined_call_operand.vmem [shape: bf16[9,128,128], index: 0, kind: input, shape index: {}]
  %s1 = inlined_call_operand.vmem [shape: bf16[9,128,256], index: 1, kind: input, shape index: {}]
  %s2 = inlined_call_operand.vmem [shape: f32[1,256], index: 2, kind: input, shape index: {}]
  %s3 = inlined_call_operand.vmem [shape: bf16[128,256], index: 3, kind: output, shape index: {}]
  %s4 = sld [smem:[#allocation0]]
  $region22: #{generator_forward.6} parent=0
    _
  %s6 = ssub.s32 1, %s4
  %s7 = scalar_select 0, %s6, %s4
  // Predicated region
  $region2: #{generator_forward.6} parent=0 // pred_check
    _
  $region3: #{generator_forward.6} parent=0 // pred_check_branch
    %9 = sbr.rel (0) target = $region5
  $region4: #{generator_forward.6} parent=0 // pred_region
    _
  $region5: #{generator_forward.6} parent=0 // pred_fallthru
    _
  // Predicated region
  $region6: #{generator_forward.6} parent=0 // pred_check
    _
  $region7: #{generator_forward.6} parent=0 // pred_check_branch
    %11 = sbr.rel (0) target = $region9
  $region8: #{generator_forward.6} parent=0 // pred_region
    _
  $region9: #{generator_forward.6} parent=0 // pred_fallthru
    _
  // Predicated region
  $region10: #{generator_forward.6} parent=0 // pred_check
    _
  $region11: #{generator_forward.6} parent=0 // pred_check_branch
    %13 = sbr.rel (0) target = $region13
  $region12: #{generator_forward.6} parent=0 // pred_region
    _
  $region13: #{generator_forward.6} parent=0 // pred_fallthru
    _
  %v15 = vld [vmem:[%s0] sm:$0xf]
  %v16 = vld [vmem:[%s0 + $0x4] sm:$0xf]
  %v17 = vld [vmem:[%s0 + $0x8] sm:$0xf]
  %v18 = vld [vmem:[%s0 + $0xc] sm:$0xf]
  %v19 = vld [vmem:[%s0 + $0x10] sm:$0xf]
  %v20 = vld [vmem:[%s0 + $0x14] sm:$0xf]
  %v21 = vld [vmem:[%s0 + $0x18] sm:$0xf]
  %v22 = vld [vmem:[%s0 + $0x1c] sm:$0xf]
  %v23 = vld [vmem:[%s0 + $0x20] sm:$0xf]
  %v24 = vld [vmem:[%s0 + $0x24] sm:$0xf]
  %v25 = vld [vmem:[%s0 + $0x28] sm:$0xf]
  %v26 = vld [vmem:[%s0 + $0x2c] sm:$0xf]
  %v27 = vld [vmem:[%s0 + $0x30] sm:$0xf]
  %v28 = vld [vmem:[%s0 + $0x34] sm:$0xf]
  %v29 = vld [vmem:[%s0 + $0x38] sm:$0xf]
  %v30 = vld [vmem:[%s0 + $0x3c] sm:$0xf]
  %v31 = vld [vmem:[%s1] sm:$0xff]
  %v32 = vld [vmem:[%s1 + $0x8] sm:$0xff]
  %v33 = vld [vmem:[%s1 + $0x10] sm:$0xff]
  %v34 = vld [vmem:[%s1 + $0x18] sm:$0xff]
  %v35 = vld [vmem:[%s1 + $0x20] sm:$0xff]
  %v36 = vld [vmem:[%s1 + $0x28] sm:$0xff]
  %v37 = vld [vmem:[%s1 + $0x30] sm:$0xff]
  %v38 = vld [vmem:[%s1 + $0x38] sm:$0xff]
  %v39 = vld [vmem:[%s1 + $0x40] sm:$0xff]
  %v40 = vld [vmem:[%s1 + $0x48] sm:$0xff]
  %v41 = vld [vmem:[%s1 + $0x50] sm:$0xff]
  %v42 = vld [vmem:[%s1 + $0x58] sm:$0xff]
  %v43 = vld [vmem:[%s1 + $0x60] sm:$0xff]
  %v44 = vld [vmem:[%s1 + $0x68] sm:$0xff]
  %v45 = vld [vmem:[%s1 + $0x70] sm:$0xff]
  %v46 = vld [vmem:[%s1 + $0x78] sm:$0xff]
  %s47 = scalar_lea.vmem %s0, 64
  %v48 = vld [vmem:[%s47] sm:$0xf]
  %v49 = vld [vmem:[%s47 + $0x4] sm:$0xf]
  %v50 = vld [vmem:[%s47 + $0x8] sm:$0xf]
  %v51 = vld [vmem:[%s47 + $0xc] sm:$0xf]
  %v52 = vld [vmem:[%s47 + $0x10] sm:$0xf]
  %v53 = vld [vmem:[%s47 + $0x14] sm:$0xf]
  %v54 = vld [vmem:[%s47 + $0x18] sm:$0xf]
  %v55 = vld [vmem:[%s47 + $0x1c] sm:$0xf]
  %v56 = vld [vmem:[%s47 + $0x20] sm:$0xf]
  %v57 = vld [vmem:[%s47 + $0x24] sm:$0xf]
  %v58 = vld [vmem:[%s47 + $0x28] sm:$0xf]
  %v59 = vld [vmem:[%s47 + $0x2c] sm:$0xf]
  %v60 = vld [vmem:[%s47 + $0x30] sm:$0xf]
  %v61 = vld [vmem:[%s47 + $0x34] sm:$0xf]
  %v62 = vld [vmem:[%s47 + $0x38] sm:$0xf]
  %v63 = vld [vmem:[%s47 + $0x3c] sm:$0xf]
  %s64 = scalar_lea.vmem %s1, 128
  %v65 = vld [vmem:[%s64] sm:$0xff]
  %v66 = vld [vmem:[%s64 + $0x8] sm:$0xff]
  %v67 = vld [vmem:[%s64 + $0x10] sm:$0xff]
  %v68 = vld [vmem:[%s64 + $0x18] sm:$0xff]
  %v69 = vld [vmem:[%s64 + $0x20] sm:$0xff]
  %v70 = vld [vmem:[%s64 + $0x28] sm:$0xff]
  %v71 = vld [vmem:[%s64 + $0x30] sm:$0xff]
  %v72 = vld [vmem:[%s64 + $0x38] sm:$0xff]
  %v73 = vld [vmem:[%s64 + $0x40] sm:$0xff]
  %v74 = vld [vmem:[%s64 + $0x48] sm:$0xff]
  %v75 = vld [vmem:[%s64 + $0x50] sm:$0xff]
  %v76 = vld [vmem:[%s64 + $0x58] sm:$0xff]
  %v77 = vld [vmem:[%s64 + $0x60] sm:$0xff]
  %v78 = vld [vmem:[%s64 + $0x68] sm:$0xff]
  %v79 = vld [vmem:[%s64 + $0x70] sm:$0xff]
  %v80 = vld [vmem:[%s64 + $0x78] sm:$0xff]
  %v97 = vunpack.c.l.b16 %v48
  %v98 = vunpack.c.l.b16 %v49
  %v99 = vunpack.c.l.b16 %v50
  %v100 = vunpack.c.l.b16 %v51
  %v101 = vunpack.c.l.b16 %v52
  %v102 = vunpack.c.l.b16 %v53
  %v103 = vunpack.c.l.b16 %v54
  %v104 = vunpack.c.l.b16 %v55
  %v105 = vunpack.c.l.b16 %v56
  %v106 = vunpack.c.l.b16 %v57
  %v107 = vunpack.c.l.b16 %v58
  %v108 = vunpack.c.l.b16 %v59
  %v109 = vunpack.c.l.b16 %v60
  %v110 = vunpack.c.l.b16 %v61
  %v111 = vunpack.c.l.b16 %v62
  %v112 = vunpack.c.l.b16 %v63
  %v113 = vpack.c.b16 %v98, %v97
  %v114 = vpack.c.b16 %v100, %v99
  %v115 = vpack.c.b16 %v102, %v101
  %v116 = vpack.c.b16 %v104, %v103
  %v117 = vpack.c.b16 %v106, %v105
  %v118 = vpack.c.b16 %v108, %v107
  %v119 = vpack.c.b16 %v110, %v109
  %v120 = vpack.c.b16 %v112, %v111
  %v145 = vunpack.c.l.b16 %v65
  %v146 = vunpack.c.h.b16 %v65
  %v147 = vunpack.c.l.b16 %v66
  %v148 = vunpack.c.h.b16 %v66
  %v149 = vunpack.c.l.b16 %v67
  %v150 = vunpack.c.h.b16 %v67
  %v151 = vunpack.c.l.b16 %v68
  %v152 = vunpack.c.h.b16 %v68
  %v153 = vunpack.c.l.b16 %v69
  %v154 = vunpack.c.h.b16 %v69
  %v155 = vunpack.c.l.b16 %v70
  %v156 = vunpack.c.h.b16 %v70
  %v157 = vunpack.c.l.b16 %v71
  %v158 = vunpack.c.h.b16 %v71
  %v159 = vunpack.c.l.b16 %v72
  %v160 = vunpack.c.h.b16 %v72
  %v161 = vunpack.c.l.b16 %v73
  %v162 = vunpack.c.h.b16 %v73
  %v163 = vunpack.c.l.b16 %v74
  %v164 = vunpack.c.h.b16 %v74
  %v165 = vunpack.c.l.b16 %v75
  %v166 = vunpack.c.h.b16 %v75
  %v167 = vunpack.c.l.b16 %v76
  %v168 = vunpack.c.h.b16 %v76
  %v169 = vunpack.c.l.b16 %v77
  %v170 = vunpack.c.h.b16 %v77
  %v171 = vunpack.c.l.b16 %v78
  %v172 = vunpack.c.h.b16 %v78
  %v173 = vunpack.c.l.b16 %v79
  %v174 = vunpack.c.h.b16 %v79
  %v175 = vunpack.c.l.b16 %v80
  %v176 = vunpack.c.h.b16 %v80
  %v177 = vpack.c.b16 %v147, %v145
  %v178 = vpack.c.b16 %v148, %v146
  %v179 = vpack.c.b16 %v151, %v149
  %v180 = vpack.c.b16 %v152, %v150
  %v181 = vpack.c.b16 %v155, %v153
  %v182 = vpack.c.b16 %v156, %v154
  %v183 = vpack.c.b16 %v159, %v157
  %v184 = vpack.c.b16 %v160, %v158
  %v185 = vpack.c.b16 %v163, %v161
  %v186 = vpack.c.b16 %v164, %v162
  %v187 = vpack.c.b16 %v167, %v165
  %v188 = vpack.c.b16 %v168, %v166
  %v189 = vpack.c.b16 %v171, %v169
  %v190 = vpack.c.b16 %v172, %v170
  %v191 = vpack.c.b16 %v175, %v173
  %v192 = vpack.c.b16 %v176, %v174
  %209 = vmatprep.subr.bf16.mxu0 %v178
  %210 = vmatpush1.bf16.msra.mxu0 %v177
  %211 = vmatprep.subr.bf16.mxu0 %v180
  %212 = vmatpush1.bf16.msra.mxu0 %v179
  %213 = vmatprep.subr.bf16.mxu0 %v182
  %214 = vmatpush1.bf16.msra.mxu0 %v181
  %215 = vmatprep.subr.bf16.mxu0 %v184
  %216 = vmatpush1.bf16.msra.mxu0 %v183
  %217 = vmatprep.subr.bf16.mxu0 %v186
  %218 = vmatpush1.bf16.msra.mxu0 %v185
  %219 = vmatprep.subr.bf16.mxu0 %v188
  %220 = vmatpush1.bf16.msra.mxu0 %v187
  %221 = vmatprep.subr.bf16.mxu0 %v190
  %222 = vmatpush1.bf16.msra.mxu0 %v189
  %223 = vmatprep.subr.bf16.mxu0 %v192
  %224 = vmatpush1.bf16.msra.mxu0 %v191
  %225 = vmatprep.subr.bf16.mxu0 0
  %226 = vmatpush1.bf16.msra.mxu0 0
  %227 = vmatprep.subr.bf16.mxu0 0
  %228 = vmatpush1.bf16.msra.mxu0 0
  %229 = vmatprep.subr.bf16.mxu0 0
  %230 = vmatpush1.bf16.msra.mxu0 0
  %231 = vmatprep.subr.bf16.mxu0 0
  %232 = vmatpush1.bf16.msra.mxu0 0
  %233 = vmatprep.subr.bf16.mxu0 0
  %234 = vmatpush1.bf16.msra.mxu0 0
  %235 = vmatprep.subr.bf16.mxu0 0
  %236 = vmatpush1.bf16.msra.mxu0 0
  %237 = vmatprep.subr.bf16.mxu0 0
  %238 = vmatpush1.bf16.msra.mxu0 0
  %239 = vmatprep.subr.bf16.mxu0 0
  %240 = vmatpush1.bf16.msra.mxu0 0
  %241 = vmatprep.mubr.bf16.mxu0 0
  %242 = vmatmul.mubr.bf16.gmra.mrb[0].mxu0 %v113
  %v243 = vpop.f32.mrb[0].mxu0
  %v244 = vadd.f32 0.0, %v243
  %v245 = vpop.f32.mrb[0].mxu0
  %v246 = vadd.f32 0.0, %v245
  %v247 = vpop.f32.mrb[0].mxu0
  %v248 = vadd.f32 0.0, %v247
  %v249 = vpop.f32.mrb[0].mxu0
  %v250 = vadd.f32 0.0, %v249
  %251 = vmatprep.mubr.bf16.mxu0 0
  %252 = vmatmul.mubr.bf16.gmra.mrb[0].mxu0 %v114
  %v253 = vpop.f32.mrb[0].mxu0
  %v254 = vadd.f32 0.0, %v253
  %v255 = vpop.f32.mrb[0].mxu0
  %v256 = vadd.f32 0.0, %v255
  %v257 = vpop.f32.mrb[0].mxu0
  %v258 = vadd.f32 0.0, %v257
  %v259 = vpop.f32.mrb[0].mxu0
  %v260 = vadd.f32 0.0, %v259
  %261 = vmatprep.mubr.bf16.mxu0 0
  %262 = vmatmul.mubr.bf16.gmra.mrb[0].mxu0 %v115
  %v263 = vpop.f32.mrb[0].mxu0
  %v264 = vadd.f32 0.0, %v263
  %v265 = vpop.f32.mrb[0].mxu0
  %v266 = vadd.f32 0.0, %v265
  %v267 = vpop.f32.mrb[0].mxu0
  %v268 = vadd.f32 0.0, %v267
  %v269 = vpop.f32.mrb[0].mxu0
  %v270 = vadd.f32 0.0, %v269
  %271 = vmatprep.mubr.bf16.mxu0 0
  %272 = vmatmul.mubr.bf16.gmra.mrb[0].mxu0 %v116
  %v273 = vpop.f32.mrb[0].mxu0
  %v274 = vadd.f32 0.0, %v273
  %v275 = vpop.f32.mrb[0].mxu0
  %v276 = vadd.f32 0.0, %v275
  %v277 = vpop.f32.mrb[0].mxu0
  %v278 = vadd.f32 0.0, %v277
  %v279 = vpop.f32.mrb[0].mxu0
  %v280 = vadd.f32 0.0, %v279
  %281 = vmatprep.mubr.bf16.mxu0 0
  %282 = vmatmul.mubr.bf16.gmra.mrb[0].mxu0 %v117
  %v283 = vpop.f32.mrb[0].mxu0
  %v284 = vadd.f32 0.0, %v283
  %v285 = vpop.f32.mrb[0].mxu0
  %v286 = vadd.f32 0.0, %v285
  %v287 = vpop.f32.mrb[0].mxu0
  %v288 = vadd.f32 0.0, %v287
  %v289 = vpop.f32.mrb[0].mxu0
  %v290 = vadd.f32 0.0, %v289
  %291 = vmatprep.mubr.bf16.mxu0 0
  %292 = vmatmul.mubr.bf16.gmra.mrb[0].mxu0 %v118
  %v293 = vpop.f32.mrb[0].mxu0
  %v294 = vadd.f32 0.0, %v293
  %v295 = vpop.f32.mrb[0].mxu0
  %v296 = vadd.f32 0.0, %v295
  %v297 = vpop.f32.mrb[0].mxu0
  %v298 = vadd.f32 0.0, %v297
  %v299 = vpop.f32.mrb[0].mxu0
  %v300 = vadd.f32 0.0, %v299
  %301 = vmatprep.mubr.bf16.mxu0 0
  %302 = vmatmul.mubr.bf16.gmra.mrb[0].mxu0 %v119
  %v303 = vpop.f32.mrb[0].mxu0
  %v304 = vadd.f32 0.0, %v303
  %v305 = vpop.f32.mrb[0].mxu0
  %v306 = vadd.f32 0.0, %v305
  %v307 = vpop.f32.mrb[0].mxu0
  %v308 = vadd.f32 0.0, %v307
  %v309 = vpop.f32.mrb[0].mxu0
  %v310 = vadd.f32 0.0, %v309
  %311 = vmatprep.mubr.bf16.mxu0 0
  %312 = vmatmul.mubr.bf16.gmra.mrb[0].mxu0 %v120
  %v313 = vpop.f32.mrb[0].mxu0
  %v314 = vadd.f32 0.0, %v313
  %v315 = vpop.f32.mrb[0].mxu0
  %v316 = vadd.f32 0.0, %v315
  %v317 = vpop.f32.mrb[0].mxu0
  %v318 = vadd.f32 0.0, %v317
  %v319 = vpop.f32.mrb[0].mxu0
  %v320 = vadd.f32 0.0, %v319
  %321 = vdwg.mxu0
  %v338 = vunpack.c.l.b16 %v15
  %v339 = vunpack.c.l.b16 %v16
  %v340 = vunpack.c.l.b16 %v17
  %v341 = vunpack.c.l.b16 %v18
  %v342 = vunpack.c.l.b16 %v19
  %v343 = vunpack.c.l.b16 %v20
  %v344 = vunpack.c.l.b16 %v21
  %v345 = vunpack.c.l.b16 %v22
  %v346 = vunpack.c.l.b16 %v23
  %v347 = vunpack.c.l.b16 %v24
  %v348 = vunpack.c.l.b16 %v25
  %v349 = vunpack.c.l.b16 %v26
  %v350 = vunpack.c.l.b16 %v27
  %v351 = vunpack.c.l.b16 %v28
  %v352 = vunpack.c.l.b16 %v29
  %v353 = vunpack.c.l.b16 %v30
  %v354 = vpack.c.b16 %v339, %v338
  %v355 = vpack.c.b16 %v341, %v340
  %v356 = vpack.c.b16 %v343, %v342
  %v357 = vpack.c.b16 %v345, %v344
  %v358 = vpack.c.b16 %v347, %v346
  %v359 = vpack.c.b16 %v349, %v348
  %v360 = vpack.c.b16 %v351, %v350
  %v361 = vpack.c.b16 %v353, %v352
  %v386 = vunpack.c.l.b16 %v31
  %v387 = vunpack.c.h.b16 %v31
  %v388 = vunpack.c.l.b16 %v32
  %v389 = vunpack.c.h.b16 %v32
  %v390 = vunpack.c.l.b16 %v33
  %v391 = vunpack.c.h.b16 %v33
  %v392 = vunpack.c.l.b16 %v34
  %v393 = vunpack.c.h.b16 %v34
  %v394 = vunpack.c.l.b16 %v35
  %v395 = vunpack.c.h.b16 %v35
  %v396 = vunpack.c.l.b16 %v36
  %v397 = vunpack.c.h.b16 %v36
  %v398 = vunpack.c.l.b16 %v37
  %v399 = vunpack.c.h.b16 %v37
  %v400 = vunpack.c.l.b16 %v38
  %v401 = vunpack.c.h.b16 %v38
  %v402 = vunpack.c.l.b16 %v39
  %v403 = vunpack.c.h.b16 %v39
  %v404 = vunpack.c.l.b16 %v40
  %v405 = vunpack.c.h.b16 %v40
  %v406 = vunpack.c.l.b16 %v41
  %v407 = vunpack.c.h.b16 %v41
  %v408 = vunpack.c.l.b16 %v42
  %v409 = vunpack.c.h.b16 %v42
  %v410 = vunpack.c.l.b16 %v43
  %v411 = vunpack.c.h.b16 %v43
  %v412 = vunpack.c.l.b16 %v44
  %v413 = vunpack.c.h.b16 %v44
  %v414 = vunpack.c.l.b16 %v45
  %v415 = vunpack.c.h.b16 %v45
  %v416 = vunpack.c.l.b16 %v46
  %v417 = vunpack.c.h.b16 %v46
  %v418 = vpack.c.b16 %v388, %v386
  %v419 = vpack.c.b16 %v389, %v387
  %v420 = vpack.c.b16 %v392, %v390
  %v421 = vpack.c.b16 %v393, %v391
  %v422 = vpack.c.b16 %v396, %v394
  %v423 = vpack.c.b16 %v397, %v395
  %v424 = vpack.c.b16 %v400, %v398
  %v425 = vpack.c.b16 %v401, %v399
  %v426 = vpack.c.b16 %v404, %v402
  %v427 = vpack.c.b16 %v405, %v403
  %v428 = vpack.c.b16 %v408, %v406
  %v429 = vpack.c.b16 %v409, %v407
  %v430 = vpack.c.b16 %v412, %v410
  %v431 = vpack.c.b16 %v413, %v411
  %v432 = vpack.c.b16 %v416, %v414
  %v433 = vpack.c.b16 %v417, %v415
  %450 = vmatprep.subr.bf16.mxu0 %v419
  %451 = vmatpush1.bf16.msra.mxu0 %v418
  %452 = vmatprep.subr.bf16.mxu0 %v421
  %453 = vmatpush1.bf16.msra.mxu0 %v420
  %454 = vmatprep.subr.bf16.mxu0 %v423
  %455 = vmatpush1.bf16.msra.mxu0 %v422
  %456 = vmatprep.subr.bf16.mxu0 %v425
  %457 = vmatpush1.bf16.msra.mxu0 %v424
  %458 = vmatprep.subr.bf16.mxu0 %v427
  %459 = vmatpush1.bf16.msra.mxu0 %v426
  %460 = vmatprep.subr.bf16.mxu0 %v429
  %461 = vmatpush1.bf16.msra.mxu0 %v428
  %462 = vmatprep.subr.bf16.mxu0 %v431
  %463 = vmatpush1.bf16.msra.mxu0 %v430
  %464 = vmatprep.subr.bf16.mxu0 %v433
  %465 = vmatpush1.bf16.msra.mxu0 %v432
  %466 = vmatprep.subr.bf16.mxu0 0
  %467 = vmatpush1.bf16.msra.mxu0 0
  %468 = vmatprep.subr.bf16.mxu0 0
  %469 = vmatpush1.bf16.msra.mxu0 0
  %470 = vmatprep.subr.bf16.mxu0 0
  %471 = vmatpush1.bf16.msra.mxu0 0
  %472 = vmatprep.subr.bf16.mxu0 0
  %473 = vmatpush1.bf16.msra.mxu0 0
  %474 = vmatprep.subr.bf16.mxu0 0
  %475 = vmatpush1.bf16.msra.mxu0 0
  %476 = vmatprep.subr.bf16.mxu0 0
  %477 = vmatpush1.bf16.msra.mxu0 0
  %478 = vmatprep.subr.bf16.mxu0 0
  %479 = vmatpush1.bf16.msra.mxu0 0
  %480 = vmatprep.subr.bf16.mxu0 0
  %481 = vmatpush1.bf16.msra.mxu0 0
  %482 = vmatprep.mubr.bf16.mxu0 0
  %483 = vmatmul.mubr.bf16.gmra.mrb[0].mxu0 %v354
  %v484 = vpop.f32.mrb[0].mxu0
  %v485 = vadd.f32 %v244, %v484
  %v486 = vpop.f32.mrb[0].mxu0
  %v487 = vadd.f32 %v246, %v486
  %v488 = vpop.f32.mrb[0].mxu0
  %v489 = vadd.f32 %v248, %v488
  %v490 = vpop.f32.mrb[0].mxu0
  %v491 = vadd.f32 %v250, %v490
  %492 = vmatprep.mubr.bf16.mxu0 0
  %493 = vmatmul.mubr.bf16.gmra.mrb[0].mxu0 %v355
  %v494 = vpop.f32.mrb[0].mxu0
  %v495 = vadd.f32 %v254, %v494
  %v496 = vpop.f32.mrb[0].mxu0
  %v497 = vadd.f32 %v256, %v496
  %v498 = vpop.f32.mrb[0].mxu0
  %v499 = vadd.f32 %v258, %v498
  %v500 = vpop.f32.mrb[0].mxu0
  %v501 = vadd.f32 %v260, %v500
  %502 = vmatprep.mubr.bf16.mxu0 0
  %503 = vmatmul.mubr.bf16.gmra.mrb[0].mxu0 %v356
  %v504 = vpop.f32.mrb[0].mxu0
  %v505 = vadd.f32 %v264, %v504
  %v506 = vpop.f32.mrb[0].mxu0
  %v507 = vadd.f32 %v266, %v506
  %v508 = vpop.f32.mrb[0].mxu0
  %v509 = vadd.f32 %v268, %v508
  %v510 = vpop.f32.mrb[0].mxu0
  %v511 = vadd.f32 %v270, %v510
  %512 = vmatprep.mubr.bf16.mxu0 0
  %513 = vmatmul.mubr.bf16.gmra.mrb[0].mxu0 %v357
  %v514 = vpop.f32.mrb[0].mxu0
  %v515 = vadd.f32 %v274, %v514
  %v516 = vpop.f32.mrb[0].mxu0
  %v517 = vadd.f32 %v276, %v516
  %v518 = vpop.f32.mrb[0].mxu0
  %v519 = vadd.f32 %v278, %v518
  %v520 = vpop.f32.mrb[0].mxu0
  %v521 = vadd.f32 %v280, %v520
  %522 = vmatprep.mubr.bf16.mxu0 0
  %523 = vmatmul.mubr.bf16.gmra.mrb[0].mxu0 %v358
  %v524 = vpop.f32.mrb[0].mxu0
  %v525 = vadd.f32 %v284, %v524
  %v526 = vpop.f32.mrb[0].mxu0
  %v527 = vadd.f32 %v286, %v526
  %v528 = vpop.f32.mrb[0].mxu0
  %v529 = vadd.f32 %v288, %v528
  %v530 = vpop.f32.mrb[0].mxu0
  %v531 = vadd.f32 %v290, %v530
  %532 = vmatprep.mubr.bf16.mxu0 0
  %533 = vmatmul.mubr.bf16.gmra.mrb[0].mxu0 %v359
  %v534 = vpop.f32.mrb[0].mxu0
  %v535 = vadd.f32 %v294, %v534
  %v536 = vpop.f32.mrb[0].mxu0
  %v537 = vadd.f32 %v296, %v536
  %v538 = vpop.f32.mrb[0].mxu0
  %v539 = vadd.f32 %v298, %v538
  %v540 = vpop.f32.mrb[0].mxu0
  %v541 = vadd.f32 %v300, %v540
  %542 = vmatprep.mubr.bf16.mxu0 0
  %543 = vmatmul.mubr.bf16.gmra.mrb[0].mxu0 %v360
  %v544 = vpop.f32.mrb[0].mxu0
  %v545 = vadd.f32 %v304, %v544
  %v546 = vpop.f32.mrb[0].mxu0
  %v547 = vadd.f32 %v306, %v546
  %v548 = vpop.f32.mrb[0].mxu0
  %v549 = vadd.f32 %v308, %v548
  %v550 = vpop.f32.mrb[0].mxu0
  %v551 = vadd.f32 %v310, %v550
  %552 = vmatprep.mubr.bf16.mxu0 0
  %553 = vmatmul.mubr.bf16.gmra.mrb[0].mxu0 %v361
  %v554 = vpop.f32.mrb[0].mxu0
  %v555 = vadd.f32 %v314, %v554
  %v556 = vpop.f32.mrb[0].mxu0
  %v557 = vadd.f32 %v316, %v556
  %v558 = vpop.f32.mrb[0].mxu0
  %v559 = vadd.f32 %v318, %v558
  %v560 = vpop.f32.mrb[0].mxu0
  %v561 = vadd.f32 %v320, %v560
  %562 = vdwg.mxu0
  %s563 = scalar_lea.vmem %s0, 128
  %v564 = vld [vmem:[%s563] sm:$0xf]
  %v565 = vld [vmem:[%s563 + $0x4] sm:$0xf]
  %v566 = vld [vmem:[%s563 + $0x8] sm:$0xf]
  %v567 = vld [vmem:[%s563 + $0xc] sm:$0xf]
  %v568 = vld [vmem:[%s563 + $0x10] sm:$0xf]
  %v569 = vld [vmem:[%s563 + $0x14] sm:$0xf]
  %v570 = vld [vmem:[%s563 + $0x18] sm:$0xf]
  %v571 = vld [vmem:[%s563 + $0x1c] sm:$0xf]
  %v572 = vld [vmem:[%s563 + $0x20] sm:$0xf]
  %v573 = vld [vmem:[%s563 + $0x24] sm:$0xf]
  %v574 = vld [vmem:[%s563 + $0x28] sm:$0xf]
  %v575 = vld [vmem:[%s563 + $0x2c] sm:$0xf]
  %v576 = vld [vmem:[%s563 + $0x30] sm:$0xf]
  %v577 = vld [vmem:[%s563 + $0x34] sm:$0xf]
  %v578 = vld [vmem:[%s563 + $0x38] sm:$0xf]
  %v579 = vld [vmem:[%s563 + $0x3c] sm:$0xf]
  %s580 = scalar_lea.vmem %s1, 256
  %v581 = vld [vmem:[%s580] sm:$0xff]
  %v582 = vld [vmem:[%s580 + $0x8] sm:$0xff]
  %v583 = vld [vmem:[%s580 + $0x10] sm:$0xff]
  %v584 = vld [vmem:[%s580 + $0x18] sm:$0xff]
  %v585 = vld [vmem:[%s580 + $0x20] sm:$0xff]
  %v586 = vld [vmem:[%s580 + $0x28] sm:$0xff]
  %v587 = vld [vmem:[%s580 + $0x30] sm:$0xff]
  %v588 = vld [vmem:[%s580 + $0x38] sm:$0xff]
  %v589 = vld [vmem:[%s580 + $0x40] sm:$0xff]
  %v590 = vld [vmem:[%s580 + $0x48] sm:$0xff]
  %v591 = vld [vmem:[%s580 + $0x50] sm:$0xff]
  %v592 = vld [vmem:[%s580 + $0x58] sm:$0xff]
  %v593 = vld [vmem:[%s580 + $0x60] sm:$0xff]
  %v594 = vld [vmem:[%s580 + $0x68] sm:$0xff]
  %v595 = vld [vmem:[%s580 + $0x70] sm:$0xff]
  %v596 = vld [vmem:[%s580 + $0x78] sm:$0xff]
  %v613 = vunpack.c.l.b16 %v564
  %v614 = vunpack.c.l.b16 %v565
  %v615 = vunpack.c.l.b16 %v566
  %v616 = vunpack.c.l.b16 %v567
  %v617 = vunpack.c.l.b16 %v568
  %v618 = vunpack.c.l.b16 %v569
  %v619 = vunpack.c.l.b16 %v570
  %v620 = vunpack.c.l.b16 %v571
  %v621 = vunpack.c.l.b16 %v572
  %v622 = vunpack.c.l.b16 %v573
  %v623 = vunpack.c.l.b16 %v574
  %v624 = vunpack.c.l.b16 %v575
  %v625 = vunpack.c.l.b16 %v576
  %v626 = vunpack.c.l.b16 %v577
  %v627 = vunpack.c.l.b16 %v578
  %v628 = vunpack.c.l.b16 %v579
  %v629 = vpack.c.b16 %v614, %v613
  %v630 = vpack.c.b16 %v616, %v615
  %v631 = vpack.c.b16 %v618, %v617
  %v632 = vpack.c.b16 %v620, %v619
  %v633 = vpack.c.b16 %v622, %v621
  %v634 = vpack.c.b16 %v624, %v623
  %v635 = vpack.c.b16 %v626, %v625
  %v636 = vpack.c.b16 %v628, %v627
  %v661 = vunpack.c.l.b16 %v581
  %v662 = vunpack.c.h.b16 %v581
  %v663 = vunpack.c.l.b16 %v582
  %v664 = vunpack.c.h.b16 %v582
  %v665 = vunpack.c.l.b16 %v583
  %v666 = vunpack.c.h.b16 %v583
  %v667 = vunpack.c.l.b16 %v584
  %v668 = vunpack.c.h.b16 %v584
  %v669 = vunpack.c.l.b16 %v585
  %v670 = vunpack.c.h.b16 %v585
  %v671 = vunpack.c.l.b16 %v586
  %v672 = vunpack.c.h.b16 %v586
  %v673 = vunpack.c.l.b16 %v587
  %v674 = vunpack.c.h.b16 %v587
  %v675 = vunpack.c.l.b16 %v588
  %v676 = vunpack.c.h.b16 %v588
  %v677 = vunpack.c.l.b16 %v589
  %v678 = vunpack.c.h.b16 %v589
  %v679 = vunpack.c.l.b16 %v590
  %v680 = vunpack.c.h.b16 %v590
  %v681 = vunpack.c.l.b16 %v591
  %v682 = vunpack.c.h.b16 %v591
  %v683 = vunpack.c.l.b16 %v592
  %v684 = vunpack.c.h.b16 %v592
  %v685 = vunpack.c.l.b16 %v593
  %v686 = vunpack.c.h.b16 %v593
  %v687 = vunpack.c.l.b16 %v594
  %v688 = vunpack.c.h.b16 %v594
  %v689 = vunpack.c.l.b16 %v595
  %v690 = vunpack.c.h.b16 %v595
  %v691 = vunpack.c.l.b16 %v596
  %v692 = vunpack.c.h.b16 %v596
  %v693 = vpack.c.b16 %v663, %v661
  %v694 = vpack.c.b16 %v664, %v662
  %v695 = vpack.c.b16 %v667, %v665
  %v696 = vpack.c.b16 %v668, %v666
  %v697 = vpack.c.b16 %v671, %v669
  %v698 = vpack.c.b16 %v672, %v670
  %v699 = vpack.c.b16 %v675, %v673
  %v700 = vpack.c.b16 %v676, %v674
  %v701 = vpack.c.b16 %v679, %v677
  %v702 = vpack.c.b16 %v680, %v678
  %v703 = vpack.c.b16 %v683, %v681
  %v704 = vpack.c.b16 %v684, %v682
  %v705 = vpack.c.b16 %v687, %v685
  %v706 = vpack.c.b16 %v688, %v686
  %v707 = vpack.c.b16 %v691, %v689
  %v708 = vpack.c.b16 %v692, %v690
  %725 = vmatprep.subr.bf16.mxu0 %v694
  %726 = vmatpush1.bf16.msra.mxu0 %v693
  %727 = vmatprep.subr.bf16.mxu0 %v696
  %728 = vmatpush1.bf16.msra.mxu0 %v695
  %729 = vmatprep.subr.bf16.mxu0 %v698
  %730 = vmatpush1.bf16.msra.mxu0 %v697
  %731 = vmatprep.subr.bf16.mxu0 %v700
  %732 = vmatpush1.bf16.msra.mxu0 %v699
  %733 = vmatprep.subr.bf16.mxu0 %v702
  %734 = vmatpush1.bf16.msra.mxu0 %v701
  %735 = vmatprep.subr.bf16.mxu0 %v704
  %736 = vmatpush1.bf16.msra.mxu0 %v703
  %737 = vmatprep.subr.bf16.mxu0 %v706
  %738 = vmatpush1.bf16.msra.mxu0 %v705
  %739 = vmatprep.subr.bf16.mxu0 %v708
  %740 = vmatpush1.bf16.msra.mxu0 %v707
  %741 = vmatprep.subr.bf16.mxu0 0
  %742 = vmatpush1.bf16.msra.mxu0 0
  %743 = vmatprep.subr.bf16.mxu0 0
  %744 = vmatpush1.bf16.msra.mxu0 0
  %745 = vmatprep.subr.bf16.mxu0 0
  %746 = vmatpush1.bf16.msra.mxu0 0
  %747 = vmatprep.subr.bf16.mxu0 0
  %748 = vmatpush1.bf16.msra.mxu0 0
  %749 = vmatprep.subr.bf16.mxu0 0
  %750 = vmatpush1.bf16.msra.mxu0 0
  %751 = vmatprep.subr.bf16.mxu0 0
  %752 = vmatpush1.bf16.msra.mxu0 0
  %753 = vmatprep.subr.bf16.mxu0 0
  %754 = vmatpush1.bf16.msra.mxu0 0
  %755 = vmatprep.subr.bf16.mxu0 0
  %756 = vmatpush1.bf16.msra.mxu0 0
  %757 = vmatprep.mubr.bf16.mxu0 0
  %758 = vmatmul.mubr.bf16.gmra.mrb[0].mxu0 %v629
  %v759 = vpop.f32.mrb[0].mxu0
  %v760 = vadd.f32 0.0, %v759
  %v761 = vpop.f32.mrb[0].mxu0
  %v762 = vadd.f32 0.0, %v761
  %v763 = vpop.f32.mrb[0].mxu0
  %v764 = vadd.f32 0.0, %v763
  %v765 = vpop.f32.mrb[0].mxu0
  %v766 = vadd.f32 0.0, %v765
  %767 = vmatprep.mubr.bf16.mxu0 0
  %768 = vmatmul.mubr.bf16.gmra.mrb[0].mxu0 %v630
  %v769 = vpop.f32.mrb[0].mxu0
  %v770 = vadd.f32 0.0, %v769
  %v771 = vpop.f32.mrb[0].mxu0
  %v772 = vadd.f32 0.0, %v771
  %v773 = vpop.f32.mrb[0].mxu0
  %v774 = vadd.f32 0.0, %v773
  %v775 = vpop.f32.mrb[0].mxu0
  %v776 = vadd.f32 0.0, %v775
  %777 = vmatprep.mubr.bf16.mxu0 0
  %778 = vmatmul.mubr.bf16.gmra.mrb[0].mxu0 %v631
  %v779 = vpop.f32.mrb[0].mxu0
  %v780 = vadd.f32 0.0, %v779
  %v781 = vpop.f32.mrb[0].mxu0
  %v782 = vadd.f32 0.0, %v781
  %v783 = vpop.f32.mrb[0].mxu0
  %v784 = vadd.f32 0.0, %v783
  %v785 = vpop.f32.mrb[0].mxu0
  %v786 = vadd.f32 0.0, %v785
  %787 = vmatprep.mubr.bf16.mxu0 0
  %788 = vmatmul.mubr.bf16.gmra.mrb[0].mxu0 %v632
  %v789 = vpop.f32.mrb[0].mxu0
  %v790 = vadd.f32 0.0, %v789
  %v791 = vpop.f32.mrb[0].mxu0
  %v792 = vadd.f32 0.0, %v791
  %v793 = vpop.f32.mrb[0].mxu0
  %v794 = vadd.f32 0.0, %v793
  %v795 = vpop.f32.mrb[0].mxu0
  %v796 = vadd.f32 0.0, %v795
  %797 = vmatprep.mubr.bf16.mxu0 0
  %798 = vmatmul.mubr.bf16.gmra.mrb[0].mxu0 %v633
  %v799 = vpop.f32.mrb[0].mxu0
  %v800 = vadd.f32 0.0, %v799
  %v801 = vpop.f32.mrb[0].mxu0
  %v802 = vadd.f32 0.0, %v801
  %v803 = vpop.f32.mrb[0].mxu0
  %v804 = vadd.f32 0.0, %v803
  %v805 = vpop.f32.mrb[0].mxu0
  %v806 = vadd.f32 0.0, %v805
  %807 = vmatprep.mubr.bf16.mxu0 0
  %808 = vmatmul.mubr.bf16.gmra.mrb[0].mxu0 %v634
  %v809 = vpop.f32.mrb[0].mxu0
  %v810 = vadd.f32 0.0, %v809
  %v811 = vpop.f32.mrb[0].mxu0
  %v812 = vadd.f32 0.0, %v811
  %v813 = vpop.f32.mrb[0].mxu0
  %v814 = vadd.f32 0.0, %v813
  %v815 = vpop.f32.mrb[0].mxu0
  %v816 = vadd.f32 0.0, %v815
  %817 = vmatprep.mubr.bf16.mxu0 0
  %818 = vmatmul.mubr.bf16.gmra.mrb[0].mxu0 %v635
  %v819 = vpop.f32.mrb[0].mxu0
  %v820 = vadd.f32 0.0, %v819
  %v821 = vpop.f32.mrb[0].mxu0
  %v822 = vadd.f32 0.0, %v821
  %v823 = vpop.f32.mrb[0].mxu0
  %v824 = vadd.f32 0.0, %v823
  %v825 = vpop.f32.mrb[0].mxu0
  %v826 = vadd.f32 0.0, %v825
  %827 = vmatprep.mubr.bf16.mxu0 0
  %828 = vmatmul.mubr.bf16.gmra.mrb[0].mxu0 %v636
  %v829 = vpop.f32.mrb[0].mxu0
  %v830 = vadd.f32 0.0, %v829
  %v831 = vpop.f32.mrb[0].mxu0
  %v832 = vadd.f32 0.0, %v831
  %v833 = vpop.f32.mrb[0].mxu0
  %v834 = vadd.f32 0.0, %v833
  %v835 = vpop.f32.mrb[0].mxu0
  %v836 = vadd.f32 0.0, %v835
  %837 = vdwg.mxu0
  %v838 = vadd.f32 %v485, %v760
  %v839 = vadd.f32 %v487, %v762
  %v840 = vadd.f32 %v489, %v764
  %v841 = vadd.f32 %v491, %v766
  %v842 = vadd.f32 %v495, %v770
  %v843 = vadd.f32 %v497, %v772
  %v844 = vadd.f32 %v499, %v774
  %v845 = vadd.f32 %v501, %v776
  %v846 = vadd.f32 %v505, %v780
  %v847 = vadd.f32 %v507, %v782
  %v848 = vadd.f32 %v509, %v784
  %v849 = vadd.f32 %v511, %v786
  %v850 = vadd.f32 %v515, %v790
  %v851 = vadd.f32 %v517, %v792
  %v852 = vadd.f32 %v519, %v794
  %v853 = vadd.f32 %v521, %v796
  %v854 = vadd.f32 %v525, %v800
  %v855 = vadd.f32 %v527, %v802
  %v856 = vadd.f32 %v529, %v804
  %v857 = vadd.f32 %v531, %v806
  %v858 = vadd.f32 %v535, %v810
  %v859 = vadd.f32 %v537, %v812
  %v860 = vadd.f32 %v539, %v814
  %v861 = vadd.f32 %v541, %v816
  %v862 = vadd.f32 %v545, %v820
  %v863 = vadd.f32 %v547, %v822
  %v864 = vadd.f32 %v549, %v824
  %v865 = vadd.f32 %v551, %v826
  %v866 = vadd.f32 %v555, %v830
  %v867 = vadd.f32 %v557, %v832
  %v868 = vadd.f32 %v559, %v834
  %v869 = vadd.f32 %v561, %v836
  %s870 = scalar_lea.vmem %s0, 192
  %v871 = vld [vmem:[%s870] sm:$0xf]
  %v872 = vld [vmem:[%s870 + $0x4] sm:$0xf]
  %v873 = vld [vmem:[%s870 + $0x8] sm:$0xf]
  %v874 = vld [vmem:[%s870 + $0xc] sm:$0xf]
  %v875 = vld [vmem:[%s870 + $0x10] sm:$0xf]
  %v876 = vld [vmem:[%s870 + $0x14] sm:$0xf]
  %v877 = vld [vmem:[%s870 + $0x18] sm:$0xf]
  %v878 = vld [vmem:[%s870 + $0x1c] sm:$0xf]
  %v879 = vld [vmem:[%s870 + $0x20] sm:$0xf]
  %v880 = vld [vmem:[%s870 + $0x24] sm:$0xf]
  %v881 = vld [vmem:[%s870 + $0x28] sm:$0xf]
  %v882 = vld [vmem:[%s870 + $0x2c] sm:$0xf]
  %v883 = vld [vmem:[%s870 + $0x30] sm:$0xf]
  %v884 = vld [vmem:[%s870 + $0x34] sm:$0xf]
  %v885 = vld [vmem:[%s870 + $0x38] sm:$0xf]
  %v886 = vld [vmem:[%s870 + $0x3c] sm:$0xf]
  %s887 = scalar_lea.vmem %s1, 384
  %v888 = vld [vmem:[%s887] sm:$0xff]
  %v889 = vld [vmem:[%s887 + $0x8] sm:$0xff]
  %v890 = vld [vmem:[%s887 + $0x10] sm:$0xff]
  %v891 = vld [vmem:[%s887 + $0x18] sm:$0xff]
  %v892 = vld [vmem:[%s887 + $0x20] sm:$0xff]
  %v893 = vld [vmem:[%s887 + $0x28] sm:$0xff]
  %v894 = vld [vmem:[%s887 + $0x30] sm:$0xff]
  %v895 = vld [vmem:[%s887 + $0x38] sm:$0xff]
  %v896 = vld [vmem:[%s887 + $0x40] sm:$0xff]
  %v897 = vld [vmem:[%s887 + $0x48] sm:$0xff]
  %v898 = vld [vmem:[%s887 + $0x50] sm:$0xff]
  %v899 = vld [vmem:[%s887 + $0x58] sm:$0xff]
  %v900 = vld [vmem:[%s887 + $0x60] sm:$0xff]
  %v901 = vld [vmem:[%s887 + $0x68] sm:$0xff]
  %v902 = vld [vmem:[%s887 + $0x70] sm:$0xff]
  %v903 = vld [vmem:[%s887 + $0x78] sm:$0xff]
  %v920 = vunpack.c.l.b16 %v871
  %v921 = vunpack.c.l.b16 %v872
  %v922 = vunpack.c.l.b16 %v873
  %v923 = vunpack.c.l.b16 %v874
  %v924 = vunpack.c.l.b16 %v875
  %v925 = vunpack.c.l.b16 %v876
  %v926 = vunpack.c.l.b16 %v877
  %v927 = vunpack.c.l.b16 %v878
  %v928 = vunpack.c.l.b16 %v879
  %v929 = vunpack.c.l.b16 %v880
  %v930 = vunpack.c.l.b16 %v881
  %v931 = vunpack.c.l.b16 %v882
  %v932 = vunpack.c.l.b16 %v883
  %v933 = vunpack.c.l.b16 %v884
  %v934 = vunpack.c.l.b16 %v885
  %v935 = vunpack.c.l.b16 %v886
  %v936 = vpack.c.b16 %v921, %v920
  %v937 = vpack.c.b16 %v923, %v922
  %v938 = vpack.c.b16 %v925, %v924
  %v939 = vpack.c.b16 %v927, %v926
  %v940 = vpack.c.b16 %v929, %v928
  %v941 = vpack.c.b16 %v931, %v930
  %v942 = vpack.c.b16 %v933, %v932
  %v943 = vpack.c.b16 %v935, %v934
  %v968 = vunpack.c.l.b16 %v888
  %v969 = vunpack.c.h.b16 %v888
  %v970 = vunpack.c.l.b16 %v889
  %v971 = vunpack.c.h.b16 %v889
  %v972 = vunpack.c.l.b16 %v890
  %v973 = vunpack.c.h.b16 %v890
  %v974 = vunpack.c.l.b16 %v891
  %v975 = vunpack.c.h.b16 %v891
  %v976 = vunpack.c.l.b16 %v892
  %v977 = vunpack.c.h.b16 %v892
  %v978 = vunpack.c.l.b16 %v893
  %v979 = vunpack.c.h.b16 %v893
  %v980 = vunpack.c.l.b16 %v894
  %v981 = vunpack.c.h.b16 %v894
  %v982 = vunpack.c.l.b16 %v895
  %v983 = vunpack.c.h.b16 %v895
  %v984 = vunpack.c.l.b16 %v896
  %v985 = vunpack.c.h.b16 %v896
  %v986 = vunpack.c.l.b16 %v897
  %v987 = vunpack.c.h.b16 %v897
  %v988 = vunpack.c.l.b16 %v898
  %v989 = vunpack.c.h.b16 %v898
  %v990 = vunpack.c.l.b16 %v899
  %v991 = vunpack.c.h.b16 %v899
  %v992 = vunpack.c.l.b16 %v900
  %v993 = vunpack.c.h.b16 %v900
  %v994 = vunpack.c.l.b16 %v901
  %v995 = vunpack.c.h.b16 %v901
  %v996 = vunpack.c.l.b16 %v902
  %v997 = vunpack.c.h.b16 %v902
  %v998 = vunpack.c.l.b16 %v903
  %v999 = vunpack.c.h.b16 %v903
  %v1000 = vpack.c.b16 %v970, %v968
  %v1001 = vpack.c.b16 %v971, %v969
  %v1002 = vpack.c.b16 %v974, %v972
  %v1003 = vpack.c.b16 %v975, %v973
  %v1004 = vpack.c.b16 %v978, %v976
  %v1005 = vpack.c.b16 %v979, %v977
  %v1006 = vpack.c.b16 %v982, %v980
  %v1007 = vpack.c.b16 %v983, %v981
  %v1008 = vpack.c.b16 %v986, %v984
  %v1009 = vpack.c.b16 %v987, %v985
  %v1010 = vpack.c.b16 %v990, %v988
  %v1011 = vpack.c.b16 %v991, %v989
  %v1012 = vpack.c.b16 %v994, %v992
  %v1013 = vpack.c.b16 %v995, %v993
  %v1014 = vpack.c.b16 %v998, %v996
  %v1015 = vpack.c.b16 %v999, %v997
  %1032 = vmatprep.subr.bf16.mxu0 %v1001
  %1033 = vmatpush1.bf16.msra.mxu0 %v1000
  %1034 = vmatprep.subr.bf16.mxu0 %v1003
  %1035 = vmatpush1.bf16.msra.mxu0 %v1002
  %1036 = vmatprep.subr.bf16.mxu0 %v1005
  %1037 = vmatpush1.bf16.msra.mxu0 %v1004
  %1038 = vmatprep.subr.bf16.mxu0 %v1007
  %1039 = vmatpush1.bf16.msra.mxu0 %v1006
  %1040 = vmatprep.subr.bf16.mxu0 %v1009
  %1041 = vmatpush1.bf16.msra.mxu0 %v1008
  %1042 = vmatprep.subr.bf16.mxu0 %v1011
  %1043 = vmatpush1.bf16.msra.mxu0 %v1010
  %1044 = vmatprep.subr.bf16.mxu0 %v1013
  %1045 = vmatpush1.bf16.msra.mxu0 %v1012
  %1046 = vmatprep.subr.bf16.mxu0 %v1015
  %1047 = vmatpush1.bf16.msra.mxu0 %v1014
  %1048 = vmatprep.subr.bf16.mxu0 0
  %1049 = vmatpush1.bf16.msra.mxu0 0
  %1050 = vmatprep.subr.bf16.mxu0 0
  %1051 = vmatpush1.bf16.msra.mxu0 0
  %1052 = vmatprep.subr.bf16.mxu0 0
  %1053 = vmatpush1.bf16.msra.mxu0 0
  %1054 = vmatprep.subr.bf16.mxu0 0
  %1055 = vmatpush1.bf16.msra.mxu0 0
  %1056 = vmatprep.subr.bf16.mxu0 0
  %1057 = vmatpush1.bf16.msra.mxu0 0
  %1058 = vmatprep.subr.bf16.mxu0 0
  %1059 = vmatpush1.bf16.msra.mxu0 0
  %1060 = vmatprep.subr.bf16.mxu0 0
  %1061 = vmatpush1.bf16.msra.mxu0 0
  %1062 = vmatprep.subr.bf16.mxu0 0
  %1063 = vmatpush1.bf16.msra.mxu0 0
  %1064 = vmatprep.mubr.bf16.mxu0 0
  %1065 = vmatmul.mubr.bf16.gmra.mrb[0].mxu0 %v936
  %v1066 = vpop.f32.mrb[0].mxu0
  %v1067 = vadd.f32 0.0, %v1066
  %v1068 = vpop.f32.mrb[0].mxu0
  %v1069 = vadd.f32 0.0, %v1068
  %v1070 = vpop.f32.mrb[0].mxu0
  %v1071 = vadd.f32 0.0, %v1070
  %v1072 = vpop.f32.mrb[0].mxu0
  %v1073 = vadd.f32 0.0, %v1072
  %1074 = vmatprep.mubr.bf16.mxu0 0
  %1075 = vmatmul.mubr.bf16.gmra.mrb[0].mxu0 %v937
  %v1076 = vpop.f32.mrb[0].mxu0
  %v1077 = vadd.f32 0.0, %v1076
  %v1078 = vpop.f32.mrb[0].mxu0
  %v1079 = vadd.f32 0.0, %v1078
  %v1080 = vpop.f32.mrb[0].mxu0
  %v1081 = vadd.f32 0.0, %v1080
  %v1082 = vpop.f32.mrb[0].mxu0
  %v1083 = vadd.f32 0.0, %v1082
  %1084 = vmatprep.mubr.bf16.mxu0 0
  %1085 = vmatmul.mubr.bf16.gmra.mrb[0].mxu0 %v938
  %v1086 = vpop.f32.mrb[0].mxu0
  %v1087 = vadd.f32 0.0, %v1086
  %v1088 = vpop.f32.mrb[0].mxu0
  %v1089 = vadd.f32 0.0, %v1088
  %v1090 = vpop.f32.mrb[0].mxu0
  %v1091 = vadd.f32 0.0, %v1090
  %v1092 = vpop.f32.mrb[0].mxu0
  %v1093 = vadd.f32 0.0, %v1092
  %1094 = vmatprep.mubr.bf16.mxu0 0
  %1095 = vmatmul.mubr.bf16.gmra.mrb[0].mxu0 %v939
  %v1096 = vpop.f32.mrb[0].mxu0
  %v1097 = vadd.f32 0.0, %v1096
  %v1098 = vpop.f32.mrb[0].mxu0
  %v1099 = vadd.f32 0.0, %v1098
  %v1100 = vpop.f32.mrb[0].mxu0
  %v1101 = vadd.f32 0.0, %v1100
  %v1102 = vpop.f32.mrb[0].mxu0
  %v1103 = vadd.f32 0.0, %v1102
  %1104 = vmatprep.mubr.bf16.mxu0 0
  %1105 = vmatmul.mubr.bf16.gmra.mrb[0].mxu0 %v940
  %v1106 = vpop.f32.mrb[0].mxu0
  %v1107 = vadd.f32 0.0, %v1106
  %v1108 = vpop.f32.mrb[0].mxu0
  %v1109 = vadd.f32 0.0, %v1108
  %v1110 = vpop.f32.mrb[0].mxu0
  %v1111 = vadd.f32 0.0, %v1110
  %v1112 = vpop.f32.mrb[0].mxu0
  %v1113 = vadd.f32 0.0, %v1112
  %1114 = vmatprep.mubr.bf16.mxu0 0
  %1115 = vmatmul.mubr.bf16.gmra.mrb[0].mxu0 %v941
  %v1116 = vpop.f32.mrb[0].mxu0
  %v1117 = vadd.f32 0.0, %v1116
  %v1118 = vpop.f32.mrb[0].mxu0
  %v1119 = vadd.f32 0.0, %v1118
  %v1120 = vpop.f32.mrb[0].mxu0
  %v1121 = vadd.f32 0.0, %v1120
  %v1122 = vpop.f32.mrb[0].mxu0
  %v1123 = vadd.f32 0.0, %v1122
  %1124 = vmatprep.mubr.bf16.mxu0 0
  %1125 = vmatmul.mubr.bf16.gmra.mrb[0].mxu0 %v942
  %v1126 = vpop.f32.mrb[0].mxu0
  %v1127 = vadd.f32 0.0, %v1126
  %v1128 = vpop.f32.mrb[0].mxu0
  %v1129 = vadd.f32 0.0, %v1128
  %v1130 = vpop.f32.mrb[0].mxu0
  %v1131 = vadd.f32 0.0, %v1130
  %v1132 = vpop.f32.mrb[0].mxu0
  %v1133 = vadd.f32 0.0, %v1132
  %1134 = vmatprep.mubr.bf16.mxu0 0
  %1135 = vmatmul.mubr.bf16.gmra.mrb[0].mxu0 %v943
  %v1136 = vpop.f32.mrb[0].mxu0
  %v1137 = vadd.f32 0.0, %v1136
  %v1138 = vpop.f32.mrb[0].mxu0
  %v1139 = vadd.f32 0.0, %v1138
  %v1140 = vpop.f32.mrb[0].mxu0
  %v1141 = vadd.f32 0.0, %v1140
  %v1142 = vpop.f32.mrb[0].mxu0
  %v1143 = vadd.f32 0.0, %v1142
  %1144 = vdwg.mxu0
  %v1145 = vadd.f32 %v838, %v1067
  %v1146 = vadd.f32 %v839, %v1069
  %v1147 = vadd.f32 %v840, %v1071
  %v1148 = vadd.f32 %v841, %v1073
  %v1149 = vadd.f32 %v842, %v1077
  %v1150 = vadd.f32 %v843, %v1079
  %v1151 = vadd.f32 %v844, %v1081
  %v1152 = vadd.f32 %v845, %v1083
  %v1153 = vadd.f32 %v846, %v1087
  %v1154 = vadd.f32 %v847, %v1089
  %v1155 = vadd.f32 %v848, %v1091
  %v1156 = vadd.f32 %v849, %v1093
  %v1157 = vadd.f32 %v850, %v1097
  %v1158 = vadd.f32 %v851, %v1099
  %v1159 = vadd.f32 %v852, %v1101
  %v1160 = vadd.f32 %v853, %v1103
  %v1161 = vadd.f32 %v854, %v1107
  %v1162 = vadd.f32 %v855, %v1109
  %v1163 = vadd.f32 %v856, %v1111
  %v1164 = vadd.f32 %v857, %v1113
  %v1165 = vadd.f32 %v858, %v1117
  %v1166 = vadd.f32 %v859, %v1119
  %v1167 = vadd.f32 %v860, %v1121
  %v1168 = vadd.f32 %v861, %v1123
  %v1169 = vadd.f32 %v862, %v1127
  %v1170 = vadd.f32 %v863, %v1129
  %v1171 = vadd.f32 %v864, %v1131
  %v1172 = vadd.f32 %v865, %v1133
  %v1173 = vadd.f32 %v866, %v1137
  %v1174 = vadd.f32 %v867, %v1139
  %v1175 = vadd.f32 %v868, %v1141
  %v1176 = vadd.f32 %v869, %v1143
  %s1177 = scalar_lea.vmem %s0, 256
  %v1178 = vld [vmem:[%s1177] sm:$0xf]
  %v1179 = vld [vmem:[%s1177 + $0x4] sm:$0xf]
  %v1180 = vld [vmem:[%s1177 + $0x8] sm:$0xf]
  %v1181 = vld [vmem:[%s1177 + $0xc] sm:$0xf]
  %v1182 = vld [vmem:[%s1177 + $0x10] sm:$0xf]
  %v1183 = vld [vmem:[%s1177 + $0x14] sm:$0xf]
  %v1184 = vld [vmem:[%s1177 + $0x18] sm:$0xf]
  %v1185 = vld [vmem:[%s1177 + $0x1c] sm:$0xf]
  %v1186 = vld [vmem:[%s1177 + $0x20] sm:$0xf]
  %v1187 = vld [vmem:[%s1177 + $0x24] sm:$0xf]
  %v1188 = vld [vmem:[%s1177 + $0x28] sm:$0xf]
  %v1189 = vld [vmem:[%s1177 + $0x2c] sm:$0xf]
  %v1190 = vld [vmem:[%s1177 + $0x30] sm:$0xf]
  %v1191 = vld [vmem:[%s1177 + $0x34] sm:$0xf]
  %v1192 = vld [vmem:[%s1177 + $0x38] sm:$0xf]
  %v1193 = vld [vmem:[%s1177 + $0x3c] sm:$0xf]
  %s1194 = scalar_lea.vmem %s1, 512
  %v1195 = vld [vmem:[%s1194] sm:$0xff]
  %v1196 = vld [vmem:[%s1194 + $0x8] sm:$0xff]
  %v1197 = vld [vmem:[%s1194 + $0x10] sm:$0xff]
  %v1198 = vld [vmem:[%s1194 + $0x18] sm:$0xff]
  %v1199 = vld [vmem:[%s1194 + $0x20] sm:$0xff]
  %v1200 = vld [vmem:[%s1194 + $0x28] sm:$0xff]
  %v1201 = vld [vmem:[%s1194 + $0x30] sm:$0xff]
  %v1202 = vld [vmem:[%s1194 + $0x38] sm:$0xff]
  %v1203 = vld [vmem:[%s1194 + $0x40] sm:$0xff]
  %v1204 = vld [vmem:[%s1194 + $0x48] sm:$0xff]
  %v1205 = vld [vmem:[%s1194 + $0x50] sm:$0xff]
  %v1206 = vld [vmem:[%s1194 + $0x58] sm:$0xff]
  %v1207 = vld [vmem:[%s1194 + $0x60] sm:$0xff]
  %v1208 = vld [vmem:[%s1194 + $0x68] sm:$0xff]
  %v1209 = vld [vmem:[%s1194 + $0x70] sm:$0xff]
  %v1210 = vld [vmem:[%s1194 + $0x78] sm:$0xff]
  %v1227 = vunpack.c.l.b16 %v1178
  %v1228 = vunpack.c.l.b16 %v1179
  %v1229 = vunpack.c.l.b16 %v1180
  %v1230 = vunpack.c.l.b16 %v1181
  %v1231 = vunpack.c.l.b16 %v1182
  %v1232 = vunpack.c.l.b16 %v1183
  %v1233 = vunpack.c.l.b16 %v1184
  %v1234 = vunpack.c.l.b16 %v1185
  %v1235 = vunpack.c.l.b16 %v1186
  %v1236 = vunpack.c.l.b16 %v1187
  %v1237 = vunpack.c.l.b16 %v1188
  %v1238 = vunpack.c.l.b16 %v1189
  %v1239 = vunpack.c.l.b16 %v1190
  %v1240 = vunpack.c.l.b16 %v1191
  %v1241 = vunpack.c.l.b16 %v1192
  %v1242 = vunpack.c.l.b16 %v1193
  %v1243 = vpack.c.b16 %v1228, %v1227
  %v1244 = vpack.c.b16 %v1230, %v1229
  %v1245 = vpack.c.b16 %v1232, %v1231
  %v1246 = vpack.c.b16 %v1234, %v1233
  %v1247 = vpack.c.b16 %v1236, %v1235
  %v1248 = vpack.c.b16 %v1238, %v1237
  %v1249 = vpack.c.b16 %v1240, %v1239
  %v1250 = vpack.c.b16 %v1242, %v1241
  %v1275 = vunpack.c.l.b16 %v1195
  %v1276 = vunpack.c.h.b16 %v1195
  %v1277 = vunpack.c.l.b16 %v1196
  %v1278 = vunpack.c.h.b16 %v1196
  %v1279 = vunpack.c.l.b16 %v1197
  %v1280 = vunpack.c.h.b16 %v1197
  %v1281 = vunpack.c.l.b16 %v1198
  %v1282 = vunpack.c.h.b16 %v1198
  %v1283 = vunpack.c.l.b16 %v1199
  %v1284 = vunpack.c.h.b16 %v1199
  %v1285 = vunpack.c.l.b16 %v1200
  %v1286 = vunpack.c.h.b16 %v1200
  %v1287 = vunpack.c.l.b16 %v1201
  %v1288 = vunpack.c.h.b16 %v1201
  %v1289 = vunpack.c.l.b16 %v1202
  %v1290 = vunpack.c.h.b16 %v1202
  %v1291 = vunpack.c.l.b16 %v1203
  %v1292 = vunpack.c.h.b16 %v1203
  %v1293 = vunpack.c.l.b16 %v1204
  %v1294 = vunpack.c.h.b16 %v1204
  %v1295 = vunpack.c.l.b16 %v1205
  %v1296 = vunpack.c.h.b16 %v1205
  %v1297 = vunpack.c.l.b16 %v1206
  %v1298 = vunpack.c.h.b16 %v1206
  %v1299 = vunpack.c.l.b16 %v1207
  %v1300 = vunpack.c.h.b16 %v1207
  %v1301 = vunpack.c.l.b16 %v1208
  %v1302 = vunpack.c.h.b16 %v1208
  %v1303 = vunpack.c.l.b16 %v1209
  %v1304 = vunpack.c.h.b16 %v1209
  %v1305 = vunpack.c.l.b16 %v1210
  %v1306 = vunpack.c.h.b16 %v1210
  %v1307 = vpack.c.b16 %v1277, %v1275
  %v1308 = vpack.c.b16 %v1278, %v1276
  %v1309 = vpack.c.b16 %v1281, %v1279
  %v1310 = vpack.c.b16 %v1282, %v1280
  %v1311 = vpack.c.b16 %v1285, %v1283
  %v1312 = vpack.c.b16 %v1286, %v1284
  %v1313 = vpack.c.b16 %v1289, %v1287
  %v1314 = vpack.c.b16 %v1290, %v1288
  %v1315 = vpack.c.b16 %v1293, %v1291
  %v1316 = vpack.c.b16 %v1294, %v1292
  %v1317 = vpack.c.b16 %v1297, %v1295
  %v1318 = vpack.c.b16 %v1298, %v1296
  %v1319 = vpack.c.b16 %v1301, %v1299
  %v1320 = vpack.c.b16 %v1302, %v1300
  %v1321 = vpack.c.b16 %v1305, %v1303
  %v1322 = vpack.c.b16 %v1306, %v1304
  %1339 = vmatprep.subr.bf16.mxu0 %v1308
  %1340 = vmatpush1.bf16.msra.mxu0 %v1307
  %1341 = vmatprep.subr.bf16.mxu0 %v1310
  %1342 = vmatpush1.bf16.msra.mxu0 %v1309
  %1343 = vmatprep.subr.bf16.mxu0 %v1312
  %1344 = vmatpush1.bf16.msra.mxu0 %v1311
  %1345 = vmatprep.subr.bf16.mxu0 %v1314
  %1346 = vmatpush1.bf16.msra.mxu0 %v1313
  %1347 = vmatprep.subr.bf16.mxu0 %v1316
  %1348 = vmatpush1.bf16.msra.mxu0 %v1315
  %1349 = vmatprep.subr.bf16.mxu0 %v1318
  %1350 = vmatpush1.bf16.msra.mxu0 %v1317
  %1351 = vmatprep.subr.bf16.mxu0 %v1320
  %1352 = vmatpush1.bf16.msra.mxu0 %v1319
  %1353 = vmatprep.subr.bf16.mxu0 %v1322
  %1354 = vmatpush1.bf16.msra.mxu0 %v1321
  %1355 = vmatprep.subr.bf16.mxu0 0
  %1356 = vmatpush1.bf16.msra.mxu0 0
  %1357 = vmatprep.subr.bf16.mxu0 0
  %1358 = vmatpush1.bf16.msra.mxu0 0
  %1359 = vmatprep.subr.bf16.mxu0 0
  %1360 = vmatpush1.bf16.msra.mxu0 0
  %1361 = vmatprep.subr.bf16.mxu0 0
  %1362 = vmatpush1.bf16.msra.mxu0 0
  %1363 = vmatprep.subr.bf16.mxu0 0
  %1364 = vmatpush1.bf16.msra.mxu0 0
  %1365 = vmatprep.subr.bf16.mxu0 0
  %1366 = vmatpush1.bf16.msra.mxu0 0
  %1367 = vmatprep.subr.bf16.mxu0 0
  %1368 = vmatpush1.bf16.msra.mxu0 0
  %1369 = vmatprep.subr.bf16.mxu0 0
  %1370 = vmatpush1.bf16.msra.mxu0 0
  %1371 = vmatprep.mubr.bf16.mxu0 0
  %1372 = vmatmul.mubr.bf16.gmra.mrb[0].mxu0 %v1243
  %v1373 = vpop.f32.mrb[0].mxu0
  %v1374 = vadd.f32 0.0, %v1373
  %v1375 = vpop.f32.mrb[0].mxu0
  %v1376 = vadd.f32 0.0, %v1375
  %v1377 = vpop.f32.mrb[0].mxu0
  %v1378 = vadd.f32 0.0, %v1377
  %v1379 = vpop.f32.mrb[0].mxu0
  %v1380 = vadd.f32 0.0, %v1379
  %1381 = vmatprep.mubr.bf16.mxu0 0
  %1382 = vmatmul.mubr.bf16.gmra.mrb[0].mxu0 %v1244
  %v1383 = vpop.f32.mrb[0].mxu0
  %v1384 = vadd.f32 0.0, %v1383
  %v1385 = vpop.f32.mrb[0].mxu0
  %v1386 = vadd.f32 0.0, %v1385
  %v1387 = vpop.f32.mrb[0].mxu0
  %v1388 = vadd.f32 0.0, %v1387
  %v1389 = vpop.f32.mrb[0].mxu0
  %v1390 = vadd.f32 0.0, %v1389
  %1391 = vmatprep.mubr.bf16.mxu0 0
  %1392 = vmatmul.mubr.bf16.gmra.mrb[0].mxu0 %v1245
  %v1393 = vpop.f32.mrb[0].mxu0
  %v1394 = vadd.f32 0.0, %v1393
  %v1395 = vpop.f32.mrb[0].mxu0
  %v1396 = vadd.f32 0.0, %v1395
  %v1397 = vpop.f32.mrb[0].mxu0
  %v1398 = vadd.f32 0.0, %v1397
  %v1399 = vpop.f32.mrb[0].mxu0
  %v1400 = vadd.f32 0.0, %v1399
  %1401 = vmatprep.mubr.bf16.mxu0 0
  %1402 = vmatmul.mubr.bf16.gmra.mrb[0].mxu0 %v1246
  %v1403 = vpop.f32.mrb[0].mxu0
  %v1404 = vadd.f32 0.0, %v1403
  %v1405 = vpop.f32.mrb[0].mxu0
  %v1406 = vadd.f32 0.0, %v1405
  %v1407 = vpop.f32.mrb[0].mxu0
  %v1408 = vadd.f32 0.0, %v1407
  %v1409 = vpop.f32.mrb[0].mxu0
  %v1410 = vadd.f32 0.0, %v1409
  %1411 = vmatprep.mubr.bf16.mxu0 0
  %1412 = vmatmul.mubr.bf16.gmra.mrb[0].mxu0 %v1247
  %v1413 = vpop.f32.mrb[0].mxu0
  %v1414 = vadd.f32 0.0, %v1413
  %v1415 = vpop.f32.mrb[0].mxu0
  %v1416 = vadd.f32 0.0, %v1415
  %v1417 = vpop.f32.mrb[0].mxu0
  %v1418 = vadd.f32 0.0, %v1417
  %v1419 = vpop.f32.mrb[0].mxu0
  %v1420 = vadd.f32 0.0, %v1419
  %1421 = vmatprep.mubr.bf16.mxu0 0
  %1422 = vmatmul.mubr.bf16.gmra.mrb[0].mxu0 %v1248
  %v1423 = vpop.f32.mrb[0].mxu0
  %v1424 = vadd.f32 0.0, %v1423
  %v1425 = vpop.f32.mrb[0].mxu0
  %v1426 = vadd.f32 0.0, %v1425
  %v1427 = vpop.f32.mrb[0].mxu0
  %v1428 = vadd.f32 0.0, %v1427
  %v1429 = vpop.f32.mrb[0].mxu0
  %v1430 = vadd.f32 0.0, %v1429
  %1431 = vmatprep.mubr.bf16.mxu0 0
  %1432 = vmatmul.mubr.bf16.gmra.mrb[0].mxu0 %v1249
  %v1433 = vpop.f32.mrb[0].mxu0
  %v1434 = vadd.f32 0.0, %v1433
  %v1435 = vpop.f32.mrb[0].mxu0
  %v1436 = vadd.f32 0.0, %v1435
  %v1437 = vpop.f32.mrb[0].mxu0
  %v1438 = vadd.f32 0.0, %v1437
  %v1439 = vpop.f32.mrb[0].mxu0
  %v1440 = vadd.f32 0.0, %v1439
  %1441 = vmatprep.mubr.bf16.mxu0 0
  %1442 = vmatmul.mubr.bf16.gmra.mrb[0].mxu0 %v1250
  %v1443 = vpop.f32.mrb[0].mxu0
  %v1444 = vadd.f32 0.0, %v1443
  %v1445 = vpop.f32.mrb[0].mxu0
  %v1446 = vadd.f32 0.0, %v1445
  %v1447 = vpop.f32.mrb[0].mxu0
  %v1448 = vadd.f32 0.0, %v1447
  %v1449 = vpop.f32.mrb[0].mxu0
  %v1450 = vadd.f32 0.0, %v1449
  %1451 = vdwg.mxu0
  %v1452 = vadd.f32 %v1145, %v1374
  %v1453 = vadd.f32 %v1146, %v1376
  %v1454 = vadd.f32 %v1147, %v1378
  %v1455 = vadd.f32 %v1148, %v1380
  %v1456 = vadd.f32 %v1149, %v1384
  %v1457 = vadd.f32 %v1150, %v1386
  %v1458 = vadd.f32 %v1151, %v1388
  %v1459 = vadd.f32 %v1152, %v1390
  %v1460 = vadd.f32 %v1153, %v1394
  %v1461 = vadd.f32 %v1154, %v1396
  %v1462 = vadd.f32 %v1155, %v1398
  %v1463 = vadd.f32 %v1156, %v1400
  %v1464 = vadd.f32 %v1157, %v1404
  %v1465 = vadd.f32 %v1158, %v1406
  %v1466 = vadd.f32 %v1159, %v1408
  %v1467 = vadd.f32 %v1160, %v1410
  %v1468 = vadd.f32 %v1161, %v1414
  %v1469 = vadd.f32 %v1162, %v1416
  %v1470 = vadd.f32 %v1163, %v1418
  %v1471 = vadd.f32 %v1164, %v1420
  %v1472 = vadd.f32 %v1165, %v1424
  %v1473 = vadd.f32 %v1166, %v1426
  %v1474 = vadd.f32 %v1167, %v1428
  %v1475 = vadd.f32 %v1168, %v1430
  %v1476 = vadd.f32 %v1169, %v1434
  %v1477 = vadd.f32 %v1170, %v1436
  %v1478 = vadd.f32 %v1171, %v1438
  %v1479 = vadd.f32 %v1172, %v1440
  %v1480 = vadd.f32 %v1173, %v1444
  %v1481 = vadd.f32 %v1174, %v1446
  %v1482 = vadd.f32 %v1175, %v1448
  %v1483 = vadd.f32 %v1176, %v1450
  %s1484 = scalar_lea.vmem %s0, 320
  %v1485 = vld [vmem:[%s1484] sm:$0xf]
  %v1486 = vld [vmem:[%s1484 + $0x4] sm:$0xf]
  %v1487 = vld [vmem:[%s1484 + $0x8] sm:$0xf]
  %v1488 = vld [vmem:[%s1484 + $0xc] sm:$0xf]
  %v1489 = vld [vmem:[%s1484 + $0x10] sm:$0xf]
  %v1490 = vld [vmem:[%s1484 + $0x14] sm:$0xf]
  %v1491 = vld [vmem:[%s1484 + $0x18] sm:$0xf]
  %v1492 = vld [vmem:[%s1484 + $0x1c] sm:$0xf]
  %v1493 = vld [vmem:[%s1484 + $0x20] sm:$0xf]
  %v1494 = vld [vmem:[%s1484 + $0x24] sm:$0xf]
  %v1495 = vld [vmem:[%s1484 + $0x28] sm:$0xf]
  %v1496 = vld [vmem:[%s1484 + $0x2c] sm:$0xf]
  %v1497 = vld [vmem:[%s1484 + $0x30] sm:$0xf]
  %v1498 = vld [vmem:[%s1484 + $0x34] sm:$0xf]
  %v1499 = vld [vmem:[%s1484 + $0x38] sm:$0xf]
  %v1500 = vld [vmem:[%s1484 + $0x3c] sm:$0xf]
  %s1501 = scalar_lea.vmem %s1, 640
  %v1502 = vld [vmem:[%s1501] sm:$0xff]
  %v1503 = vld [vmem:[%s1501 + $0x8] sm:$0xff]
  %v1504 = vld [vmem:[%s1501 + $0x10] sm:$0xff]
  %v1505 = vld [vmem:[%s1501 + $0x18] sm:$0xff]
  %v1506 = vld [vmem:[%s1501 + $0x20] sm:$0xff]
  %v1507 = vld [vmem:[%s1501 + $0x28] sm:$0xff]
  %v1508 = vld [vmem:[%s1501 + $0x30] sm:$0xff]
  %v1509 = vld [vmem:[%s1501 + $0x38] sm:$0xff]
  %v1510 = vld [vmem:[%s1501 + $0x40] sm:$0xff]
  %v1511 = vld [vmem:[%s1501 + $0x48] sm:$0xff]
  %v1512 = vld [vmem:[%s1501 + $0x50] sm:$0xff]
  %v1513 = vld [vmem:[%s1501 + $0x58] sm:$0xff]
  %v1514 = vld [vmem:[%s1501 + $0x60] sm:$0xff]
  %v1515 = vld [vmem:[%s1501 + $0x68] sm:$0xff]
  %v1516 = vld [vmem:[%s1501 + $0x70] sm:$0xff]
  %v1517 = vld [vmem:[%s1501 + $0x78] sm:$0xff]
  %v1534 = vunpack.c.l.b16 %v1485
  %v1535 = vunpack.c.l.b16 %v1486
  %v1536 = vunpack.c.l.b16 %v1487
  %v1537 = vunpack.c.l.b16 %v1488
  %v1538 = vunpack.c.l.b16 %v1489
  %v1539 = vunpack.c.l.b16 %v1490
  %v1540 = vunpack.c.l.b16 %v1491
  %v1541 = vunpack.c.l.b16 %v1492
  %v1542 = vunpack.c.l.b16 %v1493
  %v1543 = vunpack.c.l.b16 %v1494
  %v1544 = vunpack.c.l.b16 %v1495
  %v1545 = vunpack.c.l.b16 %v1496
  %v1546 = vunpack.c.l.b16 %v1497
  %v1547 = vunpack.c.l.b16 %v1498
  %v1548 = vunpack.c.l.b16 %v1499
  %v1549 = vunpack.c.l.b16 %v1500
  %v1550 = vpack.c.b16 %v1535, %v1534
  %v1551 = vpack.c.b16 %v1537, %v1536
  %v1552 = vpack.c.b16 %v1539, %v1538
  %v1553 = vpack.c.b16 %v1541, %v1540
  %v1554 = vpack.c.b16 %v1543, %v1542
  %v1555 = vpack.c.b16 %v1545, %v1544
  %v1556 = vpack.c.b16 %v1547, %v1546
  %v1557 = vpack.c.b16 %v1549, %v1548
  %v1582 = vunpack.c.l.b16 %v1502
  %v1583 = vunpack.c.h.b16 %v1502
  %v1584 = vunpack.c.l.b16 %v1503
  %v1585 = vunpack.c.h.b16 %v1503
  %v1586 = vunpack.c.l.b16 %v1504
  %v1587 = vunpack.c.h.b16 %v1504
  %v1588 = vunpack.c.l.b16 %v1505
  %v1589 = vunpack.c.h.b16 %v1505
  %v1590 = vunpack.c.l.b16 %v1506
  %v1591 = vunpack.c.h.b16 %v1506
  %v1592 = vunpack.c.l.b16 %v1507
  %v1593 = vunpack.c.h.b16 %v1507
  %v1594 = vunpack.c.l.b16 %v1508
  %v1595 = vunpack.c.h.b16 %v1508
  %v1596 = vunpack.c.l.b16 %v1509
  %v1597 = vunpack.c.h.b16 %v1509
  %v1598 = vunpack.c.l.b16 %v1510
  %v1599 = vunpack.c.h.b16 %v1510
  %v1600 = vunpack.c.l.b16 %v1511
  %v1601 = vunpack.c.h.b16 %v1511
  %v1602 = vunpack.c.l.b16 %v1512
  %v1603 = vunpack.c.h.b16 %v1512
  %v1604 = vunpack.c.l.b16 %v1513
  %v1605 = vunpack.c.h.b16 %v1513
  %v1606 = vunpack.c.l.b16 %v1514
  %v1607 = vunpack.c.h.b16 %v1514
  %v1608 = vunpack.c.l.b16 %v1515
  %v1609 = vunpack.c.h.b16 %v1515
  %v1610 = vunpack.c.l.b16 %v1516
  %v1611 = vunpack.c.h.b16 %v1516
  %v1612 = vunpack.c.l.b16 %v1517
  %v1613 = vunpack.c.h.b16 %v1517
  %v1614 = vpack.c.b16 %v1584, %v1582
  %v1615 = vpack.c.b16 %v1585, %v1583
  %v1616 = vpack.c.b16 %v1588, %v1586
  %v1617 = vpack.c.b16 %v1589, %v1587
  %v1618 = vpack.c.b16 %v1592, %v1590
  %v1619 = vpack.c.b16 %v1593, %v1591
  %v1620 = vpack.c.b16 %v1596, %v1594
  %v1621 = vpack.c.b16 %v1597, %v1595
  %v1622 = vpack.c.b16 %v1600, %v1598
  %v1623 = vpack.c.b16 %v1601, %v1599
  %v1624 = vpack.c.b16 %v1604, %v1602
  %v1625 = vpack.c.b16 %v1605, %v1603
  %v1626 = vpack.c.b16 %v1608, %v1606
  %v1627 = vpack.c.b16 %v1609, %v1607
  %v1628 = vpack.c.b16 %v1612, %v1610
  %v1629 = vpack.c.b16 %v1613, %v1611
  %1646 = vmatprep.subr.bf16.mxu0 %v1615
  %1647 = vmatpush1.bf16.msra.mxu0 %v1614
  %1648 = vmatprep.subr.bf16.mxu0 %v1617
  %1649 = vmatpush1.bf16.msra.mxu0 %v1616
  %1650 = vmatprep.subr.bf16.mxu0 %v1619
  %1651 = vmatpush1.bf16.msra.mxu0 %v1618
  %1652 = vmatprep.subr.bf16.mxu0 %v1621
  %1653 = vmatpush1.bf16.msra.mxu0 %v1620
  %1654 = vmatprep.subr.bf16.mxu0 %v1623
  %1655 = vmatpush1.bf16.msra.mxu0 %v1622
  %1656 = vmatprep.subr.bf16.mxu0 %v1625
  %1657 = vmatpush1.bf16.msra.mxu0 %v1624
  %1658 = vmatprep.subr.bf16.mxu0 %v1627
  %1659 = vmatpush1.bf16.msra.mxu0 %v1626
  %1660 = vmatprep.subr.bf16.mxu0 %v1629
  %1661 = vmatpush1.bf16.msra.mxu0 %v1628
  %1662 = vmatprep.subr.bf16.mxu0 0
  %1663 = vmatpush1.bf16.msra.mxu0 0
  %1664 = vmatprep.subr.bf16.mxu0 0
  %1665 = vmatpush1.bf16.msra.mxu0 0
  %1666 = vmatprep.subr.bf16.mxu0 0
  %1667 = vmatpush1.bf16.msra.mxu0 0
  %1668 = vmatprep.subr.bf16.mxu0 0
  %1669 = vmatpush1.bf16.msra.mxu0 0
  %1670 = vmatprep.subr.bf16.mxu0 0
  %1671 = vmatpush1.bf16.msra.mxu0 0
  %1672 = vmatprep.subr.bf16.mxu0 0
  %1673 = vmatpush1.bf16.msra.mxu0 0
  %1674 = vmatprep.subr.bf16.mxu0 0
  %1675 = vmatpush1.bf16.msra.mxu0 0
  %1676 = vmatprep.subr.bf16.mxu0 0
  %1677 = vmatpush1.bf16.msra.mxu0 0
  %1678 = vmatprep.mubr.bf16.mxu0 0
  %1679 = vmatmul.mubr.bf16.gmra.mrb[0].mxu0 %v1550
  %v1680 = vpop.f32.mrb[0].mxu0
  %v1681 = vadd.f32 0.0, %v1680
  %v1682 = vpop.f32.mrb[0].mxu0
  %v1683 = vadd.f32 0.0, %v1682
  %v1684 = vpop.f32.mrb[0].mxu0
  %v1685 = vadd.f32 0.0, %v1684
  %v1686 = vpop.f32.mrb[0].mxu0
  %v1687 = vadd.f32 0.0, %v1686
  %1688 = vmatprep.mubr.bf16.mxu0 0
  %1689 = vmatmul.mubr.bf16.gmra.mrb[0].mxu0 %v1551
  %v1690 = vpop.f32.mrb[0].mxu0
  %v1691 = vadd.f32 0.0, %v1690
  %v1692 = vpop.f32.mrb[0].mxu0
  %v1693 = vadd.f32 0.0, %v1692
  %v1694 = vpop.f32.mrb[0].mxu0
  %v1695 = vadd.f32 0.0, %v1694
  %v1696 = vpop.f32.mrb[0].mxu0
  %v1697 = vadd.f32 0.0, %v1696
  %1698 = vmatprep.mubr.bf16.mxu0 0
  %1699 = vmatmul.mubr.bf16.gmra.mrb[0].mxu0 %v1552
  %v1700 = vpop.f32.mrb[0].mxu0
  %v1701 = vadd.f32 0.0, %v1700
  %v1702 = vpop.f32.mrb[0].mxu0
  %v1703 = vadd.f32 0.0, %v1702
  %v1704 = vpop.f32.mrb[0].mxu0
  %v1705 = vadd.f32 0.0, %v1704
  %v1706 = vpop.f32.mrb[0].mxu0
  %v1707 = vadd.f32 0.0, %v1706
  %1708 = vmatprep.mubr.bf16.mxu0 0
  %1709 = vmatmul.mubr.bf16.gmra.mrb[0].mxu0 %v1553
  %v1710 = vpop.f32.mrb[0].mxu0
  %v1711 = vadd.f32 0.0, %v1710
  %v1712 = vpop.f32.mrb[0].mxu0
  %v1713 = vadd.f32 0.0, %v1712
  %v1714 = vpop.f32.mrb[0].mxu0
  %v1715 = vadd.f32 0.0, %v1714
  %v1716 = vpop.f32.mrb[0].mxu0
  %v1717 = vadd.f32 0.0, %v1716
  %1718 = vmatprep.mubr.bf16.mxu0 0
  %1719 = vmatmul.mubr.bf16.gmra.mrb[0].mxu0 %v1554
  %v1720 = vpop.f32.mrb[0].mxu0
  %v1721 = vadd.f32 0.0, %v1720
  %v1722 = vpop.f32.mrb[0].mxu0
  %v1723 = vadd.f32 0.0, %v1722
  %v1724 = vpop.f32.mrb[0].mxu0
  %v1725 = vadd.f32 0.0, %v1724
  %v1726 = vpop.f32.mrb[0].mxu0
  %v1727 = vadd.f32 0.0, %v1726
  %1728 = vmatprep.mubr.bf16.mxu0 0
  %1729 = vmatmul.mubr.bf16.gmra.mrb[0].mxu0 %v1555
  %v1730 = vpop.f32.mrb[0].mxu0
  %v1731 = vadd.f32 0.0, %v1730
  %v1732 = vpop.f32.mrb[0].mxu0
  %v1733 = vadd.f32 0.0, %v1732
  %v1734 = vpop.f32.mrb[0].mxu0
  %v1735 = vadd.f32 0.0, %v1734
  %v1736 = vpop.f32.mrb[0].mxu0
  %v1737 = vadd.f32 0.0, %v1736
  %1738 = vmatprep.mubr.bf16.mxu0 0
  %1739 = vmatmul.mubr.bf16.gmra.mrb[0].mxu0 %v1556
  %v1740 = vpop.f32.mrb[0].mxu0
  %v1741 = vadd.f32 0.0, %v1740
  %v1742 = vpop.f32.mrb[0].mxu0
  %v1743 = vadd.f32 0.0, %v1742
  %v1744 = vpop.f32.mrb[0].mxu0
  %v1745 = vadd.f32 0.0, %v1744
  %v1746 = vpop.f32.mrb[0].mxu0
  %v1747 = vadd.f32 0.0, %v1746
  %1748 = vmatprep.mubr.bf16.mxu0 0
  %1749 = vmatmul.mubr.bf16.gmra.mrb[0].mxu0 %v1557
  %v1750 = vpop.f32.mrb[0].mxu0
  %v1751 = vadd.f32 0.0, %v1750
  %v1752 = vpop.f32.mrb[0].mxu0
  %v1753 = vadd.f32 0.0, %v1752
  %v1754 = vpop.f32.mrb[0].mxu0
  %v1755 = vadd.f32 0.0, %v1754
  %v1756 = vpop.f32.mrb[0].mxu0
  %v1757 = vadd.f32 0.0, %v1756
  %1758 = vdwg.mxu0
  %v1759 = vadd.f32 %v1452, %v1681
  %v1760 = vadd.f32 %v1453, %v1683
  %v1761 = vadd.f32 %v1454, %v1685
  %v1762 = vadd.f32 %v1455, %v1687
  %v1763 = vadd.f32 %v1456, %v1691
  %v1764 = vadd.f32 %v1457, %v1693
  %v1765 = vadd.f32 %v1458, %v1695
  %v1766 = vadd.f32 %v1459, %v1697
  %v1767 = vadd.f32 %v1460, %v1701
  %v1768 = vadd.f32 %v1461, %v1703
  %v1769 = vadd.f32 %v1462, %v1705
  %v1770 = vadd.f32 %v1463, %v1707
  %v1771 = vadd.f32 %v1464, %v1711
  %v1772 = vadd.f32 %v1465, %v1713
  %v1773 = vadd.f32 %v1466, %v1715
  %v1774 = vadd.f32 %v1467, %v1717
  %v1775 = vadd.f32 %v1468, %v1721
  %v1776 = vadd.f32 %v1469, %v1723
  %v1777 = vadd.f32 %v1470, %v1725
  %v1778 = vadd.f32 %v1471, %v1727
  %v1779 = vadd.f32 %v1472, %v1731
  %v1780 = vadd.f32 %v1473, %v1733
  %v1781 = vadd.f32 %v1474, %v1735
  %v1782 = vadd.f32 %v1475, %v1737
  %v1783 = vadd.f32 %v1476, %v1741
  %v1784 = vadd.f32 %v1477, %v1743
  %v1785 = vadd.f32 %v1478, %v1745
  %v1786 = vadd.f32 %v1479, %v1747
  %v1787 = vadd.f32 %v1480, %v1751
  %v1788 = vadd.f32 %v1481, %v1753
  %v1789 = vadd.f32 %v1482, %v1755
  %v1790 = vadd.f32 %v1483, %v1757
  %s1791 = scalar_lea.vmem %s0, 384
  %v1792 = vld [vmem:[%s1791] sm:$0xf]
  %v1793 = vld [vmem:[%s1791 + $0x4] sm:$0xf]
  %v1794 = vld [vmem:[%s1791 + $0x8] sm:$0xf]
  %v1795 = vld [vmem:[%s1791 + $0xc] sm:$0xf]
  %v1796 = vld [vmem:[%s1791 + $0x10] sm:$0xf]
  %v1797 = vld [vmem:[%s1791 + $0x14] sm:$0xf]
  %v1798 = vld [vmem:[%s1791 + $0x18] sm:$0xf]
  %v1799 = vld [vmem:[%s1791 + $0x1c] sm:$0xf]
  %v1800 = vld [vmem:[%s1791 + $0x20] sm:$0xf]
  %v1801 = vld [vmem:[%s1791 + $0x24] sm:$0xf]
  %v1802 = vld [vmem:[%s1791 + $0x28] sm:$0xf]
  %v1803 = vld [vmem:[%s1791 + $0x2c] sm:$0xf]
  %v1804 = vld [vmem:[%s1791 + $0x30] sm:$0xf]
  %v1805 = vld [vmem:[%s1791 + $0x34] sm:$0xf]
  %v1806 = vld [vmem:[%s1791 + $0x38] sm:$0xf]
  %v1807 = vld [vmem:[%s1791 + $0x3c] sm:$0xf]
  %s1808 = scalar_lea.vmem %s1, 768
  %v1809 = vld [vmem:[%s1808] sm:$0xff]
  %v1810 = vld [vmem:[%s1808 + $0x8] sm:$0xff]
  %v1811 = vld [vmem:[%s1808 + $0x10] sm:$0xff]
  %v1812 = vld [vmem:[%s1808 + $0x18] sm:$0xff]
  %v1813 = vld [vmem:[%s1808 + $0x20] sm:$0xff]
  %v1814 = vld [vmem:[%s1808 + $0x28] sm:$0xff]
  %v1815 = vld [vmem:[%s1808 + $0x30] sm:$0xff]
  %v1816 = vld [vmem:[%s1808 + $0x38] sm:$0xff]
  %v1817 = vld [vmem:[%s1808 + $0x40] sm:$0xff]
  %v1818 = vld [vmem:[%s1808 + $0x48] sm:$0xff]
  %v1819 = vld [vmem:[%s1808 + $0x50] sm:$0xff]
  %v1820 = vld [vmem:[%s1808 + $0x58] sm:$0xff]
  %v1821 = vld [vmem:[%s1808 + $0x60] sm:$0xff]
  %v1822 = vld [vmem:[%s1808 + $0x68] sm:$0xff]
  %v1823 = vld [vmem:[%s1808 + $0x70] sm:$0xff]
  %v1824 = vld [vmem:[%s1808 + $0x78] sm:$0xff]
  %v1841 = vunpack.c.l.b16 %v1792
  %v1842 = vunpack.c.l.b16 %v1793
  %v1843 = vunpack.c.l.b16 %v1794
  %v1844 = vunpack.c.l.b16 %v1795
  %v1845 = vunpack.c.l.b16 %v1796
  %v1846 = vunpack.c.l.b16 %v1797
  %v1847 = vunpack.c.l.b16 %v1798
  %v1848 = vunpack.c.l.b16 %v1799
  %v1849 = vunpack.c.l.b16 %v1800
  %v1850 = vunpack.c.l.b16 %v1801
  %v1851 = vunpack.c.l.b16 %v1802
  %v1852 = vunpack.c.l.b16 %v1803
  %v1853 = vunpack.c.l.b16 %v1804
  %v1854 = vunpack.c.l.b16 %v1805
  %v1855 = vunpack.c.l.b16 %v1806
  %v1856 = vunpack.c.l.b16 %v1807
  %v1857 = vpack.c.b16 %v1842, %v1841
  %v1858 = vpack.c.b16 %v1844, %v1843
  %v1859 = vpack.c.b16 %v1846, %v1845
  %v1860 = vpack.c.b16 %v1848, %v1847
  %v1861 = vpack.c.b16 %v1850, %v1849
  %v1862 = vpack.c.b16 %v1852, %v1851
  %v1863 = vpack.c.b16 %v1854, %v1853
  %v1864 = vpack.c.b16 %v1856, %v1855
  %v1889 = vunpack.c.l.b16 %v1809
  %v1890 = vunpack.c.h.b16 %v1809
  %v1891 = vunpack.c.l.b16 %v1810
  %v1892 = vunpack.c.h.b16 %v1810
  %v1893 = vunpack.c.l.b16 %v1811
  %v1894 = vunpack.c.h.b16 %v1811
  %v1895 = vunpack.c.l.b16 %v1812
  %v1896 = vunpack.c.h.b16 %v1812
  %v1897 = vunpack.c.l.b16 %v1813
  %v1898 = vunpack.c.h.b16 %v1813
  %v1899 = vunpack.c.l.b16 %v1814
  %v1900 = vunpack.c.h.b16 %v1814
  %v1901 = vunpack.c.l.b16 %v1815
  %v1902 = vunpack.c.h.b16 %v1815
  %v1903 = vunpack.c.l.b16 %v1816
  %v1904 = vunpack.c.h.b16 %v1816
  %v1905 = vunpack.c.l.b16 %v1817
  %v1906 = vunpack.c.h.b16 %v1817
  %v1907 = vunpack.c.l.b16 %v1818
  %v1908 = vunpack.c.h.b16 %v1818
  %v1909 = vunpack.c.l.b16 %v1819
  %v1910 = vunpack.c.h.b16 %v1819
  %v1911 = vunpack.c.l.b16 %v1820
  %v1912 = vunpack.c.h.b16 %v1820
  %v1913 = vunpack.c.l.b16 %v1821
  %v1914 = vunpack.c.h.b16 %v1821
  %v1915 = vunpack.c.l.b16 %v1822
  %v1916 = vunpack.c.h.b16 %v1822
  %v1917 = vunpack.c.l.b16 %v1823
  %v1918 = vunpack.c.h.b16 %v1823
  %v1919 = vunpack.c.l.b16 %v1824
  %v1920 = vunpack.c.h.b16 %v1824
  %v1921 = vpack.c.b16 %v1891, %v1889
  %v1922 = vpack.c.b16 %v1892, %v1890
  %v1923 = vpack.c.b16 %v1895, %v1893
  %v1924 = vpack.c.b16 %v1896, %v1894
  %v1925 = vpack.c.b16 %v1899, %v1897
  %v1926 = vpack.c.b16 %v1900, %v1898
  %v1927 = vpack.c.b16 %v1903, %v1901
  %v1928 = vpack.c.b16 %v1904, %v1902
  %v1929 = vpack.c.b16 %v1907, %v1905
  %v1930 = vpack.c.b16 %v1908, %v1906
  %v1931 = vpack.c.b16 %v1911, %v1909
  %v1932 = vpack.c.b16 %v1912, %v1910
  %v1933 = vpack.c.b16 %v1915, %v1913
  %v1934 = vpack.c.b16 %v1916, %v1914
  %v1935 = vpack.c.b16 %v1919, %v1917
  %v1936 = vpack.c.b16 %v1920, %v1918
  %1953 = vmatprep.subr.bf16.mxu0 %v1922
  %1954 = vmatpush1.bf16.msra.mxu0 %v1921
  %1955 = vmatprep.subr.bf16.mxu0 %v1924
  %1956 = vmatpush1.bf16.msra.mxu0 %v1923
  %1957 = vmatprep.subr.bf16.mxu0 %v1926
  %1958 = vmatpush1.bf16.msra.mxu0 %v1925
  %1959 = vmatprep.subr.bf16.mxu0 %v1928
  %1960 = vmatpush1.bf16.msra.mxu0 %v1927
  %1961 = vmatprep.subr.bf16.mxu0 %v1930
  %1962 = vmatpush1.bf16.msra.mxu0 %v1929
  %1963 = vmatprep.subr.bf16.mxu0 %v1932
  %1964 = vmatpush1.bf16.msra.mxu0 %v1931
  %1965 = vmatprep.subr.bf16.mxu0 %v1934
  %1966 = vmatpush1.bf16.msra.mxu0 %v1933
  %1967 = vmatprep.subr.bf16.mxu0 %v1936
  %1968 = vmatpush1.bf16.msra.mxu0 %v1935
  %1969 = vmatprep.subr.bf16.mxu0 0
  %1970 = vmatpush1.bf16.msra.mxu0 0
  %1971 = vmatprep.subr.bf16.mxu0 0
  %1972 = vmatpush1.bf16.msra.mxu0 0
  %1973 = vmatprep.subr.bf16.mxu0 0
  %1974 = vmatpush1.bf16.msra.mxu0 0
  %1975 = vmatprep.subr.bf16.mxu0 0
  %1976 = vmatpush1.bf16.msra.mxu0 0
  %1977 = vmatprep.subr.bf16.mxu0 0
  %1978 = vmatpush1.bf16.msra.mxu0 0
  %1979 = vmatprep.subr.bf16.mxu0 0
  %1980 = vmatpush1.bf16.msra.mxu0 0
  %1981 = vmatprep.subr.bf16.mxu0 0
  %1982 = vmatpush1.bf16.msra.mxu0 0
  %1983 = vmatprep.subr.bf16.mxu0 0
  %1984 = vmatpush1.bf16.msra.mxu0 0
  %1985 = vmatprep.mubr.bf16.mxu0 0
  %1986 = vmatmul.mubr.bf16.gmra.mrb[0].mxu0 %v1857
  %v1987 = vpop.f32.mrb[0].mxu0
  %v1988 = vadd.f32 0.0, %v1987
  %v1989 = vpop.f32.mrb[0].mxu0
  %v1990 = vadd.f32 0.0, %v1989
  %v1991 = vpop.f32.mrb[0].mxu0
  %v1992 = vadd.f32 0.0, %v1991
  %v1993 = vpop.f32.mrb[0].mxu0
  %v1994 = vadd.f32 0.0, %v1993
  %1995 = vmatprep.mubr.bf16.mxu0 0
  %1996 = vmatmul.mubr.bf16.gmra.mrb[0].mxu0 %v1858
  %v1997 = vpop.f32.mrb[0].mxu0
  %v1998 = vadd.f32 0.0, %v1997
  %v1999 = vpop.f32.mrb[0].mxu0
  %v2000 = vadd.f32 0.0, %v1999
  %v2001 = vpop.f32.mrb[0].mxu0
  %v2002 = vadd.f32 0.0, %v2001
  %v2003 = vpop.f32.mrb[0].mxu0
  %v2004 = vadd.f32 0.0, %v2003
  %2005 = vmatprep.mubr.bf16.mxu0 0
  %2006 = vmatmul.mubr.bf16.gmra.mrb[0].mxu0 %v1859
  %v2007 = vpop.f32.mrb[0].mxu0
  %v2008 = vadd.f32 0.0, %v2007
  %v2009 = vpop.f32.mrb[0].mxu0
  %v2010 = vadd.f32 0.0, %v2009
  %v2011 = vpop.f32.mrb[0].mxu0
  %v2012 = vadd.f32 0.0, %v2011
  %v2013 = vpop.f32.mrb[0].mxu0
  %v2014 = vadd.f32 0.0, %v2013
  %2015 = vmatprep.mubr.bf16.mxu0 0
  %2016 = vmatmul.mubr.bf16.gmra.mrb[0].mxu0 %v1860
  %v2017 = vpop.f32.mrb[0].mxu0
  %v2018 = vadd.f32 0.0, %v2017
  %v2019 = vpop.f32.mrb[0].mxu0
  %v2020 = vadd.f32 0.0, %v2019
  %v2021 = vpop.f32.mrb[0].mxu0
  %v2022 = vadd.f32 0.0, %v2021
  %v2023 = vpop.f32.mrb[0].mxu0
  %v2024 = vadd.f32 0.0, %v2023
  %2025 = vmatprep.mubr.bf16.mxu0 0
  %2026 = vmatmul.mubr.bf16.gmra.mrb[0].mxu0 %v1861
  %v2027 = vpop.f32.mrb[0].mxu0
  %v2028 = vadd.f32 0.0, %v2027
  %v2029 = vpop.f32.mrb[0].mxu0
  %v2030 = vadd.f32 0.0, %v2029
  %v2031 = vpop.f32.mrb[0].mxu0
  %v2032 = vadd.f32 0.0, %v2031
  %v2033 = vpop.f32.mrb[0].mxu0
  %v2034 = vadd.f32 0.0, %v2033
  %2035 = vmatprep.mubr.bf16.mxu0 0
  %2036 = vmatmul.mubr.bf16.gmra.mrb[0].mxu0 %v1862
  %v2037 = vpop.f32.mrb[0].mxu0
  %v2038 = vadd.f32 0.0, %v2037
  %v2039 = vpop.f32.mrb[0].mxu0
  %v2040 = vadd.f32 0.0, %v2039
  %v2041 = vpop.f32.mrb[0].mxu0
  %v2042 = vadd.f32 0.0, %v2041
  %v2043 = vpop.f32.mrb[0].mxu0
  %v2044 = vadd.f32 0.0, %v2043
  %2045 = vmatprep.mubr.bf16.mxu0 0
  %2046 = vmatmul.mubr.bf16.gmra.mrb[0].mxu0 %v1863
  %v2047 = vpop.f32.mrb[0].mxu0
  %v2048 = vadd.f32 0.0, %v2047
  %v2049 = vpop.f32.mrb[0].mxu0
  %v2050 = vadd.f32 0.0, %v2049
  %v2051 = vpop.f32.mrb[0].mxu0
  %v2052 = vadd.f32 0.0, %v2051
  %v2053 = vpop.f32.mrb[0].mxu0
  %v2054 = vadd.f32 0.0, %v2053
  %2055 = vmatprep.mubr.bf16.mxu0 0
  %2056 = vmatmul.mubr.bf16.gmra.mrb[0].mxu0 %v1864
  %v2057 = vpop.f32.mrb[0].mxu0
  %v2058 = vadd.f32 0.0, %v2057
  %v2059 = vpop.f32.mrb[0].mxu0
  %v2060 = vadd.f32 0.0, %v2059
  %v2061 = vpop.f32.mrb[0].mxu0
  %v2062 = vadd.f32 0.0, %v2061
  %v2063 = vpop.f32.mrb[0].mxu0
  %v2064 = vadd.f32 0.0, %v2063
  %2065 = vdwg.mxu0
  %v2066 = vadd.f32 %v1759, %v1988
  %v2067 = vadd.f32 %v1760, %v1990
  %v2068 = vadd.f32 %v1761, %v1992
  %v2069 = vadd.f32 %v1762, %v1994
  %v2070 = vadd.f32 %v1763, %v1998
  %v2071 = vadd.f32 %v1764, %v2000
  %v2072 = vadd.f32 %v1765, %v2002
  %v2073 = vadd.f32 %v1766, %v2004
  %v2074 = vadd.f32 %v1767, %v2008
  %v2075 = vadd.f32 %v1768, %v2010
  %v2076 = vadd.f32 %v1769, %v2012
  %v2077 = vadd.f32 %v1770, %v2014
  %v2078 = vadd.f32 %v1771, %v2018
  %v2079 = vadd.f32 %v1772, %v2020
  %v2080 = vadd.f32 %v1773, %v2022
  %v2081 = vadd.f32 %v1774, %v2024
  %v2082 = vadd.f32 %v1775, %v2028
  %v2083 = vadd.f32 %v1776, %v2030
  %v2084 = vadd.f32 %v1777, %v2032
  %v2085 = vadd.f32 %v1778, %v2034
  %v2086 = vadd.f32 %v1779, %v2038
  %v2087 = vadd.f32 %v1780, %v2040
  %v2088 = vadd.f32 %v1781, %v2042
  %v2089 = vadd.f32 %v1782, %v2044
  %v2090 = vadd.f32 %v1783, %v2048
  %v2091 = vadd.f32 %v1784, %v2050
  %v2092 = vadd.f32 %v1785, %v2052
  %v2093 = vadd.f32 %v1786, %v2054
  %v2094 = vadd.f32 %v1787, %v2058
  %v2095 = vadd.f32 %v1788, %v2060
  %v2096 = vadd.f32 %v1789, %v2062
  %v2097 = vadd.f32 %v1790, %v2064
  %s2098 = scalar_lea.vmem %s0, 448
  %v2099 = vld [vmem:[%s2098] sm:$0xf]
  %v2100 = vld [vmem:[%s2098 + $0x4] sm:$0xf]
  %v2101 = vld [vmem:[%s2098 + $0x8] sm:$0xf]
  %v2102 = vld [vmem:[%s2098 + $0xc] sm:$0xf]
  %v2103 = vld [vmem:[%s2098 + $0x10] sm:$0xf]
  %v2104 = vld [vmem:[%s2098 + $0x14] sm:$0xf]
  %v2105 = vld [vmem:[%s2098 + $0x18] sm:$0xf]
  %v2106 = vld [vmem:[%s2098 + $0x1c] sm:$0xf]
  %v2107 = vld [vmem:[%s2098 + $0x20] sm:$0xf]
  %v2108 = vld [vmem:[%s2098 + $0x24] sm:$0xf]
  %v2109 = vld [vmem:[%s2098 + $0x28] sm:$0xf]
  %v2110 = vld [vmem:[%s2098 + $0x2c] sm:$0xf]
  %v2111 = vld [vmem:[%s2098 + $0x30] sm:$0xf]
  %v2112 = vld [vmem:[%s2098 + $0x34] sm:$0xf]
  %v2113 = vld [vmem:[%s2098 + $0x38] sm:$0xf]
  %v2114 = vld [vmem:[%s2098 + $0x3c] sm:$0xf]
  %s2115 = scalar_lea.vmem %s1, 896
  %v2116 = vld [vmem:[%s2115] sm:$0xff]
  %v2117 = vld [vmem:[%s2115 + $0x8] sm:$0xff]
  %v2118 = vld [vmem:[%s2115 + $0x10] sm:$0xff]
  %v2119 = vld [vmem:[%s2115 + $0x18] sm:$0xff]
  %v2120 = vld [vmem:[%s2115 + $0x20] sm:$0xff]
  %v2121 = vld [vmem:[%s2115 + $0x28] sm:$0xff]
  %v2122 = vld [vmem:[%s2115 + $0x30] sm:$0xff]
  %v2123 = vld [vmem:[%s2115 + $0x38] sm:$0xff]
  %v2124 = vld [vmem:[%s2115 + $0x40] sm:$0xff]
  %v2125 = vld [vmem:[%s2115 + $0x48] sm:$0xff]
  %v2126 = vld [vmem:[%s2115 + $0x50] sm:$0xff]
  %v2127 = vld [vmem:[%s2115 + $0x58] sm:$0xff]
  %v2128 = vld [vmem:[%s2115 + $0x60] sm:$0xff]
  %v2129 = vld [vmem:[%s2115 + $0x68] sm:$0xff]
  %v2130 = vld [vmem:[%s2115 + $0x70] sm:$0xff]
  %v2131 = vld [vmem:[%s2115 + $0x78] sm:$0xff]
  %v2148 = vunpack.c.l.b16 %v2099
  %v2149 = vunpack.c.l.b16 %v2100
  %v2150 = vunpack.c.l.b16 %v2101
  %v2151 = vunpack.c.l.b16 %v2102
  %v2152 = vunpack.c.l.b16 %v2103
  %v2153 = vunpack.c.l.b16 %v2104
  %v2154 = vunpack.c.l.b16 %v2105
  %v2155 = vunpack.c.l.b16 %v2106
  %v2156 = vunpack.c.l.b16 %v2107
  %v2157 = vunpack.c.l.b16 %v2108
  %v2158 = vunpack.c.l.b16 %v2109
  %v2159 = vunpack.c.l.b16 %v2110
  %v2160 = vunpack.c.l.b16 %v2111
  %v2161 = vunpack.c.l.b16 %v2112
  %v2162 = vunpack.c.l.b16 %v2113
  %v2163 = vunpack.c.l.b16 %v2114
  %v2164 = vpack.c.b16 %v2149, %v2148
  %v2165 = vpack.c.b16 %v2151, %v2150
  %v2166 = vpack.c.b16 %v2153, %v2152
  %v2167 = vpack.c.b16 %v2155, %v2154
  %v2168 = vpack.c.b16 %v2157, %v2156
  %v2169 = vpack.c.b16 %v2159, %v2158
  %v2170 = vpack.c.b16 %v2161, %v2160
  %v2171 = vpack.c.b16 %v2163, %v2162
  %v2196 = vunpack.c.l.b16 %v2116
  %v2197 = vunpack.c.h.b16 %v2116
  %v2198 = vunpack.c.l.b16 %v2117
  %v2199 = vunpack.c.h.b16 %v2117
  %v2200 = vunpack.c.l.b16 %v2118
  %v2201 = vunpack.c.h.b16 %v2118
  %v2202 = vunpack.c.l.b16 %v2119
  %v2203 = vunpack.c.h.b16 %v2119
  %v2204 = vunpack.c.l.b16 %v2120
  %v2205 = vunpack.c.h.b16 %v2120
  %v2206 = vunpack.c.l.b16 %v2121
  %v2207 = vunpack.c.h.b16 %v2121
  %v2208 = vunpack.c.l.b16 %v2122
  %v2209 = vunpack.c.h.b16 %v2122
  %v2210 = vunpack.c.l.b16 %v2123
  %v2211 = vunpack.c.h.b16 %v2123
  %v2212 = vunpack.c.l.b16 %v2124
  %v2213 = vunpack.c.h.b16 %v2124
  %v2214 = vunpack.c.l.b16 %v2125
  %v2215 = vunpack.c.h.b16 %v2125
  %v2216 = vunpack.c.l.b16 %v2126
  %v2217 = vunpack.c.h.b16 %v2126
  %v2218 = vunpack.c.l.b16 %v2127
  %v2219 = vunpack.c.h.b16 %v2127
  %v2220 = vunpack.c.l.b16 %v2128
  %v2221 = vunpack.c.h.b16 %v2128
  %v2222 = vunpack.c.l.b16 %v2129
  %v2223 = vunpack.c.h.b16 %v2129
  %v2224 = vunpack.c.l.b16 %v2130
  %v2225 = vunpack.c.h.b16 %v2130
  %v2226 = vunpack.c.l.b16 %v2131
  %v2227 = vunpack.c.h.b16 %v2131
  %v2228 = vpack.c.b16 %v2198, %v2196
  %v2229 = vpack.c.b16 %v2199, %v2197
  %v2230 = vpack.c.b16 %v2202, %v2200
  %v2231 = vpack.c.b16 %v2203, %v2201
  %v2232 = vpack.c.b16 %v2206, %v2204
  %v2233 = vpack.c.b16 %v2207, %v2205
  %v2234 = vpack.c.b16 %v2210, %v2208
  %v2235 = vpack.c.b16 %v2211, %v2209
  %v2236 = vpack.c.b16 %v2214, %v2212
  %v2237 = vpack.c.b16 %v2215, %v2213
  %v2238 = vpack.c.b16 %v2218, %v2216
  %v2239 = vpack.c.b16 %v2219, %v2217
  %v2240 = vpack.c.b16 %v2222, %v2220
  %v2241 = vpack.c.b16 %v2223, %v2221
  %v2242 = vpack.c.b16 %v2226, %v2224
  %v2243 = vpack.c.b16 %v2227, %v2225
  %2260 = vmatprep.subr.bf16.mxu0 %v2229
  %2261 = vmatpush1.bf16.msra.mxu0 %v2228
  %2262 = vmatprep.subr.bf16.mxu0 %v2231
  %2263 = vmatpush1.bf16.msra.mxu0 %v2230
  %2264 = vmatprep.subr.bf16.mxu0 %v2233
  %2265 = vmatpush1.bf16.msra.mxu0 %v2232
  %2266 = vmatprep.subr.bf16.mxu0 %v2235
  %2267 = vmatpush1.bf16.msra.mxu0 %v2234
  %2268 = vmatprep.subr.bf16.mxu0 %v2237
  %2269 = vmatpush1.bf16.msra.mxu0 %v2236
  %2270 = vmatprep.subr.bf16.mxu0 %v2239
  %2271 = vmatpush1.bf16.msra.mxu0 %v2238
  %2272 = vmatprep.subr.bf16.mxu0 %v2241
  %2273 = vmatpush1.bf16.msra.mxu0 %v2240
  %2274 = vmatprep.subr.bf16.mxu0 %v2243
  %2275 = vmatpush1.bf16.msra.mxu0 %v2242
  %2276 = vmatprep.subr.bf16.mxu0 0
  %2277 = vmatpush1.bf16.msra.mxu0 0
  %2278 = vmatprep.subr.bf16.mxu0 0
  %2279 = vmatpush1.bf16.msra.mxu0 0
  %2280 = vmatprep.subr.bf16.mxu0 0
  %2281 = vmatpush1.bf16.msra.mxu0 0
  %2282 = vmatprep.subr.bf16.mxu0 0
  %2283 = vmatpush1.bf16.msra.mxu0 0
  %2284 = vmatprep.subr.bf16.mxu0 0
  %2285 = vmatpush1.bf16.msra.mxu0 0
  %2286 = vmatprep.subr.bf16.mxu0 0
  %2287 = vmatpush1.bf16.msra.mxu0 0
  %2288 = vmatprep.subr.bf16.mxu0 0
  %2289 = vmatpush1.bf16.msra.mxu0 0
  %2290 = vmatprep.subr.bf16.mxu0 0
  %2291 = vmatpush1.bf16.msra.mxu0 0
  %2292 = vmatprep.mubr.bf16.mxu0 0
  %2293 = vmatmul.mubr.bf16.gmra.mrb[0].mxu0 %v2164
  %v2294 = vpop.f32.mrb[0].mxu0
  %v2295 = vadd.f32 0.0, %v2294
  %v2296 = vpop.f32.mrb[0].mxu0
  %v2297 = vadd.f32 0.0, %v2296
  %v2298 = vpop.f32.mrb[0].mxu0
  %v2299 = vadd.f32 0.0, %v2298
  %v2300 = vpop.f32.mrb[0].mxu0
  %v2301 = vadd.f32 0.0, %v2300
  %2302 = vmatprep.mubr.bf16.mxu0 0
  %2303 = vmatmul.mubr.bf16.gmra.mrb[0].mxu0 %v2165
  %v2304 = vpop.f32.mrb[0].mxu0
  %v2305 = vadd.f32 0.0, %v2304
  %v2306 = vpop.f32.mrb[0].mxu0
  %v2307 = vadd.f32 0.0, %v2306
  %v2308 = vpop.f32.mrb[0].mxu0
  %v2309 = vadd.f32 0.0, %v2308
  %v2310 = vpop.f32.mrb[0].mxu0
  %v2311 = vadd.f32 0.0, %v2310
  %2312 = vmatprep.mubr.bf16.mxu0 0
  %2313 = vmatmul.mubr.bf16.gmra.mrb[0].mxu0 %v2166
  %v2314 = vpop.f32.mrb[0].mxu0
  %v2315 = vadd.f32 0.0, %v2314
  %v2316 = vpop.f32.mrb[0].mxu0
  %v2317 = vadd.f32 0.0, %v2316
  %v2318 = vpop.f32.mrb[0].mxu0
  %v2319 = vadd.f32 0.0, %v2318
  %v2320 = vpop.f32.mrb[0].mxu0
  %v2321 = vadd.f32 0.0, %v2320
  %2322 = vmatprep.mubr.bf16.mxu0 0
  %2323 = vmatmul.mubr.bf16.gmra.mrb[0].mxu0 %v2167
  %v2324 = vpop.f32.mrb[0].mxu0
  %v2325 = vadd.f32 0.0, %v2324
  %v2326 = vpop.f32.mrb[0].mxu0
  %v2327 = vadd.f32 0.0, %v2326
  %v2328 = vpop.f32.mrb[0].mxu0
  %v2329 = vadd.f32 0.0, %v2328
  %v2330 = vpop.f32.mrb[0].mxu0
  %v2331 = vadd.f32 0.0, %v2330
  %2332 = vmatprep.mubr.bf16.mxu0 0
  %2333 = vmatmul.mubr.bf16.gmra.mrb[0].mxu0 %v2168
  %v2334 = vpop.f32.mrb[0].mxu0
  %v2335 = vadd.f32 0.0, %v2334
  %v2336 = vpop.f32.mrb[0].mxu0
  %v2337 = vadd.f32 0.0, %v2336
  %v2338 = vpop.f32.mrb[0].mxu0
  %v2339 = vadd.f32 0.0, %v2338
  %v2340 = vpop.f32.mrb[0].mxu0
  %v2341 = vadd.f32 0.0, %v2340
  %2342 = vmatprep.mubr.bf16.mxu0 0
  %2343 = vmatmul.mubr.bf16.gmra.mrb[0].mxu0 %v2169
  %v2344 = vpop.f32.mrb[0].mxu0
  %v2345 = vadd.f32 0.0, %v2344
  %v2346 = vpop.f32.mrb[0].mxu0
  %v2347 = vadd.f32 0.0, %v2346
  %v2348 = vpop.f32.mrb[0].mxu0
  %v2349 = vadd.f32 0.0, %v2348
  %v2350 = vpop.f32.mrb[0].mxu0
  %v2351 = vadd.f32 0.0, %v2350
  %2352 = vmatprep.mubr.bf16.mxu0 0
  %2353 = vmatmul.mubr.bf16.gmra.mrb[0].mxu0 %v2170
  %v2354 = vpop.f32.mrb[0].mxu0
  %v2355 = vadd.f32 0.0, %v2354
  %v2356 = vpop.f32.mrb[0].mxu0
  %v2357 = vadd.f32 0.0, %v2356
  %v2358 = vpop.f32.mrb[0].mxu0
  %v2359 = vadd.f32 0.0, %v2358
  %v2360 = vpop.f32.mrb[0].mxu0
  %v2361 = vadd.f32 0.0, %v2360
  %2362 = vmatprep.mubr.bf16.mxu0 0
  %2363 = vmatmul.mubr.bf16.gmra.mrb[0].mxu0 %v2171
  %v2364 = vpop.f32.mrb[0].mxu0
  %v2365 = vadd.f32 0.0, %v2364
  %v2366 = vpop.f32.mrb[0].mxu0
  %v2367 = vadd.f32 0.0, %v2366
  %v2368 = vpop.f32.mrb[0].mxu0
  %v2369 = vadd.f32 0.0, %v2368
  %v2370 = vpop.f32.mrb[0].mxu0
  %v2371 = vadd.f32 0.0, %v2370
  %2372 = vdwg.mxu0
  %v2373 = vadd.f32 %v2066, %v2295
  %v2374 = vadd.f32 %v2067, %v2297
  %v2375 = vadd.f32 %v2068, %v2299
  %v2376 = vadd.f32 %v2069, %v2301
  %v2377 = vadd.f32 %v2070, %v2305
  %v2378 = vadd.f32 %v2071, %v2307
  %v2379 = vadd.f32 %v2072, %v2309
  %v2380 = vadd.f32 %v2073, %v2311
  %v2381 = vadd.f32 %v2074, %v2315
  %v2382 = vadd.f32 %v2075, %v2317
  %v2383 = vadd.f32 %v2076, %v2319
  %v2384 = vadd.f32 %v2077, %v2321
  %v2385 = vadd.f32 %v2078, %v2325
  %v2386 = vadd.f32 %v2079, %v2327
  %v2387 = vadd.f32 %v2080, %v2329
  %v2388 = vadd.f32 %v2081, %v2331
  %v2389 = vadd.f32 %v2082, %v2335
  %v2390 = vadd.f32 %v2083, %v2337
  %v2391 = vadd.f32 %v2084, %v2339
  %v2392 = vadd.f32 %v2085, %v2341
  %v2393 = vadd.f32 %v2086, %v2345
  %v2394 = vadd.f32 %v2087, %v2347
  %v2395 = vadd.f32 %v2088, %v2349
  %v2396 = vadd.f32 %v2089, %v2351
  %v2397 = vadd.f32 %v2090, %v2355
  %v2398 = vadd.f32 %v2091, %v2357
  %v2399 = vadd.f32 %v2092, %v2359
  %v2400 = vadd.f32 %v2093, %v2361
  %v2401 = vadd.f32 %v2094, %v2365
  %v2402 = vadd.f32 %v2095, %v2367
  %v2403 = vadd.f32 %v2096, %v2369
  %v2404 = vadd.f32 %v2097, %v2371
  %s2405 = scalar_lea.vmem %s0, 512
  %v2406 = vld [vmem:[%s2405] sm:$0xf]
  %v2407 = vld [vmem:[%s2405 + $0x4] sm:$0xf]
  %v2408 = vld [vmem:[%s2405 + $0x8] sm:$0xf]
  %v2409 = vld [vmem:[%s2405 + $0xc] sm:$0xf]
  %v2410 = vld [vmem:[%s2405 + $0x10] sm:$0xf]
  %v2411 = vld [vmem:[%s2405 + $0x14] sm:$0xf]
  %v2412 = vld [vmem:[%s2405 + $0x18] sm:$0xf]
  %v2413 = vld [vmem:[%s2405 + $0x1c] sm:$0xf]
  %v2414 = vld [vmem:[%s2405 + $0x20] sm:$0xf]
  %v2415 = vld [vmem:[%s2405 + $0x24] sm:$0xf]
  %v2416 = vld [vmem:[%s2405 + $0x28] sm:$0xf]
  %v2417 = vld [vmem:[%s2405 + $0x2c] sm:$0xf]
  %v2418 = vld [vmem:[%s2405 + $0x30] sm:$0xf]
  %v2419 = vld [vmem:[%s2405 + $0x34] sm:$0xf]
  %v2420 = vld [vmem:[%s2405 + $0x38] sm:$0xf]
  %v2421 = vld [vmem:[%s2405 + $0x3c] sm:$0xf]
  %s2422 = scalar_lea.vmem %s1, 1024
  %v2423 = vld [vmem:[%s2422] sm:$0xff]
  %v2424 = vld [vmem:[%s2422 + $0x8] sm:$0xff]
  %v2425 = vld [vmem:[%s2422 + $0x10] sm:$0xff]
  %v2426 = vld [vmem:[%s2422 + $0x18] sm:$0xff]
  %v2427 = vld [vmem:[%s2422 + $0x20] sm:$0xff]
  %v2428 = vld [vmem:[%s2422 + $0x28] sm:$0xff]
  %v2429 = vld [vmem:[%s2422 + $0x30] sm:$0xff]
  %v2430 = vld [vmem:[%s2422 + $0x38] sm:$0xff]
  %v2431 = vld [vmem:[%s2422 + $0x40] sm:$0xff]
  %v2432 = vld [vmem:[%s2422 + $0x48] sm:$0xff]
  %v2433 = vld [vmem:[%s2422 + $0x50] sm:$0xff]
  %v2434 = vld [vmem:[%s2422 + $0x58] sm:$0xff]
  %v2435 = vld [vmem:[%s2422 + $0x60] sm:$0xff]
  %v2436 = vld [vmem:[%s2422 + $0x68] sm:$0xff]
  %v2437 = vld [vmem:[%s2422 + $0x70] sm:$0xff]
  %v2438 = vld [vmem:[%s2422 + $0x78] sm:$0xff]
  %v2455 = vunpack.c.l.b16 %v2406
  %v2456 = vunpack.c.l.b16 %v2407
  %v2457 = vunpack.c.l.b16 %v2408
  %v2458 = vunpack.c.l.b16 %v2409
  %v2459 = vunpack.c.l.b16 %v2410
  %v2460 = vunpack.c.l.b16 %v2411
  %v2461 = vunpack.c.l.b16 %v2412
  %v2462 = vunpack.c.l.b16 %v2413
  %v2463 = vunpack.c.l.b16 %v2414
  %v2464 = vunpack.c.l.b16 %v2415
  %v2465 = vunpack.c.l.b16 %v2416
  %v2466 = vunpack.c.l.b16 %v2417
  %v2467 = vunpack.c.l.b16 %v2418
  %v2468 = vunpack.c.l.b16 %v2419
  %v2469 = vunpack.c.l.b16 %v2420
  %v2470 = vunpack.c.l.b16 %v2421
  %v2471 = vpack.c.b16 %v2456, %v2455
  %v2472 = vpack.c.b16 %v2458, %v2457
  %v2473 = vpack.c.b16 %v2460, %v2459
  %v2474 = vpack.c.b16 %v2462, %v2461
  %v2475 = vpack.c.b16 %v2464, %v2463
  %v2476 = vpack.c.b16 %v2466, %v2465
  %v2477 = vpack.c.b16 %v2468, %v2467
  %v2478 = vpack.c.b16 %v2470, %v2469
  %v2503 = vunpack.c.l.b16 %v2423
  %v2504 = vunpack.c.h.b16 %v2423
  %v2505 = vunpack.c.l.b16 %v2424
  %v2506 = vunpack.c.h.b16 %v2424
  %v2507 = vunpack.c.l.b16 %v2425
  %v2508 = vunpack.c.h.b16 %v2425
  %v2509 = vunpack.c.l.b16 %v2426
  %v2510 = vunpack.c.h.b16 %v2426
  %v2511 = vunpack.c.l.b16 %v2427
  %v2512 = vunpack.c.h.b16 %v2427
  %v2513 = vunpack.c.l.b16 %v2428
  %v2514 = vunpack.c.h.b16 %v2428
  %v2515 = vunpack.c.l.b16 %v2429
  %v2516 = vunpack.c.h.b16 %v2429
  %v2517 = vunpack.c.l.b16 %v2430
  %v2518 = vunpack.c.h.b16 %v2430
  %v2519 = vunpack.c.l.b16 %v2431
  %v2520 = vunpack.c.h.b16 %v2431
  %v2521 = vunpack.c.l.b16 %v2432
  %v2522 = vunpack.c.h.b16 %v2432
  %v2523 = vunpack.c.l.b16 %v2433
  %v2524 = vunpack.c.h.b16 %v2433
  %v2525 = vunpack.c.l.b16 %v2434
  %v2526 = vunpack.c.h.b16 %v2434
  %v2527 = vunpack.c.l.b16 %v2435
  %v2528 = vunpack.c.h.b16 %v2435
  %v2529 = vunpack.c.l.b16 %v2436
  %v2530 = vunpack.c.h.b16 %v2436
  %v2531 = vunpack.c.l.b16 %v2437
  %v2532 = vunpack.c.h.b16 %v2437
  %v2533 = vunpack.c.l.b16 %v2438
  %v2534 = vunpack.c.h.b16 %v2438
  %v2535 = vpack.c.b16 %v2505, %v2503
  %v2536 = vpack.c.b16 %v2506, %v2504
  %v2537 = vpack.c.b16 %v2509, %v2507
  %v2538 = vpack.c.b16 %v2510, %v2508
  %v2539 = vpack.c.b16 %v2513, %v2511
  %v2540 = vpack.c.b16 %v2514, %v2512
  %v2541 = vpack.c.b16 %v2517, %v2515
  %v2542 = vpack.c.b16 %v2518, %v2516
  %v2543 = vpack.c.b16 %v2521, %v2519
  %v2544 = vpack.c.b16 %v2522, %v2520
  %v2545 = vpack.c.b16 %v2525, %v2523
  %v2546 = vpack.c.b16 %v2526, %v2524
  %v2547 = vpack.c.b16 %v2529, %v2527
  %v2548 = vpack.c.b16 %v2530, %v2528
  %v2549 = vpack.c.b16 %v2533, %v2531
  %v2550 = vpack.c.b16 %v2534, %v2532
  %2567 = vmatprep.subr.bf16.mxu0 %v2536
  %2568 = vmatpush1.bf16.msra.mxu0 %v2535
  %2569 = vmatprep.subr.bf16.mxu0 %v2538
  %2570 = vmatpush1.bf16.msra.mxu0 %v2537
  %2571 = vmatprep.subr.bf16.mxu0 %v2540
  %2572 = vmatpush1.bf16.msra.mxu0 %v2539
  %2573 = vmatprep.subr.bf16.mxu0 %v2542
  %2574 = vmatpush1.bf16.msra.mxu0 %v2541
  %2575 = vmatprep.subr.bf16.mxu0 %v2544
  %2576 = vmatpush1.bf16.msra.mxu0 %v2543
  %2577 = vmatprep.subr.bf16.mxu0 %v2546
  %2578 = vmatpush1.bf16.msra.mxu0 %v2545
  %2579 = vmatprep.subr.bf16.mxu0 %v2548
  %2580 = vmatpush1.bf16.msra.mxu0 %v2547
  %2581 = vmatprep.subr.bf16.mxu0 %v2550
  %2582 = vmatpush1.bf16.msra.mxu0 %v2549
  %2583 = vmatprep.subr.bf16.mxu0 0
  %2584 = vmatpush1.bf16.msra.mxu0 0
  %2585 = vmatprep.subr.bf16.mxu0 0
  %2586 = vmatpush1.bf16.msra.mxu0 0
  %2587 = vmatprep.subr.bf16.mxu0 0
  %2588 = vmatpush1.bf16.msra.mxu0 0
  %2589 = vmatprep.subr.bf16.mxu0 0
  %2590 = vmatpush1.bf16.msra.mxu0 0
  %2591 = vmatprep.subr.bf16.mxu0 0
  %2592 = vmatpush1.bf16.msra.mxu0 0
  %2593 = vmatprep.subr.bf16.mxu0 0
  %2594 = vmatpush1.bf16.msra.mxu0 0
  %2595 = vmatprep.subr.bf16.mxu0 0
  %2596 = vmatpush1.bf16.msra.mxu0 0
  %2597 = vmatprep.subr.bf16.mxu0 0
  %2598 = vmatpush1.bf16.msra.mxu0 0
  %2599 = vmatprep.mubr.bf16.mxu0 0
  %2600 = vmatmul.mubr.bf16.gmra.mrb[0].mxu0 %v2471
  %v2601 = vpop.f32.mrb[0].mxu0
  %v2602 = vadd.f32 0.0, %v2601
  %v2603 = vpop.f32.mrb[0].mxu0
  %v2604 = vadd.f32 0.0, %v2603
  %v2605 = vpop.f32.mrb[0].mxu0
  %v2606 = vadd.f32 0.0, %v2605
  %v2607 = vpop.f32.mrb[0].mxu0
  %v2608 = vadd.f32 0.0, %v2607
  %2609 = vmatprep.mubr.bf16.mxu0 0
  %2610 = vmatmul.mubr.bf16.gmra.mrb[0].mxu0 %v2472
  %v2611 = vpop.f32.mrb[0].mxu0
  %v2612 = vadd.f32 0.0, %v2611
  %v2613 = vpop.f32.mrb[0].mxu0
  %v2614 = vadd.f32 0.0, %v2613
  %v2615 = vpop.f32.mrb[0].mxu0
  %v2616 = vadd.f32 0.0, %v2615
  %v2617 = vpop.f32.mrb[0].mxu0
  %v2618 = vadd.f32 0.0, %v2617
  %2619 = vmatprep.mubr.bf16.mxu0 0
  %2620 = vmatmul.mubr.bf16.gmra.mrb[0].mxu0 %v2473
  %v2621 = vpop.f32.mrb[0].mxu0
  %v2622 = vadd.f32 0.0, %v2621
  %v2623 = vpop.f32.mrb[0].mxu0
  %v2624 = vadd.f32 0.0, %v2623
  %v2625 = vpop.f32.mrb[0].mxu0
  %v2626 = vadd.f32 0.0, %v2625
  %v2627 = vpop.f32.mrb[0].mxu0
  %v2628 = vadd.f32 0.0, %v2627
  %2629 = vmatprep.mubr.bf16.mxu0 0
  %2630 = vmatmul.mubr.bf16.gmra.mrb[0].mxu0 %v2474
  %v2631 = vpop.f32.mrb[0].mxu0
  %v2632 = vadd.f32 0.0, %v2631
  %v2633 = vpop.f32.mrb[0].mxu0
  %v2634 = vadd.f32 0.0, %v2633
  %v2635 = vpop.f32.mrb[0].mxu0
  %v2636 = vadd.f32 0.0, %v2635
  %v2637 = vpop.f32.mrb[0].mxu0
  %v2638 = vadd.f32 0.0, %v2637
  %2639 = vmatprep.mubr.bf16.mxu0 0
  %2640 = vmatmul.mubr.bf16.gmra.mrb[0].mxu0 %v2475
  %v2641 = vpop.f32.mrb[0].mxu0
  %v2642 = vadd.f32 0.0, %v2641
  %v2643 = vpop.f32.mrb[0].mxu0
  %v2644 = vadd.f32 0.0, %v2643
  %v2645 = vpop.f32.mrb[0].mxu0
  %v2646 = vadd.f32 0.0, %v2645
  %v2647 = vpop.f32.mrb[0].mxu0
  %v2648 = vadd.f32 0.0, %v2647
  %2649 = vmatprep.mubr.bf16.mxu0 0
  %2650 = vmatmul.mubr.bf16.gmra.mrb[0].mxu0 %v2476
  %v2651 = vpop.f32.mrb[0].mxu0
  %v2652 = vadd.f32 0.0, %v2651
  %v2653 = vpop.f32.mrb[0].mxu0
  %v2654 = vadd.f32 0.0, %v2653
  %v2655 = vpop.f32.mrb[0].mxu0
  %v2656 = vadd.f32 0.0, %v2655
  %v2657 = vpop.f32.mrb[0].mxu0
  %v2658 = vadd.f32 0.0, %v2657
  %2659 = vmatprep.mubr.bf16.mxu0 0
  %2660 = vmatmul.mubr.bf16.gmra.mrb[0].mxu0 %v2477
  %v2661 = vpop.f32.mrb[0].mxu0
  %v2662 = vadd.f32 0.0, %v2661
  %v2663 = vpop.f32.mrb[0].mxu0
  %v2664 = vadd.f32 0.0, %v2663
  %v2665 = vpop.f32.mrb[0].mxu0
  %v2666 = vadd.f32 0.0, %v2665
  %v2667 = vpop.f32.mrb[0].mxu0
  %v2668 = vadd.f32 0.0, %v2667
  %2669 = vmatprep.mubr.bf16.mxu0 0
  %2670 = vmatmul.mubr.bf16.gmra.mrb[0].mxu0 %v2478
  %v2671 = vpop.f32.mrb[0].mxu0
  %v2672 = vadd.f32 0.0, %v2671
  %v2673 = vpop.f32.mrb[0].mxu0
  %v2674 = vadd.f32 0.0, %v2673
  %v2675 = vpop.f32.mrb[0].mxu0
  %v2676 = vadd.f32 0.0, %v2675
  %v2677 = vpop.f32.mrb[0].mxu0
  %v2678 = vadd.f32 0.0, %v2677
  %2679 = vdwg.mxu0
  %v2680 = vadd.f32 %v2373, %v2602
  %v2681 = vadd.f32 %v2374, %v2604
  %v2682 = vadd.f32 %v2375, %v2606
  %v2683 = vadd.f32 %v2376, %v2608
  %v2684 = vadd.f32 %v2377, %v2612
  %v2685 = vadd.f32 %v2378, %v2614
  %v2686 = vadd.f32 %v2379, %v2616
  %v2687 = vadd.f32 %v2380, %v2618
  %v2688 = vadd.f32 %v2381, %v2622
  %v2689 = vadd.f32 %v2382, %v2624
  %v2690 = vadd.f32 %v2383, %v2626
  %v2691 = vadd.f32 %v2384, %v2628
  %v2692 = vadd.f32 %v2385, %v2632
  %v2693 = vadd.f32 %v2386, %v2634
  %v2694 = vadd.f32 %v2387, %v2636
  %v2695 = vadd.f32 %v2388, %v2638
  %v2696 = vadd.f32 %v2389, %v2642
  %v2697 = vadd.f32 %v2390, %v2644
  %v2698 = vadd.f32 %v2391, %v2646
  %v2699 = vadd.f32 %v2392, %v2648
  %v2700 = vadd.f32 %v2393, %v2652
  %v2701 = vadd.f32 %v2394, %v2654
  %v2702 = vadd.f32 %v2395, %v2656
  %v2703 = vadd.f32 %v2396, %v2658
  %v2704 = vadd.f32 %v2397, %v2662
  %v2705 = vadd.f32 %v2398, %v2664
  %v2706 = vadd.f32 %v2399, %v2666
  %v2707 = vadd.f32 %v2400, %v2668
  %v2708 = vadd.f32 %v2401, %v2672
  %v2709 = vadd.f32 %v2402, %v2674
  %v2710 = vadd.f32 %v2403, %v2676
  %v2711 = vadd.f32 %v2404, %v2678
  %v2712 = vld [vmem:[%s2] sm:$0x3]
  %v2714 = vlaneseq
  %v2715 = vshrl.u32 %v2714, 7
  %v2716 = vsub.s32 0, %v2715
  %v2717 = vrot.slane %v2712, %v2716
  %v2718 = vlaneseq
  %v2719 = vshrl.u32 %v2718, 7
  %v2720 = vsub.s32 1, %v2719
  %v2721 = vrot.slane %v2712, %v2720
  %v2724 = vadd.f32 %v2680, %v2717
  %v2725 = vadd.f32 %v2681, %v2721
  %v2726 = vadd.f32 %v2682, %v2717
  %v2727 = vadd.f32 %v2683, %v2721
  %v2728 = vadd.f32 %v2684, %v2717
  %v2729 = vadd.f32 %v2685, %v2721
  %v2730 = vadd.f32 %v2686, %v2717
  %v2731 = vadd.f32 %v2687, %v2721
  %v2732 = vadd.f32 %v2688, %v2717
  %v2733 = vadd.f32 %v2689, %v2721
  %v2734 = vadd.f32 %v2690, %v2717
  %v2735 = vadd.f32 %v2691, %v2721
  %v2736 = vadd.f32 %v2692, %v2717
  %v2737 = vadd.f32 %v2693, %v2721
  %v2738 = vadd.f32 %v2694, %v2717
  %v2739 = vadd.f32 %v2695, %v2721
  %v2740 = vadd.f32 %v2696, %v2717
  %v2741 = vadd.f32 %v2697, %v2721
  %v2742 = vadd.f32 %v2698, %v2717
  %v2743 = vadd.f32 %v2699, %v2721
  %v2744 = vadd.f32 %v2700, %v2717
  %v2745 = vadd.f32 %v2701, %v2721
  %v2746 = vadd.f32 %v2702, %v2717
  %v2747 = vadd.f32 %v2703, %v2721
  %v2748 = vadd.f32 %v2704, %v2717
  %v2749 = vadd.f32 %v2705, %v2721
  %v2750 = vadd.f32 %v2706, %v2717
  %v2751 = vadd.f32 %v2707, %v2721
  %v2752 = vadd.f32 %v2708, %v2717
  %v2753 = vadd.f32 %v2709, %v2721
  %v2754 = vadd.f32 %v2710, %v2717
  %v2755 = vadd.f32 %v2711, %v2721
  %v2756 = vmax.f32 %v2724, 0.0
  %v2757 = vmax.f32 %v2725, 0.0
  %v2758 = vmax.f32 %v2726, 0.0
  %v2759 = vmax.f32 %v2727, 0.0
  %v2760 = vmax.f32 %v2728, 0.0
  %v2761 = vmax.f32 %v2729, 0.0
  %v2762 = vmax.f32 %v2730, 0.0
  %v2763 = vmax.f32 %v2731, 0.0
  %v2764 = vmax.f32 %v2732, 0.0
  %v2765 = vmax.f32 %v2733, 0.0
  %v2766 = vmax.f32 %v2734, 0.0
  %v2767 = vmax.f32 %v2735, 0.0
  %v2768 = vmax.f32 %v2736, 0.0
  %v2769 = vmax.f32 %v2737, 0.0
  %v2770 = vmax.f32 %v2738, 0.0
  %v2771 = vmax.f32 %v2739, 0.0
  %v2772 = vmax.f32 %v2740, 0.0
  %v2773 = vmax.f32 %v2741, 0.0
  %v2774 = vmax.f32 %v2742, 0.0
  %v2775 = vmax.f32 %v2743, 0.0
  %v2776 = vmax.f32 %v2744, 0.0
  %v2777 = vmax.f32 %v2745, 0.0
  %v2778 = vmax.f32 %v2746, 0.0
  %v2779 = vmax.f32 %v2747, 0.0
  %v2780 = vmax.f32 %v2748, 0.0
  %v2781 = vmax.f32 %v2749, 0.0
  %v2782 = vmax.f32 %v2750, 0.0
  %v2783 = vmax.f32 %v2751, 0.0
  %v2784 = vmax.f32 %v2752, 0.0
  %v2785 = vmax.f32 %v2753, 0.0
  %v2786 = vmax.f32 %v2754, 0.0
  %v2787 = vmax.f32 %v2755, 0.0
  %v2788 = vpack.c.bf16 %v2758, %v2756
  %v2789 = vpack.c.bf16 %v2759, %v2757
  %v2790 = vpack.c.bf16 %v2762, %v2760
  %v2791 = vpack.c.bf16 %v2763, %v2761
  %v2792 = vpack.c.bf16 %v2766, %v2764
  %v2793 = vpack.c.bf16 %v2767, %v2765
  %v2794 = vpack.c.bf16 %v2770, %v2768
  %v2795 = vpack.c.bf16 %v2771, %v2769
  %v2796 = vpack.c.bf16 %v2774, %v2772
  %v2797 = vpack.c.bf16 %v2775, %v2773
  %v2798 = vpack.c.bf16 %v2778, %v2776
  %v2799 = vpack.c.bf16 %v2779, %v2777
  %v2800 = vpack.c.bf16 %v2782, %v2780
  %v2801 = vpack.c.bf16 %v2783, %v2781
  %v2802 = vpack.c.bf16 %v2786, %v2784
  %v2803 = vpack.c.bf16 %v2787, %v2785
  %v2820 = vunpack.c.l.b16 %v2788
  %v2821 = vunpack.c.l.b16 %v2789
  %v2822 = vunpack.c.h.b16 %v2788
  %v2823 = vunpack.c.h.b16 %v2789
  %v2824 = vunpack.c.l.b16 %v2790
  %v2825 = vunpack.c.l.b16 %v2791
  %v2826 = vunpack.c.h.b16 %v2790
  %v2827 = vunpack.c.h.b16 %v2791
  %v2828 = vunpack.c.l.b16 %v2792
  %v2829 = vunpack.c.l.b16 %v2793
  %v2830 = vunpack.c.h.b16 %v2792
  %v2831 = vunpack.c.h.b16 %v2793
  %v2832 = vunpack.c.l.b16 %v2794
  %v2833 = vunpack.c.l.b16 %v2795
  %v2834 = vunpack.c.h.b16 %v2794
  %v2835 = vunpack.c.h.b16 %v2795
  %v2836 = vunpack.c.l.b16 %v2796
  %v2837 = vunpack.c.l.b16 %v2797
  %v2838 = vunpack.c.h.b16 %v2796
  %v2839 = vunpack.c.h.b16 %v2797
  %v2840 = vunpack.c.l.b16 %v2798
  %v2841 = vunpack.c.l.b16 %v2799
  %v2842 = vunpack.c.h.b16 %v2798
  %v2843 = vunpack.c.h.b16 %v2799
  %v2844 = vunpack.c.l.b16 %v2800
  %v2845 = vunpack.c.l.b16 %v2801
  %v2846 = vunpack.c.h.b16 %v2800
  %v2847 = vunpack.c.h.b16 %v2801
  %v2848 = vunpack.c.l.b16 %v2802
  %v2849 = vunpack.c.l.b16 %v2803
  %v2850 = vunpack.c.h.b16 %v2802
  %v2851 = vunpack.c.h.b16 %v2803
  %v2852 = vpack.c.b16 %v2821, %v2820
  %v2853 = vpack.c.b16 %v2823, %v2822
  %v2854 = vpack.c.b16 %v2825, %v2824
  %v2855 = vpack.c.b16 %v2827, %v2826
  %v2856 = vpack.c.b16 %v2829, %v2828
  %v2857 = vpack.c.b16 %v2831, %v2830
  %v2858 = vpack.c.b16 %v2833, %v2832
  %v2859 = vpack.c.b16 %v2835, %v2834
  %v2860 = vpack.c.b16 %v2837, %v2836
  %v2861 = vpack.c.b16 %v2839, %v2838
  %v2862 = vpack.c.b16 %v2841, %v2840
  %v2863 = vpack.c.b16 %v2843, %v2842
  %v2864 = vpack.c.b16 %v2845, %v2844
  %v2865 = vpack.c.b16 %v2847, %v2846
  %v2866 = vpack.c.b16 %v2849, %v2848
  %v2867 = vpack.c.b16 %v2851, %v2850
  %2884 = vst [vmem:[%s3] sm:$0xff] %v2852
  %2885 = vst [vmem:[%s3 + $0x8] sm:$0xff] %v2853
  %2886 = vst [vmem:[%s3 + $0x10] sm:$0xff] %v2854
  %2887 = vst [vmem:[%s3 + $0x18] sm:$0xff] %v2855
  %2888 = vst [vmem:[%s3 + $0x20] sm:$0xff] %v2856
  %2889 = vst [vmem:[%s3 + $0x28] sm:$0xff] %v2857
  %2890 = vst [vmem:[%s3 + $0x30] sm:$0xff] %v2858
  %2891 = vst [vmem:[%s3 + $0x38] sm:$0xff] %v2859
  %2892 = vst [vmem:[%s3 + $0x40] sm:$0xff] %v2860
  %2893 = vst [vmem:[%s3 + $0x48] sm:$0xff] %v2861
  %2894 = vst [vmem:[%s3 + $0x50] sm:$0xff] %v2862
  %2895 = vst [vmem:[%s3 + $0x58] sm:$0xff] %v2863
  %2896 = vst [vmem:[%s3 + $0x60] sm:$0xff] %v2864
  %2897 = vst [vmem:[%s3 + $0x68] sm:$0xff] %v2865
  %2898 = vst [vmem:[%s3 + $0x70] sm:$0xff] %v2866
  %2899 = vst [vmem:[%s3 + $0x78] sm:$0xff] %v2867
  // Predicated region
  $region14: #{generator_forward.6} parent=0 // pred_check
    _
  $region15: #{generator_forward.6} parent=0 // pred_check_branch
    %2901 = sbr.rel (0) target = $region17
  $region16: #{generator_forward.6} parent=0 // pred_region
    _
  $region17: #{generator_forward.6} parent=0 // pred_fallthru
    _
  // Predicated region
  $region18: #{generator_forward.6} parent=0 // pred_check
    _
  $region19: #{generator_forward.6} parent=0 // pred_check_branch
    %2903 = sbr.rel (0) target = $region21
  $region20: #{generator_forward.6} parent=0 // pred_region
    _
  $region21: #{generator_forward.6} parent=0 // pred_fallthru
    _

// kernel: generator_forward.7
$region0: #{generator_forward.7}
  #allocation0 [shape = 'u32[]', space=smem, size = 0x4, offset = 0x4, fixed_abs, tag = 'smem constant byte address 0x4 - core index']
  #allocation1 [shape = 'u32[144,128]{1,0:T(1,128)}', space=vmem, size = 0x12000, scoped, tag = 'internal scratch']
  %s0 = inlined_call_operand.vmem [shape: bf16[9,64,512], index: 0, kind: input, shape index: {}]
  %s1 = inlined_call_operand.vmem [shape: bf16[9,4,64], index: 1, kind: input, shape index: {}]
  %s2 = inlined_call_operand.vmem [shape: f32[4,1], index: 2, kind: input, shape index: {}]
  %s3 = inlined_call_operand.vmem [shape: f32[4,512], index: 3, kind: output, shape index: {}]
  %s4 = sld [smem:[#allocation0]]
  $region22: #{generator_forward.7} parent=0
    _
  %s6 = ssub.s32 1, %s4
  %s7 = scalar_select 0, %s6, %s4
  // Predicated region
  $region2: #{generator_forward.7} parent=0 // pred_check
    _
  $region3: #{generator_forward.7} parent=0 // pred_check_branch
    %9 = sbr.rel (0) target = $region5
  $region4: #{generator_forward.7} parent=0 // pred_region
    _
  $region5: #{generator_forward.7} parent=0 // pred_fallthru
    _
  // Predicated region
  $region6: #{generator_forward.7} parent=0 // pred_check
    _
  $region7: #{generator_forward.7} parent=0 // pred_check_branch
    %11 = sbr.rel (0) target = $region9
  $region8: #{generator_forward.7} parent=0 // pred_region
    _
  $region9: #{generator_forward.7} parent=0 // pred_fallthru
    _
  // Predicated region
  $region10: #{generator_forward.7} parent=0 // pred_check
    _
  $region11: #{generator_forward.7} parent=0 // pred_check_branch
    %13 = sbr.rel (0) target = $region13
  $region12: #{generator_forward.7} parent=0 // pred_region
    _
  $region13: #{generator_forward.7} parent=0 // pred_fallthru
    _
  %v15 = vld [vmem:[%s1] sm:$0x3]
  %v16 = vld [vmem:[%s0] sm:$0xff]
  %v17 = vld [vmem:[%s0 + $0x8] sm:$0xff]
  %v18 = vld [vmem:[%s0 + $0x10] sm:$0xff]
  %v19 = vld [vmem:[%s0 + $0x18] sm:$0xff]
  %v20 = vld [vmem:[%s0 + $0x20] sm:$0xff]
  %v21 = vld [vmem:[%s0 + $0x28] sm:$0xff]
  %v22 = vld [vmem:[%s0 + $0x30] sm:$0xff]
  %v23 = vld [vmem:[%s0 + $0x38] sm:$0xff]
  %v24 = vld [vmem:[%s0 + $0x40] sm:$0xff]
  %v25 = vld [vmem:[%s0 + $0x48] sm:$0xff]
  %v26 = vld [vmem:[%s0 + $0x50] sm:$0xff]
  %v27 = vld [vmem:[%s0 + $0x58] sm:$0xff]
  %v28 = vld [vmem:[%s0 + $0x60] sm:$0xff]
  %v29 = vld [vmem:[%s0 + $0x68] sm:$0xff]
  %v30 = vld [vmem:[%s0 + $0x70] sm:$0xff]
  %v31 = vld [vmem:[%s0 + $0x78] sm:$0xff]
  %s32 = scalar_lea.vmem %s1, 2
  %v33 = vld [vmem:[%s32] sm:$0x3]
  %s34 = scalar_lea.vmem %s0, 128
  %v35 = vld [vmem:[%s34] sm:$0xff]
  %v36 = vld [vmem:[%s34 + $0x8] sm:$0xff]
  %v37 = vld [vmem:[%s34 + $0x10] sm:$0xff]
  %v38 = vld [vmem:[%s34 + $0x18] sm:$0xff]
  %v39 = vld [vmem:[%s34 + $0x20] sm:$0xff]
  %v40 = vld [vmem:[%s34 + $0x28] sm:$0xff]
  %v41 = vld [vmem:[%s34 + $0x30] sm:$0xff]
  %v42 = vld [vmem:[%s34 + $0x38] sm:$0xff]
  %v43 = vld [vmem:[%s34 + $0x40] sm:$0xff]
  %v44 = vld [vmem:[%s34 + $0x48] sm:$0xff]
  %v45 = vld [vmem:[%s34 + $0x50] sm:$0xff]
  %v46 = vld [vmem:[%s34 + $0x58] sm:$0xff]
  %v47 = vld [vmem:[%s34 + $0x60] sm:$0xff]
  %v48 = vld [vmem:[%s34 + $0x68] sm:$0xff]
  %v49 = vld [vmem:[%s34 + $0x70] sm:$0xff]
  %v50 = vld [vmem:[%s34 + $0x78] sm:$0xff]
  %v67 = vunpack.c.l.b16 %v35
  %v68 = vunpack.c.h.b16 %v35
  %v69 = vunpack.c.l.b16 %v36
  %v70 = vunpack.c.h.b16 %v36
  %v71 = vunpack.c.l.b16 %v37
  %v72 = vunpack.c.h.b16 %v37
  %v73 = vunpack.c.l.b16 %v38
  %v74 = vunpack.c.h.b16 %v38
  %v75 = vunpack.c.l.b16 %v39
  %v76 = vunpack.c.h.b16 %v39
  %v77 = vunpack.c.l.b16 %v40
  %v78 = vunpack.c.h.b16 %v40
  %v79 = vunpack.c.l.b16 %v41
  %v80 = vunpack.c.h.b16 %v41
  %v81 = vunpack.c.l.b16 %v42
  %v82 = vunpack.c.h.b16 %v42
  %v83 = vunpack.c.l.b16 %v43
  %v84 = vunpack.c.h.b16 %v43
  %v85 = vunpack.c.l.b16 %v44
  %v86 = vunpack.c.h.b16 %v44
  %v87 = vunpack.c.l.b16 %v45
  %v88 = vunpack.c.h.b16 %v45
  %v89 = vunpack.c.l.b16 %v46
  %v90 = vunpack.c.h.b16 %v46
  %v91 = vunpack.c.l.b16 %v47
  %v92 = vunpack.c.h.b16 %v47
  %v93 = vunpack.c.l.b16 %v48
  %v94 = vunpack.c.h.b16 %v48
  %v95 = vunpack.c.l.b16 %v49
  %v96 = vunpack.c.h.b16 %v49
  %v97 = vunpack.c.l.b16 %v50
  %v98 = vunpack.c.h.b16 %v50
  %v99 = vpack.c.b16 %v71, %v67
  %v100 = vpack.c.b16 %v72, %v68
  %v101 = vpack.c.b16 %v73, %v69
  %v102 = vpack.c.b16 %v74, %v70
  %v103 = vpack.c.b16 %v79, %v75
  %v104 = vpack.c.b16 %v80, %v76
  %v105 = vpack.c.b16 %v81, %v77
  %v106 = vpack.c.b16 %v82, %v78
  %v107 = vpack.c.b16 %v87, %v83
  %v108 = vpack.c.b16 %v88, %v84
  %v109 = vpack.c.b16 %v89, %v85
  %v110 = vpack.c.b16 %v90, %v86
  %v111 = vpack.c.b16 %v95, %v91
  %v112 = vpack.c.b16 %v96, %v92
  %v113 = vpack.c.b16 %v97, %v93
  %v114 = vpack.c.b16 %v98, %v94
  %vm131 = vcmask 523264
  %v133 = vsel %vm131, %v33, 0
  %135 = vmatprep.subr.bf16.mxu0 %v100
  %136 = vmatpush1.bf16.msra.mxu0 %v99
  %137 = vmatprep.subr.bf16.mxu0 %v104
  %138 = vmatpush1.bf16.msra.mxu0 %v103
  %139 = vmatprep.subr.bf16.mxu0 %v108
  %140 = vmatpush1.bf16.msra.mxu0 %v107
  %141 = vmatprep.subr.bf16.mxu0 %v112
  %142 = vmatpush1.bf16.msra.mxu0 %v111
  %143 = vmatprep.subr.bf16.mxu0 0
  %144 = vmatpush1.bf16.msra.mxu0 0
  %145 = vmatprep.subr.bf16.mxu0 0
  %146 = vmatpush1.bf16.msra.mxu0 0
  %147 = vmatprep.subr.bf16.mxu0 0
  %148 = vmatpush1.bf16.msra.mxu0 0
  %149 = vmatprep.subr.bf16.mxu0 0
  %150 = vmatpush1.bf16.msra.mxu0 0
  %151 = vmatprep.subr.bf16.mxu0 0
  %152 = vmatpush1.bf16.msra.mxu0 0
  %153 = vmatprep.subr.bf16.mxu0 0
  %154 = vmatpush1.bf16.msra.mxu0 0
  %155 = vmatprep.subr.bf16.mxu0 0
  %156 = vmatpush1.bf16.msra.mxu0 0
  %157 = vmatprep.subr.bf16.mxu0 0
  %158 = vmatpush1.bf16.msra.mxu0 0
  %159 = vmatprep.subr.bf16.mxu0 0
  %160 = vmatpush1.bf16.msra.mxu0 0
  %161 = vmatprep.subr.bf16.mxu0 0
  %162 = vmatpush1.bf16.msra.mxu0 0
  %163 = vmatprep.subr.bf16.mxu0 0
  %164 = vmatpush1.bf16.msra.mxu0 0
  %165 = vmatprep.subr.bf16.mxu0 0
  %166 = vmatpush1.bf16.msra.mxu0 0
  %167 = vmatprep.mubr.bf16.mxu0 0
  %168 = vmatmul.mubr.bf16.gmra.mrb[0].mxu0 %v133
  %v169 = vpop.f32.mrb[0].mxu0
  %v170 = vadd.f32 0.0, %v169
  %v171 = vpop.f32.mrb[0].mxu0
  %v172 = vadd.f32 0.0, %v171
  %v173 = vpop.f32.mrb[0].mxu0
  %v174 = vpop.f32.mrb[0].mxu0
  %175 = vdwg.mxu0
  %176 = vmatprep.subr.bf16.mxu0 %v102
  %177 = vmatpush1.bf16.msra.mxu0 %v101
  %178 = vmatprep.subr.bf16.mxu0 %v106
  %179 = vmatpush1.bf16.msra.mxu0 %v105
  %180 = vmatprep.subr.bf16.mxu0 %v110
  %181 = vmatpush1.bf16.msra.mxu0 %v109
  %182 = vmatprep.subr.bf16.mxu0 %v114
  %183 = vmatpush1.bf16.msra.mxu0 %v113
  %184 = vmatprep.subr.bf16.mxu0 0
  %185 = vmatpush1.bf16.msra.mxu0 0
  %186 = vmatprep.subr.bf16.mxu0 0
  %187 = vmatpush1.bf16.msra.mxu0 0
  %188 = vmatprep.subr.bf16.mxu0 0
  %189 = vmatpush1.bf16.msra.mxu0 0
  %190 = vmatprep.subr.bf16.mxu0 0
  %191 = vmatpush1.bf16.msra.mxu0 0
  %192 = vmatprep.subr.bf16.mxu0 0
  %193 = vmatpush1.bf16.msra.mxu0 0
  %194 = vmatprep.subr.bf16.mxu0 0
  %195 = vmatpush1.bf16.msra.mxu0 0
  %196 = vmatprep.subr.bf16.mxu0 0
  %197 = vmatpush1.bf16.msra.mxu0 0
  %198 = vmatprep.subr.bf16.mxu0 0
  %199 = vmatpush1.bf16.msra.mxu0 0
  %200 = vmatprep.subr.bf16.mxu0 0
  %201 = vmatpush1.bf16.msra.mxu0 0
  %202 = vmatprep.subr.bf16.mxu0 0
  %203 = vmatpush1.bf16.msra.mxu0 0
  %204 = vmatprep.subr.bf16.mxu0 0
  %205 = vmatpush1.bf16.msra.mxu0 0
  %206 = vmatprep.subr.bf16.mxu0 0
  %207 = vmatpush1.bf16.msra.mxu0 0
  %208 = vmatprep.mubr.bf16.mxu0 0
  %209 = vmatmul.mubr.bf16.gmra.mrb[0].mxu0 %v133
  %v210 = vpop.f32.mrb[0].mxu0
  %v211 = vadd.f32 0.0, %v210
  %v212 = vpop.f32.mrb[0].mxu0
  %v213 = vadd.f32 0.0, %v212
  %v214 = vpop.f32.mrb[0].mxu0
  %v215 = vpop.f32.mrb[0].mxu0
  %216 = vdwg.mxu0
  %v233 = vunpack.c.l.b16 %v16
  %v234 = vunpack.c.h.b16 %v16
  %v235 = vunpack.c.l.b16 %v17
  %v236 = vunpack.c.h.b16 %v17
  %v237 = vunpack.c.l.b16 %v18
  %v238 = vunpack.c.h.b16 %v18
  %v239 = vunpack.c.l.b16 %v19
  %v240 = vunpack.c.h.b16 %v19
  %v241 = vunpack.c.l.b16 %v20
  %v242 = vunpack.c.h.b16 %v20
  %v243 = vunpack.c.l.b16 %v21
  %v244 = vunpack.c.h.b16 %v21
  %v245 = vunpack.c.l.b16 %v22
  %v246 = vunpack.c.h.b16 %v22
  %v247 = vunpack.c.l.b16 %v23
  %v248 = vunpack.c.h.b16 %v23
  %v249 = vunpack.c.l.b16 %v24
  %v250 = vunpack.c.h.b16 %v24
  %v251 = vunpack.c.l.b16 %v25
  %v252 = vunpack.c.h.b16 %v25
  %v253 = vunpack.c.l.b16 %v26
  %v254 = vunpack.c.h.b16 %v26
  %v255 = vunpack.c.l.b16 %v27
  %v256 = vunpack.c.h.b16 %v27
  %v257 = vunpack.c.l.b16 %v28
  %v258 = vunpack.c.h.b16 %v28
  %v259 = vunpack.c.l.b16 %v29
  %v260 = vunpack.c.h.b16 %v29
  %v261 = vunpack.c.l.b16 %v30
  %v262 = vunpack.c.h.b16 %v30
  %v263 = vunpack.c.l.b16 %v31
  %v264 = vunpack.c.h.b16 %v31
  %v265 = vpack.c.b16 %v237, %v233
  %v266 = vpack.c.b16 %v238, %v234
  %v267 = vpack.c.b16 %v239, %v235
  %v268 = vpack.c.b16 %v240, %v236
  %v269 = vpack.c.b16 %v245, %v241
  %v270 = vpack.c.b16 %v246, %v242
  %v271 = vpack.c.b16 %v247, %v243
  %v272 = vpack.c.b16 %v248, %v244
  %v273 = vpack.c.b16 %v253, %v249
  %v274 = vpack.c.b16 %v254, %v250
  %v275 = vpack.c.b16 %v255, %v251
  %v276 = vpack.c.b16 %v256, %v252
  %v277 = vpack.c.b16 %v261, %v257
  %v278 = vpack.c.b16 %v262, %v258
  %v279 = vpack.c.b16 %v263, %v259
  %v280 = vpack.c.b16 %v264, %v260
  %v298 = vsel %vm131, %v15, 0
  %300 = vmatprep.subr.bf16.mxu0 %v266
  %301 = vmatpush1.bf16.msra.mxu0 %v265
  %302 = vmatprep.subr.bf16.mxu0 %v270
  %303 = vmatpush1.bf16.msra.mxu0 %v269
  %304 = vmatprep.subr.bf16.mxu0 %v274
  %305 = vmatpush1.bf16.msra.mxu0 %v273
  %306 = vmatprep.subr.bf16.mxu0 %v278
  %307 = vmatpush1.bf16.msra.mxu0 %v277
  %308 = vmatprep.subr.bf16.mxu0 0
  %309 = vmatpush1.bf16.msra.mxu0 0
  %310 = vmatprep.subr.bf16.mxu0 0
  %311 = vmatpush1.bf16.msra.mxu0 0
  %312 = vmatprep.subr.bf16.mxu0 0
  %313 = vmatpush1.bf16.msra.mxu0 0
  %314 = vmatprep.subr.bf16.mxu0 0
  %315 = vmatpush1.bf16.msra.mxu0 0
  %316 = vmatprep.subr.bf16.mxu0 0
  %317 = vmatpush1.bf16.msra.mxu0 0
  %318 = vmatprep.subr.bf16.mxu0 0
  %319 = vmatpush1.bf16.msra.mxu0 0
  %320 = vmatprep.subr.bf16.mxu0 0
  %321 = vmatpush1.bf16.msra.mxu0 0
  %322 = vmatprep.subr.bf16.mxu0 0
  %323 = vmatpush1.bf16.msra.mxu0 0
  %324 = vmatprep.subr.bf16.mxu0 0
  %325 = vmatpush1.bf16.msra.mxu0 0
  %326 = vmatprep.subr.bf16.mxu0 0
  %327 = vmatpush1.bf16.msra.mxu0 0
  %328 = vmatprep.subr.bf16.mxu0 0
  %329 = vmatpush1.bf16.msra.mxu0 0
  %330 = vmatprep.subr.bf16.mxu0 0
  %331 = vmatpush1.bf16.msra.mxu0 0
  %332 = vmatprep.mubr.bf16.mxu0 0
  %333 = vmatmul.mubr.bf16.gmra.mrb[0].mxu0 %v298
  %v334 = vpop.f32.mrb[0].mxu0
  %v335 = vadd.f32 %v170, %v334
  %v336 = vpop.f32.mrb[0].mxu0
  %v337 = vadd.f32 %v172, %v336
  %v338 = vpop.f32.mrb[0].mxu0
  %v339 = vpop.f32.mrb[0].mxu0
  %340 = vdwg.mxu0
  %341 = vmatprep.subr.bf16.mxu0 %v268
  %342 = vmatpush1.bf16.msra.mxu0 %v267
  %343 = vmatprep.subr.bf16.mxu0 %v272
  %344 = vmatpush1.bf16.msra.mxu0 %v271
  %345 = vmatprep.subr.bf16.mxu0 %v276
  %346 = vmatpush1.bf16.msra.mxu0 %v275
  %347 = vmatprep.subr.bf16.mxu0 %v280
  %348 = vmatpush1.bf16.msra.mxu0 %v279
  %349 = vmatprep.subr.bf16.mxu0 0
  %350 = vmatpush1.bf16.msra.mxu0 0
  %351 = vmatprep.subr.bf16.mxu0 0
  %352 = vmatpush1.bf16.msra.mxu0 0
  %353 = vmatprep.subr.bf16.mxu0 0
  %354 = vmatpush1.bf16.msra.mxu0 0
  %355 = vmatprep.subr.bf16.mxu0 0
  %356 = vmatpush1.bf16.msra.mxu0 0
  %357 = vmatprep.subr.bf16.mxu0 0
  %358 = vmatpush1.bf16.msra.mxu0 0
  %359 = vmatprep.subr.bf16.mxu0 0
  %360 = vmatpush1.bf16.msra.mxu0 0
  %361 = vmatprep.subr.bf16.mxu0 0
  %362 = vmatpush1.bf16.msra.mxu0 0
  %363 = vmatprep.subr.bf16.mxu0 0
  %364 = vmatpush1.bf16.msra.mxu0 0
  %365 = vmatprep.subr.bf16.mxu0 0
  %366 = vmatpush1.bf16.msra.mxu0 0
  %367 = vmatprep.subr.bf16.mxu0 0
  %368 = vmatpush1.bf16.msra.mxu0 0
  %369 = vmatprep.subr.bf16.mxu0 0
  %370 = vmatpush1.bf16.msra.mxu0 0
  %371 = vmatprep.subr.bf16.mxu0 0
  %372 = vmatpush1.bf16.msra.mxu0 0
  %373 = vmatprep.mubr.bf16.mxu0 0
  %374 = vmatmul.mubr.bf16.gmra.mrb[0].mxu0 %v298
  %v375 = vpop.f32.mrb[0].mxu0
  %v376 = vadd.f32 %v211, %v375
  %v377 = vpop.f32.mrb[0].mxu0
  %v378 = vadd.f32 %v213, %v377
  %v379 = vpop.f32.mrb[0].mxu0
  %v380 = vpop.f32.mrb[0].mxu0
  %381 = vdwg.mxu0
  %s382 = scalar_lea.vmem %s1, 4
  %v383 = vld [vmem:[%s382] sm:$0x3]
  %s384 = scalar_lea.vmem %s0, 256
  %v385 = vld [vmem:[%s384] sm:$0xff]
  %v386 = vld [vmem:[%s384 + $0x8] sm:$0xff]
  %v387 = vld [vmem:[%s384 + $0x10] sm:$0xff]
  %v388 = vld [vmem:[%s384 + $0x18] sm:$0xff]
  %v389 = vld [vmem:[%s384 + $0x20] sm:$0xff]
  %v390 = vld [vmem:[%s384 + $0x28] sm:$0xff]
  %v391 = vld [vmem:[%s384 + $0x30] sm:$0xff]
  %v392 = vld [vmem:[%s384 + $0x38] sm:$0xff]
  %v393 = vld [vmem:[%s384 + $0x40] sm:$0xff]
  %v394 = vld [vmem:[%s384 + $0x48] sm:$0xff]
  %v395 = vld [vmem:[%s384 + $0x50] sm:$0xff]
  %v396 = vld [vmem:[%s384 + $0x58] sm:$0xff]
  %v397 = vld [vmem:[%s384 + $0x60] sm:$0xff]
  %v398 = vld [vmem:[%s384 + $0x68] sm:$0xff]
  %v399 = vld [vmem:[%s384 + $0x70] sm:$0xff]
  %v400 = vld [vmem:[%s384 + $0x78] sm:$0xff]
  %v417 = vunpack.c.l.b16 %v385
  %v418 = vunpack.c.h.b16 %v385
  %v419 = vunpack.c.l.b16 %v386
  %v420 = vunpack.c.h.b16 %v386
  %v421 = vunpack.c.l.b16 %v387
  %v422 = vunpack.c.h.b16 %v387
  %v423 = vunpack.c.l.b16 %v388
  %v424 = vunpack.c.h.b16 %v388
  %v425 = vunpack.c.l.b16 %v389
  %v426 = vunpack.c.h.b16 %v389
  %v427 = vunpack.c.l.b16 %v390
  %v428 = vunpack.c.h.b16 %v390
  %v429 = vunpack.c.l.b16 %v391
  %v430 = vunpack.c.h.b16 %v391
  %v431 = vunpack.c.l.b16 %v392
  %v432 = vunpack.c.h.b16 %v392
  %v433 = vunpack.c.l.b16 %v393
  %v434 = vunpack.c.h.b16 %v393
  %v435 = vunpack.c.l.b16 %v394
  %v436 = vunpack.c.h.b16 %v394
  %v437 = vunpack.c.l.b16 %v395
  %v438 = vunpack.c.h.b16 %v395
  %v439 = vunpack.c.l.b16 %v396
  %v440 = vunpack.c.h.b16 %v396
  %v441 = vunpack.c.l.b16 %v397
  %v442 = vunpack.c.h.b16 %v397
  %v443 = vunpack.c.l.b16 %v398
  %v444 = vunpack.c.h.b16 %v398
  %v445 = vunpack.c.l.b16 %v399
  %v446 = vunpack.c.h.b16 %v399
  %v447 = vunpack.c.l.b16 %v400
  %v448 = vunpack.c.h.b16 %v400
  %v449 = vpack.c.b16 %v421, %v417
  %v450 = vpack.c.b16 %v422, %v418
  %v451 = vpack.c.b16 %v423, %v419
  %v452 = vpack.c.b16 %v424, %v420
  %v453 = vpack.c.b16 %v429, %v425
  %v454 = vpack.c.b16 %v430, %v426
  %v455 = vpack.c.b16 %v431, %v427
  %v456 = vpack.c.b16 %v432, %v428
  %v457 = vpack.c.b16 %v437, %v433
  %v458 = vpack.c.b16 %v438, %v434
  %v459 = vpack.c.b16 %v439, %v435
  %v460 = vpack.c.b16 %v440, %v436
  %v461 = vpack.c.b16 %v445, %v441
  %v462 = vpack.c.b16 %v446, %v442
  %v463 = vpack.c.b16 %v447, %v443
  %v464 = vpack.c.b16 %v448, %v444
  %v482 = vsel %vm131, %v383, 0
  %484 = vmatprep.subr.bf16.mxu0 %v450
  %485 = vmatpush1.bf16.msra.mxu0 %v449
  %486 = vmatprep.subr.bf16.mxu0 %v454
  %487 = vmatpush1.bf16.msra.mxu0 %v453
  %488 = vmatprep.subr.bf16.mxu0 %v458
  %489 = vmatpush1.bf16.msra.mxu0 %v457
  %490 = vmatprep.subr.bf16.mxu0 %v462
  %491 = vmatpush1.bf16.msra.mxu0 %v461
  %492 = vmatprep.subr.bf16.mxu0 0
  %493 = vmatpush1.bf16.msra.mxu0 0
  %494 = vmatprep.subr.bf16.mxu0 0
  %495 = vmatpush1.bf16.msra.mxu0 0
  %496 = vmatprep.subr.bf16.mxu0 0
  %497 = vmatpush1.bf16.msra.mxu0 0
  %498 = vmatprep.subr.bf16.mxu0 0
  %499 = vmatpush1.bf16.msra.mxu0 0
  %500 = vmatprep.subr.bf16.mxu0 0
  %501 = vmatpush1.bf16.msra.mxu0 0
  %502 = vmatprep.subr.bf16.mxu0 0
  %503 = vmatpush1.bf16.msra.mxu0 0
  %504 = vmatprep.subr.bf16.mxu0 0
  %505 = vmatpush1.bf16.msra.mxu0 0
  %506 = vmatprep.subr.bf16.mxu0 0
  %507 = vmatpush1.bf16.msra.mxu0 0
  %508 = vmatprep.subr.bf16.mxu0 0
  %509 = vmatpush1.bf16.msra.mxu0 0
  %510 = vmatprep.subr.bf16.mxu0 0
  %511 = vmatpush1.bf16.msra.mxu0 0
  %512 = vmatprep.subr.bf16.mxu0 0
  %513 = vmatpush1.bf16.msra.mxu0 0
  %514 = vmatprep.subr.bf16.mxu0 0
  %515 = vmatpush1.bf16.msra.mxu0 0
  %516 = vmatprep.mubr.bf16.mxu0 0
  %517 = vmatmul.mubr.bf16.gmra.mrb[0].mxu0 %v482
  %v518 = vpop.f32.mrb[0].mxu0
  %v519 = vadd.f32 0.0, %v518
  %v520 = vpop.f32.mrb[0].mxu0
  %v521 = vadd.f32 0.0, %v520
  %v522 = vpop.f32.mrb[0].mxu0
  %v523 = vpop.f32.mrb[0].mxu0
  %524 = vdwg.mxu0
  %525 = vmatprep.subr.bf16.mxu0 %v452
  %526 = vmatpush1.bf16.msra.mxu0 %v451
  %527 = vmatprep.subr.bf16.mxu0 %v456
  %528 = vmatpush1.bf16.msra.mxu0 %v455
  %529 = vmatprep.subr.bf16.mxu0 %v460
  %530 = vmatpush1.bf16.msra.mxu0 %v459
  %531 = vmatprep.subr.bf16.mxu0 %v464
  %532 = vmatpush1.bf16.msra.mxu0 %v463
  %533 = vmatprep.subr.bf16.mxu0 0
  %534 = vmatpush1.bf16.msra.mxu0 0
  %535 = vmatprep.subr.bf16.mxu0 0
  %536 = vmatpush1.bf16.msra.mxu0 0
  %537 = vmatprep.subr.bf16.mxu0 0
  %538 = vmatpush1.bf16.msra.mxu0 0
  %539 = vmatprep.subr.bf16.mxu0 0
  %540 = vmatpush1.bf16.msra.mxu0 0
  %541 = vmatprep.subr.bf16.mxu0 0
  %542 = vmatpush1.bf16.msra.mxu0 0
  %543 = vmatprep.subr.bf16.mxu0 0
  %544 = vmatpush1.bf16.msra.mxu0 0
  %545 = vmatprep.subr.bf16.mxu0 0
  %546 = vmatpush1.bf16.msra.mxu0 0
  %547 = vmatprep.subr.bf16.mxu0 0
  %548 = vmatpush1.bf16.msra.mxu0 0
  %549 = vmatprep.subr.bf16.mxu0 0
  %550 = vmatpush1.bf16.msra.mxu0 0
  %551 = vmatprep.subr.bf16.mxu0 0
  %552 = vmatpush1.bf16.msra.mxu0 0
  %553 = vmatprep.subr.bf16.mxu0 0
  %554 = vmatpush1.bf16.msra.mxu0 0
  %555 = vmatprep.subr.bf16.mxu0 0
  %556 = vmatpush1.bf16.msra.mxu0 0
  %557 = vmatprep.mubr.bf16.mxu0 0
  %558 = vmatmul.mubr.bf16.gmra.mrb[0].mxu0 %v482
  %v559 = vpop.f32.mrb[0].mxu0
  %v560 = vadd.f32 0.0, %v559
  %v561 = vpop.f32.mrb[0].mxu0
  %v562 = vadd.f32 0.0, %v561
  %v563 = vpop.f32.mrb[0].mxu0
  %v564 = vpop.f32.mrb[0].mxu0
  %565 = vdwg.mxu0
  %v566 = vadd.f32 %v335, %v519
  %v567 = vadd.f32 %v337, %v521
  %v568 = vadd.f32 %v376, %v560
  %v569 = vadd.f32 %v378, %v562
  %s570 = scalar_lea.vmem %s1, 6
  %v571 = vld [vmem:[%s570] sm:$0x3]
  %s572 = scalar_lea.vmem %s0, 384
  %v573 = vld [vmem:[%s572] sm:$0xff]
  %v574 = vld [vmem:[%s572 + $0x8] sm:$0xff]
  %v575 = vld [vmem:[%s572 + $0x10] sm:$0xff]
  %v576 = vld [vmem:[%s572 + $0x18] sm:$0xff]
  %v577 = vld [vmem:[%s572 + $0x20] sm:$0xff]
  %v578 = vld [vmem:[%s572 + $0x28] sm:$0xff]
  %v579 = vld [vmem:[%s572 + $0x30] sm:$0xff]
  %v580 = vld [vmem:[%s572 + $0x38] sm:$0xff]
  %v581 = vld [vmem:[%s572 + $0x40] sm:$0xff]
  %v582 = vld [vmem:[%s572 + $0x48] sm:$0xff]
  %v583 = vld [vmem:[%s572 + $0x50] sm:$0xff]
  %v584 = vld [vmem:[%s572 + $0x58] sm:$0xff]
  %v585 = vld [vmem:[%s572 + $0x60] sm:$0xff]
  %v586 = vld [vmem:[%s572 + $0x68] sm:$0xff]
  %v587 = vld [vmem:[%s572 + $0x70] sm:$0xff]
  %v588 = vld [vmem:[%s572 + $0x78] sm:$0xff]
  %v605 = vunpack.c.l.b16 %v573
  %v606 = vunpack.c.h.b16 %v573
  %v607 = vunpack.c.l.b16 %v574
  %v608 = vunpack.c.h.b16 %v574
  %v609 = vunpack.c.l.b16 %v575
  %v610 = vunpack.c.h.b16 %v575
  %v611 = vunpack.c.l.b16 %v576
  %v612 = vunpack.c.h.b16 %v576
  %v613 = vunpack.c.l.b16 %v577
  %v614 = vunpack.c.h.b16 %v577
  %v615 = vunpack.c.l.b16 %v578
  %v616 = vunpack.c.h.b16 %v578
  %v617 = vunpack.c.l.b16 %v579
  %v618 = vunpack.c.h.b16 %v579
  %v619 = vunpack.c.l.b16 %v580
  %v620 = vunpack.c.h.b16 %v580
  %v621 = vunpack.c.l.b16 %v581
  %v622 = vunpack.c.h.b16 %v581
  %v623 = vunpack.c.l.b16 %v582
  %v624 = vunpack.c.h.b16 %v582
  %v625 = vunpack.c.l.b16 %v583
  %v626 = vunpack.c.h.b16 %v583
  %v627 = vunpack.c.l.b16 %v584
  %v628 = vunpack.c.h.b16 %v584
  %v629 = vunpack.c.l.b16 %v585
  %v630 = vunpack.c.h.b16 %v585
  %v631 = vunpack.c.l.b16 %v586
  %v632 = vunpack.c.h.b16 %v586
  %v633 = vunpack.c.l.b16 %v587
  %v634 = vunpack.c.h.b16 %v587
  %v635 = vunpack.c.l.b16 %v588
  %v636 = vunpack.c.h.b16 %v588
  %v637 = vpack.c.b16 %v609, %v605
  %v638 = vpack.c.b16 %v610, %v606
  %v639 = vpack.c.b16 %v611, %v607
  %v640 = vpack.c.b16 %v612, %v608
  %v641 = vpack.c.b16 %v617, %v613
  %v642 = vpack.c.b16 %v618, %v614
  %v643 = vpack.c.b16 %v619, %v615
  %v644 = vpack.c.b16 %v620, %v616
  %v645 = vpack.c.b16 %v625, %v621
  %v646 = vpack.c.b16 %v626, %v622
  %v647 = vpack.c.b16 %v627, %v623
  %v648 = vpack.c.b16 %v628, %v624
  %v649 = vpack.c.b16 %v633, %v629
  %v650 = vpack.c.b16 %v634, %v630
  %v651 = vpack.c.b16 %v635, %v631
  %v652 = vpack.c.b16 %v636, %v632
  %v670 = vsel %vm131, %v571, 0
  %672 = vmatprep.subr.bf16.mxu0 %v638
  %673 = vmatpush1.bf16.msra.mxu0 %v637
  %674 = vmatprep.subr.bf16.mxu0 %v642
  %675 = vmatpush1.bf16.msra.mxu0 %v641
  %676 = vmatprep.subr.bf16.mxu0 %v646
  %677 = vmatpush1.bf16.msra.mxu0 %v645
  %678 = vmatprep.subr.bf16.mxu0 %v650
  %679 = vmatpush1.bf16.msra.mxu0 %v649
  %680 = vmatprep.subr.bf16.mxu0 0
  %681 = vmatpush1.bf16.msra.mxu0 0
  %682 = vmatprep.subr.bf16.mxu0 0
  %683 = vmatpush1.bf16.msra.mxu0 0
  %684 = vmatprep.subr.bf16.mxu0 0
  %685 = vmatpush1.bf16.msra.mxu0 0
  %686 = vmatprep.subr.bf16.mxu0 0
  %687 = vmatpush1.bf16.msra.mxu0 0
  %688 = vmatprep.subr.bf16.mxu0 0
  %689 = vmatpush1.bf16.msra.mxu0 0
  %690 = vmatprep.subr.bf16.mxu0 0
  %691 = vmatpush1.bf16.msra.mxu0 0
  %692 = vmatprep.subr.bf16.mxu0 0
  %693 = vmatpush1.bf16.msra.mxu0 0
  %694 = vmatprep.subr.bf16.mxu0 0
  %695 = vmatpush1.bf16.msra.mxu0 0
  %696 = vmatprep.subr.bf16.mxu0 0
  %697 = vmatpush1.bf16.msra.mxu0 0
  %698 = vmatprep.subr.bf16.mxu0 0
  %699 = vmatpush1.bf16.msra.mxu0 0
  %700 = vmatprep.subr.bf16.mxu0 0
  %701 = vmatpush1.bf16.msra.mxu0 0
  %702 = vmatprep.subr.bf16.mxu0 0
  %703 = vmatpush1.bf16.msra.mxu0 0
  %704 = vmatprep.mubr.bf16.mxu0 0
  %705 = vmatmul.mubr.bf16.gmra.mrb[0].mxu0 %v670
  %v706 = vpop.f32.mrb[0].mxu0
  %v707 = vadd.f32 0.0, %v706
  %v708 = vpop.f32.mrb[0].mxu0
  %v709 = vadd.f32 0.0, %v708
  %v710 = vpop.f32.mrb[0].mxu0
  %v711 = vpop.f32.mrb[0].mxu0
  %712 = vdwg.mxu0
  %713 = vmatprep.subr.bf16.mxu0 %v640
  %714 = vmatpush1.bf16.msra.mxu0 %v639
  %715 = vmatprep.subr.bf16.mxu0 %v644
  %716 = vmatpush1.bf16.msra.mxu0 %v643
  %717 = vmatprep.subr.bf16.mxu0 %v648
  %718 = vmatpush1.bf16.msra.mxu0 %v647
  %719 = vmatprep.subr.bf16.mxu0 %v652
  %720 = vmatpush1.bf16.msra.mxu0 %v651
  %721 = vmatprep.subr.bf16.mxu0 0
  %722 = vmatpush1.bf16.msra.mxu0 0
  %723 = vmatprep.subr.bf16.mxu0 0
  %724 = vmatpush1.bf16.msra.mxu0 0
  %725 = vmatprep.subr.bf16.mxu0 0
  %726 = vmatpush1.bf16.msra.mxu0 0
  %727 = vmatprep.subr.bf16.mxu0 0
  %728 = vmatpush1.bf16.msra.mxu0 0
  %729 = vmatprep.subr.bf16.mxu0 0
  %730 = vmatpush1.bf16.msra.mxu0 0
  %731 = vmatprep.subr.bf16.mxu0 0
  %732 = vmatpush1.bf16.msra.mxu0 0
  %733 = vmatprep.subr.bf16.mxu0 0
  %734 = vmatpush1.bf16.msra.mxu0 0
  %735 = vmatprep.subr.bf16.mxu0 0
  %736 = vmatpush1.bf16.msra.mxu0 0
  %737 = vmatprep.subr.bf16.mxu0 0
  %738 = vmatpush1.bf16.msra.mxu0 0
  %739 = vmatprep.subr.bf16.mxu0 0
  %740 = vmatpush1.bf16.msra.mxu0 0
  %741 = vmatprep.subr.bf16.mxu0 0
  %742 = vmatpush1.bf16.msra.mxu0 0
  %743 = vmatprep.subr.bf16.mxu0 0
  %744 = vmatpush1.bf16.msra.mxu0 0
  %745 = vmatprep.mubr.bf16.mxu0 0
  %746 = vmatmul.mubr.bf16.gmra.mrb[0].mxu0 %v670
  %v747 = vpop.f32.mrb[0].mxu0
  %v748 = vadd.f32 0.0, %v747
  %v749 = vpop.f32.mrb[0].mxu0
  %v750 = vadd.f32 0.0, %v749
  %v751 = vpop.f32.mrb[0].mxu0
  %v752 = vpop.f32.mrb[0].mxu0
  %753 = vdwg.mxu0
  %v754 = vadd.f32 %v566, %v707
  %v755 = vadd.f32 %v567, %v709
  %v756 = vadd.f32 %v568, %v748
  %v757 = vadd.f32 %v569, %v750
  %s758 = scalar_lea.vmem %s1, 8
  %v759 = vld [vmem:[%s758] sm:$0x3]
  %s760 = scalar_lea.vmem %s0, 512
  %v761 = vld [vmem:[%s760] sm:$0xff]
  %v762 = vld [vmem:[%s760 + $0x8] sm:$0xff]
  %v763 = vld [vmem:[%s760 + $0x10] sm:$0xff]
  %v764 = vld [vmem:[%s760 + $0x18] sm:$0xff]
  %v765 = vld [vmem:[%s760 + $0x20] sm:$0xff]
  %v766 = vld [vmem:[%s760 + $0x28] sm:$0xff]
  %v767 = vld [vmem:[%s760 + $0x30] sm:$0xff]
  %v768 = vld [vmem:[%s760 + $0x38] sm:$0xff]
  %v769 = vld [vmem:[%s760 + $0x40] sm:$0xff]
  %v770 = vld [vmem:[%s760 + $0x48] sm:$0xff]
  %v771 = vld [vmem:[%s760 + $0x50] sm:$0xff]
  %v772 = vld [vmem:[%s760 + $0x58] sm:$0xff]
  %v773 = vld [vmem:[%s760 + $0x60] sm:$0xff]
  %v774 = vld [vmem:[%s760 + $0x68] sm:$0xff]
  %v775 = vld [vmem:[%s760 + $0x70] sm:$0xff]
  %v776 = vld [vmem:[%s760 + $0x78] sm:$0xff]
  %v793 = vunpack.c.l.b16 %v761
  %v794 = vunpack.c.h.b16 %v761
  %v795 = vunpack.c.l.b16 %v762
  %v796 = vunpack.c.h.b16 %v762
  %v797 = vunpack.c.l.b16 %v763
  %v798 = vunpack.c.h.b16 %v763
  %v799 = vunpack.c.l.b16 %v764
  %v800 = vunpack.c.h.b16 %v764
  %v801 = vunpack.c.l.b16 %v765
  %v802 = vunpack.c.h.b16 %v765
  %v803 = vunpack.c.l.b16 %v766
  %v804 = vunpack.c.h.b16 %v766
  %v805 = vunpack.c.l.b16 %v767
  %v806 = vunpack.c.h.b16 %v767
  %v807 = vunpack.c.l.b16 %v768
  %v808 = vunpack.c.h.b16 %v768
  %v809 = vunpack.c.l.b16 %v769
  %v810 = vunpack.c.h.b16 %v769
  %v811 = vunpack.c.l.b16 %v770
  %v812 = vunpack.c.h.b16 %v770
  %v813 = vunpack.c.l.b16 %v771
  %v814 = vunpack.c.h.b16 %v771
  %v815 = vunpack.c.l.b16 %v772
  %v816 = vunpack.c.h.b16 %v772
  %v817 = vunpack.c.l.b16 %v773
  %v818 = vunpack.c.h.b16 %v773
  %v819 = vunpack.c.l.b16 %v774
  %v820 = vunpack.c.h.b16 %v774
  %v821 = vunpack.c.l.b16 %v775
  %v822 = vunpack.c.h.b16 %v775
  %v823 = vunpack.c.l.b16 %v776
  %v824 = vunpack.c.h.b16 %v776
  %v825 = vpack.c.b16 %v797, %v793
  %v826 = vpack.c.b16 %v798, %v794
  %v827 = vpack.c.b16 %v799, %v795
  %v828 = vpack.c.b16 %v800, %v796
  %v829 = vpack.c.b16 %v805, %v801
  %v830 = vpack.c.b16 %v806, %v802
  %v831 = vpack.c.b16 %v807, %v803
  %v832 = vpack.c.b16 %v808, %v804
  %v833 = vpack.c.b16 %v813, %v809
  %v834 = vpack.c.b16 %v814, %v810
  %v835 = vpack.c.b16 %v815, %v811
  %v836 = vpack.c.b16 %v816, %v812
  %v837 = vpack.c.b16 %v821, %v817
  %v838 = vpack.c.b16 %v822, %v818
  %v839 = vpack.c.b16 %v823, %v819
  %v840 = vpack.c.b16 %v824, %v820
  %v858 = vsel %vm131, %v759, 0
  %860 = vmatprep.subr.bf16.mxu0 %v826
  %861 = vmatpush1.bf16.msra.mxu0 %v825
  %862 = vmatprep.subr.bf16.mxu0 %v830
  %863 = vmatpush1.bf16.msra.mxu0 %v829
  %864 = vmatprep.subr.bf16.mxu0 %v834
  %865 = vmatpush1.bf16.msra.mxu0 %v833
  %866 = vmatprep.subr.bf16.mxu0 %v838
  %867 = vmatpush1.bf16.msra.mxu0 %v837
  %868 = vmatprep.subr.bf16.mxu0 0
  %869 = vmatpush1.bf16.msra.mxu0 0
  %870 = vmatprep.subr.bf16.mxu0 0
  %871 = vmatpush1.bf16.msra.mxu0 0
  %872 = vmatprep.subr.bf16.mxu0 0
  %873 = vmatpush1.bf16.msra.mxu0 0
  %874 = vmatprep.subr.bf16.mxu0 0
  %875 = vmatpush1.bf16.msra.mxu0 0
  %876 = vmatprep.subr.bf16.mxu0 0
  %877 = vmatpush1.bf16.msra.mxu0 0
  %878 = vmatprep.subr.bf16.mxu0 0
  %879 = vmatpush1.bf16.msra.mxu0 0
  %880 = vmatprep.subr.bf16.mxu0 0
  %881 = vmatpush1.bf16.msra.mxu0 0
  %882 = vmatprep.subr.bf16.mxu0 0
  %883 = vmatpush1.bf16.msra.mxu0 0
  %884 = vmatprep.subr.bf16.mxu0 0
  %885 = vmatpush1.bf16.msra.mxu0 0
  %886 = vmatprep.subr.bf16.mxu0 0
  %887 = vmatpush1.bf16.msra.mxu0 0
  %888 = vmatprep.subr.bf16.mxu0 0
  %889 = vmatpush1.bf16.msra.mxu0 0
  %890 = vmatprep.subr.bf16.mxu0 0
  %891 = vmatpush1.bf16.msra.mxu0 0
  %892 = vmatprep.mubr.bf16.mxu0 0
  %893 = vmatmul.mubr.bf16.gmra.mrb[0].mxu0 %v858
  %v894 = vpop.f32.mrb[0].mxu0
  %v895 = vadd.f32 0.0, %v894
  %v896 = vpop.f32.mrb[0].mxu0
  %v897 = vadd.f32 0.0, %v896
  %v898 = vpop.f32.mrb[0].mxu0
  %v899 = vpop.f32.mrb[0].mxu0
  %900 = vdwg.mxu0
  %901 = vmatprep.subr.bf16.mxu0 %v828
  %902 = vmatpush1.bf16.msra.mxu0 %v827
  %903 = vmatprep.subr.bf16.mxu0 %v832
  %904 = vmatpush1.bf16.msra.mxu0 %v831
  %905 = vmatprep.subr.bf16.mxu0 %v836
  %906 = vmatpush1.bf16.msra.mxu0 %v835
  %907 = vmatprep.subr.bf16.mxu0 %v840
  %908 = vmatpush1.bf16.msra.mxu0 %v839
  %909 = vmatprep.subr.bf16.mxu0 0
  %910 = vmatpush1.bf16.msra.mxu0 0
  %911 = vmatprep.subr.bf16.mxu0 0
  %912 = vmatpush1.bf16.msra.mxu0 0
  %913 = vmatprep.subr.bf16.mxu0 0
  %914 = vmatpush1.bf16.msra.mxu0 0
  %915 = vmatprep.subr.bf16.mxu0 0
  %916 = vmatpush1.bf16.msra.mxu0 0
  %917 = vmatprep.subr.bf16.mxu0 0
  %918 = vmatpush1.bf16.msra.mxu0 0
  %919 = vmatprep.subr.bf16.mxu0 0
  %920 = vmatpush1.bf16.msra.mxu0 0
  %921 = vmatprep.subr.bf16.mxu0 0
  %922 = vmatpush1.bf16.msra.mxu0 0
  %923 = vmatprep.subr.bf16.mxu0 0
  %924 = vmatpush1.bf16.msra.mxu0 0
  %925 = vmatprep.subr.bf16.mxu0 0
  %926 = vmatpush1.bf16.msra.mxu0 0
  %927 = vmatprep.subr.bf16.mxu0 0
  %928 = vmatpush1.bf16.msra.mxu0 0
  %929 = vmatprep.subr.bf16.mxu0 0
  %930 = vmatpush1.bf16.msra.mxu0 0
  %931 = vmatprep.subr.bf16.mxu0 0
  %932 = vmatpush1.bf16.msra.mxu0 0
  %933 = vmatprep.mubr.bf16.mxu0 0
  %934 = vmatmul.mubr.bf16.gmra.mrb[0].mxu0 %v858
  %v935 = vpop.f32.mrb[0].mxu0
  %v936 = vadd.f32 0.0, %v935
  %v937 = vpop.f32.mrb[0].mxu0
  %v938 = vadd.f32 0.0, %v937
  %v939 = vpop.f32.mrb[0].mxu0
  %v940 = vpop.f32.mrb[0].mxu0
  %941 = vdwg.mxu0
  %v942 = vadd.f32 %v754, %v895
  %v943 = vadd.f32 %v755, %v897
  %v944 = vadd.f32 %v756, %v936
  %v945 = vadd.f32 %v757, %v938
  %s946 = scalar_lea.vmem %s1, 10
  %v947 = vld [vmem:[%s946] sm:$0x3]
  %s948 = scalar_lea.vmem %s0, 640
  %v949 = vld [vmem:[%s948] sm:$0xff]
  %v950 = vld [vmem:[%s948 + $0x8] sm:$0xff]
  %v951 = vld [vmem:[%s948 + $0x10] sm:$0xff]
  %v952 = vld [vmem:[%s948 + $0x18] sm:$0xff]
  %v953 = vld [vmem:[%s948 + $0x20] sm:$0xff]
  %v954 = vld [vmem:[%s948 + $0x28] sm:$0xff]
  %v955 = vld [vmem:[%s948 + $0x30] sm:$0xff]
  %v956 = vld [vmem:[%s948 + $0x38] sm:$0xff]
  %v957 = vld [vmem:[%s948 + $0x40] sm:$0xff]
  %v958 = vld [vmem:[%s948 + $0x48] sm:$0xff]
  %v959 = vld [vmem:[%s948 + $0x50] sm:$0xff]
  %v960 = vld [vmem:[%s948 + $0x58] sm:$0xff]
  %v961 = vld [vmem:[%s948 + $0x60] sm:$0xff]
  %v962 = vld [vmem:[%s948 + $0x68] sm:$0xff]
  %v963 = vld [vmem:[%s948 + $0x70] sm:$0xff]
  %v964 = vld [vmem:[%s948 + $0x78] sm:$0xff]
  %v981 = vunpack.c.l.b16 %v949
  %v982 = vunpack.c.h.b16 %v949
  %v983 = vunpack.c.l.b16 %v950
  %v984 = vunpack.c.h.b16 %v950
  %v985 = vunpack.c.l.b16 %v951
  %v986 = vunpack.c.h.b16 %v951
  %v987 = vunpack.c.l.b16 %v952
  %v988 = vunpack.c.h.b16 %v952
  %v989 = vunpack.c.l.b16 %v953
  %v990 = vunpack.c.h.b16 %v953
  %v991 = vunpack.c.l.b16 %v954
  %v992 = vunpack.c.h.b16 %v954
  %v993 = vunpack.c.l.b16 %v955
  %v994 = vunpack.c.h.b16 %v955
  %v995 = vunpack.c.l.b16 %v956
  %v996 = vunpack.c.h.b16 %v956
  %v997 = vunpack.c.l.b16 %v957
  %v998 = vunpack.c.h.b16 %v957
  %v999 = vunpack.c.l.b16 %v958
  %v1000 = vunpack.c.h.b16 %v958
  %v1001 = vunpack.c.l.b16 %v959
  %v1002 = vunpack.c.h.b16 %v959
  %v1003 = vunpack.c.l.b16 %v960
  %v1004 = vunpack.c.h.b16 %v960
  %v1005 = vunpack.c.l.b16 %v961
  %v1006 = vunpack.c.h.b16 %v961
  %v1007 = vunpack.c.l.b16 %v962
  %v1008 = vunpack.c.h.b16 %v962
  %v1009 = vunpack.c.l.b16 %v963
  %v1010 = vunpack.c.h.b16 %v963
  %v1011 = vunpack.c.l.b16 %v964
  %v1012 = vunpack.c.h.b16 %v964
  %v1013 = vpack.c.b16 %v985, %v981
  %v1014 = vpack.c.b16 %v986, %v982
  %v1015 = vpack.c.b16 %v987, %v983
  %v1016 = vpack.c.b16 %v988, %v984
  %v1017 = vpack.c.b16 %v993, %v989
  %v1018 = vpack.c.b16 %v994, %v990
  %v1019 = vpack.c.b16 %v995, %v991
  %v1020 = vpack.c.b16 %v996, %v992
  %v1021 = vpack.c.b16 %v1001, %v997
  %v1022 = vpack.c.b16 %v1002, %v998
  %v1023 = vpack.c.b16 %v1003, %v999
  %v1024 = vpack.c.b16 %v1004, %v1000
  %v1025 = vpack.c.b16 %v1009, %v1005
  %v1026 = vpack.c.b16 %v1010, %v1006
  %v1027 = vpack.c.b16 %v1011, %v1007
  %v1028 = vpack.c.b16 %v1012, %v1008
  %v1046 = vsel %vm131, %v947, 0
  %1048 = vmatprep.subr.bf16.mxu0 %v1014
  %1049 = vmatpush1.bf16.msra.mxu0 %v1013
  %1050 = vmatprep.subr.bf16.mxu0 %v1018
  %1051 = vmatpush1.bf16.msra.mxu0 %v1017
  %1052 = vmatprep.subr.bf16.mxu0 %v1022
  %1053 = vmatpush1.bf16.msra.mxu0 %v1021
  %1054 = vmatprep.subr.bf16.mxu0 %v1026
  %1055 = vmatpush1.bf16.msra.mxu0 %v1025
  %1056 = vmatprep.subr.bf16.mxu0 0
  %1057 = vmatpush1.bf16.msra.mxu0 0
  %1058 = vmatprep.subr.bf16.mxu0 0
  %1059 = vmatpush1.bf16.msra.mxu0 0
  %1060 = vmatprep.subr.bf16.mxu0 0
  %1061 = vmatpush1.bf16.msra.mxu0 0
  %1062 = vmatprep.subr.bf16.mxu0 0
  %1063 = vmatpush1.bf16.msra.mxu0 0
  %1064 = vmatprep.subr.bf16.mxu0 0
  %1065 = vmatpush1.bf16.msra.mxu0 0
  %1066 = vmatprep.subr.bf16.mxu0 0
  %1067 = vmatpush1.bf16.msra.mxu0 0
  %1068 = vmatprep.subr.bf16.mxu0 0
  %1069 = vmatpush1.bf16.msra.mxu0 0
  %1070 = vmatprep.subr.bf16.mxu0 0
  %1071 = vmatpush1.bf16.msra.mxu0 0
  %1072 = vmatprep.subr.bf16.mxu0 0
  %1073 = vmatpush1.bf16.msra.mxu0 0
  %1074 = vmatprep.subr.bf16.mxu0 0
  %1075 = vmatpush1.bf16.msra.mxu0 0
  %1076 = vmatprep.subr.bf16.mxu0 0
  %1077 = vmatpush1.bf16.msra.mxu0 0
  %1078 = vmatprep.subr.bf16.mxu0 0
  %1079 = vmatpush1.bf16.msra.mxu0 0
  %1080 = vmatprep.mubr.bf16.mxu0 0
  %1081 = vmatmul.mubr.bf16.gmra.mrb[0].mxu0 %v1046
  %v1082 = vpop.f32.mrb[0].mxu0
  %v1083 = vadd.f32 0.0, %v1082
  %v1084 = vpop.f32.mrb[0].mxu0
  %v1085 = vadd.f32 0.0, %v1084
  %v1086 = vpop.f32.mrb[0].mxu0
  %v1087 = vpop.f32.mrb[0].mxu0
  %1088 = vdwg.mxu0
  %1089 = vmatprep.subr.bf16.mxu0 %v1016
  %1090 = vmatpush1.bf16.msra.mxu0 %v1015
  %1091 = vmatprep.subr.bf16.mxu0 %v1020
  %1092 = vmatpush1.bf16.msra.mxu0 %v1019
  %1093 = vmatprep.subr.bf16.mxu0 %v1024
  %1094 = vmatpush1.bf16.msra.mxu0 %v1023
  %1095 = vmatprep.subr.bf16.mxu0 %v1028
  %1096 = vmatpush1.bf16.msra.mxu0 %v1027
  %1097 = vmatprep.subr.bf16.mxu0 0
  %1098 = vmatpush1.bf16.msra.mxu0 0
  %1099 = vmatprep.subr.bf16.mxu0 0
  %1100 = vmatpush1.bf16.msra.mxu0 0
  %1101 = vmatprep.subr.bf16.mxu0 0
  %1102 = vmatpush1.bf16.msra.mxu0 0
  %1103 = vmatprep.subr.bf16.mxu0 0
  %1104 = vmatpush1.bf16.msra.mxu0 0
  %1105 = vmatprep.subr.bf16.mxu0 0
  %1106 = vmatpush1.bf16.msra.mxu0 0
  %1107 = vmatprep.subr.bf16.mxu0 0
  %1108 = vmatpush1.bf16.msra.mxu0 0
  %1109 = vmatprep.subr.bf16.mxu0 0
  %1110 = vmatpush1.bf16.msra.mxu0 0
  %1111 = vmatprep.subr.bf16.mxu0 0
  %1112 = vmatpush1.bf16.msra.mxu0 0
  %1113 = vmatprep.subr.bf16.mxu0 0
  %1114 = vmatpush1.bf16.msra.mxu0 0
  %1115 = vmatprep.subr.bf16.mxu0 0
  %1116 = vmatpush1.bf16.msra.mxu0 0
  %1117 = vmatprep.subr.bf16.mxu0 0
  %1118 = vmatpush1.bf16.msra.mxu0 0
  %1119 = vmatprep.subr.bf16.mxu0 0
  %1120 = vmatpush1.bf16.msra.mxu0 0
  %1121 = vmatprep.mubr.bf16.mxu0 0
  %1122 = vmatmul.mubr.bf16.gmra.mrb[0].mxu0 %v1046
  %v1123 = vpop.f32.mrb[0].mxu0
  %v1124 = vadd.f32 0.0, %v1123
  %v1125 = vpop.f32.mrb[0].mxu0
  %v1126 = vadd.f32 0.0, %v1125
  %v1127 = vpop.f32.mrb[0].mxu0
  %v1128 = vpop.f32.mrb[0].mxu0
  %1129 = vdwg.mxu0
  %v1130 = vadd.f32 %v942, %v1083
  %v1131 = vadd.f32 %v943, %v1085
  %v1132 = vadd.f32 %v944, %v1124
  %v1133 = vadd.f32 %v945, %v1126
  %s1134 = scalar_lea.vmem %s1, 12
  %v1135 = vld [vmem:[%s1134] sm:$0x3]
  %s1136 = scalar_lea.vmem %s0, 768
  %v1137 = vld [vmem:[%s1136] sm:$0xff]
  %v1138 = vld [vmem:[%s1136 + $0x8] sm:$0xff]
  %v1139 = vld [vmem:[%s1136 + $0x10] sm:$0xff]
  %v1140 = vld [vmem:[%s1136 + $0x18] sm:$0xff]
  %v1141 = vld [vmem:[%s1136 + $0x20] sm:$0xff]
  %v1142 = vld [vmem:[%s1136 + $0x28] sm:$0xff]
  %v1143 = vld [vmem:[%s1136 + $0x30] sm:$0xff]
  %v1144 = vld [vmem:[%s1136 + $0x38] sm:$0xff]
  %v1145 = vld [vmem:[%s1136 + $0x40] sm:$0xff]
  %v1146 = vld [vmem:[%s1136 + $0x48] sm:$0xff]
  %v1147 = vld [vmem:[%s1136 + $0x50] sm:$0xff]
  %v1148 = vld [vmem:[%s1136 + $0x58] sm:$0xff]
  %v1149 = vld [vmem:[%s1136 + $0x60] sm:$0xff]
  %v1150 = vld [vmem:[%s1136 + $0x68] sm:$0xff]
  %v1151 = vld [vmem:[%s1136 + $0x70] sm:$0xff]
  %v1152 = vld [vmem:[%s1136 + $0x78] sm:$0xff]
  %v1169 = vunpack.c.l.b16 %v1137
  %v1170 = vunpack.c.h.b16 %v1137
  %v1171 = vunpack.c.l.b16 %v1138
  %v1172 = vunpack.c.h.b16 %v1138
  %v1173 = vunpack.c.l.b16 %v1139
  %v1174 = vunpack.c.h.b16 %v1139
  %v1175 = vunpack.c.l.b16 %v1140
  %v1176 = vunpack.c.h.b16 %v1140
  %v1177 = vunpack.c.l.b16 %v1141
  %v1178 = vunpack.c.h.b16 %v1141
  %v1179 = vunpack.c.l.b16 %v1142
  %v1180 = vunpack.c.h.b16 %v1142
  %v1181 = vunpack.c.l.b16 %v1143
  %v1182 = vunpack.c.h.b16 %v1143
  %v1183 = vunpack.c.l.b16 %v1144
  %v1184 = vunpack.c.h.b16 %v1144
  %v1185 = vunpack.c.l.b16 %v1145
  %v1186 = vunpack.c.h.b16 %v1145
  %v1187 = vunpack.c.l.b16 %v1146
  %v1188 = vunpack.c.h.b16 %v1146
  %v1189 = vunpack.c.l.b16 %v1147
  %v1190 = vunpack.c.h.b16 %v1147
  %v1191 = vunpack.c.l.b16 %v1148
  %v1192 = vunpack.c.h.b16 %v1148
  %v1193 = vunpack.c.l.b16 %v1149
  %v1194 = vunpack.c.h.b16 %v1149
  %v1195 = vunpack.c.l.b16 %v1150
  %v1196 = vunpack.c.h.b16 %v1150
  %v1197 = vunpack.c.l.b16 %v1151
  %v1198 = vunpack.c.h.b16 %v1151
  %v1199 = vunpack.c.l.b16 %v1152
  %v1200 = vunpack.c.h.b16 %v1152
  %v1201 = vpack.c.b16 %v1173, %v1169
  %v1202 = vpack.c.b16 %v1174, %v1170
  %v1203 = vpack.c.b16 %v1175, %v1171
  %v1204 = vpack.c.b16 %v1176, %v1172
  %v1205 = vpack.c.b16 %v1181, %v1177
  %v1206 = vpack.c.b16 %v1182, %v1178
  %v1207 = vpack.c.b16 %v1183, %v1179
  %v1208 = vpack.c.b16 %v1184, %v1180
  %v1209 = vpack.c.b16 %v1189, %v1185
  %v1210 = vpack.c.b16 %v1190, %v1186
  %v1211 = vpack.c.b16 %v1191, %v1187
  %v1212 = vpack.c.b16 %v1192, %v1188
  %v1213 = vpack.c.b16 %v1197, %v1193
  %v1214 = vpack.c.b16 %v1198, %v1194
  %v1215 = vpack.c.b16 %v1199, %v1195
  %v1216 = vpack.c.b16 %v1200, %v1196
  %v1234 = vsel %vm131, %v1135, 0
  %1236 = vmatprep.subr.bf16.mxu0 %v1202
  %1237 = vmatpush1.bf16.msra.mxu0 %v1201
  %1238 = vmatprep.subr.bf16.mxu0 %v1206
  %1239 = vmatpush1.bf16.msra.mxu0 %v1205
  %1240 = vmatprep.subr.bf16.mxu0 %v1210
  %1241 = vmatpush1.bf16.msra.mxu0 %v1209
  %1242 = vmatprep.subr.bf16.mxu0 %v1214
  %1243 = vmatpush1.bf16.msra.mxu0 %v1213
  %1244 = vmatprep.subr.bf16.mxu0 0
  %1245 = vmatpush1.bf16.msra.mxu0 0
  %1246 = vmatprep.subr.bf16.mxu0 0
  %1247 = vmatpush1.bf16.msra.mxu0 0
  %1248 = vmatprep.subr.bf16.mxu0 0
  %1249 = vmatpush1.bf16.msra.mxu0 0
  %1250 = vmatprep.subr.bf16.mxu0 0
  %1251 = vmatpush1.bf16.msra.mxu0 0
  %1252 = vmatprep.subr.bf16.mxu0 0
  %1253 = vmatpush1.bf16.msra.mxu0 0
  %1254 = vmatprep.subr.bf16.mxu0 0
  %1255 = vmatpush1.bf16.msra.mxu0 0
  %1256 = vmatprep.subr.bf16.mxu0 0
  %1257 = vmatpush1.bf16.msra.mxu0 0
  %1258 = vmatprep.subr.bf16.mxu0 0
  %1259 = vmatpush1.bf16.msra.mxu0 0
  %1260 = vmatprep.subr.bf16.mxu0 0
  %1261 = vmatpush1.bf16.msra.mxu0 0
  %1262 = vmatprep.subr.bf16.mxu0 0
  %1263 = vmatpush1.bf16.msra.mxu0 0
  %1264 = vmatprep.subr.bf16.mxu0 0
  %1265 = vmatpush1.bf16.msra.mxu0 0
  %1266 = vmatprep.subr.bf16.mxu0 0
  %1267 = vmatpush1.bf16.msra.mxu0 0
  %1268 = vmatprep.mubr.bf16.mxu0 0
  %1269 = vmatmul.mubr.bf16.gmra.mrb[0].mxu0 %v1234
  %v1270 = vpop.f32.mrb[0].mxu0
  %v1271 = vadd.f32 0.0, %v1270
  %v1272 = vpop.f32.mrb[0].mxu0
  %v1273 = vadd.f32 0.0, %v1272
  %v1274 = vpop.f32.mrb[0].mxu0
  %v1275 = vpop.f32.mrb[0].mxu0
  %1276 = vdwg.mxu0
  %1277 = vmatprep.subr.bf16.mxu0 %v1204
  %1278 = vmatpush1.bf16.msra.mxu0 %v1203
  %1279 = vmatprep.subr.bf16.mxu0 %v1208
  %1280 = vmatpush1.bf16.msra.mxu0 %v1207
  %1281 = vmatprep.subr.bf16.mxu0 %v1212
  %1282 = vmatpush1.bf16.msra.mxu0 %v1211
  %1283 = vmatprep.subr.bf16.mxu0 %v1216
  %1284 = vmatpush1.bf16.msra.mxu0 %v1215
  %1285 = vmatprep.subr.bf16.mxu0 0
  %1286 = vmatpush1.bf16.msra.mxu0 0
  %1287 = vmatprep.subr.bf16.mxu0 0
  %1288 = vmatpush1.bf16.msra.mxu0 0
  %1289 = vmatprep.subr.bf16.mxu0 0
  %1290 = vmatpush1.bf16.msra.mxu0 0
  %1291 = vmatprep.subr.bf16.mxu0 0
  %1292 = vmatpush1.bf16.msra.mxu0 0
  %1293 = vmatprep.subr.bf16.mxu0 0
  %1294 = vmatpush1.bf16.msra.mxu0 0
  %1295 = vmatprep.subr.bf16.mxu0 0
  %1296 = vmatpush1.bf16.msra.mxu0 0
  %1297 = vmatprep.subr.bf16.mxu0 0
  %1298 = vmatpush1.bf16.msra.mxu0 0
  %1299 = vmatprep.subr.bf16.mxu0 0
  %1300 = vmatpush1.bf16.msra.mxu0 0
  %1301 = vmatprep.subr.bf16.mxu0 0
  %1302 = vmatpush1.bf16.msra.mxu0 0
  %1303 = vmatprep.subr.bf16.mxu0 0
  %1304 = vmatpush1.bf16.msra.mxu0 0
  %1305 = vmatprep.subr.bf16.mxu0 0
  %1306 = vmatpush1.bf16.msra.mxu0 0
  %1307 = vmatprep.subr.bf16.mxu0 0
  %1308 = vmatpush1.bf16.msra.mxu0 0
  %1309 = vmatprep.mubr.bf16.mxu0 0
  %1310 = vmatmul.mubr.bf16.gmra.mrb[0].mxu0 %v1234
  %v1311 = vpop.f32.mrb[0].mxu0
  %v1312 = vadd.f32 0.0, %v1311
  %v1313 = vpop.f32.mrb[0].mxu0
  %v1314 = vadd.f32 0.0, %v1313
  %v1315 = vpop.f32.mrb[0].mxu0
  %v1316 = vpop.f32.mrb[0].mxu0
  %1317 = vdwg.mxu0
  %v1318 = vadd.f32 %v1130, %v1271
  %v1319 = vadd.f32 %v1131, %v1273
  %v1320 = vadd.f32 %v1132, %v1312
  %v1321 = vadd.f32 %v1133, %v1314
  %s1322 = scalar_lea.vmem %s1, 14
  %v1323 = vld [vmem:[%s1322] sm:$0x3]
  %s1324 = scalar_lea.vmem %s0, 896
  %v1325 = vld [vmem:[%s1324] sm:$0xff]
  %v1326 = vld [vmem:[%s1324 + $0x8] sm:$0xff]
  %v1327 = vld [vmem:[%s1324 + $0x10] sm:$0xff]
  %v1328 = vld [vmem:[%s1324 + $0x18] sm:$0xff]
  %v1329 = vld [vmem:[%s1324 + $0x20] sm:$0xff]
  %v1330 = vld [vmem:[%s1324 + $0x28] sm:$0xff]
  %v1331 = vld [vmem:[%s1324 + $0x30] sm:$0xff]
  %v1332 = vld [vmem:[%s1324 + $0x38] sm:$0xff]
  %v1333 = vld [vmem:[%s1324 + $0x40] sm:$0xff]
  %v1334 = vld [vmem:[%s1324 + $0x48] sm:$0xff]
  %v1335 = vld [vmem:[%s1324 + $0x50] sm:$0xff]
  %v1336 = vld [vmem:[%s1324 + $0x58] sm:$0xff]
  %v1337 = vld [vmem:[%s1324 + $0x60] sm:$0xff]
  %v1338 = vld [vmem:[%s1324 + $0x68] sm:$0xff]
  %v1339 = vld [vmem:[%s1324 + $0x70] sm:$0xff]
  %v1340 = vld [vmem:[%s1324 + $0x78] sm:$0xff]
  %v1357 = vunpack.c.l.b16 %v1325
  %v1358 = vunpack.c.h.b16 %v1325
  %v1359 = vunpack.c.l.b16 %v1326
  %v1360 = vunpack.c.h.b16 %v1326
  %v1361 = vunpack.c.l.b16 %v1327
  %v1362 = vunpack.c.h.b16 %v1327
  %v1363 = vunpack.c.l.b16 %v1328
  %v1364 = vunpack.c.h.b16 %v1328
  %v1365 = vunpack.c.l.b16 %v1329
  %v1366 = vunpack.c.h.b16 %v1329
  %v1367 = vunpack.c.l.b16 %v1330
  %v1368 = vunpack.c.h.b16 %v1330
  %v1369 = vunpack.c.l.b16 %v1331
  %v1370 = vunpack.c.h.b16 %v1331
  %v1371 = vunpack.c.l.b16 %v1332
  %v1372 = vunpack.c.h.b16 %v1332
  %v1373 = vunpack.c.l.b16 %v1333
  %v1374 = vunpack.c.h.b16 %v1333
  %v1375 = vunpack.c.l.b16 %v1334
  %v1376 = vunpack.c.h.b16 %v1334
  %v1377 = vunpack.c.l.b16 %v1335
  %v1378 = vunpack.c.h.b16 %v1335
  %v1379 = vunpack.c.l.b16 %v1336
  %v1380 = vunpack.c.h.b16 %v1336
  %v1381 = vunpack.c.l.b16 %v1337
  %v1382 = vunpack.c.h.b16 %v1337
  %v1383 = vunpack.c.l.b16 %v1338
  %v1384 = vunpack.c.h.b16 %v1338
  %v1385 = vunpack.c.l.b16 %v1339
  %v1386 = vunpack.c.h.b16 %v1339
  %v1387 = vunpack.c.l.b16 %v1340
  %v1388 = vunpack.c.h.b16 %v1340
  %v1389 = vpack.c.b16 %v1361, %v1357
  %v1390 = vpack.c.b16 %v1362, %v1358
  %v1391 = vpack.c.b16 %v1363, %v1359
  %v1392 = vpack.c.b16 %v1364, %v1360
  %v1393 = vpack.c.b16 %v1369, %v1365
  %v1394 = vpack.c.b16 %v1370, %v1366
  %v1395 = vpack.c.b16 %v1371, %v1367
  %v1396 = vpack.c.b16 %v1372, %v1368
  %v1397 = vpack.c.b16 %v1377, %v1373
  %v1398 = vpack.c.b16 %v1378, %v1374
  %v1399 = vpack.c.b16 %v1379, %v1375
  %v1400 = vpack.c.b16 %v1380, %v1376
  %v1401 = vpack.c.b16 %v1385, %v1381
  %v1402 = vpack.c.b16 %v1386, %v1382
  %v1403 = vpack.c.b16 %v1387, %v1383
  %v1404 = vpack.c.b16 %v1388, %v1384
  %v1422 = vsel %vm131, %v1323, 0
  %1424 = vmatprep.subr.bf16.mxu0 %v1390
  %1425 = vmatpush1.bf16.msra.mxu0 %v1389
  %1426 = vmatprep.subr.bf16.mxu0 %v1394
  %1427 = vmatpush1.bf16.msra.mxu0 %v1393
  %1428 = vmatprep.subr.bf16.mxu0 %v1398
  %1429 = vmatpush1.bf16.msra.mxu0 %v1397
  %1430 = vmatprep.subr.bf16.mxu0 %v1402
  %1431 = vmatpush1.bf16.msra.mxu0 %v1401
  %1432 = vmatprep.subr.bf16.mxu0 0
  %1433 = vmatpush1.bf16.msra.mxu0 0
  %1434 = vmatprep.subr.bf16.mxu0 0
  %1435 = vmatpush1.bf16.msra.mxu0 0
  %1436 = vmatprep.subr.bf16.mxu0 0
  %1437 = vmatpush1.bf16.msra.mxu0 0
  %1438 = vmatprep.subr.bf16.mxu0 0
  %1439 = vmatpush1.bf16.msra.mxu0 0
  %1440 = vmatprep.subr.bf16.mxu0 0
  %1441 = vmatpush1.bf16.msra.mxu0 0
  %1442 = vmatprep.subr.bf16.mxu0 0
  %1443 = vmatpush1.bf16.msra.mxu0 0
  %1444 = vmatprep.subr.bf16.mxu0 0
  %1445 = vmatpush1.bf16.msra.mxu0 0
  %1446 = vmatprep.subr.bf16.mxu0 0
  %1447 = vmatpush1.bf16.msra.mxu0 0
  %1448 = vmatprep.subr.bf16.mxu0 0
  %1449 = vmatpush1.bf16.msra.mxu0 0
  %1450 = vmatprep.subr.bf16.mxu0 0
  %1451 = vmatpush1.bf16.msra.mxu0 0
  %1452 = vmatprep.subr.bf16.mxu0 0
  %1453 = vmatpush1.bf16.msra.mxu0 0
  %1454 = vmatprep.subr.bf16.mxu0 0
  %1455 = vmatpush1.bf16.msra.mxu0 0
  %1456 = vmatprep.mubr.bf16.mxu0 0
  %1457 = vmatmul.mubr.bf16.gmra.mrb[0].mxu0 %v1422
  %v1458 = vpop.f32.mrb[0].mxu0
  %v1459 = vadd.f32 0.0, %v1458
  %v1460 = vpop.f32.mrb[0].mxu0
  %v1461 = vadd.f32 0.0, %v1460
  %v1462 = vpop.f32.mrb[0].mxu0
  %v1463 = vpop.f32.mrb[0].mxu0
  %1464 = vdwg.mxu0
  %1465 = vmatprep.subr.bf16.mxu0 %v1392
  %1466 = vmatpush1.bf16.msra.mxu0 %v1391
  %1467 = vmatprep.subr.bf16.mxu0 %v1396
  %1468 = vmatpush1.bf16.msra.mxu0 %v1395
  %1469 = vmatprep.subr.bf16.mxu0 %v1400
  %1470 = vmatpush1.bf16.msra.mxu0 %v1399
  %1471 = vmatprep.subr.bf16.mxu0 %v1404
  %1472 = vmatpush1.bf16.msra.mxu0 %v1403
  %1473 = vmatprep.subr.bf16.mxu0 0
  %1474 = vmatpush1.bf16.msra.mxu0 0
  %1475 = vmatprep.subr.bf16.mxu0 0
  %1476 = vmatpush1.bf16.msra.mxu0 0
  %1477 = vmatprep.subr.bf16.mxu0 0
  %1478 = vmatpush1.bf16.msra.mxu0 0
  %1479 = vmatprep.subr.bf16.mxu0 0
  %1480 = vmatpush1.bf16.msra.mxu0 0
  %1481 = vmatprep.subr.bf16.mxu0 0
  %1482 = vmatpush1.bf16.msra.mxu0 0
  %1483 = vmatprep.subr.bf16.mxu0 0
  %1484 = vmatpush1.bf16.msra.mxu0 0
  %1485 = vmatprep.subr.bf16.mxu0 0
  %1486 = vmatpush1.bf16.msra.mxu0 0
  %1487 = vmatprep.subr.bf16.mxu0 0
  %1488 = vmatpush1.bf16.msra.mxu0 0
  %1489 = vmatprep.subr.bf16.mxu0 0
  %1490 = vmatpush1.bf16.msra.mxu0 0
  %1491 = vmatprep.subr.bf16.mxu0 0
  %1492 = vmatpush1.bf16.msra.mxu0 0
  %1493 = vmatprep.subr.bf16.mxu0 0
  %1494 = vmatpush1.bf16.msra.mxu0 0
  %1495 = vmatprep.subr.bf16.mxu0 0
  %1496 = vmatpush1.bf16.msra.mxu0 0
  %1497 = vmatprep.mubr.bf16.mxu0 0
  %1498 = vmatmul.mubr.bf16.gmra.mrb[0].mxu0 %v1422
  %v1499 = vpop.f32.mrb[0].mxu0
  %v1500 = vadd.f32 0.0, %v1499
  %v1501 = vpop.f32.mrb[0].mxu0
  %v1502 = vadd.f32 0.0, %v1501
  %v1503 = vpop.f32.mrb[0].mxu0
  %v1504 = vpop.f32.mrb[0].mxu0
  %1505 = vdwg.mxu0
  %v1506 = vadd.f32 %v1318, %v1459
  %v1507 = vadd.f32 %v1319, %v1461
  %v1508 = vadd.f32 %v1320, %v1500
  %v1509 = vadd.f32 %v1321, %v1502
  %s1510 = scalar_lea.vmem %s1, 16
  %v1511 = vld [vmem:[%s1510] sm:$0x3]
  %s1512 = scalar_lea.vmem %s0, 1024
  %v1513 = vld [vmem:[%s1512] sm:$0xff]
  %v1514 = vld [vmem:[%s1512 + $0x8] sm:$0xff]
  %v1515 = vld [vmem:[%s1512 + $0x10] sm:$0xff]
  %v1516 = vld [vmem:[%s1512 + $0x18] sm:$0xff]
  %v1517 = vld [vmem:[%s1512 + $0x20] sm:$0xff]
  %v1518 = vld [vmem:[%s1512 + $0x28] sm:$0xff]
  %v1519 = vld [vmem:[%s1512 + $0x30] sm:$0xff]
  %v1520 = vld [vmem:[%s1512 + $0x38] sm:$0xff]
  %v1521 = vld [vmem:[%s1512 + $0x40] sm:$0xff]
  %v1522 = vld [vmem:[%s1512 + $0x48] sm:$0xff]
  %v1523 = vld [vmem:[%s1512 + $0x50] sm:$0xff]
  %v1524 = vld [vmem:[%s1512 + $0x58] sm:$0xff]
  %v1525 = vld [vmem:[%s1512 + $0x60] sm:$0xff]
  %v1526 = vld [vmem:[%s1512 + $0x68] sm:$0xff]
  %v1527 = vld [vmem:[%s1512 + $0x70] sm:$0xff]
  %v1528 = vld [vmem:[%s1512 + $0x78] sm:$0xff]
  %v1545 = vunpack.c.l.b16 %v1513
  %v1546 = vunpack.c.h.b16 %v1513
  %v1547 = vunpack.c.l.b16 %v1514
  %v1548 = vunpack.c.h.b16 %v1514
  %v1549 = vunpack.c.l.b16 %v1515
  %v1550 = vunpack.c.h.b16 %v1515
  %v1551 = vunpack.c.l.b16 %v1516
  %v1552 = vunpack.c.h.b16 %v1516
  %v1553 = vunpack.c.l.b16 %v1517
  %v1554 = vunpack.c.h.b16 %v1517
  %v1555 = vunpack.c.l.b16 %v1518
  %v1556 = vunpack.c.h.b16 %v1518
  %v1557 = vunpack.c.l.b16 %v1519
  %v1558 = vunpack.c.h.b16 %v1519
  %v1559 = vunpack.c.l.b16 %v1520
  %v1560 = vunpack.c.h.b16 %v1520
  %v1561 = vunpack.c.l.b16 %v1521
  %v1562 = vunpack.c.h.b16 %v1521
  %v1563 = vunpack.c.l.b16 %v1522
  %v1564 = vunpack.c.h.b16 %v1522
  %v1565 = vunpack.c.l.b16 %v1523
  %v1566 = vunpack.c.h.b16 %v1523
  %v1567 = vunpack.c.l.b16 %v1524
  %v1568 = vunpack.c.h.b16 %v1524
  %v1569 = vunpack.c.l.b16 %v1525
  %v1570 = vunpack.c.h.b16 %v1525
  %v1571 = vunpack.c.l.b16 %v1526
  %v1572 = vunpack.c.h.b16 %v1526
  %v1573 = vunpack.c.l.b16 %v1527
  %v1574 = vunpack.c.h.b16 %v1527
  %v1575 = vunpack.c.l.b16 %v1528
  %v1576 = vunpack.c.h.b16 %v1528
  %v1577 = vpack.c.b16 %v1549, %v1545
  %v1578 = vpack.c.b16 %v1550, %v1546
  %v1579 = vpack.c.b16 %v1551, %v1547
  %v1580 = vpack.c.b16 %v1552, %v1548
  %v1581 = vpack.c.b16 %v1557, %v1553
  %v1582 = vpack.c.b16 %v1558, %v1554
  %v1583 = vpack.c.b16 %v1559, %v1555
  %v1584 = vpack.c.b16 %v1560, %v1556
  %v1585 = vpack.c.b16 %v1565, %v1561
  %v1586 = vpack.c.b16 %v1566, %v1562
  %v1587 = vpack.c.b16 %v1567, %v1563
  %v1588 = vpack.c.b16 %v1568, %v1564
  %v1589 = vpack.c.b16 %v1573, %v1569
  %v1590 = vpack.c.b16 %v1574, %v1570
  %v1591 = vpack.c.b16 %v1575, %v1571
  %v1592 = vpack.c.b16 %v1576, %v1572
  %v1610 = vsel %vm131, %v1511, 0
  %1612 = vmatprep.subr.bf16.mxu0 %v1578
  %1613 = vmatpush1.bf16.msra.mxu0 %v1577
  %1614 = vmatprep.subr.bf16.mxu0 %v1582
  %1615 = vmatpush1.bf16.msra.mxu0 %v1581
  %1616 = vmatprep.subr.bf16.mxu0 %v1586
  %1617 = vmatpush1.bf16.msra.mxu0 %v1585
  %1618 = vmatprep.subr.bf16.mxu0 %v1590
  %1619 = vmatpush1.bf16.msra.mxu0 %v1589
  %1620 = vmatprep.subr.bf16.mxu0 0
  %1621 = vmatpush1.bf16.msra.mxu0 0
  %1622 = vmatprep.subr.bf16.mxu0 0
  %1623 = vmatpush1.bf16.msra.mxu0 0
  %1624 = vmatprep.subr.bf16.mxu0 0
  %1625 = vmatpush1.bf16.msra.mxu0 0
  %1626 = vmatprep.subr.bf16.mxu0 0
  %1627 = vmatpush1.bf16.msra.mxu0 0
  %1628 = vmatprep.subr.bf16.mxu0 0
  %1629 = vmatpush1.bf16.msra.mxu0 0
  %1630 = vmatprep.subr.bf16.mxu0 0
  %1631 = vmatpush1.bf16.msra.mxu0 0
  %1632 = vmatprep.subr.bf16.mxu0 0
  %1633 = vmatpush1.bf16.msra.mxu0 0
  %1634 = vmatprep.subr.bf16.mxu0 0
  %1635 = vmatpush1.bf16.msra.mxu0 0
  %1636 = vmatprep.subr.bf16.mxu0 0
  %1637 = vmatpush1.bf16.msra.mxu0 0
  %1638 = vmatprep.subr.bf16.mxu0 0
  %1639 = vmatpush1.bf16.msra.mxu0 0
  %1640 = vmatprep.subr.bf16.mxu0 0
  %1641 = vmatpush1.bf16.msra.mxu0 0
  %1642 = vmatprep.subr.bf16.mxu0 0
  %1643 = vmatpush1.bf16.msra.mxu0 0
  %1644 = vmatprep.mubr.bf16.mxu0 0
  %1645 = vmatmul.mubr.bf16.gmra.mrb[0].mxu0 %v1610
  %v1646 = vpop.f32.mrb[0].mxu0
  %v1647 = vadd.f32 0.0, %v1646
  %v1648 = vpop.f32.mrb[0].mxu0
  %v1649 = vadd.f32 0.0, %v1648
  %v1650 = vpop.f32.mrb[0].mxu0
  %v1651 = vpop.f32.mrb[0].mxu0
  %1652 = vdwg.mxu0
  %1653 = vmatprep.subr.bf16.mxu0 %v1580
  %1654 = vmatpush1.bf16.msra.mxu0 %v1579
  %1655 = vmatprep.subr.bf16.mxu0 %v1584
  %1656 = vmatpush1.bf16.msra.mxu0 %v1583
  %1657 = vmatprep.subr.bf16.mxu0 %v1588
  %1658 = vmatpush1.bf16.msra.mxu0 %v1587
  %1659 = vmatprep.subr.bf16.mxu0 %v1592
  %1660 = vmatpush1.bf16.msra.mxu0 %v1591
  %1661 = vmatprep.subr.bf16.mxu0 0
  %1662 = vmatpush1.bf16.msra.mxu0 0
  %1663 = vmatprep.subr.bf16.mxu0 0
  %1664 = vmatpush1.bf16.msra.mxu0 0
  %1665 = vmatprep.subr.bf16.mxu0 0
  %1666 = vmatpush1.bf16.msra.mxu0 0
  %1667 = vmatprep.subr.bf16.mxu0 0
  %1668 = vmatpush1.bf16.msra.mxu0 0
  %1669 = vmatprep.subr.bf16.mxu0 0
  %1670 = vmatpush1.bf16.msra.mxu0 0
  %1671 = vmatprep.subr.bf16.mxu0 0
  %1672 = vmatpush1.bf16.msra.mxu0 0
  %1673 = vmatprep.subr.bf16.mxu0 0
  %1674 = vmatpush1.bf16.msra.mxu0 0
  %1675 = vmatprep.subr.bf16.mxu0 0
  %1676 = vmatpush1.bf16.msra.mxu0 0
  %1677 = vmatprep.subr.bf16.mxu0 0
  %1678 = vmatpush1.bf16.msra.mxu0 0
  %1679 = vmatprep.subr.bf16.mxu0 0
  %1680 = vmatpush1.bf16.msra.mxu0 0
  %1681 = vmatprep.subr.bf16.mxu0 0
  %1682 = vmatpush1.bf16.msra.mxu0 0
  %1683 = vmatprep.subr.bf16.mxu0 0
  %1684 = vmatpush1.bf16.msra.mxu0 0
  %1685 = vmatprep.mubr.bf16.mxu0 0
  %1686 = vmatmul.mubr.bf16.gmra.mrb[0].mxu0 %v1610
  %v1687 = vpop.f32.mrb[0].mxu0
  %v1688 = vadd.f32 0.0, %v1687
  %v1689 = vpop.f32.mrb[0].mxu0
  %v1690 = vadd.f32 0.0, %v1689
  %v1691 = vpop.f32.mrb[0].mxu0
  %v1692 = vpop.f32.mrb[0].mxu0
  %1693 = vdwg.mxu0
  %v1694 = vadd.f32 %v1506, %v1647
  %v1695 = vadd.f32 %v1507, %v1649
  %v1696 = vadd.f32 %v1508, %v1688
  %v1697 = vadd.f32 %v1509, %v1690
  %v1698 = vld [vmem:[%s2] sm:$0xf]
  %1700 = vset.pattern.permute.xlu0 0
  %1701 = vperm.xlu0 %1700, %v1698
  %v1702 = vpop.permute.xlu0 %1701
  %v1704 = vadd.f32 %v1694, %v1702
  %v1705 = vadd.f32 %v1695, %v1702
  %v1706 = vadd.f32 %v1696, %v1702
  %v1707 = vadd.f32 %v1697, %v1702
  %v1708 = vtanh.pop %v1704
  %v1709 = vtanh.pop %v1705
  %v1710 = vtanh.pop %v1706
  %v1711 = vtanh.pop %v1707
  %v1716 = vcombine.low %v1708, %v1709
  %v1717 = vcombine.low %v1710, %v1711
  %1720 = vst [vmem:[%s3] sm:$0xff] %v1716
  %1721 = vst [vmem:[%s3 + $0x8] sm:$0xff] %v1717
  // Predicated region
  $region14: #{generator_forward.7} parent=0 // pred_check
    _
  $region15: #{generator_forward.7} parent=0 // pred_check_branch
    %1723 = sbr.rel (0) target = $region17
  $region16: #{generator_forward.7} parent=0 // pred_region
    _
  $region17: #{generator_forward.7} parent=0 // pred_fallthru
    _
  // Predicated region
  $region18: #{generator_forward.7} parent=0 // pred_check
    _
  $region19: #{generator_forward.7} parent=0 // pred_check_branch
    %1725 = sbr.rel (0) target = $region21
  $region20: #{generator_forward.7} parent=0 // pred_region
    _
  $region21: #{generator_forward.7} parent=0 // pred_fallthru
    _

</llo_original>
